<compile_context>
chip_gen: v7x
topology: tpu7x:2x2x1
jax: 0.10.0
libtpu: 0.0.40
codegen_flags: <defaults>
</compile_context>

<pallas_src>
import functools

import numpy as np
import jax
import jax.numpy as jnp
from jax import lax
from jax.experimental import pallas as pl
from jax.experimental.pallas import tpu as pltpu

# ----------------------------- configuration -------------------------------
C1, C2, C3, C4 = 8, 16, 32, 64          # stand-in backbone channels
RD = 32                                  # reduce_dim (orig 256)
CLASSES = 2
PPM = [5, 3, 2]                          # pyramid_bins (orig [60, 15, 8])
SHOT = 1
FEA_DIM = C3 + C2                        # 1024 + 512 in the original
ZOOM_FACTOR = 8


def _round_up(v, m):
    return (v + m - 1) // m * m


# ============ Pallas kernel 1a: single-K-step fused matmul+bias+ReLU ========
def _mm_single_kernel(a_ref, w_ref, b_ref, o_ref, *, relu):
    acc = jnp.dot(a_ref[...], w_ref[...], preferred_element_type=jnp.float32)
    acc = acc + b_ref[...]
    if relu:
        acc = jnp.maximum(acc, 0.0)
    o_ref[...] = acc


# ============ Pallas kernel 1b: K-tiled accumulated matmul+bias+ReLU ========
def _mm_acc_kernel(a_ref, w_ref, b_ref, o_ref, acc_ref, *, relu, n_k):
    @pl.when(pl.program_id(2) == 0)
    def _init():
        acc_ref[...] = jnp.zeros_like(acc_ref)

    acc_ref[...] += jnp.dot(a_ref[...], w_ref[...],
                            preferred_element_type=jnp.float32)

    @pl.when(pl.program_id(2) == n_k - 1)
    def _finalize():
        acc = acc_ref[...] + b_ref[...]          # bias/ReLU exactly once
        if relu:
            acc = jnp.maximum(acc, 0.0)
        o_ref[...] = acc


def matmul_bias_act(a, w_p, b_p, *, relu):
    """a:(M,K), w_p:(Kp,Np) bf16 pre-padded at init, b_p:(1,Np) f32.
    Returns the full padded (Mp,Np) f32 result (caller slices)."""
    M, K = a.shape
    Kp, Np = w_p.shape
    tm = 256 if M >= 256 else _round_up(max(M, 1), 8)
    tn = 256 if Np % 256 == 0 else 128
    tk = Kp if Kp <= 512 else 512
    Mp = _round_up(M, tm)
    nk = Kp // tk

    a = a.astype(jnp.bfloat16)
    if (Mp, Kp) != (M, K):                       # only M / ragged-K edge padded
        a = jnp.pad(a, ((0, Mp - M), (0, Kp - K)))

    if nk == 1:                                  # fast path: no scratch, no when
        return pl.pallas_call(
            functools.partial(_mm_single_kernel, relu=relu),
            grid=(Mp // tm, Np // tn),
            in_specs=[pl.BlockSpec((tm, Kp), lambda i, j: (i, 0)),
                      pl.BlockSpec((Kp, tn), lambda i, j: (0, j)),
                      pl.BlockSpec((1, tn), lambda i, j: (0, j))],
            out_specs=pl.BlockSpec((tm, tn), lambda i, j: (i, j)),
            out_shape=jax.ShapeDtypeStruct((Mp, Np), jnp.float32),
            compiler_params=pltpu.CompilerParams(
                dimension_semantics=("parallel", "parallel")),
        )(a, w_p, b_p)

    return pl.pallas_call(
        functools.partial(_mm_acc_kernel, relu=relu, n_k=nk),
        grid=(Mp // tm, Np // tn, nk),
        in_specs=[pl.BlockSpec((tm, tk), lambda i, j, k: (i, k)),
                  pl.BlockSpec((tk, tn), lambda i, j, k: (k, j)),
                  pl.BlockSpec((1, tn), lambda i, j, k: (0, j))],
        out_specs=pl.BlockSpec((tm, tn), lambda i, j, k: (i, j)),
        out_shape=jax.ShapeDtypeStruct((Mp, Np), jnp.float32),
        scratch_shapes=[pltpu.VMEM((tm, tn), jnp.float32)],
        compiler_params=pltpu.CompilerParams(
            dimension_semantics=("parallel", "parallel", "arbitrary")),
    )(a, w_p, b_p)


# ============ Pallas kernel 1c: grouped matmul (3 convs, one launch) ========
def _grouped_mm_kernel(a_ref, w_ref, b_ref, o_ref, *, relu):
    acc = jnp.dot(a_ref[0], w_ref[0], preferred_element_type=jnp.float32)
    acc = acc + b_ref[0]
    if relu:
        acc = jnp.maximum(acc, 0.0)
    o_ref[0] = acc


def grouped_matmul_bias_act(a, w_p, b_p, *, relu):
    """a:(G,M,K), w_p:(G,Kp,Np) bf16, b_p:(G,1,Np) f32.  Single pallas_call
    whose leading grid axis batches over the G independent GEMMs."""
    G, M, K = a.shape
    _, Kp, Np = w_p.shape
    assert Kp <= 512, "grouped path requires a single K step"
    tm = 256 if M >= 256 else _round_up(max(M, 1), 8)
    tn = 256 if Np % 256 == 0 else 128
    Mp = _round_up(M, tm)

    a = a.astype(jnp.bfloat16)
    if (Mp, Kp) != (M, K):
        a = jnp.pad(a, ((0, 0), (0, Mp - M), (0, Kp - K)))

    return pl.pallas_call(
        functools.partial(_grouped_mm_kernel, relu=relu),
        grid=(G, Mp // tm, Np // tn),
        in_specs=[pl.BlockSpec((1, tm, Kp), lambda g, i, j: (g, i, 0)),
                  pl.BlockSpec((1, Kp, tn), lambda g, i, j: (g, 0, j)),
                  pl.BlockSpec((1, 1, tn), lambda g, i, j: (g, 0, j))],
        out_specs=pl.BlockSpec((1, tm, tn), lambda g, i, j: (g, i, j)),
        out_shape=jax.ShapeDtypeStruct((G, Mp, Np), jnp.float32),
        compiler_params=pltpu.CompilerParams(
            dimension_semantics=("parallel", "parallel", "parallel")),
    )(a, w_p, b_p)


# ==================== Pallas kernel 2: max-cosine correlation ================
def _corr_kernel(s_ref, q_ref, o_ref, *, eps):
    s = s_ref[0]                                              # (Ls, C)
    q = q_ref[0]                                              # (tq, C)
    sn = jnp.sqrt(jnp.sum(s * s, axis=1, keepdims=True))      # (Ls, 1)
    qn = jnp.sqrt(jnp.sum(q * q, axis=1, keepdims=True))      # (tq, 1)
    s_n = s / (sn + eps)                                      # normalise pre-dot
    q_n = q / (qn + eps)
    sim = lax.dot_general(s_n, q_n, (((1,), (1,)), ((), ())),
                          preferred_element_type=jnp.float32)  # (Ls, tq)
    o_ref[0] = jnp.max(sim, axis=0, keepdims=True)             # max over support


def cosine_corr(q4, s4m, eps):
    """q4, s4m: NHWC (B,H,W,C).  Returns min/max-normalised max cosine
    similarity (B, H*W), matching the PyTorch bmm/max/min-max sequence."""
    B, H, W, C = q4.shape
    L = H * W
    tq = 512 if L > 512 else 128
    Lp = _round_up(L, tq)                         # lane-dense, tiled Lq axis
    q = q4.reshape(B, L, C)
    s = s4m.reshape(B, L, C)
    if Lp != L:
        q = jnp.pad(q, ((0, 0), (0, Lp - L), (0, 0)))
    # TODO(synk): at the full-size config also tile Ls / cast to bf16 to stay
    # inside v7x's 64 MiB VMEM.
    raw = pl.pallas_call(
        functools.partial(_corr_kernel, eps=eps),
        grid=(B, Lp // tq),
        in_specs=[pl.BlockSpec((1, L, C), lambda b, t: (b, 0, 0)),
                  pl.BlockSpec((1, tq, C), lambda b, t: (b, t, 0))],
        out_specs=pl.BlockSpec((1, 1, tq), lambda b, t: (b, 0, t)),
        out_shape=jax.ShapeDtypeStruct((B, 1, Lp), jnp.float32),
        compiler_params=pltpu.CompilerParams(
            dimension_semantics=("parallel", "parallel")),
    )(s, q)
    sim = raw[:, 0, :L]                                        # (B, L)
    smin = jnp.min(sim, axis=1, keepdims=True)
    smax = jnp.max(sim, axis=1, keepdims=True)
    return (sim - smin) / (smax - smin + eps)


# ==================== Pallas kernel 3: Weighted_GAP ==========================
def _wgap_kernel(f_ref, m_ref, o_ref):
    f = f_ref[0]                                              # (HW, C)
    m = m_ref[0]                                              # (HW, 1)
    num = jnp.sum(f * m, axis=0, keepdims=True)               # (1, C)
    den = jnp.sum(m, axis=0, keepdims=True) + 0.0005          # (1, 1)
    o_ref[0] = num / den


def weighted_gap(feat, mask):
    """Weighted_GAP on NHWC: sum(feat*mask)/(sum(mask)+5e-4) -> (B,1,1,C)."""
    B, H, W, C = feat.shape
    f = feat.reshape(B, H * W, C)
    m = mask.reshape(B, H * W, 1)
    out = pl.pallas_call(
        _wgap_kernel,
        grid=(B,),
        in_specs=[pl.BlockSpec((1, H * W, C), lambda b: (b, 0, 0)),
                  pl.BlockSpec((1, H * W, 1), lambda b: (b, 0, 0))],
        out_specs=pl.BlockSpec((1, 1, C), lambda b: (b, 0, 0)),
        out_shape=jax.ShapeDtypeStruct((B, 1, C), jnp.float32),
        compiler_params=pltpu.CompilerParams(dimension_semantics=("parallel",)),
    )(f, m)
    return out.reshape(B, 1, 1, C)


# ============================ JAX glue ops ==================================
def _im2col_nhwc(x, k, stride, padding, dilation):
    B, H, W, C = x.shape
    xp = jnp.pad(x, ((0, 0), (padding, padding), (padding, padding), (0, 0)))
    oh = (H + 2 * padding - dilation * (k - 1) - 1) // stride + 1
    ow = (W + 2 * padding - dilation * (k - 1) - 1) // stride + 1
    cols = []
    for i in range(k):
        for j in range(k):
            hs, ws = i * dilation, j * dilation
            cols.append(xp[:, hs:hs + stride * (oh - 1) + 1:stride,
                              ws:ws + stride * (ow - 1) + 1:stride, :])
    col = jnp.concatenate(cols, axis=-1)           # (B, oh, ow, k*k*C)
    return col.reshape(B * oh * ow, k * k * C), oh, ow


def _conv_defs():
    d = {}

    def add(name, cout, cin, k, bias=True):
        d[name] = (cout, cin, k, bias)

    # stand-in backbone (see TODO in forward)
    add("l0", C1, 3, 3); add("l1", C1, C1, 3); add("l2", C2, C1, 3)
    add("l3", C3, C2, 3); add("l4", C4, C3, 3)
    add("dq", RD, FEA_DIM, 1)                                  # down_query
    for idx in range(len(PPM)):
        add(f"im{idx}", RD, 2 * RD + 1, 1)                     # init_merge
        add(f"bc{idx}a", RD, RD, 3); add(f"bc{idx}b", RD, RD, 3)   # beta_conv
        add(f"ic{idx}a", RD, RD, 3, bias=False); add(f"ic{idx}b", CLASSES, RD, 1)
    add("compa", RD, RD * len(PPM), 1); add("compb", RD, RD, 1)    # compressor
    add("res1a", RD, RD, 3); add("res1b", RD, RD, 3)
    add("res2a", RD, RD, 3); add("res2b", RD, RD, 3)
    add("l60", RD, RD, 1); add("l61", RD, RD, 1)
    add("l62", RD, RD, 3); add("l63", RD, RD, 3); add("l64", RD, RD, 3)
    add("clsa", RD, RD * 5, 3); add("clsb", CLASSES, RD, 1)
    return d


CONV_DEFS = _conv_defs()                 # static metadata (never traced by jit)


def conv2d(params, name, x, *, stride=1, padding=0, dilation=1, relu=False):
    """NHWC conv: 1x1 is a pure reshape; kxk uses channel-minor im2col; both
    feed the fused tiled Pallas matmul+bias+ReLU kernel."""
    cout, _cin, k, _bias = CONV_DEFS[name]
    B, H, W, Cin = x.shape
    if k == 1 and stride == 1 and padding == 0:
        a, oh, ow = x.reshape(B * H * W, Cin), H, W
    else:
        a, oh, ow = _im2col_nhwc(x, k, stride, padding, dilation)
    M = a.shape[0]
    out = matmul_bias_act(a, params[name + "_w"], params[name + "_b"], relu=relu)
    return out[:M, :cout].reshape(B, oh, ow, cout)


def layer6_dilated_group(params, x):
    """layer6_2/3/4: three independent 3x3 dilated convs on the same input,
    fused into ONE grouped Pallas GEMM (leading grid axis = conv index)."""
    B, H, W, Cin = x.shape
    cols = []
    for d in (6, 12, 18):
        a, oh, ow = _im2col_nhwc(x, 3, 1, d, d)
        cols.append(a)
    A = jnp.stack(cols, axis=0)                    # (3, M, K)
    M = A.shape[1]
    out = grouped_matmul_bias_act(A, params["l6d_w"], params["l6d_b"], relu=True)
    return [out[g, :M, :RD].reshape(B, oh, ow, RD) for g in range(3)]


@functools.lru_cache(maxsize=None)
def _interp_matrix(out_size, in_size):
    """align_corners=True bilinear interpolation matrix (out_size, in_size)."""
    pos = np.linspace(0.0, float(in_size - 1), out_size)
    i0 = np.clip(np.floor(pos).astype(np.int64), 0, in_size - 1)
    i1 = np.minimum(i0 + 1, in_size - 1)
    w1 = (pos - i0).astype(np.float32)
    mat = np.zeros((out_size, in_size), np.float32)
    mat[np.arange(out_size), i0] += 1.0 - w1
    mat[np.arange(out_size), i1] += w1
    return jnp.asarray(mat)


def bilinear_ac(x, out_h, out_w):
    """F.interpolate(mode='bilinear', align_corners=True) on NHWC as two
    small matmuls with precomputed weights (no gathers)."""
    B, H, W, C = x.shape
    if (out_h, out_w) == (H, W):                   # exact identity, skip
        return x
    wy = _interp_matrix(out_h, H)
    wx = _interp_matrix(out_w, W)
    y = jnp.einsum('oh,bhwc->bowc', wy, x)
    return jnp.einsum('pw,bowc->bopc', wx, y)


@functools.lru_cache(maxsize=None)
def _pool_matrix(out_size, in_size):
    mat = np.zeros((out_size, in_size), np.float32)
    for i in range(out_size):
        s = (i * in_size) // out_size
        e = -((-(i + 1) * in_size) // out_size)
        mat[i, s:e] = 1.0 / (e - s)
    return jnp.asarray(mat)


def adaptive_avg_pool2d(x, out_size):
    """PyTorch AdaptiveAvgPool2d on NHWC as separable averaging matmuls."""
    B, H, W, C = x.shape
    if out_size == H and out_size == W:
        return x
    ph = _pool_matrix(out_size, H)
    pw = _pool_matrix(out_size, W)
    y = jnp.einsum('oh,bhwc->bowc', ph, x)
    return jnp.einsum('pw,bowc->bopc', pw, y)


# ============================ parameters ====================================
def init_params(key):
    """Weights packed ONCE into (Kp,Np) bf16 matmul layout + f32 bias slab."""
    params = {}
    for name, (cout, cin, k, bias) in CONV_DEFS.items():
        key, kw_, kb_ = jax.random.split(key, 3)
        fan_in = cin * k * k
        w = (jax.random.normal(kw_, (cout, cin, k, k), jnp.float32)
             * np.sqrt(2.0 / fan_in))
        b = (jax.random.normal(kb_, (cout,), jnp.float32) * 0.01 if bias
             else jnp.zeros((cout,), jnp.float32))
        K = cin * k * k
        Kp = _round_up(K, 128) if K <= 512 else _round_up(K, 512)
        Np = _round_up(cout, 128)
        wm = jnp.transpose(w, (2, 3, 1, 0)).reshape(K, cout).astype(jnp.bfloat16)
        params[name + "_w"] = jnp.zeros((Kp, Np), jnp.bfloat16).at[:K, :cout].set(wm)
        params[name + "_b"] = jnp.zeros((1, Np), jnp.float32).at[0, :cout].set(b)
    # pre-stack the layer6_2/3/4 weights for the grouped GEMM (done once).
    params["l6d_w"] = jnp.stack([params["l62_w"], params["l63_w"], params["l64_w"]])
    params["l6d_b"] = jnp.stack([params["l62_b"], params["l63_b"], params["l64_b"]])
    return params


# ============================ forward pass ==================================
def sagnn_forward(p, x, s_x, s_y):
    """x: (B,3,H,W) query, s_x: (B,3,H,W) support (shot=1), s_y: (B,H,W) label.
    Dropout2d layers are inference identities.  Returns (B,classes,h,w)."""
    B, _, Hin, Win = x.shape
    h = int((Hin - 1) / 8 * ZOOM_FACTOR + 1)
    w = int((Win - 1) / 8 * ZOOM_FACTOR + 1)

    x_nhwc = jnp.transpose(x, (0, 2, 3, 1))
    s_nhwc = jnp.transpose(s_x, (0, 2, 3, 1))

    # TODO(synk): resnet.resnet50 pretrained backbone is an external dependency;
    # replaced by a deterministic conv stack with matching strides / dilations
    # (layer2 stride-8 output, layer3 dil=2, layer4 dil=4, same spatial).
    # Query + support (shot=1) batched through the shared frozen backbone:
    # identical math, half the Pallas launches, 2x the GEMM M dimension.
    both = jnp.concatenate([x_nhwc, s_nhwc], axis=0)            # (2B, H, W, 3)
    f0 = conv2d(p, "l0", both, stride=2, padding=1, relu=True)
    f1 = conv2d(p, "l1", f0, stride=2, padding=1, relu=True)
    f2 = conv2d(p, "l2", f1, stride=2, padding=1, relu=True)
    f3 = conv2d(p, "l3", f2, stride=1, padding=2, dilation=2, relu=True)
    q2, s2 = f2[:B], f2[B:]
    q3, s3 = f3[:B], f3[B:]

    mask_full = (s_y == 1.0).astype(jnp.float32)[:, :, :, None]   # (B,H,W,1)
    mask = bilinear_ac(mask_full, s3.shape[1], s3.shape[2])

    # layer4 for query (q3) and support (s3*mask) batched together.
    f4 = conv2d(p, "l4", jnp.concatenate([q3, s3 * mask], axis=0),
                stride=1, padding=4, dilation=4, relu=True)
    q4, s4 = f4[:B], f4[B:]

    # down_query on query and support feature concatenations, batched.
    dq_in = jnp.concatenate(
        [jnp.concatenate([q3, q2], axis=-1),
         jnp.concatenate([s3, s2], axis=-1)], axis=0)
    dq_out = conv2d(p, "dq", dq_in, relu=True)
    query_feat, supp_feat_full = dq_out[:B], dq_out[B:]

    supp_feat = weighted_gap(supp_feat_full, mask)                 # Pallas

    # ---------------- correlation mask (shot = 1) ----------------
    cosine_eps = 1e-7
    rs = s4.shape[1]
    tmp_mask = bilinear_ac(mask_full, rs, rs)
    s4m = s4 * tmp_mask
    sp = q4.shape[1]
    sim = cosine_corr(q4, s4m, cosine_eps)                         # Pallas
    corr_query = sim.reshape(B, sp, sp, 1)
    corr_query = bilinear_ac(corr_query, q3.shape[1], q3.shape[2])
    corr_query_mask = corr_query                                   # mean over 1 shot
    corr_query_mask = bilinear_ac(corr_query_mask,
                                  query_feat.shape[1], query_feat.shape[2])

    # ---------------- pyramid ----------------
    pyramid_feat_list = []
    for idx, b_sz in enumerate(PPM):
        qbin = adaptive_avg_pool2d(query_feat, b_sz)
        sbin = jnp.broadcast_to(supp_feat, (B, b_sz, b_sz, supp_feat.shape[-1]))
        cbin = bilinear_ac(corr_query_mask, b_sz, b_sz)
        merge = jnp.concatenate([qbin, sbin, cbin], axis=-1)
        merge = conv2d(p, f"im{idx}", merge, relu=True)
        merge = conv2d(p, f"bc{idx}a", merge, padding=1, relu=True)
        merge = conv2d(p, f"bc{idx}b", merge, padding=1, relu=True)
        # inner_cls aux heads do not contribute to the returned tensor
        # (dead code under jit); skipped.
        merge_up = bilinear_ac(merge, query_feat.shape[1], query_feat.shape[2])
        pyramid_feat_list.append(merge_up)

    # TODO(synk): MPNN2 message-passing module is not defined in the provided
    # source; shape-preserving pass-through of the pyramid features is used.
    Hf = pyramid_feat_list

    Hc = jnp.concatenate(Hf, axis=-1)
    Hc = conv2d(p, "compa", Hc, relu=True)
    Hc = conv2d(p, "compb", Hc, relu=True)
    Hc = conv2d(p, "res1b",
                conv2d(p, "res1a", Hc, padding=1, relu=True),
                padding=1, relu=True) + Hc
    Hc = conv2d(p, "res2b",
                conv2d(p, "res2a", Hc, padding=1, relu=True),
                padding=1, relu=True) + Hc

    gfeat = jnp.mean(Hc, axis=(1, 2), keepdims=True)           # global avg pool
    gfeat = conv2d(p, "l60", gfeat, relu=True)
    gfeat = jnp.broadcast_to(gfeat, (B, Hc.shape[1], Hc.shape[2], gfeat.shape[-1]))
    d6, d12, d18 = layer6_dilated_group(p, Hc)                  # fused 3-conv GEMM
    out = jnp.concatenate([
        gfeat,
        conv2d(p, "l61", Hc, relu=True),
        d6, d12, d18,
    ], axis=-1)
    out = conv2d(p, "clsa", out, padding=1, relu=True)         # K-tiled GEMM here
    out = conv2d(p, "clsb", out, relu=False)
    if ZOOM_FACTOR != 1:
        out = bilinear_ac(out, h, w)
    return jnp.transpose(out, (0, 3, 1, 2))                    # back to NCHW


# ================================ main ======================================
if __name__ == "__main__":
    key = jax.random.PRNGKey(0)
    kparams, kx, ks, ky = jax.random.split(key, 4)
    params = init_params(kparams)

    B, Hin, Win = 2, 33, 33            # 8*k + 1 spatial size (like 473 in original)
    x = jax.random.normal(kx, (B, 3, Hin, Win), jnp.float32)
    s_x = jax.random.normal(ks, (B, 3, Hin, Win), jnp.float32)
    s_y = (jax.random.uniform(ky, (B, Hin, Win)) > 0.5).astype(jnp.float32)

    out = jax.jit(sagnn_forward)(params, x, s_x, s_y)
    out = jax.block_until_ready(out)
    assert out.shape == (B, CLASSES, Hin, Win), out.shape
    assert bool(jnp.all(jnp.isfinite(out)))
    print("KERNEL_OK")
</pallas_src>

<mosaic_0001>
module attributes {stable_mosaic.version = 11 : i64} {
  func.func @_mm_single_kernel(%arg0: i32, %arg1: i32, %arg2: memref<256x128xbf16, #tpu.memory_space<vmem>>, %arg3: memref<128x128xbf16, #tpu.memory_space<vmem>>, %arg4: memref<1x128xf32, #tpu.memory_space<vmem>>, %arg5: memref<256x128xf32, #tpu.memory_space<vmem>>) attributes {dimension_semantics = [#tpu.dimension_semantics<parallel>, #tpu.dimension_semantics<parallel>], iteration_bounds = array<i64: 5, 1>, scalar_prefetch = 0 : i64, scratch_operands = 0 : i64, tpu.core_type = #tpu.core_type<tc>, window_params = [{transform_indices = @transform_0, window_bounds = array<i64: 256, 128>}, {transform_indices = @transform_1, window_bounds = array<i64: 128, 128>}, {transform_indices = @transform_2, window_bounds = array<i64: 1, 128>}, {transform_indices = @transform_3, window_bounds = array<i64: 256, 128>}]} {
    %c0 = arith.constant 0 : index
    %c0_0 = arith.constant 0 : index
    %0 = vector.load %arg2[%c0, %c0_0] : memref<256x128xbf16, #tpu.memory_space<vmem>>, vector<256x128xbf16>
    %c0_1 = arith.constant 0 : index
    %c0_2 = arith.constant 0 : index
    %1 = vector.load %arg3[%c0_1, %c0_2] : memref<128x128xbf16, #tpu.memory_space<vmem>>, vector<128x128xbf16>
    %cst = arith.constant dense<0.000000e+00> : vector<256x128xf32>
    %2 = tpu.matmul %0, %1, %cst {dimension_numbers = #tpu.dot_dimension_numbers<[1], [0], [0], [1], [0, 0, 1, 1], [], []>} : vector<256x128xbf16>, vector<128x128xbf16>, vector<256x128xf32> -> vector<256x128xf32>
    %c0_3 = arith.constant 0 : index
    %c0_4 = arith.constant 0 : index
    %3 = vector.load %arg4[%c0_3, %c0_4] : memref<1x128xf32, #tpu.memory_space<vmem>>, vector<1x128xf32>
    %4 = vector.broadcast %3 : vector<1x128xf32> to vector<256x128xf32>
    %5 = arith.addf %2, %4 : vector<256x128xf32>
    %cst_5 = arith.constant 0.000000e+00 : f32
    %6 = vector.broadcast %cst_5 : f32 to vector<256x128xf32>
    %7 = arith.maximumf %5, %6 : vector<256x128xf32>
    %c0_6 = arith.constant 0 : index
    %c0_7 = arith.constant 0 : index
    %8 = vector.load %arg5[%c0_6, %c0_7] : memref<256x128xf32, #tpu.memory_space<vmem>>, vector<256x128xf32>
    tpu.vector_store %arg5[%c0_6, %c0_7], %7 {strides = array<i32>} : memref<256x128xf32, #tpu.memory_space<vmem>>, vector<256x128xf32>,
    return
  }
  func.func @transform_0(%arg0: i32, %arg1: i32) -> (i32, i32) {
    %c0_i32 = arith.constant 0 : i32
    %c0_i32_0 = arith.constant 0 : i32
    return %arg0, %c0_i32 : i32, i32
  }
  func.func @transform_1(%arg0: i32, %arg1: i32) -> (i32, i32) {
    %c0_i32 = arith.constant 0 : i32
    %c0_i32_0 = arith.constant 0 : i32
    return %c0_i32, %arg1 : i32, i32
  }
  func.func @transform_2(%arg0: i32, %arg1: i32) -> (i32, i32) {
    %c0_i32 = arith.constant 0 : i32
    %c0_i32_0 = arith.constant 0 : i32
    return %c0_i32, %arg1 : i32, i32
  }
  func.func @transform_3(%arg0: i32, %arg1: i32) -> (i32, i32) {
    %c0_i32 = arith.constant 0 : i32
    return %arg0, %arg1 : i32, i32
  }
}

module attributes {stable_mosaic.version = 11 : i64} {
  func.func @_mm_single_kernel(%arg0: i32, %arg1: i32, %arg2: memref<256x128xbf16, #tpu.memory_space<vmem>>, %arg3: memref<128x128xbf16, #tpu.memory_space<vmem>>, %arg4: memref<1x128xf32, #tpu.memory_space<vmem>>, %arg5: memref<256x128xf32, #tpu.memory_space<vmem>>) attributes {dimension_semantics = [#tpu.dimension_semantics<parallel>, #tpu.dimension_semantics<parallel>], iteration_bounds = array<i64: 2, 1>, scalar_prefetch = 0 : i64, scratch_operands = 0 : i64, tpu.core_type = #tpu.core_type<tc>, window_params = [{transform_indices = @transform_0, window_bounds = array<i64: 256, 128>}, {transform_indices = @transform_1, window_bounds = array<i64: 128, 128>}, {transform_indices = @transform_2, window_bounds = array<i64: 1, 128>}, {transform_indices = @transform_3, window_bounds = array<i64: 256, 128>}]} {
    %c0 = arith.constant 0 : index
    %c0_0 = arith.constant 0 : index
    %0 = vector.load %arg2[%c0, %c0_0] : memref<256x128xbf16, #tpu.memory_space<vmem>>, vector<256x128xbf16>
    %c0_1 = arith.constant 0 : index
    %c0_2 = arith.constant 0 : index
    %1 = vector.load %arg3[%c0_1, %c0_2] : memref<128x128xbf16, #tpu.memory_space<vmem>>, vector<128x128xbf16>
    %cst = arith.constant dense<0.000000e+00> : vector<256x128xf32>
    %2 = tpu.matmul %0, %1, %cst {dimension_numbers = #tpu.dot_dimension_numbers<[1], [0], [0], [1], [0, 0, 1, 1], [], []>} : vector<256x128xbf16>, vector<128x128xbf16>, vector<256x128xf32> -> vector<256x128xf32>
    %c0_3 = arith.constant 0 : index
    %c0_4 = arith.constant 0 : index
    %3 = vector.load %arg4[%c0_3, %c0_4] : memref<1x128xf32, #tpu.memory_space<vmem>>, vector<1x128xf32>
    %4 = vector.broadcast %3 : vector<1x128xf32> to vector<256x128xf32>
    %5 = arith.addf %2, %4 : vector<256x128xf32>
    %cst_5 = arith.constant 0.000000e+00 : f32
    %6 = vector.broadcast %cst_5 : f32 to vector<256x128xf32>
    %7 = arith.maximumf %5, %6 : vector<256x128xf32>
    %c0_6 = arith.constant 0 : index
    %c0_7 = arith.constant 0 : index
    %8 = vector.load %arg5[%c0_6, %c0_7] : memref<256x128xf32, #tpu.memory_space<vmem>>, vector<256x128xf32>
    tpu.vector_store %arg5[%c0_6, %c0_7], %7 {strides = array<i32>} : memref<256x128xf32, #tpu.memory_space<vmem>>, vector<256x128xf32>,
    return
  }
  func.func @transform_0(%arg0: i32, %arg1: i32) -> (i32, i32) {
    %c0_i32 = arith.constant 0 : i32
    %c0_i32_0 = arith.constant 0 : i32
    return %arg0, %c0_i32 : i32, i32
  }
  func.func @transform_1(%arg0: i32, %arg1: i32) -> (i32, i32) {
    %c0_i32 = arith.constant 0 : i32
    %c0_i32_0 = arith.constant 0 : i32
    return %c0_i32, %arg1 : i32, i32
  }
  func.func @transform_2(%arg0: i32, %arg1: i32) -> (i32, i32) {
    %c0_i32 = arith.constant 0 : i32
    %c0_i32_0 = arith.constant 0 : i32
    return %c0_i32, %arg1 : i32, i32
  }
  func.func @transform_3(%arg0: i32, %arg1: i32) -> (i32, i32) {
    %c0_i32 = arith.constant 0 : i32
    return %arg0, %arg1 : i32, i32
  }
}

module attributes {stable_mosaic.version = 11 : i64} {
  func.func @_mm_single_kernel(%arg0: i32, %arg1: i32, %arg2: memref<104x128xbf16, #tpu.memory_space<vmem>>, %arg3: memref<128x128xbf16, #tpu.memory_space<vmem>>, %arg4: memref<1x128xf32, #tpu.memory_space<vmem>>, %arg5: memref<104x128xf32, #tpu.memory_space<vmem>>) attributes {dimension_semantics = [#tpu.dimension_semantics<parallel>, #tpu.dimension_semantics<parallel>], iteration_bounds = array<i64: 1, 1>, scalar_prefetch = 0 : i64, scratch_operands = 0 : i64, tpu.core_type = #tpu.core_type<tc>, window_params = [{transform_indices = @transform_0, window_bounds = array<i64: 104, 128>}, {transform_indices = @transform_1, window_bounds = array<i64: 128, 128>}, {transform_indices = @transform_2, window_bounds = array<i64: 1, 128>}, {transform_indices = @transform_3, window_bounds = array<i64: 104, 128>}]} {
    %c0 = arith.constant 0 : index
    %c0_0 = arith.constant 0 : index
    %0 = vector.load %arg2[%c0, %c0_0] : memref<104x128xbf16, #tpu.memory_space<vmem>>, vector<104x128xbf16>
    %c0_1 = arith.constant 0 : index
    %c0_2 = arith.constant 0 : index
    %1 = vector.load %arg3[%c0_1, %c0_2] : memref<128x128xbf16, #tpu.memory_space<vmem>>, vector<128x128xbf16>
    %cst = arith.constant dense<0.000000e+00> : vector<104x128xf32>
    %2 = tpu.matmul %0, %1, %cst {dimension_numbers = #tpu.dot_dimension_numbers<[1], [0], [0], [1], [0, 0, 1, 1], [], []>} : vector<104x128xbf16>, vector<128x128xbf16>, vector<104x128xf32> -> vector<104x128xf32>
    %c0_3 = arith.constant 0 : index
    %c0_4 = arith.constant 0 : index
    %3 = vector.load %arg4[%c0_3, %c0_4] : memref<1x128xf32, #tpu.memory_space<vmem>>, vector<1x128xf32>
    %4 = vector.broadcast %3 : vector<1x128xf32> to vector<104x128xf32>
    %5 = arith.addf %2, %4 : vector<104x128xf32>
    %cst_5 = arith.constant 0.000000e+00 : f32
    %6 = vector.broadcast %cst_5 : f32 to vector<104x128xf32>
    %7 = arith.maximumf %5, %6 : vector<104x128xf32>
    %c0_6 = arith.constant 0 : index
    %c0_7 = arith.constant 0 : index
    %8 = vector.load %arg5[%c0_6, %c0_7] : memref<104x128xf32, #tpu.memory_space<vmem>>, vector<104x128xf32>
    tpu.vector_store %arg5[%c0_6, %c0_7], %7 {strides = array<i32>} : memref<104x128xf32, #tpu.memory_space<vmem>>, vector<104x128xf32>,
    return
  }
  func.func @transform_0(%arg0: i32, %arg1: i32) -> (i32, i32) {
    %c0_i32 = arith.constant 0 : i32
    %c0_i32_0 = arith.constant 0 : i32
    return %arg0, %c0_i32 : i32, i32
  }
  func.func @transform_1(%arg0: i32, %arg1: i32) -> (i32, i32) {
    %c0_i32 = arith.constant 0 : i32
    %c0_i32_0 = arith.constant 0 : i32
    return %c0_i32, %arg1 : i32, i32
  }
  func.func @transform_2(%arg0: i32, %arg1: i32) -> (i32, i32) {
    %c0_i32 = arith.constant 0 : i32
    %c0_i32_0 = arith.constant 0 : i32
    return %c0_i32, %arg1 : i32, i32
  }
  func.func @transform_3(%arg0: i32, %arg1: i32) -> (i32, i32) {
    %c0_i32 = arith.constant 0 : i32
    return %arg0, %arg1 : i32, i32
  }
}

module attributes {stable_mosaic.version = 11 : i64} {
  func.func @_mm_single_kernel(%arg0: i32, %arg1: i32, %arg2: memref<104x256xbf16, #tpu.memory_space<vmem>>, %arg3: memref<256x128xbf16, #tpu.memory_space<vmem>>, %arg4: memref<1x128xf32, #tpu.memory_space<vmem>>, %arg5: memref<104x128xf32, #tpu.memory_space<vmem>>) attributes {dimension_semantics = [#tpu.dimension_semantics<parallel>, #tpu.dimension_semantics<parallel>], iteration_bounds = array<i64: 1, 1>, scalar_prefetch = 0 : i64, scratch_operands = 0 : i64, tpu.core_type = #tpu.core_type<tc>, window_params = [{transform_indices = @transform_0, window_bounds = array<i64: 104, 256>}, {transform_indices = @transform_1, window_bounds = array<i64: 256, 128>}, {transform_indices = @transform_2, window_bounds = array<i64: 1, 128>}, {transform_indices = @transform_3, window_bounds = array<i64: 104, 128>}]} {
    %c0 = arith.constant 0 : index
    %c0_0 = arith.constant 0 : index
    %0 = vector.load %arg2[%c0, %c0_0] : memref<104x256xbf16, #tpu.memory_space<vmem>>, vector<104x256xbf16>
    %c0_1 = arith.constant 0 : index
    %c0_2 = arith.constant 0 : index
    %1 = vector.load %arg3[%c0_1, %c0_2] : memref<256x128xbf16, #tpu.memory_space<vmem>>, vector<256x128xbf16>
    %cst = arith.constant dense<0.000000e+00> : vector<104x128xf32>
    %2 = tpu.matmul %0, %1, %cst {dimension_numbers = #tpu.dot_dimension_numbers<[1], [0], [0], [1], [0, 0, 1, 1], [], []>} : vector<104x256xbf16>, vector<256x128xbf16>, vector<104x128xf32> -> vector<104x128xf32>
    %c0_3 = arith.constant 0 : index
    %c0_4 = arith.constant 0 : index
    %3 = vector.load %arg4[%c0_3, %c0_4] : memref<1x128xf32, #tpu.memory_space<vmem>>, vector<1x128xf32>
    %4 = vector.broadcast %3 : vector<1x128xf32> to vector<104x128xf32>
    %5 = arith.addf %2, %4 : vector<104x128xf32>
    %cst_5 = arith.constant 0.000000e+00 : f32
    %6 = vector.broadcast %cst_5 : f32 to vector<104x128xf32>
    %7 = arith.maximumf %5, %6 : vector<104x128xf32>
    %c0_6 = arith.constant 0 : index
    %c0_7 = arith.constant 0 : index
    %8 = vector.load %arg5[%c0_6, %c0_7] : memref<104x128xf32, #tpu.memory_space<vmem>>, vector<104x128xf32>
    tpu.vector_store %arg5[%c0_6, %c0_7], %7 {strides = array<i32>} : memref<104x128xf32, #tpu.memory_space<vmem>>, vector<104x128xf32>,
    return
  }
  func.func @transform_0(%arg0: i32, %arg1: i32) -> (i32, i32) {
    %c0_i32 = arith.constant 0 : i32
    %c0_i32_0 = arith.constant 0 : i32
    return %arg0, %c0_i32 : i32, i32
  }
  func.func @transform_1(%arg0: i32, %arg1: i32) -> (i32, i32) {
    %c0_i32 = arith.constant 0 : i32
    %c0_i32_0 = arith.constant 0 : i32
    return %c0_i32, %arg1 : i32, i32
  }
  func.func @transform_2(%arg0: i32, %arg1: i32) -> (i32, i32) {
    %c0_i32 = arith.constant 0 : i32
    %c0_i32_0 = arith.constant 0 : i32
    return %c0_i32, %arg1 : i32, i32
  }
  func.func @transform_3(%arg0: i32, %arg1: i32) -> (i32, i32) {
    %c0_i32 = arith.constant 0 : i32
    return %arg0, %arg1 : i32, i32
  }
}

module attributes {stable_mosaic.version = 11 : i64} {
  func.func @_mm_single_kernel(%arg0: i32, %arg1: i32, %arg2: memref<104x384xbf16, #tpu.memory_space<vmem>>, %arg3: memref<384x128xbf16, #tpu.memory_space<vmem>>, %arg4: memref<1x128xf32, #tpu.memory_space<vmem>>, %arg5: memref<104x128xf32, #tpu.memory_space<vmem>>) attributes {dimension_semantics = [#tpu.dimension_semantics<parallel>, #tpu.dimension_semantics<parallel>], iteration_bounds = array<i64: 1, 1>, scalar_prefetch = 0 : i64, scratch_operands = 0 : i64, tpu.core_type = #tpu.core_type<tc>, window_params = [{transform_indices = @transform_0, window_bounds = array<i64: 104, 384>}, {transform_indices = @transform_1, window_bounds = array<i64: 384, 128>}, {transform_indices = @transform_2, window_bounds = array<i64: 1, 128>}, {transform_indices = @transform_3, window_bounds = array<i64: 104, 128>}]} {
    %c0 = arith.constant 0 : index
    %c0_0 = arith.constant 0 : index
    %0 = vector.load %arg2[%c0, %c0_0] : memref<104x384xbf16, #tpu.memory_space<vmem>>, vector<104x384xbf16>
    %c0_1 = arith.constant 0 : index
    %c0_2 = arith.constant 0 : index
    %1 = vector.load %arg3[%c0_1, %c0_2] : memref<384x128xbf16, #tpu.memory_space<vmem>>, vector<384x128xbf16>
    %cst = arith.constant dense<0.000000e+00> : vector<104x128xf32>
    %2 = tpu.matmul %0, %1, %cst {dimension_numbers = #tpu.dot_dimension_numbers<[1], [0], [0], [1], [0, 0, 1, 1], [], []>} : vector<104x384xbf16>, vector<384x128xbf16>, vector<104x128xf32> -> vector<104x128xf32>
    %c0_3 = arith.constant 0 : index
    %c0_4 = arith.constant 0 : index
    %3 = vector.load %arg4[%c0_3, %c0_4] : memref<1x128xf32, #tpu.memory_space<vmem>>, vector<1x128xf32>
    %4 = vector.broadcast %3 : vector<1x128xf32> to vector<104x128xf32>
    %5 = arith.addf %2, %4 : vector<104x128xf32>
    %cst_5 = arith.constant 0.000000e+00 : f32
    %6 = vector.broadcast %cst_5 : f32 to vector<104x128xf32>
    %7 = arith.maximumf %5, %6 : vector<104x128xf32>
    %c0_6 = arith.constant 0 : index
    %c0_7 = arith.constant 0 : index
    %8 = vector.load %arg5[%c0_6, %c0_7] : memref<104x128xf32, #tpu.memory_space<vmem>>, vector<104x128xf32>
    tpu.vector_store %arg5[%c0_6, %c0_7], %7 {strides = array<i32>} : memref<104x128xf32, #tpu.memory_space<vmem>>, vector<104x128xf32>,
    return
  }
  func.func @transform_0(%arg0: i32, %arg1: i32) -> (i32, i32) {
    %c0_i32 = arith.constant 0 : i32
    %c0_i32_0 = arith.constant 0 : i32
    return %arg0, %c0_i32 : i32, i32
  }
  func.func @transform_1(%arg0: i32, %arg1: i32) -> (i32, i32) {
    %c0_i32 = arith.constant 0 : i32
    %c0_i32_0 = arith.constant 0 : i32
    return %c0_i32, %arg1 : i32, i32
  }
  func.func @transform_2(%arg0: i32, %arg1: i32) -> (i32, i32) {
    %c0_i32 = arith.constant 0 : i32
    %c0_i32_0 = arith.constant 0 : i32
    return %c0_i32, %arg1 : i32, i32
  }
  func.func @transform_3(%arg0: i32, %arg1: i32) -> (i32, i32) {
    %c0_i32 = arith.constant 0 : i32
    return %arg0, %arg1 : i32, i32
  }
}

module attributes {stable_mosaic.version = 11 : i64} {
  func.func @_corr_kernel(%arg0: i32, %arg1: i32, %arg2: memref<1x25x64xf32, #tpu.memory_space<vmem>>, %arg3: memref<1x128x64xf32, #tpu.memory_space<vmem>>, %arg4: memref<1x1x128xf32, #tpu.memory_space<vmem>>) attributes {dimension_semantics = [#tpu.dimension_semantics<parallel>, #tpu.dimension_semantics<parallel>], iteration_bounds = array<i64: 2, 1>, scalar_prefetch = 0 : i64, scratch_operands = 0 : i64, tpu.core_type = #tpu.core_type<tc>, window_params = [{transform_indices = @transform_0, window_bounds = array<i64: 1, 25, 64>}, {transform_indices = @transform_1, window_bounds = array<i64: 1, 128, 64>}, {transform_indices = @transform_2, window_bounds = array<i64: 1, 1, 128>}]} {
    %c0 = arith.constant 0 : index
    %c0_0 = arith.constant 0 : index
    %c0_1 = arith.constant 0 : index
    %0 = vector.load %arg2[%c0, %c0_0, %c0_1] : memref<1x25x64xf32, #tpu.memory_space<vmem>>, vector<1x25x64xf32>
    %1 = vector.shape_cast %0 : vector<1x25x64xf32> to vector<25x64xf32>
    %c0_2 = arith.constant 0 : index
    %c0_3 = arith.constant 0 : index
    %c0_4 = arith.constant 0 : index
    %2 = vector.load %arg3[%c0_2, %c0_3, %c0_4] : memref<1x128x64xf32, #tpu.memory_space<vmem>>, vector<1x128x64xf32>
    %3 = vector.shape_cast %2 : vector<1x128x64xf32> to vector<128x64xf32>
    %4 = arith.mulf %1, %1 : vector<25x64xf32>
    %cst = arith.constant dense<0.000000e+00> : vector<25xf32>
    %5 = vector.multi_reduction <add>, %4, %cst [1] : vector<25x64xf32> to vector<25xf32>
    %6 = vector.shape_cast %5 : vector<25xf32> to vector<25x1xf32>
    %7 = math.sqrt %6 : vector<25x1xf32>
    %8 = arith.mulf %3, %3 : vector<128x64xf32>
    %cst_5 = arith.constant dense<0.000000e+00> : vector<128xf32>
    %9 = vector.multi_reduction <add>, %8, %cst_5 [1] : vector<128x64xf32> to vector<128xf32>
    %10 = vector.shape_cast %9 : vector<128xf32> to vector<128x1xf32>
    %11 = math.sqrt %10 : vector<128x1xf32>
    %cst_6 = arith.constant 1.000000e-07 : f32
    %12 = vector.broadcast %cst_6 : f32 to vector<25x1xf32>
    %13 = arith.addf %7, %12 : vector<25x1xf32>
    %14 = vector.broadcast %13 : vector<25x1xf32> to vector<25x64xf32>
    %15 = arith.divf %1, %14 : vector<25x64xf32>
    %cst_7 = arith.constant 1.000000e-07 : f32
    %16 = vector.broadcast %cst_7 : f32 to vector<128x1xf32>
    %17 = arith.addf %11, %16 : vector<128x1xf32>
    %18 = vector.broadcast %17 : vector<128x1xf32> to vector<128x64xf32>
    %19 = arith.divf %3, %18 : vector<128x64xf32>
    %cst_8 = arith.constant dense<0.000000e+00> : vector<25x128xf32>
    %20 = tpu.matmul %15, %19, %cst_8 {dimension_numbers = #tpu.dot_dimension_numbers<[1], [1], [0], [0], [0, 0, 1, 0], [], []>} : vector<25x64xf32>, vector<128x64xf32>, vector<25x128xf32> -> vector<25x128xf32>
    %cst_9 = arith.constant dense<0xFF800000> : vector<128xf32>
    %21 = vector.multi_reduction <maximumf>, %20, %cst_9 [0] : vector<25x128xf32> to vector<128xf32>
    %22 = vector.shape_cast %21 : vector<128xf32> to vector<1x128xf32>
    %c0_10 = arith.constant 0 : index
    %c0_11 = arith.constant 0 : index
    %c0_12 = arith.constant 0 : index
    %23 = vector.load %arg4[%c0_10, %c0_11, %c0_12] : memref<1x1x128xf32, #tpu.memory_space<vmem>>, vector<1x1x128xf32>
    %24 = vector.shape_cast %23 : vector<1x1x128xf32> to vector<1x128xf32>
    %25 = vector.shape_cast %22 : vector<1x128xf32> to vector<1x1x128xf32>
    tpu.vector_store %arg4[%c0_10, %c0_11, %c0_12], %25 {strides = array<i32>} : memref<1x1x128xf32, #tpu.memory_space<vmem>>, vector<1x1x128xf32>,
    return
  }
  func.func @transform_0(%arg0: i32, %arg1: i32) -> (i32, i32, i32) {
    %c0_i32 = arith.constant 0 : i32
    %c0_i32_0 = arith.constant 0 : i32
    %c0_i32_1 = arith.constant 0 : i32
    return %arg0, %c0_i32, %c0_i32_0 : i32, i32, i32
  }
  func.func @transform_1(%arg0: i32, %arg1: i32) -> (i32, i32, i32) {
    %c0_i32 = arith.constant 0 : i32
    %c0_i32_0 = arith.constant 0 : i32
    return %arg0, %arg1, %c0_i32 : i32, i32, i32
  }
  func.func @transform_2(%arg0: i32, %arg1: i32) -> (i32, i32, i32) {
    %c0_i32 = arith.constant 0 : i32
    %c0_i32_0 = arith.constant 0 : i32
    return %arg0, %c0_i32, %arg1 : i32, i32, i32
  }
}

module attributes {stable_mosaic.version = 11 : i64} {
  func.func @_wgap_kernel(%arg0: i32, %arg1: memref<1x25x32xf32, #tpu.memory_space<vmem>>, %arg2: memref<1x25x1xf32, #tpu.memory_space<vmem>>, %arg3: memref<1x1x32xf32, #tpu.memory_space<vmem>>) attributes {dimension_semantics = [#tpu.dimension_semantics<parallel>], iteration_bounds = array<i64: 2>, scalar_prefetch = 0 : i64, scratch_operands = 0 : i64, tpu.core_type = #tpu.core_type<tc>, window_params = [{transform_indices = @transform_0, window_bounds = array<i64: 1, 25, 32>}, {transform_indices = @transform_1, window_bounds = array<i64: 1, 25, 1>}, {transform_indices = @transform_2, window_bounds = array<i64: 1, 1, 32>}]} {
    %c0 = arith.constant 0 : index
    %c0_0 = arith.constant 0 : index
    %c0_1 = arith.constant 0 : index
    %0 = vector.load %arg1[%c0, %c0_0, %c0_1] : memref<1x25x32xf32, #tpu.memory_space<vmem>>, vector<1x25x32xf32>
    %1 = vector.shape_cast %0 : vector<1x25x32xf32> to vector<25x32xf32>
    %c0_2 = arith.constant 0 : index
    %c0_3 = arith.constant 0 : index
    %c0_4 = arith.constant 0 : index
    %2 = vector.load %arg2[%c0_2, %c0_3, %c0_4] : memref<1x25x1xf32, #tpu.memory_space<vmem>>, vector<1x25x1xf32>
    %3 = vector.shape_cast %2 : vector<1x25x1xf32> to vector<25x1xf32>
    %4 = vector.broadcast %3 : vector<25x1xf32> to vector<25x32xf32>
    %5 = arith.mulf %1, %4 : vector<25x32xf32>
    %cst = arith.constant dense<0.000000e+00> : vector<32xf32>
    %6 = vector.multi_reduction <add>, %5, %cst [0] : vector<25x32xf32> to vector<32xf32>
    %7 = vector.shape_cast %6 : vector<32xf32> to vector<1x32xf32>
    %cst_5 = arith.constant dense<0.000000e+00> : vector<1xf32>
    %8 = vector.multi_reduction <add>, %3, %cst_5 [0] : vector<25x1xf32> to vector<1xf32>
    %9 = vector.shape_cast %8 : vector<1xf32> to vector<1x1xf32>
    %cst_6 = arith.constant 5.000000e-04 : f32
    %10 = vector.broadcast %cst_6 : f32 to vector<1x1xf32>
    %11 = arith.addf %9, %10 : vector<1x1xf32>
    %12 = vector.broadcast %11 : vector<1x1xf32> to vector<1x32xf32>
    %13 = arith.divf %7, %12 : vector<1x32xf32>
    %c0_7 = arith.constant 0 : index
    %c0_8 = arith.constant 0 : index
    %c0_9 = arith.constant 0 : index
    %14 = vector.load %arg3[%c0_7, %c0_8, %c0_9] : memref<1x1x32xf32, #tpu.memory_space<vmem>>, vector<1x1x32xf32>
    %15 = vector.shape_cast %14 : vector<1x1x32xf32> to vector<1x32xf32>
    %16 = vector.shape_cast %13 : vector<1x32xf32> to vector<1x1x32xf32>
    tpu.vector_store %arg3[%c0_7, %c0_8, %c0_9], %16 {strides = array<i32>} : memref<1x1x32xf32, #tpu.memory_space<vmem>>, vector<1x1x32xf32>,
    return
  }
  func.func @transform_0(%arg0: i32) -> (i32, i32, i32) {
    %c0_i32 = arith.constant 0 : i32
    %c0_i32_0 = arith.constant 0 : i32
    %c0_i32_1 = arith.constant 0 : i32
    return %arg0, %c0_i32, %c0_i32_0 : i32, i32, i32
  }
  func.func @transform_1(%arg0: i32) -> (i32, i32, i32) {
    %c0_i32 = arith.constant 0 : i32
    %c0_i32_0 = arith.constant 0 : i32
    %c0_i32_1 = arith.constant 0 : i32
    return %arg0, %c0_i32, %c0_i32_0 : i32, i32, i32
  }
  func.func @transform_2(%arg0: i32) -> (i32, i32, i32) {
    %c0_i32 = arith.constant 0 : i32
    %c0_i32_0 = arith.constant 0 : i32
    %c0_i32_1 = arith.constant 0 : i32
    return %arg0, %c0_i32, %c0_i32_0 : i32, i32, i32
  }
}

module attributes {stable_mosaic.version = 11 : i64} {
  func.func @_mm_single_kernel(%arg0: i32, %arg1: i32, %arg2: memref<56x128xbf16, #tpu.memory_space<vmem>>, %arg3: memref<128x128xbf16, #tpu.memory_space<vmem>>, %arg4: memref<1x128xf32, #tpu.memory_space<vmem>>, %arg5: memref<56x128xf32, #tpu.memory_space<vmem>>) attributes {dimension_semantics = [#tpu.dimension_semantics<parallel>, #tpu.dimension_semantics<parallel>], iteration_bounds = array<i64: 1, 1>, scalar_prefetch = 0 : i64, scratch_operands = 0 : i64, tpu.core_type = #tpu.core_type<tc>, window_params = [{transform_indices = @transform_0, window_bounds = array<i64: 56, 128>}, {transform_indices = @transform_1, window_bounds = array<i64: 128, 128>}, {transform_indices = @transform_2, window_bounds = array<i64: 1, 128>}, {transform_indices = @transform_3, window_bounds = array<i64: 56, 128>}]} {
    %c0 = arith.constant 0 : index
    %c0_0 = arith.constant 0 : index
    %0 = vector.load %arg2[%c0, %c0_0] : memref<56x128xbf16, #tpu.memory_space<vmem>>, vector<56x128xbf16>
    %c0_1 = arith.constant 0 : index
    %c0_2 = arith.constant 0 : index
    %1 = vector.load %arg3[%c0_1, %c0_2] : memref<128x128xbf16, #tpu.memory_space<vmem>>, vector<128x128xbf16>
    %cst = arith.constant dense<0.000000e+00> : vector<56x128xf32>
    %2 = tpu.matmul %0, %1, %cst {dimension_numbers = #tpu.dot_dimension_numbers<[1], [0], [0], [1], [0, 0, 1, 1], [], []>} : vector<56x128xbf16>, vector<128x128xbf16>, vector<56x128xf32> -> vector<56x128xf32>
    %c0_3 = arith.constant 0 : index
    %c0_4 = arith.constant 0 : index
    %3 = vector.load %arg4[%c0_3, %c0_4] : memref<1x128xf32, #tpu.memory_space<vmem>>, vector<1x128xf32>
    %4 = vector.broadcast %3 : vector<1x128xf32> to vector<56x128xf32>
    %5 = arith.addf %2, %4 : vector<56x128xf32>
    %cst_5 = arith.constant 0.000000e+00 : f32
    %6 = vector.broadcast %cst_5 : f32 to vector<56x128xf32>
    %7 = arith.maximumf %5, %6 : vector<56x128xf32>
    %c0_6 = arith.constant 0 : index
    %c0_7 = arith.constant 0 : index
    %8 = vector.load %arg5[%c0_6, %c0_7] : memref<56x128xf32, #tpu.memory_space<vmem>>, vector<56x128xf32>
    tpu.vector_store %arg5[%c0_6, %c0_7], %7 {strides = array<i32>} : memref<56x128xf32, #tpu.memory_space<vmem>>, vector<56x128xf32>,
    return
  }
  func.func @transform_0(%arg0: i32, %arg1: i32) -> (i32, i32) {
    %c0_i32 = arith.constant 0 : i32
    %c0_i32_0 = arith.constant 0 : i32
    return %arg0, %c0_i32 : i32, i32
  }
  func.func @transform_1(%arg0: i32, %arg1: i32) -> (i32, i32) {
    %c0_i32 = arith.constant 0 : i32
    %c0_i32_0 = arith.constant 0 : i32
    return %c0_i32, %arg1 : i32, i32
  }
  func.func @transform_2(%arg0: i32, %arg1: i32) -> (i32, i32) {
    %c0_i32 = arith.constant 0 : i32
    %c0_i32_0 = arith.constant 0 : i32
    return %c0_i32, %arg1 : i32, i32
  }
  func.func @transform_3(%arg0: i32, %arg1: i32) -> (i32, i32) {
    %c0_i32 = arith.constant 0 : i32
    return %arg0, %arg1 : i32, i32
  }
}

module attributes {stable_mosaic.version = 11 : i64} {
  func.func @_mm_single_kernel(%arg0: i32, %arg1: i32, %arg2: memref<56x384xbf16, #tpu.memory_space<vmem>>, %arg3: memref<384x128xbf16, #tpu.memory_space<vmem>>, %arg4: memref<1x128xf32, #tpu.memory_space<vmem>>, %arg5: memref<56x128xf32, #tpu.memory_space<vmem>>) attributes {dimension_semantics = [#tpu.dimension_semantics<parallel>, #tpu.dimension_semantics<parallel>], iteration_bounds = array<i64: 1, 1>, scalar_prefetch = 0 : i64, scratch_operands = 0 : i64, tpu.core_type = #tpu.core_type<tc>, window_params = [{transform_indices = @transform_0, window_bounds = array<i64: 56, 384>}, {transform_indices = @transform_1, window_bounds = array<i64: 384, 128>}, {transform_indices = @transform_2, window_bounds = array<i64: 1, 128>}, {transform_indices = @transform_3, window_bounds = array<i64: 56, 128>}]} {
    %c0 = arith.constant 0 : index
    %c0_0 = arith.constant 0 : index
    %0 = vector.load %arg2[%c0, %c0_0] : memref<56x384xbf16, #tpu.memory_space<vmem>>, vector<56x384xbf16>
    %c0_1 = arith.constant 0 : index
    %c0_2 = arith.constant 0 : index
    %1 = vector.load %arg3[%c0_1, %c0_2] : memref<384x128xbf16, #tpu.memory_space<vmem>>, vector<384x128xbf16>
    %cst = arith.constant dense<0.000000e+00> : vector<56x128xf32>
    %2 = tpu.matmul %0, %1, %cst {dimension_numbers = #tpu.dot_dimension_numbers<[1], [0], [0], [1], [0, 0, 1, 1], [], []>} : vector<56x384xbf16>, vector<384x128xbf16>, vector<56x128xf32> -> vector<56x128xf32>
    %c0_3 = arith.constant 0 : index
    %c0_4 = arith.constant 0 : index
    %3 = vector.load %arg4[%c0_3, %c0_4] : memref<1x128xf32, #tpu.memory_space<vmem>>, vector<1x128xf32>
    %4 = vector.broadcast %3 : vector<1x128xf32> to vector<56x128xf32>
    %5 = arith.addf %2, %4 : vector<56x128xf32>
    %cst_5 = arith.constant 0.000000e+00 : f32
    %6 = vector.broadcast %cst_5 : f32 to vector<56x128xf32>
    %7 = arith.maximumf %5, %6 : vector<56x128xf32>
    %c0_6 = arith.constant 0 : index
    %c0_7 = arith.constant 0 : index
    %8 = vector.load %arg5[%c0_6, %c0_7] : memref<56x128xf32, #tpu.memory_space<vmem>>, vector<56x128xf32>
    tpu.vector_store %arg5[%c0_6, %c0_7], %7 {strides = array<i32>} : memref<56x128xf32, #tpu.memory_space<vmem>>, vector<56x128xf32>,
    return
  }
  func.func @transform_0(%arg0: i32, %arg1: i32) -> (i32, i32) {
    %c0_i32 = arith.constant 0 : i32
    %c0_i32_0 = arith.constant 0 : i32
    return %arg0, %c0_i32 : i32, i32
  }
  func.func @transform_1(%arg0: i32, %arg1: i32) -> (i32, i32) {
    %c0_i32 = arith.constant 0 : i32
    %c0_i32_0 = arith.constant 0 : i32
    return %c0_i32, %arg1 : i32, i32
  }
  func.func @transform_2(%arg0: i32, %arg1: i32) -> (i32, i32) {
    %c0_i32 = arith.constant 0 : i32
    %c0_i32_0 = arith.constant 0 : i32
    return %c0_i32, %arg1 : i32, i32
  }
  func.func @transform_3(%arg0: i32, %arg1: i32) -> (i32, i32) {
    %c0_i32 = arith.constant 0 : i32
    return %arg0, %arg1 : i32, i32
  }
}

module attributes {stable_mosaic.version = 11 : i64} {
  func.func @_mm_single_kernel(%arg0: i32, %arg1: i32, %arg2: memref<24x128xbf16, #tpu.memory_space<vmem>>, %arg3: memref<128x128xbf16, #tpu.memory_space<vmem>>, %arg4: memref<1x128xf32, #tpu.memory_space<vmem>>, %arg5: memref<24x128xf32, #tpu.memory_space<vmem>>) attributes {dimension_semantics = [#tpu.dimension_semantics<parallel>, #tpu.dimension_semantics<parallel>], iteration_bounds = array<i64: 1, 1>, scalar_prefetch = 0 : i64, scratch_operands = 0 : i64, tpu.core_type = #tpu.core_type<tc>, window_params = [{transform_indices = @transform_0, window_bounds = array<i64: 24, 128>}, {transform_indices = @transform_1, window_bounds = array<i64: 128, 128>}, {transform_indices = @transform_2, window_bounds = array<i64: 1, 128>}, {transform_indices = @transform_3, window_bounds = array<i64: 24, 128>}]} {
    %c0 = arith.constant 0 : index
    %c0_0 = arith.constant 0 : index
    %0 = vector.load %arg2[%c0, %c0_0] : memref<24x128xbf16, #tpu.memory_space<vmem>>, vector<24x128xbf16>
    %c0_1 = arith.constant 0 : index
    %c0_2 = arith.constant 0 : index
    %1 = vector.load %arg3[%c0_1, %c0_2] : memref<128x128xbf16, #tpu.memory_space<vmem>>, vector<128x128xbf16>
    %cst = arith.constant dense<0.000000e+00> : vector<24x128xf32>
    %2 = tpu.matmul %0, %1, %cst {dimension_numbers = #tpu.dot_dimension_numbers<[1], [0], [0], [1], [0, 0, 1, 1], [], []>} : vector<24x128xbf16>, vector<128x128xbf16>, vector<24x128xf32> -> vector<24x128xf32>
    %c0_3 = arith.constant 0 : index
    %c0_4 = arith.constant 0 : index
    %3 = vector.load %arg4[%c0_3, %c0_4] : memref<1x128xf32, #tpu.memory_space<vmem>>, vector<1x128xf32>
    %4 = vector.broadcast %3 : vector<1x128xf32> to vector<24x128xf32>
    %5 = arith.addf %2, %4 : vector<24x128xf32>
    %cst_5 = arith.constant 0.000000e+00 : f32
    %6 = vector.broadcast %cst_5 : f32 to vector<24x128xf32>
    %7 = arith.maximumf %5, %6 : vector<24x128xf32>
    %c0_6 = arith.constant 0 : index
    %c0_7 = arith.constant 0 : index
    %8 = vector.load %arg5[%c0_6, %c0_7] : memref<24x128xf32, #tpu.memory_space<vmem>>, vector<24x128xf32>
    tpu.vector_store %arg5[%c0_6, %c0_7], %7 {strides = array<i32>} : memref<24x128xf32, #tpu.memory_space<vmem>>, vector<24x128xf32>,
    return
  }
  func.func @transform_0(%arg0: i32, %arg1: i32) -> (i32, i32) {
    %c0_i32 = arith.constant 0 : i32
    %c0_i32_0 = arith.constant 0 : i32
    return %arg0, %c0_i32 : i32, i32
  }
  func.func @transform_1(%arg0: i32, %arg1: i32) -> (i32, i32) {
    %c0_i32 = arith.constant 0 : i32
    %c0_i32_0 = arith.constant 0 : i32
    return %c0_i32, %arg1 : i32, i32
  }
  func.func @transform_2(%arg0: i32, %arg1: i32) -> (i32, i32) {
    %c0_i32 = arith.constant 0 : i32
    %c0_i32_0 = arith.constant 0 : i32
    return %c0_i32, %arg1 : i32, i32
  }
  func.func @transform_3(%arg0: i32, %arg1: i32) -> (i32, i32) {
    %c0_i32 = arith.constant 0 : i32
    return %arg0, %arg1 : i32, i32
  }
}

module attributes {stable_mosaic.version = 11 : i64} {
  func.func @_mm_single_kernel(%arg0: i32, %arg1: i32, %arg2: memref<24x384xbf16, #tpu.memory_space<vmem>>, %arg3: memref<384x128xbf16, #tpu.memory_space<vmem>>, %arg4: memref<1x128xf32, #tpu.memory_space<vmem>>, %arg5: memref<24x128xf32, #tpu.memory_space<vmem>>) attributes {dimension_semantics = [#tpu.dimension_semantics<parallel>, #tpu.dimension_semantics<parallel>], iteration_bounds = array<i64: 1, 1>, scalar_prefetch = 0 : i64, scratch_operands = 0 : i64, tpu.core_type = #tpu.core_type<tc>, window_params = [{transform_indices = @transform_0, window_bounds = array<i64: 24, 384>}, {transform_indices = @transform_1, window_bounds = array<i64: 384, 128>}, {transform_indices = @transform_2, window_bounds = array<i64: 1, 128>}, {transform_indices = @transform_3, window_bounds = array<i64: 24, 128>}]} {
    %c0 = arith.constant 0 : index
    %c0_0 = arith.constant 0 : index
    %0 = vector.load %arg2[%c0, %c0_0] : memref<24x384xbf16, #tpu.memory_space<vmem>>, vector<24x384xbf16>
    %c0_1 = arith.constant 0 : index
    %c0_2 = arith.constant 0 : index
    %1 = vector.load %arg3[%c0_1, %c0_2] : memref<384x128xbf16, #tpu.memory_space<vmem>>, vector<384x128xbf16>
    %cst = arith.constant dense<0.000000e+00> : vector<24x128xf32>
    %2 = tpu.matmul %0, %1, %cst {dimension_numbers = #tpu.dot_dimension_numbers<[1], [0], [0], [1], [0, 0, 1, 1], [], []>} : vector<24x384xbf16>, vector<384x128xbf16>, vector<24x128xf32> -> vector<24x128xf32>
    %c0_3 = arith.constant 0 : index
    %c0_4 = arith.constant 0 : index
    %3 = vector.load %arg4[%c0_3, %c0_4] : memref<1x128xf32, #tpu.memory_space<vmem>>, vector<1x128xf32>
    %4 = vector.broadcast %3 : vector<1x128xf32> to vector<24x128xf32>
    %5 = arith.addf %2, %4 : vector<24x128xf32>
    %cst_5 = arith.constant 0.000000e+00 : f32
    %6 = vector.broadcast %cst_5 : f32 to vector<24x128xf32>
    %7 = arith.maximumf %5, %6 : vector<24x128xf32>
    %c0_6 = arith.constant 0 : index
    %c0_7 = arith.constant 0 : index
    %8 = vector.load %arg5[%c0_6, %c0_7] : memref<24x128xf32, #tpu.memory_space<vmem>>, vector<24x128xf32>
    tpu.vector_store %arg5[%c0_6, %c0_7], %7 {strides = array<i32>} : memref<24x128xf32, #tpu.memory_space<vmem>>, vector<24x128xf32>,
    return
  }
  func.func @transform_0(%arg0: i32, %arg1: i32) -> (i32, i32) {
    %c0_i32 = arith.constant 0 : i32
    %c0_i32_0 = arith.constant 0 : i32
    return %arg0, %c0_i32 : i32, i32
  }
  func.func @transform_1(%arg0: i32, %arg1: i32) -> (i32, i32) {
    %c0_i32 = arith.constant 0 : i32
    %c0_i32_0 = arith.constant 0 : i32
    return %c0_i32, %arg1 : i32, i32
  }
  func.func @transform_2(%arg0: i32, %arg1: i32) -> (i32, i32) {
    %c0_i32 = arith.constant 0 : i32
    %c0_i32_0 = arith.constant 0 : i32
    return %c0_i32, %arg1 : i32, i32
  }
  func.func @transform_3(%arg0: i32, %arg1: i32) -> (i32, i32) {
    %c0_i32 = arith.constant 0 : i32
    return %arg0, %arg1 : i32, i32
  }
}

module attributes {stable_mosaic.version = 11 : i64} {
  func.func @_mm_single_kernel(%arg0: i32, %arg1: i32, %arg2: memref<8x128xbf16, #tpu.memory_space<vmem>>, %arg3: memref<128x128xbf16, #tpu.memory_space<vmem>>, %arg4: memref<1x128xf32, #tpu.memory_space<vmem>>, %arg5: memref<8x128xf32, #tpu.memory_space<vmem>>) attributes {dimension_semantics = [#tpu.dimension_semantics<parallel>, #tpu.dimension_semantics<parallel>], iteration_bounds = array<i64: 1, 1>, scalar_prefetch = 0 : i64, scratch_operands = 0 : i64, tpu.core_type = #tpu.core_type<tc>, window_params = [{transform_indices = @transform_0, window_bounds = array<i64: 8, 128>}, {transform_indices = @transform_1, window_bounds = array<i64: 128, 128>}, {transform_indices = @transform_2, window_bounds = array<i64: 1, 128>}, {transform_indices = @transform_3, window_bounds = array<i64: 8, 128>}]} {
    %c0 = arith.constant 0 : index
    %c0_0 = arith.constant 0 : index
    %0 = vector.load %arg2[%c0, %c0_0] : memref<8x128xbf16, #tpu.memory_space<vmem>>, vector<8x128xbf16>
    %c0_1 = arith.constant 0 : index
    %c0_2 = arith.constant 0 : index
    %1 = vector.load %arg3[%c0_1, %c0_2] : memref<128x128xbf16, #tpu.memory_space<vmem>>, vector<128x128xbf16>
    %cst = arith.constant dense<0.000000e+00> : vector<8x128xf32>
    %2 = tpu.matmul %0, %1, %cst {dimension_numbers = #tpu.dot_dimension_numbers<[1], [0], [0], [1], [0, 0, 1, 1], [], []>} : vector<8x128xbf16>, vector<128x128xbf16>, vector<8x128xf32> -> vector<8x128xf32>
    %c0_3 = arith.constant 0 : index
    %c0_4 = arith.constant 0 : index
    %3 = vector.load %arg4[%c0_3, %c0_4] : memref<1x128xf32, #tpu.memory_space<vmem>>, vector<1x128xf32>
    %4 = vector.broadcast %3 : vector<1x128xf32> to vector<8x128xf32>
    %5 = arith.addf %2, %4 : vector<8x128xf32>
    %cst_5 = arith.constant 0.000000e+00 : f32
    %6 = vector.broadcast %cst_5 : f32 to vector<8x128xf32>
    %7 = arith.maximumf %5, %6 : vector<8x128xf32>
    %c0_6 = arith.constant 0 : index
    %c0_7 = arith.constant 0 : index
    %8 = vector.load %arg5[%c0_6, %c0_7] : memref<8x128xf32, #tpu.memory_space<vmem>>, vector<8x128xf32>
    tpu.vector_store %arg5[%c0_6, %c0_7], %7 {strides = array<i32>} : memref<8x128xf32, #tpu.memory_space<vmem>>, vector<8x128xf32>,
    return
  }
  func.func @transform_0(%arg0: i32, %arg1: i32) -> (i32, i32) {
    %c0_i32 = arith.constant 0 : i32
    %c0_i32_0 = arith.constant 0 : i32
    return %arg0, %c0_i32 : i32, i32
  }
  func.func @transform_1(%arg0: i32, %arg1: i32) -> (i32, i32) {
    %c0_i32 = arith.constant 0 : i32
    %c0_i32_0 = arith.constant 0 : i32
    return %c0_i32, %arg1 : i32, i32
  }
  func.func @transform_2(%arg0: i32, %arg1: i32) -> (i32, i32) {
    %c0_i32 = arith.constant 0 : i32
    %c0_i32_0 = arith.constant 0 : i32
    return %c0_i32, %arg1 : i32, i32
  }
  func.func @transform_3(%arg0: i32, %arg1: i32) -> (i32, i32) {
    %c0_i32 = arith.constant 0 : i32
    return %arg0, %arg1 : i32, i32
  }
}

module attributes {stable_mosaic.version = 11 : i64} {
  func.func @_mm_single_kernel(%arg0: i32, %arg1: i32, %arg2: memref<8x384xbf16, #tpu.memory_space<vmem>>, %arg3: memref<384x128xbf16, #tpu.memory_space<vmem>>, %arg4: memref<1x128xf32, #tpu.memory_space<vmem>>, %arg5: memref<8x128xf32, #tpu.memory_space<vmem>>) attributes {dimension_semantics = [#tpu.dimension_semantics<parallel>, #tpu.dimension_semantics<parallel>], iteration_bounds = array<i64: 1, 1>, scalar_prefetch = 0 : i64, scratch_operands = 0 : i64, tpu.core_type = #tpu.core_type<tc>, window_params = [{transform_indices = @transform_0, window_bounds = array<i64: 8, 384>}, {transform_indices = @transform_1, window_bounds = array<i64: 384, 128>}, {transform_indices = @transform_2, window_bounds = array<i64: 1, 128>}, {transform_indices = @transform_3, window_bounds = array<i64: 8, 128>}]} {
    %c0 = arith.constant 0 : index
    %c0_0 = arith.constant 0 : index
    %0 = vector.load %arg2[%c0, %c0_0] : memref<8x384xbf16, #tpu.memory_space<vmem>>, vector<8x384xbf16>
    %c0_1 = arith.constant 0 : index
    %c0_2 = arith.constant 0 : index
    %1 = vector.load %arg3[%c0_1, %c0_2] : memref<384x128xbf16, #tpu.memory_space<vmem>>, vector<384x128xbf16>
    %cst = arith.constant dense<0.000000e+00> : vector<8x128xf32>
    %2 = tpu.matmul %0, %1, %cst {dimension_numbers = #tpu.dot_dimension_numbers<[1], [0], [0], [1], [0, 0, 1, 1], [], []>} : vector<8x384xbf16>, vector<384x128xbf16>, vector<8x128xf32> -> vector<8x128xf32>
    %c0_3 = arith.constant 0 : index
    %c0_4 = arith.constant 0 : index
    %3 = vector.load %arg4[%c0_3, %c0_4] : memref<1x128xf32, #tpu.memory_space<vmem>>, vector<1x128xf32>
    %4 = vector.broadcast %3 : vector<1x128xf32> to vector<8x128xf32>
    %5 = arith.addf %2, %4 : vector<8x128xf32>
    %cst_5 = arith.constant 0.000000e+00 : f32
    %6 = vector.broadcast %cst_5 : f32 to vector<8x128xf32>
    %7 = arith.maximumf %5, %6 : vector<8x128xf32>
    %c0_6 = arith.constant 0 : index
    %c0_7 = arith.constant 0 : index
    %8 = vector.load %arg5[%c0_6, %c0_7] : memref<8x128xf32, #tpu.memory_space<vmem>>, vector<8x128xf32>
    tpu.vector_store %arg5[%c0_6, %c0_7], %7 {strides = array<i32>} : memref<8x128xf32, #tpu.memory_space<vmem>>, vector<8x128xf32>,
    return
  }
  func.func @transform_0(%arg0: i32, %arg1: i32) -> (i32, i32) {
    %c0_i32 = arith.constant 0 : i32
    %c0_i32_0 = arith.constant 0 : i32
    return %arg0, %c0_i32 : i32, i32
  }
  func.func @transform_1(%arg0: i32, %arg1: i32) -> (i32, i32) {
    %c0_i32 = arith.constant 0 : i32
    %c0_i32_0 = arith.constant 0 : i32
    return %c0_i32, %arg1 : i32, i32
  }
  func.func @transform_2(%arg0: i32, %arg1: i32) -> (i32, i32) {
    %c0_i32 = arith.constant 0 : i32
    %c0_i32_0 = arith.constant 0 : i32
    return %c0_i32, %arg1 : i32, i32
  }
  func.func @transform_3(%arg0: i32, %arg1: i32) -> (i32, i32) {
    %c0_i32 = arith.constant 0 : i32
    return %arg0, %arg1 : i32, i32
  }
}

module attributes {stable_mosaic.version = 11 : i64} {
  func.func @_grouped_mm_kernel(%arg0: i32, %arg1: i32, %arg2: i32, %arg3: memref<1x56x384xbf16, #tpu.memory_space<vmem>>, %arg4: memref<1x384x128xbf16, #tpu.memory_space<vmem>>, %arg5: memref<1x1x128xf32, #tpu.memory_space<vmem>>, %arg6: memref<1x56x128xf32, #tpu.memory_space<vmem>>) attributes {dimension_semantics = [#tpu.dimension_semantics<parallel>, #tpu.dimension_semantics<parallel>, #tpu.dimension_semantics<parallel>], iteration_bounds = array<i64: 3, 1, 1>, scalar_prefetch = 0 : i64, scratch_operands = 0 : i64, tpu.core_type = #tpu.core_type<tc>, window_params = [{transform_indices = @transform_0, window_bounds = array<i64: 1, 56, 384>}, {transform_indices = @transform_1, window_bounds = array<i64: 1, 384, 128>}, {transform_indices = @transform_2, window_bounds = array<i64: 1, 1, 128>}, {transform_indices = @transform_3, window_bounds = array<i64: 1, 56, 128>}]} {
    %c0 = arith.constant 0 : index
    %c0_0 = arith.constant 0 : index
    %c0_1 = arith.constant 0 : index
    %0 = vector.load %arg3[%c0, %c0_0, %c0_1] : memref<1x56x384xbf16, #tpu.memory_space<vmem>>, vector<1x56x384xbf16>
    %1 = vector.shape_cast %0 : vector<1x56x384xbf16> to vector<56x384xbf16>
    %c0_2 = arith.constant 0 : index
    %c0_3 = arith.constant 0 : index
    %c0_4 = arith.constant 0 : index
    %2 = vector.load %arg4[%c0_2, %c0_3, %c0_4] : memref<1x384x128xbf16, #tpu.memory_space<vmem>>, vector<1x384x128xbf16>
    %3 = vector.shape_cast %2 : vector<1x384x128xbf16> to vector<384x128xbf16>
    %cst = arith.constant dense<0.000000e+00> : vector<56x128xf32>
    %4 = tpu.matmul %1, %3, %cst {dimension_numbers = #tpu.dot_dimension_numbers<[1], [0], [0], [1], [0, 0, 1, 1], [], []>} : vector<56x384xbf16>, vector<384x128xbf16>, vector<56x128xf32> -> vector<56x128xf32>
    %c0_5 = arith.constant 0 : index
    %c0_6 = arith.constant 0 : index
    %c0_7 = arith.constant 0 : index
    %5 = vector.load %arg5[%c0_5, %c0_6, %c0_7] : memref<1x1x128xf32, #tpu.memory_space<vmem>>, vector<1x1x128xf32>
    %6 = vector.shape_cast %5 : vector<1x1x128xf32> to vector<1x128xf32>
    %7 = vector.broadcast %6 : vector<1x128xf32> to vector<56x128xf32>
    %8 = arith.addf %4, %7 : vector<56x128xf32>
    %cst_8 = arith.constant 0.000000e+00 : f32
    %9 = vector.broadcast %cst_8 : f32 to vector<56x128xf32>
    %10 = arith.maximumf %8, %9 : vector<56x128xf32>
    %c0_9 = arith.constant 0 : index
    %c0_10 = arith.constant 0 : index
    %c0_11 = arith.constant 0 : index
    %11 = vector.load %arg6[%c0_9, %c0_10, %c0_11] : memref<1x56x128xf32, #tpu.memory_space<vmem>>, vector<1x56x128xf32>
    %12 = vector.shape_cast %11 : vector<1x56x128xf32> to vector<56x128xf32>
    %13 = vector.shape_cast %10 : vector<56x128xf32> to vector<1x56x128xf32>
    tpu.vector_store %arg6[%c0_9, %c0_10, %c0_11], %13 {strides = array<i32>} : memref<1x56x128xf32, #tpu.memory_space<vmem>>, vector<1x56x128xf32>,
    return
  }
  func.func @transform_0(%arg0: i32, %arg1: i32, %arg2: i32) -> (i32, i32, i32) {
    %c0_i32 = arith.constant 0 : i32
    %c0_i32_0 = arith.constant 0 : i32
    return %arg0, %arg1, %c0_i32 : i32, i32, i32
  }
  func.func @transform_1(%arg0: i32, %arg1: i32, %arg2: i32) -> (i32, i32, i32) {
    %c0_i32 = arith.constant 0 : i32
    %c0_i32_0 = arith.constant 0 : i32
    return %arg0, %c0_i32, %arg2 : i32, i32, i32
  }
  func.func @transform_2(%arg0: i32, %arg1: i32, %arg2: i32) -> (i32, i32, i32) {
    %c0_i32 = arith.constant 0 : i32
    %c0_i32_0 = arith.constant 0 : i32
    return %arg0, %c0_i32, %arg2 : i32, i32, i32
  }
  func.func @transform_3(%arg0: i32, %arg1: i32, %arg2: i32) -> (i32, i32, i32) {
    %c0_i32 = arith.constant 0 : i32
    return %arg0, %arg1, %arg2 : i32, i32, i32
  }
}

module attributes {stable_mosaic.version = 11 : i64} {
  func.func @_mm_acc_kernel(%arg0: i32, %arg1: i32, %arg2: i32, %arg3: memref<56x512xbf16, #tpu.memory_space<vmem>>, %arg4: memref<512x128xbf16, #tpu.memory_space<vmem>>, %arg5: memref<1x128xf32, #tpu.memory_space<vmem>>, %arg6: memref<56x128xf32, #tpu.memory_space<vmem>>, %arg7: memref<56x128xf32, #tpu.memory_space<vmem>>) attributes {dimension_semantics = [#tpu.dimension_semantics<parallel>, #tpu.dimension_semantics<parallel>, #tpu.dimension_semantics<arbitrary>], iteration_bounds = array<i64: 1, 1, 3>, scalar_prefetch = 0 : i64, scratch_operands = 1 : i64, tpu.core_type = #tpu.core_type<tc>, window_params = [{transform_indices = @transform_0, window_bounds = array<i64: 56, 512>}, {transform_indices = @transform_1, window_bounds = array<i64: 512, 128>}, {transform_indices = @transform_2, window_bounds = array<i64: 1, 128>}, {transform_indices = @transform_3, window_bounds = array<i64: 56, 128>}]} {
    %c0_i32 = arith.constant 0 : i32
    %0 = arith.cmpi eq, %arg2, %c0_i32 : i32
    %1 = arith.extui %0 : i1 to i32
    %c0_i32_0 = arith.constant 0 : i32
    %2 = arith.cmpi ne, %1, %c0_i32_0 : i32
    scf.if %2 {
      %cst_9 = arith.constant 0.000000e+00 : f32
      %12 = vector.broadcast %cst_9 : f32 to vector<56x128xf32>
      %c0_10 = arith.constant 0 : index
      %c0_11 = arith.constant 0 : index
      %13 = vector.load %arg7[%c0_10, %c0_11] : memref<56x128xf32, #tpu.memory_space<vmem>>, vector<56x128xf32>
      tpu.vector_store %arg7[%c0_10, %c0_11], %12 {strides = array<i32>} : memref<56x128xf32, #tpu.memory_space<vmem>>, vector<56x128xf32>,
    } else {
    }
    %c0 = arith.constant 0 : index
    %c0_1 = arith.constant 0 : index
    %3 = vector.load %arg7[%c0, %c0_1] : memref<56x128xf32, #tpu.memory_space<vmem>>, vector<56x128xf32>
    %c0_2 = arith.constant 0 : index
    %c0_3 = arith.constant 0 : index
    %4 = vector.load %arg3[%c0_2, %c0_3] : memref<56x512xbf16, #tpu.memory_space<vmem>>, vector<56x512xbf16>
    %c0_4 = arith.constant 0 : index
    %c0_5 = arith.constant 0 : index
    %5 = vector.load %arg4[%c0_4, %c0_5] : memref<512x128xbf16, #tpu.memory_space<vmem>>, vector<512x128xbf16>
    %cst = arith.constant dense<0.000000e+00> : vector<56x128xf32>
    %6 = tpu.matmul %4, %5, %cst {dimension_numbers = #tpu.dot_dimension_numbers<[1], [0], [0], [1], [0, 0, 1, 1], [], []>} : vector<56x512xbf16>, vector<512x128xbf16>, vector<56x128xf32> -> vector<56x128xf32>
    %7 = arith.addf %3, %6 : vector<56x128xf32>
    %c0_6 = arith.constant 0 : index
    %c0_7 = arith.constant 0 : index
    %8 = vector.load %arg7[%c0_6, %c0_7] : memref<56x128xf32, #tpu.memory_space<vmem>>, vector<56x128xf32>
    tpu.vector_store %arg7[%c0_6, %c0_7], %7 {strides = array<i32>} : memref<56x128xf32, #tpu.memory_space<vmem>>, vector<56x128xf32>,
    %c2_i32 = arith.constant 2 : i32
    %9 = arith.cmpi eq, %arg2, %c2_i32 : i32
    %10 = arith.extui %9 : i1 to i32
    %c0_i32_8 = arith.constant 0 : i32
    %11 = arith.cmpi ne, %10, %c0_i32_8 : i32
    scf.if %11 {
      %c0_9 = arith.constant 0 : index
      %c0_10 = arith.constant 0 : index
      %12 = vector.load %arg7[%c0_9, %c0_10] : memref<56x128xf32, #tpu.memory_space<vmem>>, vector<56x128xf32>
      %c0_11 = arith.constant 0 : index
      %c0_12 = arith.constant 0 : index
      %13 = vector.load %arg5[%c0_11, %c0_12] : memref<1x128xf32, #tpu.memory_space<vmem>>, vector<1x128xf32>
      %14 = vector.broadcast %13 : vector<1x128xf32> to vector<56x128xf32>
      %15 = arith.addf %12, %14 : vector<56x128xf32>
      %cst_13 = arith.constant 0.000000e+00 : f32
      %16 = vector.broadcast %cst_13 : f32 to vector<56x128xf32>
      %17 = arith.maximumf %15, %16 : vector<56x128xf32>
      %c0_14 = arith.constant 0 : index
      %c0_15 = arith.constant 0 : index
      %18 = vector.load %arg6[%c0_14, %c0_15] : memref<56x128xf32, #tpu.memory_space<vmem>>, vector<56x128xf32>
      tpu.vector_store %arg6[%c0_14, %c0_15], %17 {strides = array<i32>} : memref<56x128xf32, #tpu.memory_space<vmem>>, vector<56x128xf32>,
    } else {
    }
    return
  }
  func.func @transform_0(%arg0: i32, %arg1: i32, %arg2: i32) -> (i32, i32) {
    %c0_i32 = arith.constant 0 : i32
    return %arg0, %arg2 : i32, i32
  }
  func.func @transform_1(%arg0: i32, %arg1: i32, %arg2: i32) -> (i32, i32) {
    %c0_i32 = arith.constant 0 : i32
    return %arg2, %arg1 : i32, i32
  }
  func.func @transform_2(%arg0: i32, %arg1: i32, %arg2: i32) -> (i32, i32) {
    %c0_i32 = arith.constant 0 : i32
    %c0_i32_0 = arith.constant 0 : i32
    return %c0_i32, %arg1 : i32, i32
  }
  func.func @transform_3(%arg0: i32, %arg1: i32, %arg2: i32) -> (i32, i32) {
    %c0_i32 = arith.constant 0 : i32
    return %arg0, %arg1 : i32, i32
  }
}

module attributes {stable_mosaic.version = 11 : i64} {
  func.func @_mm_single_kernel(%arg0: i32, %arg1: i32, %arg2: memref<56x128xbf16, #tpu.memory_space<vmem>>, %arg3: memref<128x128xbf16, #tpu.memory_space<vmem>>, %arg4: memref<1x128xf32, #tpu.memory_space<vmem>>, %arg5: memref<56x128xf32, #tpu.memory_space<vmem>>) attributes {dimension_semantics = [#tpu.dimension_semantics<parallel>, #tpu.dimension_semantics<parallel>], iteration_bounds = array<i64: 1, 1>, scalar_prefetch = 0 : i64, scratch_operands = 0 : i64, tpu.core_type = #tpu.core_type<tc>, window_params = [{transform_indices = @transform_0, window_bounds = array<i64: 56, 128>}, {transform_indices = @transform_1, window_bounds = array<i64: 128, 128>}, {transform_indices = @transform_2, window_bounds = array<i64: 1, 128>}, {transform_indices = @transform_3, window_bounds = array<i64: 56, 128>}]} {
    %c0 = arith.constant 0 : index
    %c0_0 = arith.constant 0 : index
    %0 = vector.load %arg2[%c0, %c0_0] : memref<56x128xbf16, #tpu.memory_space<vmem>>, vector<56x128xbf16>
    %c0_1 = arith.constant 0 : index
    %c0_2 = arith.constant 0 : index
    %1 = vector.load %arg3[%c0_1, %c0_2] : memref<128x128xbf16, #tpu.memory_space<vmem>>, vector<128x128xbf16>
    %cst = arith.constant dense<0.000000e+00> : vector<56x128xf32>
    %2 = tpu.matmul %0, %1, %cst {dimension_numbers = #tpu.dot_dimension_numbers<[1], [0], [0], [1], [0, 0, 1, 1], [], []>} : vector<56x128xbf16>, vector<128x128xbf16>, vector<56x128xf32> -> vector<56x128xf32>
    %c0_3 = arith.constant 0 : index
    %c0_4 = arith.constant 0 : index
    %3 = vector.load %arg4[%c0_3, %c0_4] : memref<1x128xf32, #tpu.memory_space<vmem>>, vector<1x128xf32>
    %4 = vector.broadcast %3 : vector<1x128xf32> to vector<56x128xf32>
    %5 = arith.addf %2, %4 : vector<56x128xf32>
    %c0_5 = arith.constant 0 : index
    %c0_6 = arith.constant 0 : index
    %6 = vector.load %arg5[%c0_5, %c0_6] : memref<56x128xf32, #tpu.memory_space<vmem>>, vector<56x128xf32>
    tpu.vector_store %arg5[%c0_5, %c0_6], %5 {strides = array<i32>} : memref<56x128xf32, #tpu.memory_space<vmem>>, vector<56x128xf32>,
    return
  }
  func.func @transform_0(%arg0: i32, %arg1: i32) -> (i32, i32) {
    %c0_i32 = arith.constant 0 : i32
    %c0_i32_0 = arith.constant 0 : i32
    return %arg0, %c0_i32 : i32, i32
  }
  func.func @transform_1(%arg0: i32, %arg1: i32) -> (i32, i32) {
    %c0_i32 = arith.constant 0 : i32
    %c0_i32_0 = arith.constant 0 : i32
    return %c0_i32, %arg1 : i32, i32
  }
  func.func @transform_2(%arg0: i32, %arg1: i32) -> (i32, i32) {
    %c0_i32 = arith.constant 0 : i32
    %c0_i32_0 = arith.constant 0 : i32
    return %c0_i32, %arg1 : i32, i32
  }
  func.func @transform_3(%arg0: i32, %arg1: i32) -> (i32, i32) {
    %c0_i32 = arith.constant 0 : i32
    return %arg0, %arg1 : i32, i32
  }
}

</mosaic_0001>

<llo_original>
// kernel: sagnn_forward.28
$region0: #{sagnn_forward.28}
  #allocation0 [shape = 'u32[]', space=smem, size = 0x4, offset = 0x4, fixed_abs, tag = 'smem constant byte address 0x4 - core index']
  #allocation1 [shape = 'u32[144,128]{1,0:T(1,128)}', space=vmem, size = 0x12000, scoped, tag = 'internal scratch']
  %s0 = inlined_call_operand.vmem [shape: bf16[1280,128], index: 0, kind: input, shape index: {}]
  %s1 = inlined_call_operand.vmem [shape: bf16[128,128], index: 1, kind: input, shape index: {}]
  %s2 = inlined_call_operand.vmem [shape: f32[1,128], index: 2, kind: input, shape index: {}]
  %s3 = inlined_call_operand.vmem [shape: f32[1280,128], index: 3, kind: output, shape index: {}]
  %s4 = sld [smem:[#allocation0]]
  $region45: #{sagnn_forward.28} parent=0
    _
  %s6 = ssub.s32 1, %s4
  %s7 = scalar_select 0, %s6, %s4
  loop: start=0, step=1, limit=7
  $region2: #{sagnn_forward.28} parent=0 // loop_pre_header
    _
  $region3: #{sagnn_forward.28} parent=0 // loop_header
    %s9 = sphi 0, %s13
    %p10 = scmp.ge.s32.totalorder %s9, 7
    %s16 = sphi 0, %s28
    %s17 = sphi 0, %s24
    %s18 = sphi 0, %s16
    %s19 = sphi 0, %s17
    %s20 = sphi 0, %s18
    %s21 = sphi 0, %s19
    %s31 = sphi 0, %s33
    %s34 = sphi 0, %s31
    %s35 = sphi 0, %s34
    %s51 = sphi 0, %s35
    %s57 = sphi 0, %s59
    %s60 = sphi 0, %s57
    %s61 = sphi 0, %s60
    %s77 = sphi 0, %s61
    %s83 = sphi 0, %s85
    %s86 = sphi 0, %s83
    %s87 = sphi 0, %s86
    %s103 = sphi 0, %s87
    %s111 = sphi 0, %s113
    %s114 = sphi 0, %s111
    %s115 = sphi 0, %s114
    %s131 = sphi 0, %s115
  $region4: #{sagnn_forward.28} parent=0 // loop_header_branch
    %12 = sbr.rel (%p10) target = $region8
  $region5: #{sagnn_forward.28} parent=0 // loop_body
    %s14 = ssub.s32 %s9, 1
    %s15 = ssub.s32 %s9, 2
    %s22 = sadd.s32 1, %s17
    %p23 = scmp.ge.s32.totalorder %s22, 1
    %s24 = scalar_select %p23, 0, %s22
    %s25 = sadd.s32 1, %s16
    %s26 = scalar_select %p23, %s25, %s16
    %p27 = scmp.ge.s32.totalorder %s26, 5
    %s28 = scalar_select %p27, 0, %s26
    %s29 = ssub.s32 %s16, %s28
    %p30 = scmp.eq.s32.totalorder %s29, 0
    %s32 = sadd.s32 %s31, 1
    %s33 = scalar_select %p30, %s31, %s32
    %p36 = pneg %p30
    %p37 = scmp.eq.s32.totalorder %s9, 4
    %p38 = por %p36, %p37
    %p39 = scmp.ne.s32.totalorder %s31, %s34
    %p40 = scmp.eq.s32.totalorder %s9, 0
    %p41 = por %p39, %p40
    %p42 = scmp.ne.s32.totalorder %s31, %s34
    %p43 = scmp.eq.s32.totalorder %s14, 4
    %p44 = por %p42, %p43
    %p45 = scmp.ne.s32.totalorder %s34, %s35
    %p46 = scmp.eq.s32.totalorder %s14, 0
    %p47 = por %p45, %p46
    %p48 = scmp.ne.s32.totalorder %s34, %s35
    %p49 = scmp.eq.s32.totalorder %s15, 4
    %p50 = por %p48, %p49
    %p52 = scmp.ne.s32.totalorder %s35, %s51
    %p53 = scmp.eq.s32.totalorder %s15, 0
    %p54 = por %p52, %p53
    %s55 = ssub.s32 %s17, %s24
    %p56 = scmp.eq.s32.totalorder %s55, 0
    %s58 = sadd.s32 %s57, 1
    %s59 = scalar_select %p56, %s57, %s58
    %p62 = pneg %p56
    %p63 = scmp.eq.s32.totalorder %s9, 4
    %p64 = por %p62, %p63
    %p65 = scmp.ne.s32.totalorder %s57, %s60
    %p66 = scmp.eq.s32.totalorder %s9, 0
    %p67 = por %p65, %p66
    %p68 = scmp.ne.s32.totalorder %s57, %s60
    %p69 = scmp.eq.s32.totalorder %s14, 4
    %p70 = por %p68, %p69
    %p71 = scmp.ne.s32.totalorder %s60, %s61
    %p72 = scmp.eq.s32.totalorder %s14, 0
    %p73 = por %p71, %p72
    %p74 = scmp.ne.s32.totalorder %s60, %s61
    %p75 = scmp.eq.s32.totalorder %s15, 4
    %p76 = por %p74, %p75
    %p78 = scmp.ne.s32.totalorder %s61, %s77
    %p79 = scmp.eq.s32.totalorder %s15, 0
    %p80 = por %p78, %p79
    %s81 = ssub.s32 %s17, %s24
    %p82 = scmp.eq.s32.totalorder %s81, 0
    %s84 = sadd.s32 %s83, 1
    %s85 = scalar_select %p82, %s83, %s84
    %p88 = pneg %p82
    %p89 = scmp.eq.s32.totalorder %s9, 4
    %p90 = por %p88, %p89
    %p91 = scmp.ne.s32.totalorder %s83, %s86
    %p92 = scmp.eq.s32.totalorder %s9, 0
    %p93 = por %p91, %p92
    %p94 = scmp.ne.s32.totalorder %s83, %s86
    %p95 = scmp.eq.s32.totalorder %s14, 4
    %p96 = por %p94, %p95
    %p97 = scmp.ne.s32.totalorder %s86, %s87
    %p98 = scmp.eq.s32.totalorder %s14, 0
    %p99 = por %p97, %p98
    %p100 = scmp.ne.s32.totalorder %s86, %s87
    %p101 = scmp.eq.s32.totalorder %s15, 4
    %p102 = por %p100, %p101
    %p104 = scmp.ne.s32.totalorder %s87, %s103
    %p105 = scmp.eq.s32.totalorder %s15, 0
    %p106 = por %p104, %p105
    %s107 = ssub.s32 %s16, %s28
    %s108 = ssub.s32 %s17, %s24
    %s109 = sor.u32 %s107, %s108
    %p110 = scmp.eq.s32.totalorder %s109, 0
    %s112 = sadd.s32 %s111, 1
    %s113 = scalar_select %p110, %s111, %s112
    %p116 = pneg %p110
    %p117 = scmp.eq.s32.totalorder %s9, 4
    %p118 = por %p116, %p117
    %p119 = scmp.ne.s32.totalorder %s111, %s114
    %p120 = scmp.eq.s32.totalorder %s9, 0
    %p121 = por %p119, %p120
    %p122 = scmp.ne.s32.totalorder %s111, %s114
    %p123 = scmp.eq.s32.totalorder %s14, 4
    %p124 = por %p122, %p123
    %p125 = scmp.ne.s32.totalorder %s114, %s115
    %p126 = scmp.eq.s32.totalorder %s14, 0
    %p127 = por %p125, %p126
    %p128 = scmp.ne.s32.totalorder %s114, %s115
    %p129 = scmp.eq.s32.totalorder %s15, 4
    %p130 = por %p128, %p129
    %p132 = scmp.ne.s32.totalorder %s115, %s131
    %p133 = scmp.eq.s32.totalorder %s15, 0
    %p134 = por %p132, %p133
    %p135 = scmp.le.s32.totalorder 1, %s9
    %p136 = scmp.lt.s32.totalorder %s9, 6
    %p137 = pnand %p135, %p136
    %p138 = pneg %p137
    // Predicated region
    $region9: #{sagnn_forward.28} parent=5 // pred_check
      _
    $region10: #{sagnn_forward.28} parent=5 // pred_check_branch
      %140 = sbr.rel (%p137) target = $region12
    $region11: #{sagnn_forward.28} parent=5 // pred_region
      %s141 = ssub.s32 %s9, 1
      // Predicated region
      $region13: #{sagnn_forward.28} parent=11 // pred_check
        %p142 = pneg %p73
      $region14: #{sagnn_forward.28} parent=11 // pred_check_branch
        %144 = sbr.rel (%p142) target = $region16
      $region15: #{sagnn_forward.28} parent=11 // pred_region
        %p145 = scmp.lt.s32.totalorder %s19, 0
        %s146 = scalar_select %p145, %s19, 0
        %s147 = smul.addr %s146, 4
        %s148 = scalar_lea.vmem %s1, %s147
      $region16: #{sagnn_forward.28} parent=11 // pred_fallthru
        _
      // Predicated region
      $region17: #{sagnn_forward.28} parent=11 // pred_check
        %p149 = pneg %p99
      $region18: #{sagnn_forward.28} parent=11 // pred_check_branch
        %151 = sbr.rel (%p149) target = $region20
      $region19: #{sagnn_forward.28} parent=11 // pred_region
        %p152 = scmp.lt.s32.totalorder %s19, 0
        %s153 = scalar_select %p152, %s19, 0
        %s154 = scalar_lea.vmem %s2, %s153
      $region20: #{sagnn_forward.28} parent=11 // pred_fallthru
        _
    $region12: #{sagnn_forward.28} parent=5 // pred_fallthru
      _
    %p155 = scmp.lt.s32.totalorder %s9, 5
    // Predicated region
    $region21: #{sagnn_forward.28} parent=5 // pred_check
      %p156 = pneg %p155
    $region22: #{sagnn_forward.28} parent=5 // pred_check_branch
      %158 = sbr.rel (%p156) target = $region24
    $region23: #{sagnn_forward.28} parent=5 // pred_region
      // Predicated region
      $region25: #{sagnn_forward.28} parent=23 // pred_check
        %p159 = pneg %p41
      $region26: #{sagnn_forward.28} parent=23 // pred_check_branch
        %161 = sbr.rel (%p159) target = $region28
      $region27: #{sagnn_forward.28} parent=23 // pred_region
        %s162 = smul.u32 32, %s16
        %p163 = scmp.lt.s32.totalorder %s162, 159
        %s164 = scalar_select %p163, %s162, 159
        %s165 = smul.addr %s164, 4
        %s166 = scalar_lea.vmem %s0, %s165
        %s167 = smul.u32 32, %s16
      $region28: #{sagnn_forward.28} parent=23 // pred_fallthru
        _
    $region24: #{sagnn_forward.28} parent=5 // pred_fallthru
      _
    %p168 = scmp.le.s32.totalorder 1, %s9
    %p169 = scmp.lt.s32.totalorder %s9, 6
    %p170 = pnand %p168, %p169
    %p171 = pneg %p170
    // Predicated region
    $region29: #{sagnn_forward.28} parent=5 // pred_check
      _
    $region30: #{sagnn_forward.28} parent=5 // pred_check_branch
      %173 = sbr.rel (%p170) target = $region32
    $region31: #{sagnn_forward.28} parent=5 // pred_region
      %s174 = ssub.s32 %s9, 1
      %s175 = smul.u32 32, %s18
      %p176 = scmp.lt.s32.totalorder %s175, 159
      %s177 = scalar_select %p176, %s175, 159
      %s178 = smul.addr %s177, 4
      %s179 = scalar_lea.vmem %s0, %s178
      %p180 = pneg %p47
      %p181 = pneg %p44
      %p182 = scmp.lt.s32.totalorder %s19, 0
      %s183 = scalar_select %p182, %s19, 0
      %s184 = smul.addr %s183, 4
      %s185 = scalar_lea.vmem %s1, %s184
      %p186 = pneg %p73
      %p187 = pneg %p70
      %p188 = scmp.lt.s32.totalorder %s19, 0
      %s189 = scalar_select %p188, %s19, 0
      %s190 = scalar_lea.vmem %s2, %s189
      %p191 = pneg %p99
      %p192 = pneg %p96
      %p193 = pneg %p127
      %p194 = pneg %p124
      %s195 = smul.u32 32, %s18
      %p196 = scmp.lt.s32.totalorder %s195, 159
      %s197 = scalar_select %p196, %s195, 159
      %p198 = scmp.lt.s32.totalorder %s19, 0
      %s199 = scalar_select %p198, %s19, 0
      %s200 = sadd.s32 %s199, %s197
      %s201 = smul.addr %s200, 8
      %s202 = scalar_lea.vmem %s3, %s201
      %s203 = smul.u32 32, %s18
      %p204 = scmp.lt.s32.totalorder %s203, 159
      %s205 = scalar_select %p204, %s203, 159
      %s206 = smul.addr %s205, 4
      %s207 = scalar_lea.vmem %s0, %s206
      %s208 = smul.u32 32, %s18
      %p209 = scmp.lt.s32.totalorder %s19, 0
      %s210 = scalar_select %p209, %s19, 0
      %s211 = smul.addr %s210, 4
      %s212 = scalar_lea.vmem %s1, %s211
      %p213 = scmp.lt.s32.totalorder %s19, 0
      %s214 = scalar_select %p213, %s19, 0
      %s215 = scalar_lea.vmem %s2, %s214
      %s216 = smul.u32 32, %s18
      %p217 = scmp.lt.s32.totalorder %s216, 159
      %s218 = scalar_select %p217, %s216, 159
      %p219 = scmp.lt.s32.totalorder %s19, 0
      %s220 = scalar_select %p219, %s19, 0
      %s221 = sadd.s32 %s220, %s218
      %s222 = smul.addr %s221, 8
      %s223 = scalar_lea.vmem %s3, %s222
      %s224 = smul.u32 32, %s18
      %v226 = vld [vmem:[%s207] sm:$0xf]
      %v227 = vld [vmem:[%s207 + $0x4] sm:$0xf]
      %v228 = vld [vmem:[%s207 + $0x8] sm:$0xf]
      %v229 = vld [vmem:[%s207 + $0xc] sm:$0xf]
      %v230 = vld [vmem:[%s207 + $0x10] sm:$0xf]
      %v231 = vld [vmem:[%s207 + $0x14] sm:$0xf]
      %v232 = vld [vmem:[%s207 + $0x18] sm:$0xf]
      %v233 = vld [vmem:[%s207 + $0x1c] sm:$0xf]
      %v234 = vld [vmem:[%s207 + $0x20] sm:$0xf]
      %v235 = vld [vmem:[%s207 + $0x24] sm:$0xf]
      %v236 = vld [vmem:[%s207 + $0x28] sm:$0xf]
      %v237 = vld [vmem:[%s207 + $0x2c] sm:$0xf]
      %v238 = vld [vmem:[%s207 + $0x30] sm:$0xf]
      %v239 = vld [vmem:[%s207 + $0x34] sm:$0xf]
      %v240 = vld [vmem:[%s207 + $0x38] sm:$0xf]
      %v241 = vld [vmem:[%s207 + $0x3c] sm:$0xf]
      %v242 = vld [vmem:[%s207 + $0x40] sm:$0xf]
      %v243 = vld [vmem:[%s207 + $0x44] sm:$0xf]
      %v244 = vld [vmem:[%s207 + $0x48] sm:$0xf]
      %v245 = vld [vmem:[%s207 + $0x4c] sm:$0xf]
      %v246 = vld [vmem:[%s207 + $0x50] sm:$0xf]
      %v247 = vld [vmem:[%s207 + $0x54] sm:$0xf]
      %v248 = vld [vmem:[%s207 + $0x58] sm:$0xf]
      %v249 = vld [vmem:[%s207 + $0x5c] sm:$0xf]
      %v250 = vld [vmem:[%s207 + $0x60] sm:$0xf]
      %v251 = vld [vmem:[%s207 + $0x64] sm:$0xf]
      %v252 = vld [vmem:[%s207 + $0x68] sm:$0xf]
      %v253 = vld [vmem:[%s207 + $0x6c] sm:$0xf]
      %v254 = vld [vmem:[%s207 + $0x70] sm:$0xf]
      %v255 = vld [vmem:[%s207 + $0x74] sm:$0xf]
      %v256 = vld [vmem:[%s207 + $0x78] sm:$0xf]
      %v257 = vld [vmem:[%s207 + $0x7c] sm:$0xf]
      %v258 = vld [vmem:[%s212] sm:$0xf]
      %v259 = vld [vmem:[%s212 + $0x4] sm:$0xf]
      %v260 = vld [vmem:[%s212 + $0x8] sm:$0xf]
      %v261 = vld [vmem:[%s212 + $0xc] sm:$0xf]
      %v262 = vld [vmem:[%s212 + $0x10] sm:$0xf]
      %v263 = vld [vmem:[%s212 + $0x14] sm:$0xf]
      %v264 = vld [vmem:[%s212 + $0x18] sm:$0xf]
      %v265 = vld [vmem:[%s212 + $0x1c] sm:$0xf]
      %v266 = vld [vmem:[%s212 + $0x20] sm:$0xf]
      %v267 = vld [vmem:[%s212 + $0x24] sm:$0xf]
      %v268 = vld [vmem:[%s212 + $0x28] sm:$0xf]
      %v269 = vld [vmem:[%s212 + $0x2c] sm:$0xf]
      %v270 = vld [vmem:[%s212 + $0x30] sm:$0xf]
      %v271 = vld [vmem:[%s212 + $0x34] sm:$0xf]
      %v272 = vld [vmem:[%s212 + $0x38] sm:$0xf]
      %v273 = vld [vmem:[%s212 + $0x3c] sm:$0xf]
      %v274 = vld [vmem:[%s215] sm:$0x1]
      %v276 = vlaneseq
      %v277 = vshrl.u32 %v276, 7
      %v278 = vsub.s32 0, %v277
      %v279 = vrot.slane %v274, %v278
      %v313 = vunpack.c.l.b16 %v226
      %v314 = vunpack.c.l.b16 %v227
      %v315 = vunpack.c.l.b16 %v228
      %v316 = vunpack.c.l.b16 %v229
      %v317 = vunpack.c.l.b16 %v230
      %v318 = vunpack.c.l.b16 %v231
      %v319 = vunpack.c.l.b16 %v232
      %v320 = vunpack.c.l.b16 %v233
      %v321 = vunpack.c.l.b16 %v234
      %v322 = vunpack.c.l.b16 %v235
      %v323 = vunpack.c.l.b16 %v236
      %v324 = vunpack.c.l.b16 %v237
      %v325 = vunpack.c.l.b16 %v238
      %v326 = vunpack.c.l.b16 %v239
      %v327 = vunpack.c.l.b16 %v240
      %v328 = vunpack.c.l.b16 %v241
      %v329 = vunpack.c.l.b16 %v242
      %v330 = vunpack.c.l.b16 %v243
      %v331 = vunpack.c.l.b16 %v244
      %v332 = vunpack.c.l.b16 %v245
      %v333 = vunpack.c.l.b16 %v246
      %v334 = vunpack.c.l.b16 %v247
      %v335 = vunpack.c.l.b16 %v248
      %v336 = vunpack.c.l.b16 %v249
      %v337 = vunpack.c.l.b16 %v250
      %v338 = vunpack.c.l.b16 %v251
      %v339 = vunpack.c.l.b16 %v252
      %v340 = vunpack.c.l.b16 %v253
      %v341 = vunpack.c.l.b16 %v254
      %v342 = vunpack.c.l.b16 %v255
      %v343 = vunpack.c.l.b16 %v256
      %v344 = vunpack.c.l.b16 %v257
      %v345 = vpack.c.b16 %v314, %v313
      %v346 = vpack.c.b16 %v316, %v315
      %v347 = vpack.c.b16 %v318, %v317
      %v348 = vpack.c.b16 %v320, %v319
      %v349 = vpack.c.b16 %v322, %v321
      %v350 = vpack.c.b16 %v324, %v323
      %v351 = vpack.c.b16 %v326, %v325
      %v352 = vpack.c.b16 %v328, %v327
      %v353 = vpack.c.b16 %v330, %v329
      %v354 = vpack.c.b16 %v332, %v331
      %v355 = vpack.c.b16 %v334, %v333
      %v356 = vpack.c.b16 %v336, %v335
      %v357 = vpack.c.b16 %v338, %v337
      %v358 = vpack.c.b16 %v340, %v339
      %v359 = vpack.c.b16 %v342, %v341
      %v360 = vpack.c.b16 %v344, %v343
      %v393 = vunpack.c.l.b16 %v258
      %v394 = vunpack.c.l.b16 %v259
      %v395 = vunpack.c.l.b16 %v260
      %v396 = vunpack.c.l.b16 %v261
      %v397 = vunpack.c.l.b16 %v262
      %v398 = vunpack.c.l.b16 %v263
      %v399 = vunpack.c.l.b16 %v264
      %v400 = vunpack.c.l.b16 %v265
      %v401 = vunpack.c.l.b16 %v266
      %v402 = vunpack.c.l.b16 %v267
      %v403 = vunpack.c.l.b16 %v268
      %v404 = vunpack.c.l.b16 %v269
      %v405 = vunpack.c.l.b16 %v270
      %v406 = vunpack.c.l.b16 %v271
      %v407 = vunpack.c.l.b16 %v272
      %v408 = vunpack.c.l.b16 %v273
      %v409 = vpack.c.b16 %v394, %v393
      %v410 = vpack.c.b16 %v396, %v395
      %v411 = vpack.c.b16 %v398, %v397
      %v412 = vpack.c.b16 %v400, %v399
      %v413 = vpack.c.b16 %v402, %v401
      %v414 = vpack.c.b16 %v404, %v403
      %v415 = vpack.c.b16 %v406, %v405
      %v416 = vpack.c.b16 %v408, %v407
      %425 = vmatprep.subr.bf16.mxu0 0
      %426 = vmatpush1.bf16.msra.mxu0 %v409
      %427 = vmatprep.subr.bf16.mxu0 0
      %428 = vmatpush1.bf16.msra.mxu0 %v410
      %429 = vmatprep.subr.bf16.mxu0 0
      %430 = vmatpush1.bf16.msra.mxu0 %v411
      %431 = vmatprep.subr.bf16.mxu0 0
      %432 = vmatpush1.bf16.msra.mxu0 %v412
      %433 = vmatprep.subr.bf16.mxu0 0
      %434 = vmatpush1.bf16.msra.mxu0 %v413
      %435 = vmatprep.subr.bf16.mxu0 0
      %436 = vmatpush1.bf16.msra.mxu0 %v414
      %437 = vmatprep.subr.bf16.mxu0 0
      %438 = vmatpush1.bf16.msra.mxu0 %v415
      %439 = vmatprep.subr.bf16.mxu0 0
      %440 = vmatpush1.bf16.msra.mxu0 %v416
      %441 = vmatprep.subr.bf16.mxu0 0
      %442 = vmatpush1.bf16.msra.mxu0 0
      %443 = vmatprep.subr.bf16.mxu0 0
      %444 = vmatpush1.bf16.msra.mxu0 0
      %445 = vmatprep.subr.bf16.mxu0 0
      %446 = vmatpush1.bf16.msra.mxu0 0
      %447 = vmatprep.subr.bf16.mxu0 0
      %448 = vmatpush1.bf16.msra.mxu0 0
      %449 = vmatprep.subr.bf16.mxu0 0
      %450 = vmatpush1.bf16.msra.mxu0 0
      %451 = vmatprep.subr.bf16.mxu0 0
      %452 = vmatpush1.bf16.msra.mxu0 0
      %453 = vmatprep.subr.bf16.mxu0 0
      %454 = vmatpush1.bf16.msra.mxu0 0
      %455 = vmatprep.subr.bf16.mxu0 0
      %456 = vmatpush1.bf16.msra.mxu0 0
      %457 = vmatprep.mubr.bf16.mxu0 0
      %458 = vmatmul.mubr.bf16.gmra.mrb[0].mxu0 %v345
      %v459 = vpop.f32.mrb[0].mxu0
      %v460 = vadd.f32 %v279, %v459
      %v461 = vpop.f32.mrb[0].mxu0
      %v462 = vpop.f32.mrb[0].mxu0
      %v463 = vadd.f32 %v279, %v462
      %v464 = vpop.f32.mrb[0].mxu0
      %465 = vmatprep.mubr.bf16.mxu0 0
      %466 = vmatmul.mubr.bf16.gmra.mrb[0].mxu0 %v346
      %v467 = vpop.f32.mrb[0].mxu0
      %v468 = vadd.f32 %v279, %v467
      %v469 = vpop.f32.mrb[0].mxu0
      %v470 = vpop.f32.mrb[0].mxu0
      %v471 = vadd.f32 %v279, %v470
      %v472 = vpop.f32.mrb[0].mxu0
      %473 = vmatprep.mubr.bf16.mxu0 0
      %474 = vmatmul.mubr.bf16.gmra.mrb[0].mxu0 %v347
      %v475 = vpop.f32.mrb[0].mxu0
      %v476 = vadd.f32 %v279, %v475
      %v477 = vpop.f32.mrb[0].mxu0
      %v478 = vpop.f32.mrb[0].mxu0
      %v479 = vadd.f32 %v279, %v478
      %v480 = vpop.f32.mrb[0].mxu0
      %481 = vmatprep.mubr.bf16.mxu0 0
      %482 = vmatmul.mubr.bf16.gmra.mrb[0].mxu0 %v348
      %v483 = vpop.f32.mrb[0].mxu0
      %v484 = vadd.f32 %v279, %v483
      %v485 = vpop.f32.mrb[0].mxu0
      %v486 = vpop.f32.mrb[0].mxu0
      %v487 = vadd.f32 %v279, %v486
      %v488 = vpop.f32.mrb[0].mxu0
      %489 = vmatprep.mubr.bf16.mxu0 0
      %490 = vmatmul.mubr.bf16.gmra.mrb[0].mxu0 %v349
      %v491 = vpop.f32.mrb[0].mxu0
      %v492 = vadd.f32 %v279, %v491
      %v493 = vpop.f32.mrb[0].mxu0
      %v494 = vpop.f32.mrb[0].mxu0
      %v495 = vadd.f32 %v279, %v494
      %v496 = vpop.f32.mrb[0].mxu0
      %497 = vmatprep.mubr.bf16.mxu0 0
      %498 = vmatmul.mubr.bf16.gmra.mrb[0].mxu0 %v350
      %v499 = vpop.f32.mrb[0].mxu0
      %v500 = vadd.f32 %v279, %v499
      %v501 = vpop.f32.mrb[0].mxu0
      %v502 = vpop.f32.mrb[0].mxu0
      %v503 = vadd.f32 %v279, %v502
      %v504 = vpop.f32.mrb[0].mxu0
      %505 = vmatprep.mubr.bf16.mxu0 0
      %506 = vmatmul.mubr.bf16.gmra.mrb[0].mxu0 %v351
      %v507 = vpop.f32.mrb[0].mxu0
      %v508 = vadd.f32 %v279, %v507
      %v509 = vpop.f32.mrb[0].mxu0
      %v510 = vpop.f32.mrb[0].mxu0
      %v511 = vadd.f32 %v279, %v510
      %v512 = vpop.f32.mrb[0].mxu0
      %513 = vmatprep.mubr.bf16.mxu0 0
      %514 = vmatmul.mubr.bf16.gmra.mrb[0].mxu0 %v352
      %v515 = vpop.f32.mrb[0].mxu0
      %v516 = vadd.f32 %v279, %v515
      %v517 = vpop.f32.mrb[0].mxu0
      %v518 = vpop.f32.mrb[0].mxu0
      %v519 = vadd.f32 %v279, %v518
      %v520 = vpop.f32.mrb[0].mxu0
      %521 = vmatprep.mubr.bf16.mxu0 0
      %522 = vmatmul.mubr.bf16.gmra.mrb[0].mxu0 %v353
      %v523 = vpop.f32.mrb[0].mxu0
      %v524 = vadd.f32 %v279, %v523
      %v525 = vpop.f32.mrb[0].mxu0
      %v526 = vpop.f32.mrb[0].mxu0
      %v527 = vadd.f32 %v279, %v526
      %v528 = vpop.f32.mrb[0].mxu0
      %529 = vmatprep.mubr.bf16.mxu0 0
      %530 = vmatmul.mubr.bf16.gmra.mrb[0].mxu0 %v354
      %v531 = vpop.f32.mrb[0].mxu0
      %v532 = vadd.f32 %v279, %v531
      %v533 = vpop.f32.mrb[0].mxu0
      %v534 = vpop.f32.mrb[0].mxu0
      %v535 = vadd.f32 %v279, %v534
      %v536 = vpop.f32.mrb[0].mxu0
      %537 = vmatprep.mubr.bf16.mxu0 0
      %538 = vmatmul.mubr.bf16.gmra.mrb[0].mxu0 %v355
      %v539 = vpop.f32.mrb[0].mxu0
      %v540 = vadd.f32 %v279, %v539
      %v541 = vpop.f32.mrb[0].mxu0
      %v542 = vpop.f32.mrb[0].mxu0
      %v543 = vadd.f32 %v279, %v542
      %v544 = vpop.f32.mrb[0].mxu0
      %545 = vmatprep.mubr.bf16.mxu0 0
      %546 = vmatmul.mubr.bf16.gmra.mrb[0].mxu0 %v356
      %v547 = vpop.f32.mrb[0].mxu0
      %v548 = vadd.f32 %v279, %v547
      %v549 = vpop.f32.mrb[0].mxu0
      %v550 = vpop.f32.mrb[0].mxu0
      %v551 = vadd.f32 %v279, %v550
      %v552 = vpop.f32.mrb[0].mxu0
      %553 = vmatprep.mubr.bf16.mxu0 0
      %554 = vmatmul.mubr.bf16.gmra.mrb[0].mxu0 %v357
      %v555 = vpop.f32.mrb[0].mxu0
      %v556 = vadd.f32 %v279, %v555
      %v557 = vpop.f32.mrb[0].mxu0
      %v558 = vpop.f32.mrb[0].mxu0
      %v559 = vadd.f32 %v279, %v558
      %v560 = vpop.f32.mrb[0].mxu0
      %561 = vmatprep.mubr.bf16.mxu0 0
      %562 = vmatmul.mubr.bf16.gmra.mrb[0].mxu0 %v358
      %v563 = vpop.f32.mrb[0].mxu0
      %v564 = vadd.f32 %v279, %v563
      %v565 = vpop.f32.mrb[0].mxu0
      %v566 = vpop.f32.mrb[0].mxu0
      %v567 = vadd.f32 %v279, %v566
      %v568 = vpop.f32.mrb[0].mxu0
      %569 = vmatprep.mubr.bf16.mxu0 0
      %570 = vmatmul.mubr.bf16.gmra.mrb[0].mxu0 %v359
      %v571 = vpop.f32.mrb[0].mxu0
      %v572 = vadd.f32 %v279, %v571
      %v573 = vpop.f32.mrb[0].mxu0
      %v574 = vpop.f32.mrb[0].mxu0
      %v575 = vadd.f32 %v279, %v574
      %v576 = vpop.f32.mrb[0].mxu0
      %577 = vmatprep.mubr.bf16.mxu0 0
      %578 = vmatmul.mubr.bf16.gmra.mrb[0].mxu0 %v360
      %v579 = vpop.f32.mrb[0].mxu0
      %v580 = vadd.f32 %v279, %v579
      %v581 = vpop.f32.mrb[0].mxu0
      %v582 = vpop.f32.mrb[0].mxu0
      %v583 = vadd.f32 %v279, %v582
      %v584 = vpop.f32.mrb[0].mxu0
      %585 = vdwg.mxu0
      %v586 = vmax.f32 %v460, 0.0
      %v587 = vmax.f32 %v463, 0.0
      %v588 = vmax.f32 %v468, 0.0
      %v589 = vmax.f32 %v471, 0.0
      %v590 = vmax.f32 %v476, 0.0
      %v591 = vmax.f32 %v479, 0.0
      %v592 = vmax.f32 %v484, 0.0
      %v593 = vmax.f32 %v487, 0.0
      %v594 = vmax.f32 %v492, 0.0
      %v595 = vmax.f32 %v495, 0.0
      %v596 = vmax.f32 %v500, 0.0
      %v597 = vmax.f32 %v503, 0.0
      %v598 = vmax.f32 %v508, 0.0
      %v599 = vmax.f32 %v511, 0.0
      %v600 = vmax.f32 %v516, 0.0
      %v601 = vmax.f32 %v519, 0.0
      %v602 = vmax.f32 %v524, 0.0
      %v603 = vmax.f32 %v527, 0.0
      %v604 = vmax.f32 %v532, 0.0
      %v605 = vmax.f32 %v535, 0.0
      %v606 = vmax.f32 %v540, 0.0
      %v607 = vmax.f32 %v543, 0.0
      %v608 = vmax.f32 %v548, 0.0
      %v609 = vmax.f32 %v551, 0.0
      %v610 = vmax.f32 %v556, 0.0
      %v611 = vmax.f32 %v559, 0.0
      %v612 = vmax.f32 %v564, 0.0
      %v613 = vmax.f32 %v567, 0.0
      %v614 = vmax.f32 %v572, 0.0
      %v615 = vmax.f32 %v575, 0.0
      %v616 = vmax.f32 %v580, 0.0
      %v617 = vmax.f32 %v583, 0.0
      %618 = vst [vmem:[%s223] sm:$0xff] %v586
      %619 = vst [vmem:[%s223 + $0x8] sm:$0xff] %v587
      %620 = vst [vmem:[%s223 + $0x10] sm:$0xff] %v588
      %621 = vst [vmem:[%s223 + $0x18] sm:$0xff] %v589
      %622 = vst [vmem:[%s223 + $0x20] sm:$0xff] %v590
      %623 = vst [vmem:[%s223 + $0x28] sm:$0xff] %v591
      %624 = vst [vmem:[%s223 + $0x30] sm:$0xff] %v592
      %625 = vst [vmem:[%s223 + $0x38] sm:$0xff] %v593
      %626 = vst [vmem:[%s223 + $0x40] sm:$0xff] %v594
      %627 = vst [vmem:[%s223 + $0x48] sm:$0xff] %v595
      %628 = vst [vmem:[%s223 + $0x50] sm:$0xff] %v596
      %629 = vst [vmem:[%s223 + $0x58] sm:$0xff] %v597
      %630 = vst [vmem:[%s223 + $0x60] sm:$0xff] %v598
      %631 = vst [vmem:[%s223 + $0x68] sm:$0xff] %v599
      %632 = vst [vmem:[%s223 + $0x70] sm:$0xff] %v600
      %633 = vst [vmem:[%s223 + $0x78] sm:$0xff] %v601
      %634 = vst [vmem:[%s223 + $0x80] sm:$0xff] %v602
      %635 = vst [vmem:[%s223 + $0x88] sm:$0xff] %v603
      %636 = vst [vmem:[%s223 + $0x90] sm:$0xff] %v604
      %637 = vst [vmem:[%s223 + $0x98] sm:$0xff] %v605
      %638 = vst [vmem:[%s223 + $0xa0] sm:$0xff] %v606
      %639 = vst [vmem:[%s223 + $0xa8] sm:$0xff] %v607
      %640 = vst [vmem:[%s223 + $0xb0] sm:$0xff] %v608
      %641 = vst [vmem:[%s223 + $0xb8] sm:$0xff] %v609
      %642 = vst [vmem:[%s223 + $0xc0] sm:$0xff] %v610
      %643 = vst [vmem:[%s223 + $0xc8] sm:$0xff] %v611
      %644 = vst [vmem:[%s223 + $0xd0] sm:$0xff] %v612
      %645 = vst [vmem:[%s223 + $0xd8] sm:$0xff] %v613
      %646 = vst [vmem:[%s223 + $0xe0] sm:$0xff] %v614
      %647 = vst [vmem:[%s223 + $0xe8] sm:$0xff] %v615
      %648 = vst [vmem:[%s223 + $0xf0] sm:$0xff] %v616
      %649 = vst [vmem:[%s223 + $0xf8] sm:$0xff] %v617
      %s650 = smul.u32 32, %s18
      %p651 = scmp.lt.s32.totalorder %s650, 159
      %s652 = scalar_select %p651, %s650, 159
      %p653 = scmp.lt.s32.totalorder %s19, 0
      %s654 = scalar_select %p653, %s19, 0
      %s655 = sadd.s32 %s654, %s652
      %s656 = smul.addr %s655, 8
      %s657 = scalar_lea.vmem %s3, %s656
      // Predicated region
      $region33: #{sagnn_forward.28} parent=31 // pred_check
        %p658 = pneg %p124
      $region34: #{sagnn_forward.28} parent=31 // pred_check_branch
        %660 = sbr.rel (%p658) target = $region36
      $region35: #{sagnn_forward.28} parent=31 // pred_region
        %s661 = smul.u32 32, %s18
      $region36: #{sagnn_forward.28} parent=31 // pred_fallthru
        _
    $region32: #{sagnn_forward.28} parent=5 // pred_fallthru
      _
    %p662 = scmp.le.s32.totalorder 2, %s9
    // Predicated region
    $region37: #{sagnn_forward.28} parent=5 // pred_check
      %p663 = pneg %p662
    $region38: #{sagnn_forward.28} parent=5 // pred_check_branch
      %665 = sbr.rel (%p663) target = $region40
    $region39: #{sagnn_forward.28} parent=5 // pred_region
      %s666 = ssub.s32 %s9, 2
      // Predicated region
      $region41: #{sagnn_forward.28} parent=39 // pred_check
        %p667 = pneg %p130
      $region42: #{sagnn_forward.28} parent=39 // pred_check_branch
        %669 = sbr.rel (%p667) target = $region44
      $region43: #{sagnn_forward.28} parent=39 // pred_region
        %s670 = smul.u32 32, %s20
        %p671 = scmp.lt.s32.totalorder %s670, 159
        %s672 = scalar_select %p671, %s670, 159
        %p673 = scmp.lt.s32.totalorder %s21, 0
        %s674 = scalar_select %p673, %s21, 0
        %s675 = sadd.s32 %s674, %s672
        %s676 = smul.addr %s675, 8
        %s677 = scalar_lea.vmem %s3, %s676
      $region44: #{sagnn_forward.28} parent=39 // pred_fallthru
        _
    $region40: #{sagnn_forward.28} parent=5 // pred_fallthru
      _
  $region6: #{sagnn_forward.28} parent=0 // loop_footer
    %s13 = sadd.s32 1, %s9
  $region7: #{sagnn_forward.28} parent=0 // loop_footer_branch
    %8 = sbr.rel target = $region3
  $region8: #{sagnn_forward.28} parent=0 // loop_exit
    _

// kernel: sagnn_forward.29
$region0: #{sagnn_forward.29}
  #allocation0 [shape = 'u32[]', space=smem, size = 0x4, offset = 0x4, fixed_abs, tag = 'smem constant byte address 0x4 - core index']
  #allocation1 [shape = 'u32[144,128]{1,0:T(1,128)}', space=vmem, size = 0x12000, scoped, tag = 'internal scratch']
  %s0 = inlined_call_operand.vmem [shape: bf16[512,128], index: 0, kind: input, shape index: {}]
  %s1 = inlined_call_operand.vmem [shape: bf16[128,128], index: 1, kind: input, shape index: {}]
  %s2 = inlined_call_operand.vmem [shape: f32[1,128], index: 2, kind: input, shape index: {}]
  %s3 = inlined_call_operand.vmem [shape: f32[512,128], index: 3, kind: output, shape index: {}]
  %s4 = sld [smem:[#allocation0]]
  $region45: #{sagnn_forward.29} parent=0
    _
  %s6 = ssub.s32 1, %s4
  %s7 = scalar_select 0, %s6, %s4
  loop: start=0, step=1, limit=4
  $region2: #{sagnn_forward.29} parent=0 // loop_pre_header
    _
  $region3: #{sagnn_forward.29} parent=0 // loop_header
    %s9 = sphi 0, %s13
    %p10 = scmp.ge.s32.totalorder %s9, 4
    %s16 = sphi 0, %s28
    %s17 = sphi 0, %s24
    %s18 = sphi 0, %s16
    %s19 = sphi 0, %s17
    %s20 = sphi 0, %s18
    %s21 = sphi 0, %s19
    %s31 = sphi 0, %s33
    %s34 = sphi 0, %s31
    %s35 = sphi 0, %s34
    %s51 = sphi 0, %s35
    %s57 = sphi 0, %s59
    %s60 = sphi 0, %s57
    %s61 = sphi 0, %s60
    %s77 = sphi 0, %s61
    %s83 = sphi 0, %s85
    %s86 = sphi 0, %s83
    %s87 = sphi 0, %s86
    %s103 = sphi 0, %s87
    %s111 = sphi 0, %s113
    %s114 = sphi 0, %s111
    %s115 = sphi 0, %s114
    %s131 = sphi 0, %s115
  $region4: #{sagnn_forward.29} parent=0 // loop_header_branch
    %12 = sbr.rel (%p10) target = $region8
  $region5: #{sagnn_forward.29} parent=0 // loop_body
    %s14 = ssub.s32 %s9, 1
    %s15 = ssub.s32 %s9, 2
    %s22 = sadd.s32 1, %s17
    %p23 = scmp.ge.s32.totalorder %s22, 1
    %s24 = scalar_select %p23, 0, %s22
    %s25 = sadd.s32 1, %s16
    %s26 = scalar_select %p23, %s25, %s16
    %p27 = scmp.ge.s32.totalorder %s26, 2
    %s28 = scalar_select %p27, 0, %s26
    %s29 = ssub.s32 %s16, %s28
    %p30 = scmp.eq.s32.totalorder %s29, 0
    %s32 = sadd.s32 %s31, 1
    %s33 = scalar_select %p30, %s31, %s32
    %p36 = pneg %p30
    %p37 = scmp.eq.s32.totalorder %s9, 1
    %p38 = por %p36, %p37
    %p39 = scmp.ne.s32.totalorder %s31, %s34
    %p40 = scmp.eq.s32.totalorder %s9, 0
    %p41 = por %p39, %p40
    %p42 = scmp.ne.s32.totalorder %s31, %s34
    %p43 = scmp.eq.s32.totalorder %s14, 1
    %p44 = por %p42, %p43
    %p45 = scmp.ne.s32.totalorder %s34, %s35
    %p46 = scmp.eq.s32.totalorder %s14, 0
    %p47 = por %p45, %p46
    %p48 = scmp.ne.s32.totalorder %s34, %s35
    %p49 = scmp.eq.s32.totalorder %s15, 1
    %p50 = por %p48, %p49
    %p52 = scmp.ne.s32.totalorder %s35, %s51
    %p53 = scmp.eq.s32.totalorder %s15, 0
    %p54 = por %p52, %p53
    %s55 = ssub.s32 %s17, %s24
    %p56 = scmp.eq.s32.totalorder %s55, 0
    %s58 = sadd.s32 %s57, 1
    %s59 = scalar_select %p56, %s57, %s58
    %p62 = pneg %p56
    %p63 = scmp.eq.s32.totalorder %s9, 1
    %p64 = por %p62, %p63
    %p65 = scmp.ne.s32.totalorder %s57, %s60
    %p66 = scmp.eq.s32.totalorder %s9, 0
    %p67 = por %p65, %p66
    %p68 = scmp.ne.s32.totalorder %s57, %s60
    %p69 = scmp.eq.s32.totalorder %s14, 1
    %p70 = por %p68, %p69
    %p71 = scmp.ne.s32.totalorder %s60, %s61
    %p72 = scmp.eq.s32.totalorder %s14, 0
    %p73 = por %p71, %p72
    %p74 = scmp.ne.s32.totalorder %s60, %s61
    %p75 = scmp.eq.s32.totalorder %s15, 1
    %p76 = por %p74, %p75
    %p78 = scmp.ne.s32.totalorder %s61, %s77
    %p79 = scmp.eq.s32.totalorder %s15, 0
    %p80 = por %p78, %p79
    %s81 = ssub.s32 %s17, %s24
    %p82 = scmp.eq.s32.totalorder %s81, 0
    %s84 = sadd.s32 %s83, 1
    %s85 = scalar_select %p82, %s83, %s84
    %p88 = pneg %p82
    %p89 = scmp.eq.s32.totalorder %s9, 1
    %p90 = por %p88, %p89
    %p91 = scmp.ne.s32.totalorder %s83, %s86
    %p92 = scmp.eq.s32.totalorder %s9, 0
    %p93 = por %p91, %p92
    %p94 = scmp.ne.s32.totalorder %s83, %s86
    %p95 = scmp.eq.s32.totalorder %s14, 1
    %p96 = por %p94, %p95
    %p97 = scmp.ne.s32.totalorder %s86, %s87
    %p98 = scmp.eq.s32.totalorder %s14, 0
    %p99 = por %p97, %p98
    %p100 = scmp.ne.s32.totalorder %s86, %s87
    %p101 = scmp.eq.s32.totalorder %s15, 1
    %p102 = por %p100, %p101
    %p104 = scmp.ne.s32.totalorder %s87, %s103
    %p105 = scmp.eq.s32.totalorder %s15, 0
    %p106 = por %p104, %p105
    %s107 = ssub.s32 %s16, %s28
    %s108 = ssub.s32 %s17, %s24
    %s109 = sor.u32 %s107, %s108
    %p110 = scmp.eq.s32.totalorder %s109, 0
    %s112 = sadd.s32 %s111, 1
    %s113 = scalar_select %p110, %s111, %s112
    %p116 = pneg %p110
    %p117 = scmp.eq.s32.totalorder %s9, 1
    %p118 = por %p116, %p117
    %p119 = scmp.ne.s32.totalorder %s111, %s114
    %p120 = scmp.eq.s32.totalorder %s9, 0
    %p121 = por %p119, %p120
    %p122 = scmp.ne.s32.totalorder %s111, %s114
    %p123 = scmp.eq.s32.totalorder %s14, 1
    %p124 = por %p122, %p123
    %p125 = scmp.ne.s32.totalorder %s114, %s115
    %p126 = scmp.eq.s32.totalorder %s14, 0
    %p127 = por %p125, %p126
    %p128 = scmp.ne.s32.totalorder %s114, %s115
    %p129 = scmp.eq.s32.totalorder %s15, 1
    %p130 = por %p128, %p129
    %p132 = scmp.ne.s32.totalorder %s115, %s131
    %p133 = scmp.eq.s32.totalorder %s15, 0
    %p134 = por %p132, %p133
    %p135 = scmp.le.s32.totalorder 1, %s9
    %p136 = scmp.lt.s32.totalorder %s9, 3
    %p137 = pnand %p135, %p136
    %p138 = pneg %p137
    // Predicated region
    $region9: #{sagnn_forward.29} parent=5 // pred_check
      _
    $region10: #{sagnn_forward.29} parent=5 // pred_check_branch
      %140 = sbr.rel (%p137) target = $region12
    $region11: #{sagnn_forward.29} parent=5 // pred_region
      %s141 = ssub.s32 %s9, 1
      // Predicated region
      $region13: #{sagnn_forward.29} parent=11 // pred_check
        %p142 = pneg %p73
      $region14: #{sagnn_forward.29} parent=11 // pred_check_branch
        %144 = sbr.rel (%p142) target = $region16
      $region15: #{sagnn_forward.29} parent=11 // pred_region
        %p145 = scmp.lt.s32.totalorder %s19, 0
        %s146 = scalar_select %p145, %s19, 0
        %s147 = smul.addr %s146, 4
        %s148 = scalar_lea.vmem %s1, %s147
      $region16: #{sagnn_forward.29} parent=11 // pred_fallthru
        _
      // Predicated region
      $region17: #{sagnn_forward.29} parent=11 // pred_check
        %p149 = pneg %p99
      $region18: #{sagnn_forward.29} parent=11 // pred_check_branch
        %151 = sbr.rel (%p149) target = $region20
      $region19: #{sagnn_forward.29} parent=11 // pred_region
        %p152 = scmp.lt.s32.totalorder %s19, 0
        %s153 = scalar_select %p152, %s19, 0
        %s154 = scalar_lea.vmem %s2, %s153
      $region20: #{sagnn_forward.29} parent=11 // pred_fallthru
        _
    $region12: #{sagnn_forward.29} parent=5 // pred_fallthru
      _
    %p155 = scmp.lt.s32.totalorder %s9, 2
    // Predicated region
    $region21: #{sagnn_forward.29} parent=5 // pred_check
      %p156 = pneg %p155
    $region22: #{sagnn_forward.29} parent=5 // pred_check_branch
      %158 = sbr.rel (%p156) target = $region24
    $region23: #{sagnn_forward.29} parent=5 // pred_region
      // Predicated region
      $region25: #{sagnn_forward.29} parent=23 // pred_check
        %p159 = pneg %p41
      $region26: #{sagnn_forward.29} parent=23 // pred_check_branch
        %161 = sbr.rel (%p159) target = $region28
      $region27: #{sagnn_forward.29} parent=23 // pred_region
        %s162 = smul.u32 32, %s16
        %p163 = scmp.lt.s32.totalorder %s162, 63
        %s164 = scalar_select %p163, %s162, 63
        %s165 = smul.addr %s164, 4
        %s166 = scalar_lea.vmem %s0, %s165
        %s167 = smul.u32 32, %s16
      $region28: #{sagnn_forward.29} parent=23 // pred_fallthru
        _
    $region24: #{sagnn_forward.29} parent=5 // pred_fallthru
      _
    %p168 = scmp.le.s32.totalorder 1, %s9
    %p169 = scmp.lt.s32.totalorder %s9, 3
    %p170 = pnand %p168, %p169
    %p171 = pneg %p170
    // Predicated region
    $region29: #{sagnn_forward.29} parent=5 // pred_check
      _
    $region30: #{sagnn_forward.29} parent=5 // pred_check_branch
      %173 = sbr.rel (%p170) target = $region32
    $region31: #{sagnn_forward.29} parent=5 // pred_region
      %s174 = ssub.s32 %s9, 1
      %s175 = smul.u32 32, %s18
      %p176 = scmp.lt.s32.totalorder %s175, 63
      %s177 = scalar_select %p176, %s175, 63
      %s178 = smul.addr %s177, 4
      %s179 = scalar_lea.vmem %s0, %s178
      %p180 = pneg %p47
      %p181 = pneg %p44
      %p182 = scmp.lt.s32.totalorder %s19, 0
      %s183 = scalar_select %p182, %s19, 0
      %s184 = smul.addr %s183, 4
      %s185 = scalar_lea.vmem %s1, %s184
      %p186 = pneg %p73
      %p187 = pneg %p70
      %p188 = scmp.lt.s32.totalorder %s19, 0
      %s189 = scalar_select %p188, %s19, 0
      %s190 = scalar_lea.vmem %s2, %s189
      %p191 = pneg %p99
      %p192 = pneg %p96
      %p193 = pneg %p127
      %p194 = pneg %p124
      %s195 = smul.u32 32, %s18
      %p196 = scmp.lt.s32.totalorder %s195, 63
      %s197 = scalar_select %p196, %s195, 63
      %p198 = scmp.lt.s32.totalorder %s19, 0
      %s199 = scalar_select %p198, %s19, 0
      %s200 = sadd.s32 %s199, %s197
      %s201 = smul.addr %s200, 8
      %s202 = scalar_lea.vmem %s3, %s201
      %s203 = smul.u32 32, %s18
      %p204 = scmp.lt.s32.totalorder %s203, 63
      %s205 = scalar_select %p204, %s203, 63
      %s206 = smul.addr %s205, 4
      %s207 = scalar_lea.vmem %s0, %s206
      %s208 = smul.u32 32, %s18
      %p209 = scmp.lt.s32.totalorder %s19, 0
      %s210 = scalar_select %p209, %s19, 0
      %s211 = smul.addr %s210, 4
      %s212 = scalar_lea.vmem %s1, %s211
      %p213 = scmp.lt.s32.totalorder %s19, 0
      %s214 = scalar_select %p213, %s19, 0
      %s215 = scalar_lea.vmem %s2, %s214
      %s216 = smul.u32 32, %s18
      %p217 = scmp.lt.s32.totalorder %s216, 63
      %s218 = scalar_select %p217, %s216, 63
      %p219 = scmp.lt.s32.totalorder %s19, 0
      %s220 = scalar_select %p219, %s19, 0
      %s221 = sadd.s32 %s220, %s218
      %s222 = smul.addr %s221, 8
      %s223 = scalar_lea.vmem %s3, %s222
      %s224 = smul.u32 32, %s18
      %v226 = vld [vmem:[%s207] sm:$0xf]
      %v227 = vld [vmem:[%s207 + $0x4] sm:$0xf]
      %v228 = vld [vmem:[%s207 + $0x8] sm:$0xf]
      %v229 = vld [vmem:[%s207 + $0xc] sm:$0xf]
      %v230 = vld [vmem:[%s207 + $0x10] sm:$0xf]
      %v231 = vld [vmem:[%s207 + $0x14] sm:$0xf]
      %v232 = vld [vmem:[%s207 + $0x18] sm:$0xf]
      %v233 = vld [vmem:[%s207 + $0x1c] sm:$0xf]
      %v234 = vld [vmem:[%s207 + $0x20] sm:$0xf]
      %v235 = vld [vmem:[%s207 + $0x24] sm:$0xf]
      %v236 = vld [vmem:[%s207 + $0x28] sm:$0xf]
      %v237 = vld [vmem:[%s207 + $0x2c] sm:$0xf]
      %v238 = vld [vmem:[%s207 + $0x30] sm:$0xf]
      %v239 = vld [vmem:[%s207 + $0x34] sm:$0xf]
      %v240 = vld [vmem:[%s207 + $0x38] sm:$0xf]
      %v241 = vld [vmem:[%s207 + $0x3c] sm:$0xf]
      %v242 = vld [vmem:[%s207 + $0x40] sm:$0xf]
      %v243 = vld [vmem:[%s207 + $0x44] sm:$0xf]
      %v244 = vld [vmem:[%s207 + $0x48] sm:$0xf]
      %v245 = vld [vmem:[%s207 + $0x4c] sm:$0xf]
      %v246 = vld [vmem:[%s207 + $0x50] sm:$0xf]
      %v247 = vld [vmem:[%s207 + $0x54] sm:$0xf]
      %v248 = vld [vmem:[%s207 + $0x58] sm:$0xf]
      %v249 = vld [vmem:[%s207 + $0x5c] sm:$0xf]
      %v250 = vld [vmem:[%s207 + $0x60] sm:$0xf]
      %v251 = vld [vmem:[%s207 + $0x64] sm:$0xf]
      %v252 = vld [vmem:[%s207 + $0x68] sm:$0xf]
      %v253 = vld [vmem:[%s207 + $0x6c] sm:$0xf]
      %v254 = vld [vmem:[%s207 + $0x70] sm:$0xf]
      %v255 = vld [vmem:[%s207 + $0x74] sm:$0xf]
      %v256 = vld [vmem:[%s207 + $0x78] sm:$0xf]
      %v257 = vld [vmem:[%s207 + $0x7c] sm:$0xf]
      %v258 = vld [vmem:[%s212] sm:$0xf]
      %v259 = vld [vmem:[%s212 + $0x4] sm:$0xf]
      %v260 = vld [vmem:[%s212 + $0x8] sm:$0xf]
      %v261 = vld [vmem:[%s212 + $0xc] sm:$0xf]
      %v262 = vld [vmem:[%s212 + $0x10] sm:$0xf]
      %v263 = vld [vmem:[%s212 + $0x14] sm:$0xf]
      %v264 = vld [vmem:[%s212 + $0x18] sm:$0xf]
      %v265 = vld [vmem:[%s212 + $0x1c] sm:$0xf]
      %v266 = vld [vmem:[%s212 + $0x20] sm:$0xf]
      %v267 = vld [vmem:[%s212 + $0x24] sm:$0xf]
      %v268 = vld [vmem:[%s212 + $0x28] sm:$0xf]
      %v269 = vld [vmem:[%s212 + $0x2c] sm:$0xf]
      %v270 = vld [vmem:[%s212 + $0x30] sm:$0xf]
      %v271 = vld [vmem:[%s212 + $0x34] sm:$0xf]
      %v272 = vld [vmem:[%s212 + $0x38] sm:$0xf]
      %v273 = vld [vmem:[%s212 + $0x3c] sm:$0xf]
      %v274 = vld [vmem:[%s215] sm:$0x1]
      %v276 = vlaneseq
      %v277 = vshrl.u32 %v276, 7
      %v278 = vsub.s32 0, %v277
      %v279 = vrot.slane %v274, %v278
      %v313 = vunpack.c.l.b16 %v226
      %v314 = vunpack.c.l.b16 %v227
      %v315 = vunpack.c.l.b16 %v228
      %v316 = vunpack.c.l.b16 %v229
      %v317 = vunpack.c.l.b16 %v230
      %v318 = vunpack.c.l.b16 %v231
      %v319 = vunpack.c.l.b16 %v232
      %v320 = vunpack.c.l.b16 %v233
      %v321 = vunpack.c.l.b16 %v234
      %v322 = vunpack.c.l.b16 %v235
      %v323 = vunpack.c.l.b16 %v236
      %v324 = vunpack.c.l.b16 %v237
      %v325 = vunpack.c.l.b16 %v238
      %v326 = vunpack.c.l.b16 %v239
      %v327 = vunpack.c.l.b16 %v240
      %v328 = vunpack.c.l.b16 %v241
      %v329 = vunpack.c.l.b16 %v242
      %v330 = vunpack.c.l.b16 %v243
      %v331 = vunpack.c.l.b16 %v244
      %v332 = vunpack.c.l.b16 %v245
      %v333 = vunpack.c.l.b16 %v246
      %v334 = vunpack.c.l.b16 %v247
      %v335 = vunpack.c.l.b16 %v248
      %v336 = vunpack.c.l.b16 %v249
      %v337 = vunpack.c.l.b16 %v250
      %v338 = vunpack.c.l.b16 %v251
      %v339 = vunpack.c.l.b16 %v252
      %v340 = vunpack.c.l.b16 %v253
      %v341 = vunpack.c.l.b16 %v254
      %v342 = vunpack.c.l.b16 %v255
      %v343 = vunpack.c.l.b16 %v256
      %v344 = vunpack.c.l.b16 %v257
      %v345 = vpack.c.b16 %v314, %v313
      %v346 = vpack.c.b16 %v316, %v315
      %v347 = vpack.c.b16 %v318, %v317
      %v348 = vpack.c.b16 %v320, %v319
      %v349 = vpack.c.b16 %v322, %v321
      %v350 = vpack.c.b16 %v324, %v323
      %v351 = vpack.c.b16 %v326, %v325
      %v352 = vpack.c.b16 %v328, %v327
      %v353 = vpack.c.b16 %v330, %v329
      %v354 = vpack.c.b16 %v332, %v331
      %v355 = vpack.c.b16 %v334, %v333
      %v356 = vpack.c.b16 %v336, %v335
      %v357 = vpack.c.b16 %v338, %v337
      %v358 = vpack.c.b16 %v340, %v339
      %v359 = vpack.c.b16 %v342, %v341
      %v360 = vpack.c.b16 %v344, %v343
      %v393 = vunpack.c.l.b16 %v258
      %v394 = vunpack.c.l.b16 %v259
      %v395 = vunpack.c.l.b16 %v260
      %v396 = vunpack.c.l.b16 %v261
      %v397 = vunpack.c.l.b16 %v262
      %v398 = vunpack.c.l.b16 %v263
      %v399 = vunpack.c.l.b16 %v264
      %v400 = vunpack.c.l.b16 %v265
      %v401 = vunpack.c.l.b16 %v266
      %v402 = vunpack.c.l.b16 %v267
      %v403 = vunpack.c.l.b16 %v268
      %v404 = vunpack.c.l.b16 %v269
      %v405 = vunpack.c.l.b16 %v270
      %v406 = vunpack.c.l.b16 %v271
      %v407 = vunpack.c.l.b16 %v272
      %v408 = vunpack.c.l.b16 %v273
      %v409 = vpack.c.b16 %v394, %v393
      %v410 = vpack.c.b16 %v396, %v395
      %v411 = vpack.c.b16 %v398, %v397
      %v412 = vpack.c.b16 %v400, %v399
      %v413 = vpack.c.b16 %v402, %v401
      %v414 = vpack.c.b16 %v404, %v403
      %v415 = vpack.c.b16 %v406, %v405
      %v416 = vpack.c.b16 %v408, %v407
      %425 = vmatprep.subr.bf16.mxu0 0
      %426 = vmatpush1.bf16.msra.mxu0 %v409
      %427 = vmatprep.subr.bf16.mxu0 0
      %428 = vmatpush1.bf16.msra.mxu0 %v410
      %429 = vmatprep.subr.bf16.mxu0 0
      %430 = vmatpush1.bf16.msra.mxu0 %v411
      %431 = vmatprep.subr.bf16.mxu0 0
      %432 = vmatpush1.bf16.msra.mxu0 %v412
      %433 = vmatprep.subr.bf16.mxu0 0
      %434 = vmatpush1.bf16.msra.mxu0 %v413
      %435 = vmatprep.subr.bf16.mxu0 0
      %436 = vmatpush1.bf16.msra.mxu0 %v414
      %437 = vmatprep.subr.bf16.mxu0 0
      %438 = vmatpush1.bf16.msra.mxu0 %v415
      %439 = vmatprep.subr.bf16.mxu0 0
      %440 = vmatpush1.bf16.msra.mxu0 %v416
      %441 = vmatprep.subr.bf16.mxu0 0
      %442 = vmatpush1.bf16.msra.mxu0 0
      %443 = vmatprep.subr.bf16.mxu0 0
      %444 = vmatpush1.bf16.msra.mxu0 0
      %445 = vmatprep.subr.bf16.mxu0 0
      %446 = vmatpush1.bf16.msra.mxu0 0
      %447 = vmatprep.subr.bf16.mxu0 0
      %448 = vmatpush1.bf16.msra.mxu0 0
      %449 = vmatprep.subr.bf16.mxu0 0
      %450 = vmatpush1.bf16.msra.mxu0 0
      %451 = vmatprep.subr.bf16.mxu0 0
      %452 = vmatpush1.bf16.msra.mxu0 0
      %453 = vmatprep.subr.bf16.mxu0 0
      %454 = vmatpush1.bf16.msra.mxu0 0
      %455 = vmatprep.subr.bf16.mxu0 0
      %456 = vmatpush1.bf16.msra.mxu0 0
      %457 = vmatprep.mubr.bf16.mxu0 0
      %458 = vmatmul.mubr.bf16.gmra.mrb[0].mxu0 %v345
      %v459 = vpop.f32.mrb[0].mxu0
      %v460 = vadd.f32 %v279, %v459
      %v461 = vpop.f32.mrb[0].mxu0
      %v462 = vpop.f32.mrb[0].mxu0
      %v463 = vadd.f32 %v279, %v462
      %v464 = vpop.f32.mrb[0].mxu0
      %465 = vmatprep.mubr.bf16.mxu0 0
      %466 = vmatmul.mubr.bf16.gmra.mrb[0].mxu0 %v346
      %v467 = vpop.f32.mrb[0].mxu0
      %v468 = vadd.f32 %v279, %v467
      %v469 = vpop.f32.mrb[0].mxu0
      %v470 = vpop.f32.mrb[0].mxu0
      %v471 = vadd.f32 %v279, %v470
      %v472 = vpop.f32.mrb[0].mxu0
      %473 = vmatprep.mubr.bf16.mxu0 0
      %474 = vmatmul.mubr.bf16.gmra.mrb[0].mxu0 %v347
      %v475 = vpop.f32.mrb[0].mxu0
      %v476 = vadd.f32 %v279, %v475
      %v477 = vpop.f32.mrb[0].mxu0
      %v478 = vpop.f32.mrb[0].mxu0
      %v479 = vadd.f32 %v279, %v478
      %v480 = vpop.f32.mrb[0].mxu0
      %481 = vmatprep.mubr.bf16.mxu0 0
      %482 = vmatmul.mubr.bf16.gmra.mrb[0].mxu0 %v348
      %v483 = vpop.f32.mrb[0].mxu0
      %v484 = vadd.f32 %v279, %v483
      %v485 = vpop.f32.mrb[0].mxu0
      %v486 = vpop.f32.mrb[0].mxu0
      %v487 = vadd.f32 %v279, %v486
      %v488 = vpop.f32.mrb[0].mxu0
      %489 = vmatprep.mubr.bf16.mxu0 0
      %490 = vmatmul.mubr.bf16.gmra.mrb[0].mxu0 %v349
      %v491 = vpop.f32.mrb[0].mxu0
      %v492 = vadd.f32 %v279, %v491
      %v493 = vpop.f32.mrb[0].mxu0
      %v494 = vpop.f32.mrb[0].mxu0
      %v495 = vadd.f32 %v279, %v494
      %v496 = vpop.f32.mrb[0].mxu0
      %497 = vmatprep.mubr.bf16.mxu0 0
      %498 = vmatmul.mubr.bf16.gmra.mrb[0].mxu0 %v350
      %v499 = vpop.f32.mrb[0].mxu0
      %v500 = vadd.f32 %v279, %v499
      %v501 = vpop.f32.mrb[0].mxu0
      %v502 = vpop.f32.mrb[0].mxu0
      %v503 = vadd.f32 %v279, %v502
      %v504 = vpop.f32.mrb[0].mxu0
      %505 = vmatprep.mubr.bf16.mxu0 0
      %506 = vmatmul.mubr.bf16.gmra.mrb[0].mxu0 %v351
      %v507 = vpop.f32.mrb[0].mxu0
      %v508 = vadd.f32 %v279, %v507
      %v509 = vpop.f32.mrb[0].mxu0
      %v510 = vpop.f32.mrb[0].mxu0
      %v511 = vadd.f32 %v279, %v510
      %v512 = vpop.f32.mrb[0].mxu0
      %513 = vmatprep.mubr.bf16.mxu0 0
      %514 = vmatmul.mubr.bf16.gmra.mrb[0].mxu0 %v352
      %v515 = vpop.f32.mrb[0].mxu0
      %v516 = vadd.f32 %v279, %v515
      %v517 = vpop.f32.mrb[0].mxu0
      %v518 = vpop.f32.mrb[0].mxu0
      %v519 = vadd.f32 %v279, %v518
      %v520 = vpop.f32.mrb[0].mxu0
      %521 = vmatprep.mubr.bf16.mxu0 0
      %522 = vmatmul.mubr.bf16.gmra.mrb[0].mxu0 %v353
      %v523 = vpop.f32.mrb[0].mxu0
      %v524 = vadd.f32 %v279, %v523
      %v525 = vpop.f32.mrb[0].mxu0
      %v526 = vpop.f32.mrb[0].mxu0
      %v527 = vadd.f32 %v279, %v526
      %v528 = vpop.f32.mrb[0].mxu0
      %529 = vmatprep.mubr.bf16.mxu0 0
      %530 = vmatmul.mubr.bf16.gmra.mrb[0].mxu0 %v354
      %v531 = vpop.f32.mrb[0].mxu0
      %v532 = vadd.f32 %v279, %v531
      %v533 = vpop.f32.mrb[0].mxu0
      %v534 = vpop.f32.mrb[0].mxu0
      %v535 = vadd.f32 %v279, %v534
      %v536 = vpop.f32.mrb[0].mxu0
      %537 = vmatprep.mubr.bf16.mxu0 0
      %538 = vmatmul.mubr.bf16.gmra.mrb[0].mxu0 %v355
      %v539 = vpop.f32.mrb[0].mxu0
      %v540 = vadd.f32 %v279, %v539
      %v541 = vpop.f32.mrb[0].mxu0
      %v542 = vpop.f32.mrb[0].mxu0
      %v543 = vadd.f32 %v279, %v542
      %v544 = vpop.f32.mrb[0].mxu0
      %545 = vmatprep.mubr.bf16.mxu0 0
      %546 = vmatmul.mubr.bf16.gmra.mrb[0].mxu0 %v356
      %v547 = vpop.f32.mrb[0].mxu0
      %v548 = vadd.f32 %v279, %v547
      %v549 = vpop.f32.mrb[0].mxu0
      %v550 = vpop.f32.mrb[0].mxu0
      %v551 = vadd.f32 %v279, %v550
      %v552 = vpop.f32.mrb[0].mxu0
      %553 = vmatprep.mubr.bf16.mxu0 0
      %554 = vmatmul.mubr.bf16.gmra.mrb[0].mxu0 %v357
      %v555 = vpop.f32.mrb[0].mxu0
      %v556 = vadd.f32 %v279, %v555
      %v557 = vpop.f32.mrb[0].mxu0
      %v558 = vpop.f32.mrb[0].mxu0
      %v559 = vadd.f32 %v279, %v558
      %v560 = vpop.f32.mrb[0].mxu0
      %561 = vmatprep.mubr.bf16.mxu0 0
      %562 = vmatmul.mubr.bf16.gmra.mrb[0].mxu0 %v358
      %v563 = vpop.f32.mrb[0].mxu0
      %v564 = vadd.f32 %v279, %v563
      %v565 = vpop.f32.mrb[0].mxu0
      %v566 = vpop.f32.mrb[0].mxu0
      %v567 = vadd.f32 %v279, %v566
      %v568 = vpop.f32.mrb[0].mxu0
      %569 = vmatprep.mubr.bf16.mxu0 0
      %570 = vmatmul.mubr.bf16.gmra.mrb[0].mxu0 %v359
      %v571 = vpop.f32.mrb[0].mxu0
      %v572 = vadd.f32 %v279, %v571
      %v573 = vpop.f32.mrb[0].mxu0
      %v574 = vpop.f32.mrb[0].mxu0
      %v575 = vadd.f32 %v279, %v574
      %v576 = vpop.f32.mrb[0].mxu0
      %577 = vmatprep.mubr.bf16.mxu0 0
      %578 = vmatmul.mubr.bf16.gmra.mrb[0].mxu0 %v360
      %v579 = vpop.f32.mrb[0].mxu0
      %v580 = vadd.f32 %v279, %v579
      %v581 = vpop.f32.mrb[0].mxu0
      %v582 = vpop.f32.mrb[0].mxu0
      %v583 = vadd.f32 %v279, %v582
      %v584 = vpop.f32.mrb[0].mxu0
      %585 = vdwg.mxu0
      %v586 = vmax.f32 %v460, 0.0
      %v587 = vmax.f32 %v463, 0.0
      %v588 = vmax.f32 %v468, 0.0
      %v589 = vmax.f32 %v471, 0.0
      %v590 = vmax.f32 %v476, 0.0
      %v591 = vmax.f32 %v479, 0.0
      %v592 = vmax.f32 %v484, 0.0
      %v593 = vmax.f32 %v487, 0.0
      %v594 = vmax.f32 %v492, 0.0
      %v595 = vmax.f32 %v495, 0.0
      %v596 = vmax.f32 %v500, 0.0
      %v597 = vmax.f32 %v503, 0.0
      %v598 = vmax.f32 %v508, 0.0
      %v599 = vmax.f32 %v511, 0.0
      %v600 = vmax.f32 %v516, 0.0
      %v601 = vmax.f32 %v519, 0.0
      %v602 = vmax.f32 %v524, 0.0
      %v603 = vmax.f32 %v527, 0.0
      %v604 = vmax.f32 %v532, 0.0
      %v605 = vmax.f32 %v535, 0.0
      %v606 = vmax.f32 %v540, 0.0
      %v607 = vmax.f32 %v543, 0.0
      %v608 = vmax.f32 %v548, 0.0
      %v609 = vmax.f32 %v551, 0.0
      %v610 = vmax.f32 %v556, 0.0
      %v611 = vmax.f32 %v559, 0.0
      %v612 = vmax.f32 %v564, 0.0
      %v613 = vmax.f32 %v567, 0.0
      %v614 = vmax.f32 %v572, 0.0
      %v615 = vmax.f32 %v575, 0.0
      %v616 = vmax.f32 %v580, 0.0
      %v617 = vmax.f32 %v583, 0.0
      %618 = vst [vmem:[%s223] sm:$0xff] %v586
      %619 = vst [vmem:[%s223 + $0x8] sm:$0xff] %v587
      %620 = vst [vmem:[%s223 + $0x10] sm:$0xff] %v588
      %621 = vst [vmem:[%s223 + $0x18] sm:$0xff] %v589
      %622 = vst [vmem:[%s223 + $0x20] sm:$0xff] %v590
      %623 = vst [vmem:[%s223 + $0x28] sm:$0xff] %v591
      %624 = vst [vmem:[%s223 + $0x30] sm:$0xff] %v592
      %625 = vst [vmem:[%s223 + $0x38] sm:$0xff] %v593
      %626 = vst [vmem:[%s223 + $0x40] sm:$0xff] %v594
      %627 = vst [vmem:[%s223 + $0x48] sm:$0xff] %v595
      %628 = vst [vmem:[%s223 + $0x50] sm:$0xff] %v596
      %629 = vst [vmem:[%s223 + $0x58] sm:$0xff] %v597
      %630 = vst [vmem:[%s223 + $0x60] sm:$0xff] %v598
      %631 = vst [vmem:[%s223 + $0x68] sm:$0xff] %v599
      %632 = vst [vmem:[%s223 + $0x70] sm:$0xff] %v600
      %633 = vst [vmem:[%s223 + $0x78] sm:$0xff] %v601
      %634 = vst [vmem:[%s223 + $0x80] sm:$0xff] %v602
      %635 = vst [vmem:[%s223 + $0x88] sm:$0xff] %v603
      %636 = vst [vmem:[%s223 + $0x90] sm:$0xff] %v604
      %637 = vst [vmem:[%s223 + $0x98] sm:$0xff] %v605
      %638 = vst [vmem:[%s223 + $0xa0] sm:$0xff] %v606
      %639 = vst [vmem:[%s223 + $0xa8] sm:$0xff] %v607
      %640 = vst [vmem:[%s223 + $0xb0] sm:$0xff] %v608
      %641 = vst [vmem:[%s223 + $0xb8] sm:$0xff] %v609
      %642 = vst [vmem:[%s223 + $0xc0] sm:$0xff] %v610
      %643 = vst [vmem:[%s223 + $0xc8] sm:$0xff] %v611
      %644 = vst [vmem:[%s223 + $0xd0] sm:$0xff] %v612
      %645 = vst [vmem:[%s223 + $0xd8] sm:$0xff] %v613
      %646 = vst [vmem:[%s223 + $0xe0] sm:$0xff] %v614
      %647 = vst [vmem:[%s223 + $0xe8] sm:$0xff] %v615
      %648 = vst [vmem:[%s223 + $0xf0] sm:$0xff] %v616
      %649 = vst [vmem:[%s223 + $0xf8] sm:$0xff] %v617
      %s650 = smul.u32 32, %s18
      %p651 = scmp.lt.s32.totalorder %s650, 63
      %s652 = scalar_select %p651, %s650, 63
      %p653 = scmp.lt.s32.totalorder %s19, 0
      %s654 = scalar_select %p653, %s19, 0
      %s655 = sadd.s32 %s654, %s652
      %s656 = smul.addr %s655, 8
      %s657 = scalar_lea.vmem %s3, %s656
      // Predicated region
      $region33: #{sagnn_forward.29} parent=31 // pred_check
        %p658 = pneg %p124
      $region34: #{sagnn_forward.29} parent=31 // pred_check_branch
        %660 = sbr.rel (%p658) target = $region36
      $region35: #{sagnn_forward.29} parent=31 // pred_region
        %s661 = smul.u32 32, %s18
      $region36: #{sagnn_forward.29} parent=31 // pred_fallthru
        _
    $region32: #{sagnn_forward.29} parent=5 // pred_fallthru
      _
    %p662 = scmp.le.s32.totalorder 2, %s9
    // Predicated region
    $region37: #{sagnn_forward.29} parent=5 // pred_check
      %p663 = pneg %p662
    $region38: #{sagnn_forward.29} parent=5 // pred_check_branch
      %665 = sbr.rel (%p663) target = $region40
    $region39: #{sagnn_forward.29} parent=5 // pred_region
      %s666 = ssub.s32 %s9, 2
      // Predicated region
      $region41: #{sagnn_forward.29} parent=39 // pred_check
        %p667 = pneg %p130
      $region42: #{sagnn_forward.29} parent=39 // pred_check_branch
        %669 = sbr.rel (%p667) target = $region44
      $region43: #{sagnn_forward.29} parent=39 // pred_region
        %s670 = smul.u32 32, %s20
        %p671 = scmp.lt.s32.totalorder %s670, 63
        %s672 = scalar_select %p671, %s670, 63
        %p673 = scmp.lt.s32.totalorder %s21, 0
        %s674 = scalar_select %p673, %s21, 0
        %s675 = sadd.s32 %s674, %s672
        %s676 = smul.addr %s675, 8
        %s677 = scalar_lea.vmem %s3, %s676
      $region44: #{sagnn_forward.29} parent=39 // pred_fallthru
        _
    $region40: #{sagnn_forward.29} parent=5 // pred_fallthru
      _
  $region6: #{sagnn_forward.29} parent=0 // loop_footer
    %s13 = sadd.s32 1, %s9
  $region7: #{sagnn_forward.29} parent=0 // loop_footer_branch
    %8 = sbr.rel target = $region3
  $region8: #{sagnn_forward.29} parent=0 // loop_exit
    _

// kernel: sagnn_forward.30
$region0: #{sagnn_forward.30}
  #allocation0 [shape = 'u32[]', space=smem, size = 0x4, offset = 0x4, fixed_abs, tag = 'smem constant byte address 0x4 - core index']
  #allocation1 [shape = 'u32[144,128]{1,0:T(1,128)}', space=vmem, size = 0x12000, scoped, tag = 'internal scratch']
  %s0 = inlined_call_operand.vmem [shape: bf16[104,128], index: 0, kind: input, shape index: {}]
  %s1 = inlined_call_operand.vmem [shape: bf16[128,128], index: 1, kind: input, shape index: {}]
  %s2 = inlined_call_operand.vmem [shape: f32[1,128], index: 2, kind: input, shape index: {}]
  %s3 = inlined_call_operand.vmem [shape: f32[104,128], index: 3, kind: output, shape index: {}]
  %s4 = sld [smem:[#allocation0]]
  $region22: #{sagnn_forward.30} parent=0
    _
  %s6 = ssub.s32 1, %s4
  %s7 = scalar_select 0, %s6, %s4
  // Predicated region
  $region2: #{sagnn_forward.30} parent=0 // pred_check
    _
  $region3: #{sagnn_forward.30} parent=0 // pred_check_branch
    %9 = sbr.rel (0) target = $region5
  $region4: #{sagnn_forward.30} parent=0 // pred_region
    _
  $region5: #{sagnn_forward.30} parent=0 // pred_fallthru
    _
  // Predicated region
  $region6: #{sagnn_forward.30} parent=0 // pred_check
    _
  $region7: #{sagnn_forward.30} parent=0 // pred_check_branch
    %11 = sbr.rel (0) target = $region9
  $region8: #{sagnn_forward.30} parent=0 // pred_region
    _
  $region9: #{sagnn_forward.30} parent=0 // pred_fallthru
    _
  // Predicated region
  $region10: #{sagnn_forward.30} parent=0 // pred_check
    _
  $region11: #{sagnn_forward.30} parent=0 // pred_check_branch
    %13 = sbr.rel (0) target = $region13
  $region12: #{sagnn_forward.30} parent=0 // pred_region
    _
  $region13: #{sagnn_forward.30} parent=0 // pred_fallthru
    _
  %v15 = vld [vmem:[%s0] sm:$0xf]
  %v16 = vld [vmem:[%s0 + $0x4] sm:$0xf]
  %v17 = vld [vmem:[%s0 + $0x8] sm:$0xf]
  %v18 = vld [vmem:[%s0 + $0xc] sm:$0xf]
  %v19 = vld [vmem:[%s0 + $0x10] sm:$0xf]
  %v20 = vld [vmem:[%s0 + $0x14] sm:$0xf]
  %v21 = vld [vmem:[%s0 + $0x18] sm:$0xf]
  %v22 = vld [vmem:[%s0 + $0x1c] sm:$0xf]
  %v23 = vld [vmem:[%s0 + $0x20] sm:$0xf]
  %v24 = vld [vmem:[%s0 + $0x24] sm:$0xf]
  %v25 = vld [vmem:[%s0 + $0x28] sm:$0xf]
  %v26 = vld [vmem:[%s0 + $0x2c] sm:$0xf]
  %v27 = vld [vmem:[%s0 + $0x30] sm:$0xf]
  %v28 = vld [vmem:[%s1] sm:$0xf]
  %v29 = vld [vmem:[%s1 + $0x4] sm:$0xf]
  %v30 = vld [vmem:[%s1 + $0x8] sm:$0xf]
  %v31 = vld [vmem:[%s1 + $0xc] sm:$0xf]
  %v32 = vld [vmem:[%s1 + $0x10] sm:$0xf]
  %v33 = vld [vmem:[%s1 + $0x14] sm:$0xf]
  %v34 = vld [vmem:[%s1 + $0x18] sm:$0xf]
  %v35 = vld [vmem:[%s1 + $0x1c] sm:$0xf]
  %v36 = vld [vmem:[%s1 + $0x20] sm:$0xf]
  %v37 = vld [vmem:[%s1 + $0x24] sm:$0xf]
  %v38 = vld [vmem:[%s1 + $0x28] sm:$0xf]
  %v39 = vld [vmem:[%s1 + $0x2c] sm:$0xf]
  %v40 = vld [vmem:[%s1 + $0x30] sm:$0xf]
  %v41 = vld [vmem:[%s1 + $0x34] sm:$0xf]
  %v42 = vld [vmem:[%s1 + $0x38] sm:$0xf]
  %v43 = vld [vmem:[%s1 + $0x3c] sm:$0xf]
  %v44 = vld [vmem:[%s2] sm:$0x1]
  %v46 = vlaneseq
  %v47 = vshrl.u32 %v46, 7
  %v48 = vsub.s32 0, %v47
  %v49 = vrot.slane %v44, %v48
  %v64 = vunpack.c.l.b16 %v15
  %v65 = vunpack.c.l.b16 %v16
  %v66 = vunpack.c.l.b16 %v17
  %v67 = vunpack.c.l.b16 %v18
  %v68 = vunpack.c.l.b16 %v19
  %v69 = vunpack.c.l.b16 %v20
  %v70 = vunpack.c.l.b16 %v21
  %v71 = vunpack.c.l.b16 %v22
  %v72 = vunpack.c.l.b16 %v23
  %v73 = vunpack.c.l.b16 %v24
  %v74 = vunpack.c.l.b16 %v25
  %v75 = vunpack.c.l.b16 %v26
  %v76 = vunpack.c.l.b16 %v27
  %v77 = vpack.c.b16 %v65, %v64
  %v78 = vpack.c.b16 %v67, %v66
  %v79 = vpack.c.b16 %v69, %v68
  %v80 = vpack.c.b16 %v71, %v70
  %v81 = vpack.c.b16 %v73, %v72
  %v82 = vpack.c.b16 %v75, %v74
  %v83 = vpack.c.b16 %v76, %v76
  %v107 = vunpack.c.l.b16 %v28
  %v108 = vunpack.c.l.b16 %v29
  %v109 = vunpack.c.l.b16 %v30
  %v110 = vunpack.c.l.b16 %v31
  %v111 = vunpack.c.l.b16 %v32
  %v112 = vunpack.c.l.b16 %v33
  %v113 = vunpack.c.l.b16 %v34
  %v114 = vunpack.c.l.b16 %v35
  %v115 = vunpack.c.l.b16 %v36
  %v116 = vunpack.c.l.b16 %v37
  %v117 = vunpack.c.l.b16 %v38
  %v118 = vunpack.c.l.b16 %v39
  %v119 = vunpack.c.l.b16 %v40
  %v120 = vunpack.c.l.b16 %v41
  %v121 = vunpack.c.l.b16 %v42
  %v122 = vunpack.c.l.b16 %v43
  %v123 = vpack.c.b16 %v108, %v107
  %v124 = vpack.c.b16 %v110, %v109
  %v125 = vpack.c.b16 %v112, %v111
  %v126 = vpack.c.b16 %v114, %v113
  %v127 = vpack.c.b16 %v116, %v115
  %v128 = vpack.c.b16 %v118, %v117
  %v129 = vpack.c.b16 %v120, %v119
  %v130 = vpack.c.b16 %v122, %v121
  %139 = vmatprep.subr.bf16.mxu0 0
  %140 = vmatpush1.bf16.msra.mxu0 %v123
  %141 = vmatprep.subr.bf16.mxu0 0
  %142 = vmatpush1.bf16.msra.mxu0 %v124
  %143 = vmatprep.subr.bf16.mxu0 0
  %144 = vmatpush1.bf16.msra.mxu0 %v125
  %145 = vmatprep.subr.bf16.mxu0 0
  %146 = vmatpush1.bf16.msra.mxu0 %v126
  %147 = vmatprep.subr.bf16.mxu0 0
  %148 = vmatpush1.bf16.msra.mxu0 %v127
  %149 = vmatprep.subr.bf16.mxu0 0
  %150 = vmatpush1.bf16.msra.mxu0 %v128
  %151 = vmatprep.subr.bf16.mxu0 0
  %152 = vmatpush1.bf16.msra.mxu0 %v129
  %153 = vmatprep.subr.bf16.mxu0 0
  %154 = vmatpush1.bf16.msra.mxu0 %v130
  %155 = vmatprep.subr.bf16.mxu0 0
  %156 = vmatpush1.bf16.msra.mxu0 0
  %157 = vmatprep.subr.bf16.mxu0 0
  %158 = vmatpush1.bf16.msra.mxu0 0
  %159 = vmatprep.subr.bf16.mxu0 0
  %160 = vmatpush1.bf16.msra.mxu0 0
  %161 = vmatprep.subr.bf16.mxu0 0
  %162 = vmatpush1.bf16.msra.mxu0 0
  %163 = vmatprep.subr.bf16.mxu0 0
  %164 = vmatpush1.bf16.msra.mxu0 0
  %165 = vmatprep.subr.bf16.mxu0 0
  %166 = vmatpush1.bf16.msra.mxu0 0
  %167 = vmatprep.subr.bf16.mxu0 0
  %168 = vmatpush1.bf16.msra.mxu0 0
  %169 = vmatprep.subr.bf16.mxu0 0
  %170 = vmatpush1.bf16.msra.mxu0 0
  %171 = vmatprep.mubr.bf16.mxu0 0
  %172 = vmatmul.mubr.bf16.gmra.mrb[0].mxu0 %v77
  %v173 = vpop.f32.mrb[0].mxu0
  %v174 = vadd.f32 %v49, %v173
  %v175 = vpop.f32.mrb[0].mxu0
  %v176 = vpop.f32.mrb[0].mxu0
  %v177 = vadd.f32 %v49, %v176
  %v178 = vpop.f32.mrb[0].mxu0
  %179 = vmatprep.mubr.bf16.mxu0 0
  %180 = vmatmul.mubr.bf16.gmra.mrb[0].mxu0 %v78
  %v181 = vpop.f32.mrb[0].mxu0
  %v182 = vadd.f32 %v49, %v181
  %v183 = vpop.f32.mrb[0].mxu0
  %v184 = vpop.f32.mrb[0].mxu0
  %v185 = vadd.f32 %v49, %v184
  %v186 = vpop.f32.mrb[0].mxu0
  %187 = vmatprep.mubr.bf16.mxu0 0
  %188 = vmatmul.mubr.bf16.gmra.mrb[0].mxu0 %v79
  %v189 = vpop.f32.mrb[0].mxu0
  %v190 = vadd.f32 %v49, %v189
  %v191 = vpop.f32.mrb[0].mxu0
  %v192 = vpop.f32.mrb[0].mxu0
  %v193 = vadd.f32 %v49, %v192
  %v194 = vpop.f32.mrb[0].mxu0
  %195 = vmatprep.mubr.bf16.mxu0 0
  %196 = vmatmul.mubr.bf16.gmra.mrb[0].mxu0 %v80
  %v197 = vpop.f32.mrb[0].mxu0
  %v198 = vadd.f32 %v49, %v197
  %v199 = vpop.f32.mrb[0].mxu0
  %v200 = vpop.f32.mrb[0].mxu0
  %v201 = vadd.f32 %v49, %v200
  %v202 = vpop.f32.mrb[0].mxu0
  %203 = vmatprep.mubr.bf16.mxu0 0
  %204 = vmatmul.mubr.bf16.gmra.mrb[0].mxu0 %v81
  %v205 = vpop.f32.mrb[0].mxu0
  %v206 = vadd.f32 %v49, %v205
  %v207 = vpop.f32.mrb[0].mxu0
  %v208 = vpop.f32.mrb[0].mxu0
  %v209 = vadd.f32 %v49, %v208
  %v210 = vpop.f32.mrb[0].mxu0
  %211 = vmatprep.mubr.bf16.mxu0 0
  %212 = vmatmul.mubr.bf16.gmra.mrb[0].mxu0 %v82
  %v213 = vpop.f32.mrb[0].mxu0
  %v214 = vadd.f32 %v49, %v213
  %v215 = vpop.f32.mrb[0].mxu0
  %v216 = vpop.f32.mrb[0].mxu0
  %v217 = vadd.f32 %v49, %v216
  %v218 = vpop.f32.mrb[0].mxu0
  %219 = vmatprep.mubr.bf16.mxu0 0
  %220 = vmatmul.mubr.bf16.gmra.mrb[0].mxu0 %v83
  %v221 = vpop.f32.mrb[0].mxu0
  %v222 = vadd.f32 %v49, %v221
  %v223 = vpop.f32.mrb[0].mxu0
  %v224 = vpop.f32.mrb[0].mxu0
  %v225 = vpop.f32.mrb[0].mxu0
  %226 = vdwg.mxu0
  %v227 = vmax.f32 %v174, 0.0
  %v228 = vmax.f32 %v177, 0.0
  %v229 = vmax.f32 %v182, 0.0
  %v230 = vmax.f32 %v185, 0.0
  %v231 = vmax.f32 %v190, 0.0
  %v232 = vmax.f32 %v193, 0.0
  %v233 = vmax.f32 %v198, 0.0
  %v234 = vmax.f32 %v201, 0.0
  %v235 = vmax.f32 %v206, 0.0
  %v236 = vmax.f32 %v209, 0.0
  %v237 = vmax.f32 %v214, 0.0
  %v238 = vmax.f32 %v217, 0.0
  %v239 = vmax.f32 %v222, 0.0
  %240 = vst [vmem:[%s3] sm:$0xff] %v227
  %241 = vst [vmem:[%s3 + $0x8] sm:$0xff] %v228
  %242 = vst [vmem:[%s3 + $0x10] sm:$0xff] %v229
  %243 = vst [vmem:[%s3 + $0x18] sm:$0xff] %v230
  %244 = vst [vmem:[%s3 + $0x20] sm:$0xff] %v231
  %245 = vst [vmem:[%s3 + $0x28] sm:$0xff] %v232
  %246 = vst [vmem:[%s3 + $0x30] sm:$0xff] %v233
  %247 = vst [vmem:[%s3 + $0x38] sm:$0xff] %v234
  %248 = vst [vmem:[%s3 + $0x40] sm:$0xff] %v235
  %249 = vst [vmem:[%s3 + $0x48] sm:$0xff] %v236
  %250 = vst [vmem:[%s3 + $0x50] sm:$0xff] %v237
  %251 = vst [vmem:[%s3 + $0x58] sm:$0xff] %v238
  %252 = vst [vmem:[%s3 + $0x60] sm:$0xff] %v239
  // Predicated region
  $region14: #{sagnn_forward.30} parent=0 // pred_check
    _
  $region15: #{sagnn_forward.30} parent=0 // pred_check_branch
    %254 = sbr.rel (0) target = $region17
  $region16: #{sagnn_forward.30} parent=0 // pred_region
    _
  $region17: #{sagnn_forward.30} parent=0 // pred_fallthru
    _
  // Predicated region
  $region18: #{sagnn_forward.30} parent=0 // pred_check
    _
  $region19: #{sagnn_forward.30} parent=0 // pred_check_branch
    %256 = sbr.rel (0) target = $region21
  $region20: #{sagnn_forward.30} parent=0 // pred_region
    _
  $region21: #{sagnn_forward.30} parent=0 // pred_fallthru
    _

// kernel: sagnn_forward.31
$region0: #{sagnn_forward.31}
  #allocation0 [shape = 'u32[]', space=smem, size = 0x4, offset = 0x4, fixed_abs, tag = 'smem constant byte address 0x4 - core index']
  #allocation1 [shape = 'u32[144,128]{1,0:T(1,128)}', space=vmem, size = 0x12000, scoped, tag = 'internal scratch']
  %s0 = inlined_call_operand.vmem [shape: bf16[104,256], index: 0, kind: input, shape index: {}]
  %s1 = inlined_call_operand.vmem [shape: bf16[256,128], index: 1, kind: input, shape index: {}]
  %s2 = inlined_call_operand.vmem [shape: f32[1,128], index: 2, kind: input, shape index: {}]
  %s3 = inlined_call_operand.vmem [shape: f32[104,128], index: 3, kind: output, shape index: {}]
  %s4 = sld [smem:[#allocation0]]
  $region22: #{sagnn_forward.31} parent=0
    _
  %s6 = ssub.s32 1, %s4
  %s7 = scalar_select 0, %s6, %s4
  // Predicated region
  $region2: #{sagnn_forward.31} parent=0 // pred_check
    _
  $region3: #{sagnn_forward.31} parent=0 // pred_check_branch
    %9 = sbr.rel (0) target = $region5
  $region4: #{sagnn_forward.31} parent=0 // pred_region
    _
  $region5: #{sagnn_forward.31} parent=0 // pred_fallthru
    _
  // Predicated region
  $region6: #{sagnn_forward.31} parent=0 // pred_check
    _
  $region7: #{sagnn_forward.31} parent=0 // pred_check_branch
    %11 = sbr.rel (0) target = $region9
  $region8: #{sagnn_forward.31} parent=0 // pred_region
    _
  $region9: #{sagnn_forward.31} parent=0 // pred_fallthru
    _
  // Predicated region
  $region10: #{sagnn_forward.31} parent=0 // pred_check
    _
  $region11: #{sagnn_forward.31} parent=0 // pred_check_branch
    %13 = sbr.rel (0) target = $region13
  $region12: #{sagnn_forward.31} parent=0 // pred_region
    _
  $region13: #{sagnn_forward.31} parent=0 // pred_fallthru
    _
  %v15 = vld [vmem:[%s0] sm:$0xff]
  %v16 = vld [vmem:[%s0 + $0x8] sm:$0xff]
  %v17 = vld [vmem:[%s0 + $0x10] sm:$0xff]
  %v18 = vld [vmem:[%s0 + $0x18] sm:$0xff]
  %v19 = vld [vmem:[%s0 + $0x20] sm:$0xff]
  %v20 = vld [vmem:[%s0 + $0x28] sm:$0xff]
  %v21 = vld [vmem:[%s0 + $0x30] sm:$0xff]
  %v22 = vld [vmem:[%s0 + $0x38] sm:$0xff]
  %v23 = vld [vmem:[%s0 + $0x40] sm:$0xff]
  %v24 = vld [vmem:[%s0 + $0x48] sm:$0xff]
  %v25 = vld [vmem:[%s0 + $0x50] sm:$0xff]
  %v26 = vld [vmem:[%s0 + $0x58] sm:$0xff]
  %v27 = vld [vmem:[%s0 + $0x60] sm:$0xff]
  %v28 = vld [vmem:[%s1] sm:$0xf]
  %v29 = vld [vmem:[%s1 + $0x4] sm:$0xf]
  %v30 = vld [vmem:[%s1 + $0x8] sm:$0xf]
  %v31 = vld [vmem:[%s1 + $0xc] sm:$0xf]
  %v32 = vld [vmem:[%s1 + $0x10] sm:$0xf]
  %v33 = vld [vmem:[%s1 + $0x14] sm:$0xf]
  %v34 = vld [vmem:[%s1 + $0x18] sm:$0xf]
  %v35 = vld [vmem:[%s1 + $0x1c] sm:$0xf]
  %v36 = vld [vmem:[%s1 + $0x20] sm:$0xf]
  %v37 = vld [vmem:[%s1 + $0x24] sm:$0xf]
  %v38 = vld [vmem:[%s1 + $0x28] sm:$0xf]
  %v39 = vld [vmem:[%s1 + $0x2c] sm:$0xf]
  %v40 = vld [vmem:[%s1 + $0x30] sm:$0xf]
  %v41 = vld [vmem:[%s1 + $0x34] sm:$0xf]
  %v42 = vld [vmem:[%s1 + $0x38] sm:$0xf]
  %v43 = vld [vmem:[%s1 + $0x3c] sm:$0xf]
  %v44 = vld [vmem:[%s1 + $0x40] sm:$0xf]
  %v45 = vld [vmem:[%s1 + $0x44] sm:$0xf]
  %v46 = vld [vmem:[%s1 + $0x48] sm:$0xf]
  %v47 = vld [vmem:[%s1 + $0x4c] sm:$0xf]
  %v48 = vld [vmem:[%s1 + $0x50] sm:$0xf]
  %v49 = vld [vmem:[%s1 + $0x54] sm:$0xf]
  %v50 = vld [vmem:[%s1 + $0x58] sm:$0xf]
  %v51 = vld [vmem:[%s1 + $0x5c] sm:$0xf]
  %v52 = vld [vmem:[%s1 + $0x60] sm:$0xf]
  %v53 = vld [vmem:[%s1 + $0x64] sm:$0xf]
  %v54 = vld [vmem:[%s1 + $0x68] sm:$0xf]
  %v55 = vld [vmem:[%s1 + $0x6c] sm:$0xf]
  %v56 = vld [vmem:[%s1 + $0x70] sm:$0xf]
  %v57 = vld [vmem:[%s1 + $0x74] sm:$0xf]
  %v58 = vld [vmem:[%s1 + $0x78] sm:$0xf]
  %v59 = vld [vmem:[%s1 + $0x7c] sm:$0xf]
  %v60 = vld [vmem:[%s2] sm:$0x1]
  %v62 = vlaneseq
  %v63 = vshrl.u32 %v62, 7
  %v64 = vsub.s32 0, %v63
  %v65 = vrot.slane %v60, %v64
  %v80 = vunpack.c.l.b16 %v15
  %v81 = vunpack.c.h.b16 %v15
  %v82 = vunpack.c.l.b16 %v16
  %v83 = vunpack.c.h.b16 %v16
  %v84 = vunpack.c.l.b16 %v17
  %v85 = vunpack.c.h.b16 %v17
  %v86 = vunpack.c.l.b16 %v18
  %v87 = vunpack.c.h.b16 %v18
  %v88 = vunpack.c.l.b16 %v19
  %v89 = vunpack.c.h.b16 %v19
  %v90 = vunpack.c.l.b16 %v20
  %v91 = vunpack.c.h.b16 %v20
  %v92 = vunpack.c.l.b16 %v21
  %v93 = vunpack.c.h.b16 %v21
  %v94 = vunpack.c.l.b16 %v22
  %v95 = vunpack.c.h.b16 %v22
  %v96 = vunpack.c.l.b16 %v23
  %v97 = vunpack.c.h.b16 %v23
  %v98 = vunpack.c.l.b16 %v24
  %v99 = vunpack.c.h.b16 %v24
  %v100 = vunpack.c.l.b16 %v25
  %v101 = vunpack.c.h.b16 %v25
  %v102 = vunpack.c.l.b16 %v26
  %v103 = vunpack.c.h.b16 %v26
  %v104 = vunpack.c.l.b16 %v27
  %v105 = vunpack.c.h.b16 %v27
  %v106 = vpack.c.b16 %v82, %v80
  %v107 = vpack.c.b16 %v83, %v81
  %v108 = vpack.c.b16 %v86, %v84
  %v109 = vpack.c.b16 %v87, %v85
  %v110 = vpack.c.b16 %v90, %v88
  %v111 = vpack.c.b16 %v91, %v89
  %v112 = vpack.c.b16 %v94, %v92
  %v113 = vpack.c.b16 %v95, %v93
  %v114 = vpack.c.b16 %v98, %v96
  %v115 = vpack.c.b16 %v99, %v97
  %v116 = vpack.c.b16 %v102, %v100
  %v117 = vpack.c.b16 %v103, %v101
  %v118 = vpack.c.b16 %v104, %v104
  %v119 = vpack.c.b16 %v105, %v105
  %v166 = vunpack.c.l.b16 %v28
  %v167 = vunpack.c.l.b16 %v29
  %v168 = vunpack.c.l.b16 %v30
  %v169 = vunpack.c.l.b16 %v31
  %v170 = vunpack.c.l.b16 %v32
  %v171 = vunpack.c.l.b16 %v33
  %v172 = vunpack.c.l.b16 %v34
  %v173 = vunpack.c.l.b16 %v35
  %v174 = vunpack.c.l.b16 %v36
  %v175 = vunpack.c.l.b16 %v37
  %v176 = vunpack.c.l.b16 %v38
  %v177 = vunpack.c.l.b16 %v39
  %v178 = vunpack.c.l.b16 %v40
  %v179 = vunpack.c.l.b16 %v41
  %v180 = vunpack.c.l.b16 %v42
  %v181 = vunpack.c.l.b16 %v43
  %v182 = vunpack.c.l.b16 %v44
  %v183 = vunpack.c.l.b16 %v45
  %v184 = vunpack.c.l.b16 %v46
  %v185 = vunpack.c.l.b16 %v47
  %v186 = vunpack.c.l.b16 %v48
  %v187 = vunpack.c.l.b16 %v49
  %v188 = vunpack.c.l.b16 %v50
  %v189 = vunpack.c.l.b16 %v51
  %v190 = vunpack.c.l.b16 %v52
  %v191 = vunpack.c.l.b16 %v53
  %v192 = vunpack.c.l.b16 %v54
  %v193 = vunpack.c.l.b16 %v55
  %v194 = vunpack.c.l.b16 %v56
  %v195 = vunpack.c.l.b16 %v57
  %v196 = vunpack.c.l.b16 %v58
  %v197 = vunpack.c.l.b16 %v59
  %v198 = vpack.c.b16 %v167, %v166
  %v199 = vpack.c.b16 %v169, %v168
  %v200 = vpack.c.b16 %v171, %v170
  %v201 = vpack.c.b16 %v173, %v172
  %v202 = vpack.c.b16 %v175, %v174
  %v203 = vpack.c.b16 %v177, %v176
  %v204 = vpack.c.b16 %v179, %v178
  %v205 = vpack.c.b16 %v181, %v180
  %v206 = vpack.c.b16 %v183, %v182
  %v207 = vpack.c.b16 %v185, %v184
  %v208 = vpack.c.b16 %v187, %v186
  %v209 = vpack.c.b16 %v189, %v188
  %v210 = vpack.c.b16 %v191, %v190
  %v211 = vpack.c.b16 %v193, %v192
  %v212 = vpack.c.b16 %v195, %v194
  %v213 = vpack.c.b16 %v197, %v196
  %230 = vmatprep.subr.bf16.mxu0 0
  %231 = vmatpush1.bf16.msra.mxu0 %v198
  %232 = vmatprep.subr.bf16.mxu0 0
  %233 = vmatpush1.bf16.msra.mxu0 %v199
  %234 = vmatprep.subr.bf16.mxu0 0
  %235 = vmatpush1.bf16.msra.mxu0 %v200
  %236 = vmatprep.subr.bf16.mxu0 0
  %237 = vmatpush1.bf16.msra.mxu0 %v201
  %238 = vmatprep.subr.bf16.mxu0 0
  %239 = vmatpush1.bf16.msra.mxu0 %v202
  %240 = vmatprep.subr.bf16.mxu0 0
  %241 = vmatpush1.bf16.msra.mxu0 %v203
  %242 = vmatprep.subr.bf16.mxu0 0
  %243 = vmatpush1.bf16.msra.mxu0 %v204
  %244 = vmatprep.subr.bf16.mxu0 0
  %245 = vmatpush1.bf16.msra.mxu0 %v205
  %246 = vmatprep.subr.bf16.mxu0 0
  %247 = vmatpush1.bf16.msra.mxu0 %v206
  %248 = vmatprep.subr.bf16.mxu0 0
  %249 = vmatpush1.bf16.msra.mxu0 %v207
  %250 = vmatprep.subr.bf16.mxu0 0
  %251 = vmatpush1.bf16.msra.mxu0 %v208
  %252 = vmatprep.subr.bf16.mxu0 0
  %253 = vmatpush1.bf16.msra.mxu0 %v209
  %254 = vmatprep.subr.bf16.mxu0 0
  %255 = vmatpush1.bf16.msra.mxu0 %v210
  %256 = vmatprep.subr.bf16.mxu0 0
  %257 = vmatpush1.bf16.msra.mxu0 %v211
  %258 = vmatprep.subr.bf16.mxu0 0
  %259 = vmatpush1.bf16.msra.mxu0 %v212
  %260 = vmatprep.subr.bf16.mxu0 0
  %261 = vmatpush1.bf16.msra.mxu0 %v213
  %262 = vmatprep.mubr.bf16.mxu0 %v107
  %263 = vmatmul.mubr.bf16.gmra.mrb[0].mxu0 %v106
  %v264 = vpop.f32.mrb[0].mxu0
  %v265 = vadd.f32 %v65, %v264
  %v266 = vpop.f32.mrb[0].mxu0
  %v267 = vpop.f32.mrb[0].mxu0
  %v268 = vadd.f32 %v65, %v267
  %v269 = vpop.f32.mrb[0].mxu0
  %270 = vmatprep.mubr.bf16.mxu0 %v109
  %271 = vmatmul.mubr.bf16.gmra.mrb[0].mxu0 %v108
  %v272 = vpop.f32.mrb[0].mxu0
  %v273 = vadd.f32 %v65, %v272
  %v274 = vpop.f32.mrb[0].mxu0
  %v275 = vpop.f32.mrb[0].mxu0
  %v276 = vadd.f32 %v65, %v275
  %v277 = vpop.f32.mrb[0].mxu0
  %278 = vmatprep.mubr.bf16.mxu0 %v111
  %279 = vmatmul.mubr.bf16.gmra.mrb[0].mxu0 %v110
  %v280 = vpop.f32.mrb[0].mxu0
  %v281 = vadd.f32 %v65, %v280
  %v282 = vpop.f32.mrb[0].mxu0
  %v283 = vpop.f32.mrb[0].mxu0
  %v284 = vadd.f32 %v65, %v283
  %v285 = vpop.f32.mrb[0].mxu0
  %286 = vmatprep.mubr.bf16.mxu0 %v113
  %287 = vmatmul.mubr.bf16.gmra.mrb[0].mxu0 %v112
  %v288 = vpop.f32.mrb[0].mxu0
  %v289 = vadd.f32 %v65, %v288
  %v290 = vpop.f32.mrb[0].mxu0
  %v291 = vpop.f32.mrb[0].mxu0
  %v292 = vadd.f32 %v65, %v291
  %v293 = vpop.f32.mrb[0].mxu0
  %294 = vmatprep.mubr.bf16.mxu0 %v115
  %295 = vmatmul.mubr.bf16.gmra.mrb[0].mxu0 %v114
  %v296 = vpop.f32.mrb[0].mxu0
  %v297 = vadd.f32 %v65, %v296
  %v298 = vpop.f32.mrb[0].mxu0
  %v299 = vpop.f32.mrb[0].mxu0
  %v300 = vadd.f32 %v65, %v299
  %v301 = vpop.f32.mrb[0].mxu0
  %302 = vmatprep.mubr.bf16.mxu0 %v117
  %303 = vmatmul.mubr.bf16.gmra.mrb[0].mxu0 %v116
  %v304 = vpop.f32.mrb[0].mxu0
  %v305 = vadd.f32 %v65, %v304
  %v306 = vpop.f32.mrb[0].mxu0
  %v307 = vpop.f32.mrb[0].mxu0
  %v308 = vadd.f32 %v65, %v307
  %v309 = vpop.f32.mrb[0].mxu0
  %310 = vmatprep.mubr.bf16.mxu0 %v119
  %311 = vmatmul.mubr.bf16.gmra.mrb[0].mxu0 %v118
  %v312 = vpop.f32.mrb[0].mxu0
  %v313 = vadd.f32 %v65, %v312
  %v314 = vpop.f32.mrb[0].mxu0
  %v315 = vpop.f32.mrb[0].mxu0
  %v316 = vpop.f32.mrb[0].mxu0
  %317 = vdwg.mxu0
  %v318 = vmax.f32 %v265, 0.0
  %v319 = vmax.f32 %v268, 0.0
  %v320 = vmax.f32 %v273, 0.0
  %v321 = vmax.f32 %v276, 0.0
  %v322 = vmax.f32 %v281, 0.0
  %v323 = vmax.f32 %v284, 0.0
  %v324 = vmax.f32 %v289, 0.0
  %v325 = vmax.f32 %v292, 0.0
  %v326 = vmax.f32 %v297, 0.0
  %v327 = vmax.f32 %v300, 0.0
  %v328 = vmax.f32 %v305, 0.0
  %v329 = vmax.f32 %v308, 0.0
  %v330 = vmax.f32 %v313, 0.0
  %331 = vst [vmem:[%s3] sm:$0xff] %v318
  %332 = vst [vmem:[%s3 + $0x8] sm:$0xff] %v319
  %333 = vst [vmem:[%s3 + $0x10] sm:$0xff] %v320
  %334 = vst [vmem:[%s3 + $0x18] sm:$0xff] %v321
  %335 = vst [vmem:[%s3 + $0x20] sm:$0xff] %v322
  %336 = vst [vmem:[%s3 + $0x28] sm:$0xff] %v323
  %337 = vst [vmem:[%s3 + $0x30] sm:$0xff] %v324
  %338 = vst [vmem:[%s3 + $0x38] sm:$0xff] %v325
  %339 = vst [vmem:[%s3 + $0x40] sm:$0xff] %v326
  %340 = vst [vmem:[%s3 + $0x48] sm:$0xff] %v327
  %341 = vst [vmem:[%s3 + $0x50] sm:$0xff] %v328
  %342 = vst [vmem:[%s3 + $0x58] sm:$0xff] %v329
  %343 = vst [vmem:[%s3 + $0x60] sm:$0xff] %v330
  // Predicated region
  $region14: #{sagnn_forward.31} parent=0 // pred_check
    _
  $region15: #{sagnn_forward.31} parent=0 // pred_check_branch
    %345 = sbr.rel (0) target = $region17
  $region16: #{sagnn_forward.31} parent=0 // pred_region
    _
  $region17: #{sagnn_forward.31} parent=0 // pred_fallthru
    _
  // Predicated region
  $region18: #{sagnn_forward.31} parent=0 // pred_check
    _
  $region19: #{sagnn_forward.31} parent=0 // pred_check_branch
    %347 = sbr.rel (0) target = $region21
  $region20: #{sagnn_forward.31} parent=0 // pred_region
    _
  $region21: #{sagnn_forward.31} parent=0 // pred_fallthru
    _

// kernel: sagnn_forward.32
$region0: #{sagnn_forward.32}
  #allocation0 [shape = 'u32[]', space=smem, size = 0x4, offset = 0x4, fixed_abs, tag = 'smem constant byte address 0x4 - core index']
  #allocation1 [shape = 'u32[144,128]{1,0:T(1,128)}', space=vmem, size = 0x12000, scoped, tag = 'internal scratch']
  %s0 = inlined_call_operand.vmem [shape: bf16[104,384], index: 0, kind: input, shape index: {}]
  %s1 = inlined_call_operand.vmem [shape: bf16[384,128], index: 1, kind: input, shape index: {}]
  %s2 = inlined_call_operand.vmem [shape: f32[1,128], index: 2, kind: input, shape index: {}]
  %s3 = inlined_call_operand.vmem [shape: f32[104,128], index: 3, kind: output, shape index: {}]
  %s4 = sld [smem:[#allocation0]]
  $region22: #{sagnn_forward.32} parent=0
    _
  %s6 = ssub.s32 1, %s4
  %s7 = scalar_select 0, %s6, %s4
  // Predicated region
  $region2: #{sagnn_forward.32} parent=0 // pred_check
    _
  $region3: #{sagnn_forward.32} parent=0 // pred_check_branch
    %9 = sbr.rel (0) target = $region5
  $region4: #{sagnn_forward.32} parent=0 // pred_region
    _
  $region5: #{sagnn_forward.32} parent=0 // pred_fallthru
    _
  // Predicated region
  $region6: #{sagnn_forward.32} parent=0 // pred_check
    _
  $region7: #{sagnn_forward.32} parent=0 // pred_check_branch
    %11 = sbr.rel (0) target = $region9
  $region8: #{sagnn_forward.32} parent=0 // pred_region
    _
  $region9: #{sagnn_forward.32} parent=0 // pred_fallthru
    _
  // Predicated region
  $region10: #{sagnn_forward.32} parent=0 // pred_check
    _
  $region11: #{sagnn_forward.32} parent=0 // pred_check_branch
    %13 = sbr.rel (0) target = $region13
  $region12: #{sagnn_forward.32} parent=0 // pred_region
    _
  $region13: #{sagnn_forward.32} parent=0 // pred_fallthru
    _
  %v15 = vld [vmem:[%s0] sm:$0xff]
  %v16 = vld [vmem:[%s0 + $0x8] sm:$0xf]
  %v17 = vld [vmem:[%s0 + $0xc] sm:$0xff]
  %v18 = vld [vmem:[%s0 + $0x14] sm:$0xf]
  %v19 = vld [vmem:[%s0 + $0x18] sm:$0xff]
  %v20 = vld [vmem:[%s0 + $0x20] sm:$0xf]
  %v21 = vld [vmem:[%s0 + $0x24] sm:$0xff]
  %v22 = vld [vmem:[%s0 + $0x2c] sm:$0xf]
  %v23 = vld [vmem:[%s0 + $0x30] sm:$0xff]
  %v24 = vld [vmem:[%s0 + $0x38] sm:$0xf]
  %v25 = vld [vmem:[%s0 + $0x3c] sm:$0xff]
  %v26 = vld [vmem:[%s0 + $0x44] sm:$0xf]
  %v27 = vld [vmem:[%s0 + $0x48] sm:$0xff]
  %v28 = vld [vmem:[%s0 + $0x50] sm:$0xf]
  %v29 = vld [vmem:[%s0 + $0x54] sm:$0xff]
  %v30 = vld [vmem:[%s0 + $0x5c] sm:$0xf]
  %v31 = vld [vmem:[%s0 + $0x60] sm:$0xff]
  %v32 = vld [vmem:[%s0 + $0x68] sm:$0xf]
  %v33 = vld [vmem:[%s0 + $0x6c] sm:$0xff]
  %v34 = vld [vmem:[%s0 + $0x74] sm:$0xf]
  %v35 = vld [vmem:[%s0 + $0x78] sm:$0xff]
  %v36 = vld [vmem:[%s0 + $0x80] sm:$0xf]
  %v37 = vld [vmem:[%s0 + $0x84] sm:$0xff]
  %v38 = vld [vmem:[%s0 + $0x8c] sm:$0xf]
  %v39 = vld [vmem:[%s0 + $0x90] sm:$0xff]
  %v40 = vld [vmem:[%s0 + $0x98] sm:$0xf]
  %v41 = vld [vmem:[%s1] sm:$0xf]
  %v42 = vld [vmem:[%s1 + $0x4] sm:$0xf]
  %v43 = vld [vmem:[%s1 + $0x8] sm:$0xf]
  %v44 = vld [vmem:[%s1 + $0xc] sm:$0xf]
  %v45 = vld [vmem:[%s1 + $0x10] sm:$0xf]
  %v46 = vld [vmem:[%s1 + $0x14] sm:$0xf]
  %v47 = vld [vmem:[%s1 + $0x18] sm:$0xf]
  %v48 = vld [vmem:[%s1 + $0x1c] sm:$0xf]
  %v49 = vld [vmem:[%s1 + $0x20] sm:$0xf]
  %v50 = vld [vmem:[%s1 + $0x24] sm:$0xf]
  %v51 = vld [vmem:[%s1 + $0x28] sm:$0xf]
  %v52 = vld [vmem:[%s1 + $0x2c] sm:$0xf]
  %v53 = vld [vmem:[%s1 + $0x30] sm:$0xf]
  %v54 = vld [vmem:[%s1 + $0x34] sm:$0xf]
  %v55 = vld [vmem:[%s1 + $0x38] sm:$0xf]
  %v56 = vld [vmem:[%s1 + $0x3c] sm:$0xf]
  %v57 = vld [vmem:[%s1 + $0x40] sm:$0xf]
  %v58 = vld [vmem:[%s1 + $0x44] sm:$0xf]
  %v59 = vld [vmem:[%s1 + $0x48] sm:$0xf]
  %v60 = vld [vmem:[%s1 + $0x4c] sm:$0xf]
  %v61 = vld [vmem:[%s1 + $0x50] sm:$0xf]
  %v62 = vld [vmem:[%s1 + $0x54] sm:$0xf]
  %v63 = vld [vmem:[%s1 + $0x58] sm:$0xf]
  %v64 = vld [vmem:[%s1 + $0x5c] sm:$0xf]
  %v65 = vld [vmem:[%s1 + $0x60] sm:$0xf]
  %v66 = vld [vmem:[%s1 + $0x64] sm:$0xf]
  %v67 = vld [vmem:[%s1 + $0x68] sm:$0xf]
  %v68 = vld [vmem:[%s1 + $0x6c] sm:$0xf]
  %v69 = vld [vmem:[%s1 + $0x70] sm:$0xf]
  %v70 = vld [vmem:[%s1 + $0x74] sm:$0xf]
  %v71 = vld [vmem:[%s1 + $0x78] sm:$0xf]
  %v72 = vld [vmem:[%s1 + $0x7c] sm:$0xf]
  %v73 = vld [vmem:[%s1 + $0x80] sm:$0xf]
  %v74 = vld [vmem:[%s1 + $0x84] sm:$0xf]
  %v75 = vld [vmem:[%s1 + $0x88] sm:$0xf]
  %v76 = vld [vmem:[%s1 + $0x8c] sm:$0xf]
  %v77 = vld [vmem:[%s1 + $0x90] sm:$0xf]
  %v78 = vld [vmem:[%s1 + $0x94] sm:$0xf]
  %v79 = vld [vmem:[%s1 + $0x98] sm:$0xf]
  %v80 = vld [vmem:[%s1 + $0x9c] sm:$0xf]
  %v81 = vld [vmem:[%s1 + $0xa0] sm:$0xf]
  %v82 = vld [vmem:[%s1 + $0xa4] sm:$0xf]
  %v83 = vld [vmem:[%s1 + $0xa8] sm:$0xf]
  %v84 = vld [vmem:[%s1 + $0xac] sm:$0xf]
  %v85 = vld [vmem:[%s1 + $0xb0] sm:$0xf]
  %v86 = vld [vmem:[%s1 + $0xb4] sm:$0xf]
  %v87 = vld [vmem:[%s1 + $0xb8] sm:$0xf]
  %v88 = vld [vmem:[%s1 + $0xbc] sm:$0xf]
  %v89 = vld [vmem:[%s2] sm:$0x1]
  %v91 = vlaneseq
  %v92 = vshrl.u32 %v91, 7
  %v93 = vsub.s32 0, %v92
  %v94 = vrot.slane %v89, %v93
  %v122 = vunpack.c.l.b16 %v15
  %v123 = vunpack.c.h.b16 %v15
  %v124 = vunpack.c.l.b16 %v16
  %v125 = vunpack.c.l.b16 %v17
  %v126 = vunpack.c.h.b16 %v17
  %v127 = vunpack.c.l.b16 %v18
  %v128 = vunpack.c.l.b16 %v19
  %v129 = vunpack.c.h.b16 %v19
  %v130 = vunpack.c.l.b16 %v20
  %v131 = vunpack.c.l.b16 %v21
  %v132 = vunpack.c.h.b16 %v21
  %v133 = vunpack.c.l.b16 %v22
  %v134 = vunpack.c.l.b16 %v23
  %v135 = vunpack.c.h.b16 %v23
  %v136 = vunpack.c.l.b16 %v24
  %v137 = vunpack.c.l.b16 %v25
  %v138 = vunpack.c.h.b16 %v25
  %v139 = vunpack.c.l.b16 %v26
  %v140 = vunpack.c.l.b16 %v27
  %v141 = vunpack.c.h.b16 %v27
  %v142 = vunpack.c.l.b16 %v28
  %v143 = vunpack.c.l.b16 %v29
  %v144 = vunpack.c.h.b16 %v29
  %v145 = vunpack.c.l.b16 %v30
  %v146 = vunpack.c.l.b16 %v31
  %v147 = vunpack.c.h.b16 %v31
  %v148 = vunpack.c.l.b16 %v32
  %v149 = vunpack.c.l.b16 %v33
  %v150 = vunpack.c.h.b16 %v33
  %v151 = vunpack.c.l.b16 %v34
  %v152 = vunpack.c.l.b16 %v35
  %v153 = vunpack.c.h.b16 %v35
  %v154 = vunpack.c.l.b16 %v36
  %v155 = vunpack.c.l.b16 %v37
  %v156 = vunpack.c.h.b16 %v37
  %v157 = vunpack.c.l.b16 %v38
  %v158 = vunpack.c.l.b16 %v39
  %v159 = vunpack.c.h.b16 %v39
  %v160 = vunpack.c.l.b16 %v40
  %v161 = vpack.c.b16 %v125, %v122
  %v162 = vpack.c.b16 %v126, %v123
  %v163 = vpack.c.b16 %v127, %v124
  %v164 = vpack.c.b16 %v131, %v128
  %v165 = vpack.c.b16 %v132, %v129
  %v166 = vpack.c.b16 %v133, %v130
  %v167 = vpack.c.b16 %v137, %v134
  %v168 = vpack.c.b16 %v138, %v135
  %v169 = vpack.c.b16 %v139, %v136
  %v170 = vpack.c.b16 %v143, %v140
  %v171 = vpack.c.b16 %v144, %v141
  %v172 = vpack.c.b16 %v145, %v142
  %v173 = vpack.c.b16 %v149, %v146
  %v174 = vpack.c.b16 %v150, %v147
  %v175 = vpack.c.b16 %v151, %v148
  %v176 = vpack.c.b16 %v155, %v152
  %v177 = vpack.c.b16 %v156, %v153
  %v178 = vpack.c.b16 %v157, %v154
  %v179 = vpack.c.b16 %v158, %v158
  %v180 = vpack.c.b16 %v159, %v159
  %v181 = vpack.c.b16 %v160, %v160
  %v251 = vunpack.c.l.b16 %v41
  %v252 = vunpack.c.l.b16 %v42
  %v253 = vunpack.c.l.b16 %v43
  %v254 = vunpack.c.l.b16 %v44
  %v255 = vunpack.c.l.b16 %v45
  %v256 = vunpack.c.l.b16 %v46
  %v257 = vunpack.c.l.b16 %v47
  %v258 = vunpack.c.l.b16 %v48
  %v259 = vunpack.c.l.b16 %v49
  %v260 = vunpack.c.l.b16 %v50
  %v261 = vunpack.c.l.b16 %v51
  %v262 = vunpack.c.l.b16 %v52
  %v263 = vunpack.c.l.b16 %v53
  %v264 = vunpack.c.l.b16 %v54
  %v265 = vunpack.c.l.b16 %v55
  %v266 = vunpack.c.l.b16 %v56
  %v267 = vunpack.c.l.b16 %v57
  %v268 = vunpack.c.l.b16 %v58
  %v269 = vunpack.c.l.b16 %v59
  %v270 = vunpack.c.l.b16 %v60
  %v271 = vunpack.c.l.b16 %v61
  %v272 = vunpack.c.l.b16 %v62
  %v273 = vunpack.c.l.b16 %v63
  %v274 = vunpack.c.l.b16 %v64
  %v275 = vunpack.c.l.b16 %v65
  %v276 = vunpack.c.l.b16 %v66
  %v277 = vunpack.c.l.b16 %v67
  %v278 = vunpack.c.l.b16 %v68
  %v279 = vunpack.c.l.b16 %v69
  %v280 = vunpack.c.l.b16 %v70
  %v281 = vunpack.c.l.b16 %v71
  %v282 = vunpack.c.l.b16 %v72
  %v283 = vunpack.c.l.b16 %v73
  %v284 = vunpack.c.l.b16 %v74
  %v285 = vunpack.c.l.b16 %v75
  %v286 = vunpack.c.l.b16 %v76
  %v287 = vunpack.c.l.b16 %v77
  %v288 = vunpack.c.l.b16 %v78
  %v289 = vunpack.c.l.b16 %v79
  %v290 = vunpack.c.l.b16 %v80
  %v291 = vunpack.c.l.b16 %v81
  %v292 = vunpack.c.l.b16 %v82
  %v293 = vunpack.c.l.b16 %v83
  %v294 = vunpack.c.l.b16 %v84
  %v295 = vunpack.c.l.b16 %v85
  %v296 = vunpack.c.l.b16 %v86
  %v297 = vunpack.c.l.b16 %v87
  %v298 = vunpack.c.l.b16 %v88
  %v299 = vpack.c.b16 %v252, %v251
  %v300 = vpack.c.b16 %v254, %v253
  %v301 = vpack.c.b16 %v256, %v255
  %v302 = vpack.c.b16 %v258, %v257
  %v303 = vpack.c.b16 %v260, %v259
  %v304 = vpack.c.b16 %v262, %v261
  %v305 = vpack.c.b16 %v264, %v263
  %v306 = vpack.c.b16 %v266, %v265
  %v307 = vpack.c.b16 %v268, %v267
  %v308 = vpack.c.b16 %v270, %v269
  %v309 = vpack.c.b16 %v272, %v271
  %v310 = vpack.c.b16 %v274, %v273
  %v311 = vpack.c.b16 %v276, %v275
  %v312 = vpack.c.b16 %v278, %v277
  %v313 = vpack.c.b16 %v280, %v279
  %v314 = vpack.c.b16 %v282, %v281
  %v315 = vpack.c.b16 %v284, %v283
  %v316 = vpack.c.b16 %v286, %v285
  %v317 = vpack.c.b16 %v288, %v287
  %v318 = vpack.c.b16 %v290, %v289
  %v319 = vpack.c.b16 %v292, %v291
  %v320 = vpack.c.b16 %v294, %v293
  %v321 = vpack.c.b16 %v296, %v295
  %v322 = vpack.c.b16 %v298, %v297
  %347 = vmatprep.subr.bf16.mxu0 0
  %348 = vmatpush1.bf16.msra.mxu0 %v299
  %349 = vmatprep.subr.bf16.mxu0 0
  %350 = vmatpush1.bf16.msra.mxu0 %v300
  %351 = vmatprep.subr.bf16.mxu0 0
  %352 = vmatpush1.bf16.msra.mxu0 %v301
  %353 = vmatprep.subr.bf16.mxu0 0
  %354 = vmatpush1.bf16.msra.mxu0 %v302
  %355 = vmatprep.subr.bf16.mxu0 0
  %356 = vmatpush1.bf16.msra.mxu0 %v303
  %357 = vmatprep.subr.bf16.mxu0 0
  %358 = vmatpush1.bf16.msra.mxu0 %v304
  %359 = vmatprep.subr.bf16.mxu0 0
  %360 = vmatpush1.bf16.msra.mxu0 %v305
  %361 = vmatprep.subr.bf16.mxu0 0
  %362 = vmatpush1.bf16.msra.mxu0 %v306
  %363 = vmatprep.subr.bf16.mxu0 0
  %364 = vmatpush1.bf16.msra.mxu0 %v307
  %365 = vmatprep.subr.bf16.mxu0 0
  %366 = vmatpush1.bf16.msra.mxu0 %v308
  %367 = vmatprep.subr.bf16.mxu0 0
  %368 = vmatpush1.bf16.msra.mxu0 %v309
  %369 = vmatprep.subr.bf16.mxu0 0
  %370 = vmatpush1.bf16.msra.mxu0 %v310
  %371 = vmatprep.subr.bf16.mxu0 0
  %372 = vmatpush1.bf16.msra.mxu0 %v311
  %373 = vmatprep.subr.bf16.mxu0 0
  %374 = vmatpush1.bf16.msra.mxu0 %v312
  %375 = vmatprep.subr.bf16.mxu0 0
  %376 = vmatpush1.bf16.msra.mxu0 %v313
  %377 = vmatprep.subr.bf16.mxu0 0
  %378 = vmatpush1.bf16.msra.mxu0 %v314
  %379 = vmatprep.mubr.bf16.mxu0 %v162
  %380 = vmatmul.mubr.bf16.gmra.mrb[0].mxu0 %v161
  %v381 = vpop.f32.mrb[0].mxu0
  %v382 = vadd.f32 %v94, %v381
  %v383 = vpop.f32.mrb[0].mxu0
  %v384 = vpop.f32.mrb[0].mxu0
  %v385 = vadd.f32 %v94, %v384
  %v386 = vpop.f32.mrb[0].mxu0
  %387 = vmatprep.mubr.bf16.mxu0 %v165
  %388 = vmatmul.mubr.bf16.gmra.mrb[0].mxu0 %v164
  %v389 = vpop.f32.mrb[0].mxu0
  %v390 = vadd.f32 %v94, %v389
  %v391 = vpop.f32.mrb[0].mxu0
  %v392 = vpop.f32.mrb[0].mxu0
  %v393 = vadd.f32 %v94, %v392
  %v394 = vpop.f32.mrb[0].mxu0
  %395 = vmatprep.mubr.bf16.mxu0 %v168
  %396 = vmatmul.mubr.bf16.gmra.mrb[0].mxu0 %v167
  %v397 = vpop.f32.mrb[0].mxu0
  %v398 = vadd.f32 %v94, %v397
  %v399 = vpop.f32.mrb[0].mxu0
  %v400 = vpop.f32.mrb[0].mxu0
  %v401 = vadd.f32 %v94, %v400
  %v402 = vpop.f32.mrb[0].mxu0
  %403 = vmatprep.mubr.bf16.mxu0 %v171
  %404 = vmatmul.mubr.bf16.gmra.mrb[0].mxu0 %v170
  %v405 = vpop.f32.mrb[0].mxu0
  %v406 = vadd.f32 %v94, %v405
  %v407 = vpop.f32.mrb[0].mxu0
  %v408 = vpop.f32.mrb[0].mxu0
  %v409 = vadd.f32 %v94, %v408
  %v410 = vpop.f32.mrb[0].mxu0
  %411 = vmatprep.mubr.bf16.mxu0 %v174
  %412 = vmatmul.mubr.bf16.gmra.mrb[0].mxu0 %v173
  %v413 = vpop.f32.mrb[0].mxu0
  %v414 = vadd.f32 %v94, %v413
  %v415 = vpop.f32.mrb[0].mxu0
  %v416 = vpop.f32.mrb[0].mxu0
  %v417 = vadd.f32 %v94, %v416
  %v418 = vpop.f32.mrb[0].mxu0
  %419 = vmatprep.mubr.bf16.mxu0 %v177
  %420 = vmatmul.mubr.bf16.gmra.mrb[0].mxu0 %v176
  %v421 = vpop.f32.mrb[0].mxu0
  %v422 = vadd.f32 %v94, %v421
  %v423 = vpop.f32.mrb[0].mxu0
  %v424 = vpop.f32.mrb[0].mxu0
  %v425 = vadd.f32 %v94, %v424
  %v426 = vpop.f32.mrb[0].mxu0
  %427 = vmatprep.mubr.bf16.mxu0 %v180
  %428 = vmatmul.mubr.bf16.gmra.mrb[0].mxu0 %v179
  %v429 = vpop.f32.mrb[0].mxu0
  %v430 = vadd.f32 %v94, %v429
  %v431 = vpop.f32.mrb[0].mxu0
  %v432 = vpop.f32.mrb[0].mxu0
  %v433 = vpop.f32.mrb[0].mxu0
  %434 = vdwg.mxu0
  %435 = vmatprep.subr.bf16.mxu0 0
  %436 = vmatpush1.bf16.msra.mxu0 %v315
  %437 = vmatprep.subr.bf16.mxu0 0
  %438 = vmatpush1.bf16.msra.mxu0 %v316
  %439 = vmatprep.subr.bf16.mxu0 0
  %440 = vmatpush1.bf16.msra.mxu0 %v317
  %441 = vmatprep.subr.bf16.mxu0 0
  %442 = vmatpush1.bf16.msra.mxu0 %v318
  %443 = vmatprep.subr.bf16.mxu0 0
  %444 = vmatpush1.bf16.msra.mxu0 %v319
  %445 = vmatprep.subr.bf16.mxu0 0
  %446 = vmatpush1.bf16.msra.mxu0 %v320
  %447 = vmatprep.subr.bf16.mxu0 0
  %448 = vmatpush1.bf16.msra.mxu0 %v321
  %449 = vmatprep.subr.bf16.mxu0 0
  %450 = vmatpush1.bf16.msra.mxu0 %v322
  %451 = vmatprep.subr.bf16.mxu0 0
  %452 = vmatpush1.bf16.msra.mxu0 0
  %453 = vmatprep.subr.bf16.mxu0 0
  %454 = vmatpush1.bf16.msra.mxu0 0
  %455 = vmatprep.subr.bf16.mxu0 0
  %456 = vmatpush1.bf16.msra.mxu0 0
  %457 = vmatprep.subr.bf16.mxu0 0
  %458 = vmatpush1.bf16.msra.mxu0 0
  %459 = vmatprep.subr.bf16.mxu0 0
  %460 = vmatpush1.bf16.msra.mxu0 0
  %461 = vmatprep.subr.bf16.mxu0 0
  %462 = vmatpush1.bf16.msra.mxu0 0
  %463 = vmatprep.subr.bf16.mxu0 0
  %464 = vmatpush1.bf16.msra.mxu0 0
  %465 = vmatprep.subr.bf16.mxu0 0
  %466 = vmatpush1.bf16.msra.mxu0 0
  %467 = vmatprep.mubr.bf16.mxu0 0
  %468 = vmatmul.mubr.bf16.gmra.mrb[0].mxu0 %v163
  %v469 = vpop.f32.mrb[0].mxu0
  %v470 = vadd.f32 %v382, %v469
  %v471 = vpop.f32.mrb[0].mxu0
  %v472 = vpop.f32.mrb[0].mxu0
  %v473 = vadd.f32 %v385, %v472
  %v474 = vpop.f32.mrb[0].mxu0
  %475 = vmatprep.mubr.bf16.mxu0 0
  %476 = vmatmul.mubr.bf16.gmra.mrb[0].mxu0 %v166
  %v477 = vpop.f32.mrb[0].mxu0
  %v478 = vadd.f32 %v390, %v477
  %v479 = vpop.f32.mrb[0].mxu0
  %v480 = vpop.f32.mrb[0].mxu0
  %v481 = vadd.f32 %v393, %v480
  %v482 = vpop.f32.mrb[0].mxu0
  %483 = vmatprep.mubr.bf16.mxu0 0
  %484 = vmatmul.mubr.bf16.gmra.mrb[0].mxu0 %v169
  %v485 = vpop.f32.mrb[0].mxu0
  %v486 = vadd.f32 %v398, %v485
  %v487 = vpop.f32.mrb[0].mxu0
  %v488 = vpop.f32.mrb[0].mxu0
  %v489 = vadd.f32 %v401, %v488
  %v490 = vpop.f32.mrb[0].mxu0
  %491 = vmatprep.mubr.bf16.mxu0 0
  %492 = vmatmul.mubr.bf16.gmra.mrb[0].mxu0 %v172
  %v493 = vpop.f32.mrb[0].mxu0
  %v494 = vadd.f32 %v406, %v493
  %v495 = vpop.f32.mrb[0].mxu0
  %v496 = vpop.f32.mrb[0].mxu0
  %v497 = vadd.f32 %v409, %v496
  %v498 = vpop.f32.mrb[0].mxu0
  %499 = vmatprep.mubr.bf16.mxu0 0
  %500 = vmatmul.mubr.bf16.gmra.mrb[0].mxu0 %v175
  %v501 = vpop.f32.mrb[0].mxu0
  %v502 = vadd.f32 %v414, %v501
  %v503 = vpop.f32.mrb[0].mxu0
  %v504 = vpop.f32.mrb[0].mxu0
  %v505 = vadd.f32 %v417, %v504
  %v506 = vpop.f32.mrb[0].mxu0
  %507 = vmatprep.mubr.bf16.mxu0 0
  %508 = vmatmul.mubr.bf16.gmra.mrb[0].mxu0 %v178
  %v509 = vpop.f32.mrb[0].mxu0
  %v510 = vadd.f32 %v422, %v509
  %v511 = vpop.f32.mrb[0].mxu0
  %v512 = vpop.f32.mrb[0].mxu0
  %v513 = vadd.f32 %v425, %v512
  %v514 = vpop.f32.mrb[0].mxu0
  %515 = vmatprep.mubr.bf16.mxu0 0
  %516 = vmatmul.mubr.bf16.gmra.mrb[0].mxu0 %v181
  %v517 = vpop.f32.mrb[0].mxu0
  %v518 = vadd.f32 %v430, %v517
  %v519 = vpop.f32.mrb[0].mxu0
  %v520 = vpop.f32.mrb[0].mxu0
  %v521 = vpop.f32.mrb[0].mxu0
  %522 = vdwg.mxu0
  %v523 = vmax.f32 %v470, 0.0
  %v524 = vmax.f32 %v473, 0.0
  %v525 = vmax.f32 %v478, 0.0
  %v526 = vmax.f32 %v481, 0.0
  %v527 = vmax.f32 %v486, 0.0
  %v528 = vmax.f32 %v489, 0.0
  %v529 = vmax.f32 %v494, 0.0
  %v530 = vmax.f32 %v497, 0.0
  %v531 = vmax.f32 %v502, 0.0
  %v532 = vmax.f32 %v505, 0.0
  %v533 = vmax.f32 %v510, 0.0
  %v534 = vmax.f32 %v513, 0.0
  %v535 = vmax.f32 %v518, 0.0
  %536 = vst [vmem:[%s3] sm:$0xff] %v523
  %537 = vst [vmem:[%s3 + $0x8] sm:$0xff] %v524
  %538 = vst [vmem:[%s3 + $0x10] sm:$0xff] %v525
  %539 = vst [vmem:[%s3 + $0x18] sm:$0xff] %v526
  %540 = vst [vmem:[%s3 + $0x20] sm:$0xff] %v527
  %541 = vst [vmem:[%s3 + $0x28] sm:$0xff] %v528
  %542 = vst [vmem:[%s3 + $0x30] sm:$0xff] %v529
  %543 = vst [vmem:[%s3 + $0x38] sm:$0xff] %v530
  %544 = vst [vmem:[%s3 + $0x40] sm:$0xff] %v531
  %545 = vst [vmem:[%s3 + $0x48] sm:$0xff] %v532
  %546 = vst [vmem:[%s3 + $0x50] sm:$0xff] %v533
  %547 = vst [vmem:[%s3 + $0x58] sm:$0xff] %v534
  %548 = vst [vmem:[%s3 + $0x60] sm:$0xff] %v535
  // Predicated region
  $region14: #{sagnn_forward.32} parent=0 // pred_check
    _
  $region15: #{sagnn_forward.32} parent=0 // pred_check_branch
    %550 = sbr.rel (0) target = $region17
  $region16: #{sagnn_forward.32} parent=0 // pred_region
    _
  $region17: #{sagnn_forward.32} parent=0 // pred_fallthru
    _
  // Predicated region
  $region18: #{sagnn_forward.32} parent=0 // pred_check
    _
  $region19: #{sagnn_forward.32} parent=0 // pred_check_branch
    %552 = sbr.rel (0) target = $region21
  $region20: #{sagnn_forward.32} parent=0 // pred_region
    _
  $region21: #{sagnn_forward.32} parent=0 // pred_fallthru
    _

// kernel: sub.19
$region0: #{sub.19}
  #allocation0 [shape = 's32[1]{0}', space=sflag, size = 0x4, scoped, tag = 'scoped memory for sub.19']
  %s0 = inlined_call_operand.vmem [shape: f32[50,1], index: 0, kind: input, shape index: {}]
  %s1 = inlined_call_operand.vmem [shape: f32[50,1], index: 1, kind: input, shape index: {}]
  %s2 = inlined_call_operand.vmem [shape: f32[50,1], index: 2, kind: output, shape index: {}]
  %v3 = vld [vmem:[%s0] sm:$0x1]
  %v4 = vld [vmem:[%s1] sm:$0x1]
  %5 = xla_tuple %v3, %v4
  %6 = xla_tuple %5
  %v7 = vsub.f32 %v3, %v4
  %8 = xla_tuple %v7
  %9 = vst [vmem:[%s2] sm:$0x1] %v7

// kernel: sagnn_forward.35
$region0: #{sagnn_forward.35}
  #allocation0 [shape = 'u32[]', space=smem, size = 0x4, offset = 0x4, fixed_abs, tag = 'smem constant byte address 0x4 - core index']
  #allocation1 [shape = 'u32[144,128]{1,0:T(1,128)}', space=vmem, size = 0x12000, scoped, tag = 'internal scratch']
  %s0 = inlined_call_operand.vmem [shape: f32[2,25,64], index: 0, kind: input, shape index: {}]
  %s1 = inlined_call_operand.vmem [shape: f32[2,128,64], index: 1, kind: input, shape index: {}]
  %s2 = inlined_call_operand.vmem [shape: f32[2,1,128], index: 2, kind: output, shape index: {}]
  %s3 = sld [smem:[#allocation0]]
  $region41: #{sagnn_forward.35} parent=0
    _
  %s5 = ssub.s32 1, %s3
  %s6 = scalar_select 0, %s5, %s3
  loop: start=0, step=1, limit=4
  $region2: #{sagnn_forward.35} parent=0 // loop_pre_header
    _
  $region3: #{sagnn_forward.35} parent=0 // loop_header
    %s8 = sphi 0, %s12
    %p9 = scmp.ge.s32.totalorder %s8, 4
    %s15 = sphi 0, %s27
    %s16 = sphi 0, %s23
    %s17 = sphi 0, %s15
    %s18 = sphi 0, %s16
    %s19 = sphi 0, %s17
    %s20 = sphi 0, %s18
    %s30 = sphi 0, %s32
    %s33 = sphi 0, %s30
    %s34 = sphi 0, %s33
    %s50 = sphi 0, %s34
    %s58 = sphi 0, %s60
    %s61 = sphi 0, %s58
    %s62 = sphi 0, %s61
    %s78 = sphi 0, %s62
    %s86 = sphi 0, %s88
    %s89 = sphi 0, %s86
    %s90 = sphi 0, %s89
    %s106 = sphi 0, %s90
  $region4: #{sagnn_forward.35} parent=0 // loop_header_branch
    %11 = sbr.rel (%p9) target = $region8
  $region5: #{sagnn_forward.35} parent=0 // loop_body
    %s13 = ssub.s32 %s8, 1
    %s14 = ssub.s32 %s8, 2
    %s21 = sadd.s32 1, %s16
    %p22 = scmp.ge.s32.totalorder %s21, 1
    %s23 = scalar_select %p22, 0, %s21
    %s24 = sadd.s32 1, %s15
    %s25 = scalar_select %p22, %s24, %s15
    %p26 = scmp.ge.s32.totalorder %s25, 2
    %s27 = scalar_select %p26, 0, %s25
    %s28 = ssub.s32 %s15, %s27
    %p29 = scmp.eq.s32.totalorder %s28, 0
    %s31 = sadd.s32 %s30, 1
    %s32 = scalar_select %p29, %s30, %s31
    %p35 = pneg %p29
    %p36 = scmp.eq.s32.totalorder %s8, 1
    %p37 = por %p35, %p36
    %p38 = scmp.ne.s32.totalorder %s30, %s33
    %p39 = scmp.eq.s32.totalorder %s8, 0
    %p40 = por %p38, %p39
    %p41 = scmp.ne.s32.totalorder %s30, %s33
    %p42 = scmp.eq.s32.totalorder %s13, 1
    %p43 = por %p41, %p42
    %p44 = scmp.ne.s32.totalorder %s33, %s34
    %p45 = scmp.eq.s32.totalorder %s13, 0
    %p46 = por %p44, %p45
    %p47 = scmp.ne.s32.totalorder %s33, %s34
    %p48 = scmp.eq.s32.totalorder %s14, 1
    %p49 = por %p47, %p48
    %p51 = scmp.ne.s32.totalorder %s34, %s50
    %p52 = scmp.eq.s32.totalorder %s14, 0
    %p53 = por %p51, %p52
    %s54 = ssub.s32 %s15, %s27
    %s55 = ssub.s32 %s16, %s23
    %s56 = sor.u32 %s54, %s55
    %p57 = scmp.eq.s32.totalorder %s56, 0
    %s59 = sadd.s32 %s58, 1
    %s60 = scalar_select %p57, %s58, %s59
    %p63 = pneg %p57
    %p64 = scmp.eq.s32.totalorder %s8, 1
    %p65 = por %p63, %p64
    %p66 = scmp.ne.s32.totalorder %s58, %s61
    %p67 = scmp.eq.s32.totalorder %s8, 0
    %p68 = por %p66, %p67
    %p69 = scmp.ne.s32.totalorder %s58, %s61
    %p70 = scmp.eq.s32.totalorder %s13, 1
    %p71 = por %p69, %p70
    %p72 = scmp.ne.s32.totalorder %s61, %s62
    %p73 = scmp.eq.s32.totalorder %s13, 0
    %p74 = por %p72, %p73
    %p75 = scmp.ne.s32.totalorder %s61, %s62
    %p76 = scmp.eq.s32.totalorder %s14, 1
    %p77 = por %p75, %p76
    %p79 = scmp.ne.s32.totalorder %s62, %s78
    %p80 = scmp.eq.s32.totalorder %s14, 0
    %p81 = por %p79, %p80
    %s82 = ssub.s32 %s15, %s27
    %s83 = ssub.s32 %s16, %s23
    %s84 = sor.u32 %s82, %s83
    %p85 = scmp.eq.s32.totalorder %s84, 0
    %s87 = sadd.s32 %s86, 1
    %s88 = scalar_select %p85, %s86, %s87
    %p91 = pneg %p85
    %p92 = scmp.eq.s32.totalorder %s8, 1
    %p93 = por %p91, %p92
    %p94 = scmp.ne.s32.totalorder %s86, %s89
    %p95 = scmp.eq.s32.totalorder %s8, 0
    %p96 = por %p94, %p95
    %p97 = scmp.ne.s32.totalorder %s86, %s89
    %p98 = scmp.eq.s32.totalorder %s13, 1
    %p99 = por %p97, %p98
    %p100 = scmp.ne.s32.totalorder %s89, %s90
    %p101 = scmp.eq.s32.totalorder %s13, 0
    %p102 = por %p100, %p101
    %p103 = scmp.ne.s32.totalorder %s89, %s90
    %p104 = scmp.eq.s32.totalorder %s14, 1
    %p105 = por %p103, %p104
    %p107 = scmp.ne.s32.totalorder %s90, %s106
    %p108 = scmp.eq.s32.totalorder %s14, 0
    %p109 = por %p107, %p108
    %p110 = scmp.le.s32.totalorder 1, %s8
    %p111 = scmp.lt.s32.totalorder %s8, 3
    %p112 = pnand %p110, %p111
    %p113 = pneg %p112
    // Predicated region
    $region9: #{sagnn_forward.35} parent=5 // pred_check
      _
    $region10: #{sagnn_forward.35} parent=5 // pred_check_branch
      %115 = sbr.rel (%p112) target = $region12
    $region11: #{sagnn_forward.35} parent=5 // pred_region
      %s116 = ssub.s32 %s8, 1
    $region12: #{sagnn_forward.35} parent=5 // pred_fallthru
      _
    %p117 = scmp.lt.s32.totalorder %s8, 2
    // Predicated region
    $region13: #{sagnn_forward.35} parent=5 // pred_check
      %p118 = pneg %p117
    $region14: #{sagnn_forward.35} parent=5 // pred_check_branch
      %120 = sbr.rel (%p118) target = $region16
    $region15: #{sagnn_forward.35} parent=5 // pred_region
      // Predicated region
      $region17: #{sagnn_forward.35} parent=15 // pred_check
        %p121 = pneg %p40
      $region18: #{sagnn_forward.35} parent=15 // pred_check_branch
        %123 = sbr.rel (%p121) target = $region20
      $region19: #{sagnn_forward.35} parent=15 // pred_region
        %p124 = scmp.lt.s32.totalorder %s15, 1
        %s125 = scalar_select %p124, %s15, 1
        %s126 = smul.addr %s125, 4
        %s127 = smul.addr %s126, 8
        %s128 = scalar_lea.vmem %s0, %s127
      $region20: #{sagnn_forward.35} parent=15 // pred_fallthru
        _
      // Predicated region
      $region21: #{sagnn_forward.35} parent=15 // pred_check
        %p129 = pneg %p68
      $region22: #{sagnn_forward.35} parent=15 // pred_check_branch
        %131 = sbr.rel (%p129) target = $region24
      $region23: #{sagnn_forward.35} parent=15 // pred_region
        %s132 = smul.u32 16, %s16
        %p133 = scmp.lt.s32.totalorder %s15, 1
        %s134 = scalar_select %p133, %s15, 1
        %p135 = scmp.lt.s32.totalorder %s132, 15
        %s136 = scalar_select %p135, %s132, 15
        %s137 = smul.addr %s134, 16
        %s138 = sadd.s32 %s136, %s137
        %s139 = smul.addr %s138, 8
        %s140 = scalar_lea.vmem %s1, %s139
        %s141 = smul.u32 16, %s16
      $region24: #{sagnn_forward.35} parent=15 // pred_fallthru
        _
    $region16: #{sagnn_forward.35} parent=5 // pred_fallthru
      _
    %p142 = scmp.le.s32.totalorder 1, %s8
    %p143 = scmp.lt.s32.totalorder %s8, 3
    %p144 = pnand %p142, %p143
    %p145 = pneg %p144
    // Predicated region
    $region25: #{sagnn_forward.35} parent=5 // pred_check
      _
    $region26: #{sagnn_forward.35} parent=5 // pred_check_branch
      %147 = sbr.rel (%p144) target = $region28
    $region27: #{sagnn_forward.35} parent=5 // pred_region
      %s148 = ssub.s32 %s8, 1
      %p149 = scmp.lt.s32.totalorder %s17, 1
      %s150 = scalar_select %p149, %s17, 1
      %s151 = smul.addr %s150, 4
      %s152 = smul.addr %s151, 8
      %s153 = scalar_lea.vmem %s0, %s152
      %p154 = pneg %p46
      %p155 = pneg %p43
      %s156 = smul.u32 16, %s18
      %p157 = scmp.lt.s32.totalorder %s17, 1
      %s158 = scalar_select %p157, %s17, 1
      %p159 = scmp.lt.s32.totalorder %s156, 15
      %s160 = scalar_select %p159, %s156, 15
      %s161 = smul.addr %s158, 16
      %s162 = sadd.s32 %s160, %s161
      %s163 = smul.addr %s162, 8
      %s164 = scalar_lea.vmem %s1, %s163
      %p165 = pneg %p74
      %p166 = pneg %p71
      %p167 = pneg %p102
      %p168 = pneg %p99
      %p169 = scmp.lt.s32.totalorder %s17, 1
      %s170 = scalar_select %p169, %s17, 1
      %p171 = scmp.lt.s32.totalorder %s18, 0
      %s172 = scalar_select %p171, %s18, 0
      %s173 = sadd.s32 %s172, %s170
      %s174 = scalar_lea.vmem %s2, %s173
      %p175 = scmp.lt.s32.totalorder %s17, 1
      %s176 = scalar_select %p175, %s17, 1
      %s177 = smul.addr %s176, 4
      %s178 = smul.addr %s177, 8
      %s179 = scalar_lea.vmem %s0, %s178
      %s180 = smul.u32 16, %s18
      %p181 = scmp.lt.s32.totalorder %s17, 1
      %s182 = scalar_select %p181, %s17, 1
      %p183 = scmp.lt.s32.totalorder %s180, 15
      %s184 = scalar_select %p183, %s180, 15
      %s185 = smul.addr %s182, 16
      %s186 = sadd.s32 %s184, %s185
      %s187 = smul.addr %s186, 8
      %s188 = scalar_lea.vmem %s1, %s187
      %s189 = smul.u32 16, %s18
      %p190 = scmp.lt.s32.totalorder %s17, 1
      %s191 = scalar_select %p190, %s17, 1
      %p192 = scmp.lt.s32.totalorder %s18, 0
      %s193 = scalar_select %p192, %s18, 0
      %s194 = sadd.s32 %s193, %s191
      %s195 = scalar_lea.vmem %s2, %s194
      %v196 = vld [vmem:[%s179] sm:$0xff]
      %v197 = vld [vmem:[%s179 + $0x8] sm:$0xff]
      %v198 = vld [vmem:[%s179 + $0x10] sm:$0xff]
      %v199 = vld [vmem:[%s179 + $0x18] sm:$0x1]
      %v200 = vld [vmem:[%s188] sm:$0xff]
      %v201 = vld [vmem:[%s188 + $0x8] sm:$0xff]
      %v202 = vld [vmem:[%s188 + $0x10] sm:$0xff]
      %v203 = vld [vmem:[%s188 + $0x18] sm:$0xff]
      %v204 = vld [vmem:[%s188 + $0x20] sm:$0xff]
      %v205 = vld [vmem:[%s188 + $0x28] sm:$0xff]
      %v206 = vld [vmem:[%s188 + $0x30] sm:$0xff]
      %v207 = vld [vmem:[%s188 + $0x38] sm:$0xff]
      %v208 = vld [vmem:[%s188 + $0x40] sm:$0xff]
      %v209 = vld [vmem:[%s188 + $0x48] sm:$0xff]
      %v210 = vld [vmem:[%s188 + $0x50] sm:$0xff]
      %v211 = vld [vmem:[%s188 + $0x58] sm:$0xff]
      %v212 = vld [vmem:[%s188 + $0x60] sm:$0xff]
      %v213 = vld [vmem:[%s188 + $0x68] sm:$0xff]
      %v214 = vld [vmem:[%s188 + $0x70] sm:$0xff]
      %v215 = vld [vmem:[%s188 + $0x78] sm:$0xff]
      %v216 = vmul.f32 %v196, %v196
      %v217 = vmul.f32 %v197, %v197
      %v218 = vmul.f32 %v198, %v198
      %v219 = vmul.f32 %v199, %v199
      %vm220 = vcmask 523264
      %v221 = vsel %vm220, %v216, 0.0
      %222 = vadd.xlane.f32.xlu0 %v221
      %v223 = vpop.xlane.xlu0 %222
      %v224 = vsel %vm220, %v217, 0.0
      %225 = vadd.xlane.f32.xlu0 %v224
      %v226 = vpop.xlane.xlu0 %225
      %v227 = vsel %vm220, %v218, 0.0
      %228 = vadd.xlane.f32.xlu0 %v227
      %v229 = vpop.xlane.xlu0 %228
      %vm230 = vcmask 516096
      %v231 = vsel %vm230, %v219, 0.0
      %232 = vadd.xlane.f32.xlu0 %v231
      %v233 = vpop.xlane.xlu0 %232
      %v234 = vrsqrt.pop %v223
      %v235 = vmul.f32 %v223, %v234
      %vm236 = vcmp.eq.f32.partialorder %v223, inf
      %v237 = vsel %vm236, %v223, %v235
      %vm238 = vcmp.eq.f32.partialorder %v223, 0.0
      %v239 = vand.u32 %v223, 2147483648
      %v240 = vsel %vm238, %v239, %v237
      %v241 = vrsqrt.pop %v226
      %v242 = vmul.f32 %v226, %v241
      %vm243 = vcmp.eq.f32.partialorder %v226, inf
      %v244 = vsel %vm243, %v226, %v242
      %vm245 = vcmp.eq.f32.partialorder %v226, 0.0
      %v246 = vand.u32 %v226, 2147483648
      %v247 = vsel %vm245, %v246, %v244
      %v248 = vrsqrt.pop %v229
      %v249 = vmul.f32 %v229, %v248
      %vm250 = vcmp.eq.f32.partialorder %v229, inf
      %v251 = vsel %vm250, %v229, %v249
      %vm252 = vcmp.eq.f32.partialorder %v229, 0.0
      %v253 = vand.u32 %v229, 2147483648
      %v254 = vsel %vm252, %v253, %v251
      %v255 = vrsqrt.pop %v233
      %v256 = vmul.f32 %v233, %v255
      %vm257 = vcmp.eq.f32.partialorder %v233, inf
      %v258 = vsel %vm257, %v233, %v256
      %vm259 = vcmp.eq.f32.partialorder %v233, 0.0
      %v260 = vand.u32 %v233, 2147483648
      %v261 = vsel %vm259, %v260, %v258
      %v262 = vmul.f32 %v200, %v200
      %v263 = vmul.f32 %v201, %v201
      %v264 = vmul.f32 %v202, %v202
      %v265 = vmul.f32 %v203, %v203
      %v266 = vmul.f32 %v204, %v204
      %v267 = vmul.f32 %v205, %v205
      %v268 = vmul.f32 %v206, %v206
      %v269 = vmul.f32 %v207, %v207
      %v270 = vmul.f32 %v208, %v208
      %v271 = vmul.f32 %v209, %v209
      %v272 = vmul.f32 %v210, %v210
      %v273 = vmul.f32 %v211, %v211
      %v274 = vmul.f32 %v212, %v212
      %v275 = vmul.f32 %v213, %v213
      %v276 = vmul.f32 %v214, %v214
      %v277 = vmul.f32 %v215, %v215
      %v278 = vsel %vm220, %v262, 0.0
      %279 = vadd.xlane.f32.xlu0 %v278
      %v280 = vpop.xlane.xlu0 %279
      %v281 = vsel %vm220, %v263, 0.0
      %282 = vadd.xlane.f32.xlu0 %v281
      %v283 = vpop.xlane.xlu0 %282
      %v284 = vsel %vm220, %v264, 0.0
      %285 = vadd.xlane.f32.xlu0 %v284
      %v286 = vpop.xlane.xlu0 %285
      %v287 = vsel %vm220, %v265, 0.0
      %288 = vadd.xlane.f32.xlu0 %v287
      %v289 = vpop.xlane.xlu0 %288
      %v290 = vsel %vm220, %v266, 0.0
      %291 = vadd.xlane.f32.xlu0 %v290
      %v292 = vpop.xlane.xlu0 %291
      %v293 = vsel %vm220, %v267, 0.0
      %294 = vadd.xlane.f32.xlu0 %v293
      %v295 = vpop.xlane.xlu0 %294
      %v296 = vsel %vm220, %v268, 0.0
      %297 = vadd.xlane.f32.xlu0 %v296
      %v298 = vpop.xlane.xlu0 %297
      %v299 = vsel %vm220, %v269, 0.0
      %300 = vadd.xlane.f32.xlu0 %v299
      %v301 = vpop.xlane.xlu0 %300
      %v302 = vsel %vm220, %v270, 0.0
      %303 = vadd.xlane.f32.xlu0 %v302
      %v304 = vpop.xlane.xlu0 %303
      %v305 = vsel %vm220, %v271, 0.0
      %306 = vadd.xlane.f32.xlu0 %v305
      %v307 = vpop.xlane.xlu0 %306
      %v308 = vsel %vm220, %v272, 0.0
      %309 = vadd.xlane.f32.xlu0 %v308
      %v310 = vpop.xlane.xlu0 %309
      %v311 = vsel %vm220, %v273, 0.0
      %312 = vadd.xlane.f32.xlu0 %v311
      %v313 = vpop.xlane.xlu0 %312
      %v314 = vsel %vm220, %v274, 0.0
      %315 = vadd.xlane.f32.xlu0 %v314
      %v316 = vpop.xlane.xlu0 %315
      %v317 = vsel %vm220, %v275, 0.0
      %318 = vadd.xlane.f32.xlu0 %v317
      %v319 = vpop.xlane.xlu0 %318
      %v320 = vsel %vm220, %v276, 0.0
      %321 = vadd.xlane.f32.xlu0 %v320
      %v322 = vpop.xlane.xlu0 %321
      %v323 = vsel %vm220, %v277, 0.0
      %324 = vadd.xlane.f32.xlu0 %v323
      %v325 = vpop.xlane.xlu0 %324
      %v326 = vrsqrt.pop %v280
      %v327 = vmul.f32 %v280, %v326
      %vm328 = vcmp.eq.f32.partialorder %v280, inf
      %v329 = vsel %vm328, %v280, %v327
      %vm330 = vcmp.eq.f32.partialorder %v280, 0.0
      %v331 = vand.u32 %v280, 2147483648
      %v332 = vsel %vm330, %v331, %v329
      %v333 = vrsqrt.pop %v283
      %v334 = vmul.f32 %v283, %v333
      %vm335 = vcmp.eq.f32.partialorder %v283, inf
      %v336 = vsel %vm335, %v283, %v334
      %vm337 = vcmp.eq.f32.partialorder %v283, 0.0
      %v338 = vand.u32 %v283, 2147483648
      %v339 = vsel %vm337, %v338, %v336
      %v340 = vrsqrt.pop %v286
      %v341 = vmul.f32 %v286, %v340
      %vm342 = vcmp.eq.f32.partialorder %v286, inf
      %v343 = vsel %vm342, %v286, %v341
      %vm344 = vcmp.eq.f32.partialorder %v286, 0.0
      %v345 = vand.u32 %v286, 2147483648
      %v346 = vsel %vm344, %v345, %v343
      %v347 = vrsqrt.pop %v289
      %v348 = vmul.f32 %v289, %v347
      %vm349 = vcmp.eq.f32.partialorder %v289, inf
      %v350 = vsel %vm349, %v289, %v348
      %vm351 = vcmp.eq.f32.partialorder %v289, 0.0
      %v352 = vand.u32 %v289, 2147483648
      %v353 = vsel %vm351, %v352, %v350
      %v354 = vrsqrt.pop %v292
      %v355 = vmul.f32 %v292, %v354
      %vm356 = vcmp.eq.f32.partialorder %v292, inf
      %v357 = vsel %vm356, %v292, %v355
      %vm358 = vcmp.eq.f32.partialorder %v292, 0.0
      %v359 = vand.u32 %v292, 2147483648
      %v360 = vsel %vm358, %v359, %v357
      %v361 = vrsqrt.pop %v295
      %v362 = vmul.f32 %v295, %v361
      %vm363 = vcmp.eq.f32.partialorder %v295, inf
      %v364 = vsel %vm363, %v295, %v362
      %vm365 = vcmp.eq.f32.partialorder %v295, 0.0
      %v366 = vand.u32 %v295, 2147483648
      %v367 = vsel %vm365, %v366, %v364
      %v368 = vrsqrt.pop %v298
      %v369 = vmul.f32 %v298, %v368
      %vm370 = vcmp.eq.f32.partialorder %v298, inf
      %v371 = vsel %vm370, %v298, %v369
      %vm372 = vcmp.eq.f32.partialorder %v298, 0.0
      %v373 = vand.u32 %v298, 2147483648
      %v374 = vsel %vm372, %v373, %v371
      %v375 = vrsqrt.pop %v301
      %v376 = vmul.f32 %v301, %v375
      %vm377 = vcmp.eq.f32.partialorder %v301, inf
      %v378 = vsel %vm377, %v301, %v376
      %vm379 = vcmp.eq.f32.partialorder %v301, 0.0
      %v380 = vand.u32 %v301, 2147483648
      %v381 = vsel %vm379, %v380, %v378
      %v382 = vrsqrt.pop %v304
      %v383 = vmul.f32 %v304, %v382
      %vm384 = vcmp.eq.f32.partialorder %v304, inf
      %v385 = vsel %vm384, %v304, %v383
      %vm386 = vcmp.eq.f32.partialorder %v304, 0.0
      %v387 = vand.u32 %v304, 2147483648
      %v388 = vsel %vm386, %v387, %v385
      %v389 = vrsqrt.pop %v307
      %v390 = vmul.f32 %v307, %v389
      %vm391 = vcmp.eq.f32.partialorder %v307, inf
      %v392 = vsel %vm391, %v307, %v390
      %vm393 = vcmp.eq.f32.partialorder %v307, 0.0
      %v394 = vand.u32 %v307, 2147483648
      %v395 = vsel %vm393, %v394, %v392
      %v396 = vrsqrt.pop %v310
      %v397 = vmul.f32 %v310, %v396
      %vm398 = vcmp.eq.f32.partialorder %v310, inf
      %v399 = vsel %vm398, %v310, %v397
      %vm400 = vcmp.eq.f32.partialorder %v310, 0.0
      %v401 = vand.u32 %v310, 2147483648
      %v402 = vsel %vm400, %v401, %v399
      %v403 = vrsqrt.pop %v313
      %v404 = vmul.f32 %v313, %v403
      %vm405 = vcmp.eq.f32.partialorder %v313, inf
      %v406 = vsel %vm405, %v313, %v404
      %vm407 = vcmp.eq.f32.partialorder %v313, 0.0
      %v408 = vand.u32 %v313, 2147483648
      %v409 = vsel %vm407, %v408, %v406
      %v410 = vrsqrt.pop %v316
      %v411 = vmul.f32 %v316, %v410
      %vm412 = vcmp.eq.f32.partialorder %v316, inf
      %v413 = vsel %vm412, %v316, %v411
      %vm414 = vcmp.eq.f32.partialorder %v316, 0.0
      %v415 = vand.u32 %v316, 2147483648
      %v416 = vsel %vm414, %v415, %v413
      %v417 = vrsqrt.pop %v319
      %v418 = vmul.f32 %v319, %v417
      %vm419 = vcmp.eq.f32.partialorder %v319, inf
      %v420 = vsel %vm419, %v319, %v418
      %vm421 = vcmp.eq.f32.partialorder %v319, 0.0
      %v422 = vand.u32 %v319, 2147483648
      %v423 = vsel %vm421, %v422, %v420
      %v424 = vrsqrt.pop %v322
      %v425 = vmul.f32 %v322, %v424
      %vm426 = vcmp.eq.f32.partialorder %v322, inf
      %v427 = vsel %vm426, %v322, %v425
      %vm428 = vcmp.eq.f32.partialorder %v322, 0.0
      %v429 = vand.u32 %v322, 2147483648
      %v430 = vsel %vm428, %v429, %v427
      %v431 = vrsqrt.pop %v325
      %v432 = vmul.f32 %v325, %v431
      %vm433 = vcmp.eq.f32.partialorder %v325, inf
      %v434 = vsel %vm433, %v325, %v432
      %vm435 = vcmp.eq.f32.partialorder %v325, 0.0
      %v436 = vand.u32 %v325, 2147483648
      %v437 = vsel %vm435, %v436, %v434
      %v438 = vadd.f32 %v240, 1e-07
      %v439 = vadd.f32 %v247, 1e-07
      %v440 = vadd.f32 %v254, 1e-07
      %v441 = vadd.f32 %v261, 1e-07
      %v442 = vrcp.pop %v438
      %v443 = vmul.f32 %v196, %v442
      %v444 = vrcp.pop %v439
      %v445 = vmul.f32 %v197, %v444
      %v446 = vrcp.pop %v440
      %v447 = vmul.f32 %v198, %v446
      %v448 = vrcp.pop %v441
      %v449 = vmul.f32 %v199, %v448
      %v450 = vadd.f32 %v332, 1e-07
      %v451 = vadd.f32 %v339, 1e-07
      %v452 = vadd.f32 %v346, 1e-07
      %v453 = vadd.f32 %v353, 1e-07
      %v454 = vadd.f32 %v360, 1e-07
      %v455 = vadd.f32 %v367, 1e-07
      %v456 = vadd.f32 %v374, 1e-07
      %v457 = vadd.f32 %v381, 1e-07
      %v458 = vadd.f32 %v388, 1e-07
      %v459 = vadd.f32 %v395, 1e-07
      %v460 = vadd.f32 %v402, 1e-07
      %v461 = vadd.f32 %v409, 1e-07
      %v462 = vadd.f32 %v416, 1e-07
      %v463 = vadd.f32 %v423, 1e-07
      %v464 = vadd.f32 %v430, 1e-07
      %v465 = vadd.f32 %v437, 1e-07
      %v466 = vrcp.pop %v450
      %v467 = vmul.f32 %v200, %v466
      %v468 = vrcp.pop %v451
      %v469 = vmul.f32 %v201, %v468
      %v470 = vrcp.pop %v452
      %v471 = vmul.f32 %v202, %v470
      %v472 = vrcp.pop %v453
      %v473 = vmul.f32 %v203, %v472
      %v474 = vrcp.pop %v454
      %v475 = vmul.f32 %v204, %v474
      %v476 = vrcp.pop %v455
      %v477 = vmul.f32 %v205, %v476
      %v478 = vrcp.pop %v456
      %v479 = vmul.f32 %v206, %v478
      %v480 = vrcp.pop %v457
      %v481 = vmul.f32 %v207, %v480
      %v482 = vrcp.pop %v458
      %v483 = vmul.f32 %v208, %v482
      %v484 = vrcp.pop %v459
      %v485 = vmul.f32 %v209, %v484
      %v486 = vrcp.pop %v460
      %v487 = vmul.f32 %v210, %v486
      %v488 = vrcp.pop %v461
      %v489 = vmul.f32 %v211, %v488
      %v490 = vrcp.pop %v462
      %v491 = vmul.f32 %v212, %v490
      %v492 = vrcp.pop %v463
      %v493 = vmul.f32 %v213, %v492
      %v494 = vrcp.pop %v464
      %v495 = vmul.f32 %v214, %v494
      %v496 = vrcp.pop %v465
      %v497 = vmul.f32 %v215, %v496
      %v499 = vsel %vm220, %v443, 0
      %v502 = vsel %vm220, %v445, 0
      %v505 = vsel %vm220, %v447, 0
      %v508 = vsel %vm220, %v449, 0
      %v511 = vsel %vm220, %v467, 0
      %v514 = vsel %vm220, %v469, 0
      %v517 = vsel %vm220, %v471, 0
      %v520 = vsel %vm220, %v473, 0
      %v523 = vsel %vm220, %v475, 0
      %v526 = vsel %vm220, %v477, 0
      %v529 = vsel %vm220, %v479, 0
      %v532 = vsel %vm220, %v481, 0
      %v535 = vsel %vm220, %v483, 0
      %v538 = vsel %vm220, %v485, 0
      %v541 = vsel %vm220, %v487, 0
      %v544 = vsel %vm220, %v489, 0
      %v547 = vsel %vm220, %v491, 0
      %v550 = vsel %vm220, %v493, 0
      %v553 = vsel %vm220, %v495, 0
      %v556 = vsel %vm220, %v497, 0
      %558 = vmatprep.subr.mxu0 0.0
      %559 = vmatpush1.xpose.msra.mxu0 %v511
      %560 = vmatprep.subr.mxu0 0.0
      %561 = vmatpush1.xpose.msra.mxu0 %v514
      %562 = vmatprep.subr.mxu0 0.0
      %563 = vmatpush1.xpose.msra.mxu0 %v517
      %564 = vmatprep.subr.mxu0 0.0
      %565 = vmatpush1.xpose.msra.mxu0 %v520
      %566 = vmatprep.subr.mxu0 0.0
      %567 = vmatpush1.xpose.msra.mxu0 %v523
      %568 = vmatprep.subr.mxu0 0.0
      %569 = vmatpush1.xpose.msra.mxu0 %v526
      %570 = vmatprep.subr.mxu0 0.0
      %571 = vmatpush1.xpose.msra.mxu0 %v529
      %572 = vmatprep.subr.mxu0 0.0
      %573 = vmatpush1.xpose.msra.mxu0 %v532
      %574 = vmatprep.subr.mxu0 0.0
      %575 = vmatpush1.xpose.msra.mxu0 %v535
      %576 = vmatprep.subr.mxu0 0.0
      %577 = vmatpush1.xpose.msra.mxu0 %v538
      %578 = vmatprep.subr.mxu0 0.0
      %579 = vmatpush1.xpose.msra.mxu0 %v541
      %580 = vmatprep.subr.mxu0 0.0
      %581 = vmatpush1.xpose.msra.mxu0 %v544
      %582 = vmatprep.subr.mxu0 0.0
      %583 = vmatpush1.xpose.msra.mxu0 %v547
      %584 = vmatprep.subr.mxu0 0.0
      %585 = vmatpush1.xpose.msra.mxu0 %v550
      %586 = vmatprep.subr.mxu0 0.0
      %587 = vmatpush1.xpose.msra.mxu0 %v553
      %588 = vmatprep.subr.mxu0 0.0
      %589 = vmatpush1.xpose.msra.mxu0 %v556
      %590 = vmatprep.subr.mxu0 0.0
      %591 = vmatpush1.xpose.msra.mxu0 0.0
      %592 = vmatprep.subr.mxu0 0.0
      %593 = vmatpush1.xpose.msra.mxu0 0.0
      %594 = vmatprep.subr.mxu0 0.0
      %595 = vmatpush1.xpose.msra.mxu0 0.0
      %596 = vmatprep.subr.mxu0 0.0
      %597 = vmatpush1.xpose.msra.mxu0 0.0
      %598 = vmatprep.subr.mxu0 0.0
      %599 = vmatpush1.xpose.msra.mxu0 0.0
      %600 = vmatprep.subr.mxu0 0.0
      %601 = vmatpush1.xpose.msra.mxu0 0.0
      %602 = vmatprep.subr.mxu0 0.0
      %603 = vmatpush1.xpose.msra.mxu0 0.0
      %604 = vmatprep.subr.mxu0 0.0
      %605 = vmatpush1.xpose.msra.mxu0 0.0
      %606 = vmatprep.subr.mxu0 0.0
      %607 = vmatpush1.xpose.msra.mxu0 0.0
      %608 = vmatprep.subr.mxu0 0.0
      %609 = vmatpush1.xpose.msra.mxu0 0.0
      %610 = vmatprep.subr.mxu0 0.0
      %611 = vmatpush1.xpose.msra.mxu0 0.0
      %612 = vmatprep.subr.mxu0 0.0
      %613 = vmatpush1.xpose.msra.mxu0 0.0
      %614 = vmatprep.subr.mxu0 0.0
      %615 = vmatpush1.xpose.msra.mxu0 0.0
      %616 = vmatprep.subr.mxu0 0.0
      %617 = vmatpush1.xpose.msra.mxu0 0.0
      %618 = vmatprep.subr.mxu0 0.0
      %619 = vmatpush1.xpose.msra.mxu0 0.0
      %620 = vmatprep.subr.mxu0 0.0
      %621 = vmatpush1.xpose.msra.mxu0 0.0
      %622 = vmatprep.mubr.f32.mxu0 0.0
      %623 = vmatmul.mubr.f32.gmra.mrb[0].mxu0 %v499
      %v624 = vpop.f32.mrb[0].mxu0
      %v625 = vadd.f32 0.0, %v624
      %v626 = vpop.f32.mrb[0].mxu0
      %627 = vmatprep.mubr.f32.mxu0 0.0
      %628 = vmatmul.mubr.f32.gmra.mrb[0].mxu0 %v502
      %v629 = vpop.f32.mrb[0].mxu0
      %v630 = vadd.f32 0.0, %v629
      %v631 = vpop.f32.mrb[0].mxu0
      %632 = vmatprep.mubr.f32.mxu0 0.0
      %633 = vmatmul.mubr.f32.gmra.mrb[0].mxu0 %v505
      %v634 = vpop.f32.mrb[0].mxu0
      %v635 = vadd.f32 0.0, %v634
      %v636 = vpop.f32.mrb[0].mxu0
      %637 = vmatprep.mubr.f32.mxu0 0.0
      %638 = vmatmul.mubr.f32.gmra.mrb[0].mxu0 %v508
      %v639 = vpop.f32.mrb[0].mxu0
      %v640 = vadd.f32 0.0, %v639
      %v641 = vpop.f32.mrb[0].mxu0
      %642 = vdwg.mxu0
      %vm643 = vcmask 1040384
      %v644 = vsel %vm643, %v640, -inf
      %v645 = vmax.f32 %v625, %v630
      %v646 = vmax.f32 %v635, %v644
      %v647 = vmax.f32 %v645, %v646
      %v648 = vrot.slane %v647, 4
      %v649 = vmax.f32 %v647, %v648
      %v650 = vrot.slane %v649, 2
      %v651 = vmax.f32 %v649, %v650
      %v652 = vrot.slane %v651, 1
      %v653 = vmax.f32 %v651, %v652
      %654 = vst [vmem:[%s195] sm:$0x1] %v653
      %p655 = scmp.lt.s32.totalorder %s17, 1
      %s656 = scalar_select %p655, %s17, 1
      %p657 = scmp.lt.s32.totalorder %s18, 0
      %s658 = scalar_select %p657, %s18, 0
      %s659 = sadd.s32 %s658, %s656
      %s660 = scalar_lea.vmem %s2, %s659
      // Predicated region
      $region29: #{sagnn_forward.35} parent=27 // pred_check
        %p661 = pneg %p99
      $region30: #{sagnn_forward.35} parent=27 // pred_check_branch
        %663 = sbr.rel (%p661) target = $region32
      $region31: #{sagnn_forward.35} parent=27 // pred_region
        _
      $region32: #{sagnn_forward.35} parent=27 // pred_fallthru
        _
    $region28: #{sagnn_forward.35} parent=5 // pred_fallthru
      _
    %p664 = scmp.le.s32.totalorder 2, %s8
    // Predicated region
    $region33: #{sagnn_forward.35} parent=5 // pred_check
      %p665 = pneg %p664
    $region34: #{sagnn_forward.35} parent=5 // pred_check_branch
      %667 = sbr.rel (%p665) target = $region36
    $region35: #{sagnn_forward.35} parent=5 // pred_region
      %s668 = ssub.s32 %s8, 2
      // Predicated region
      $region37: #{sagnn_forward.35} parent=35 // pred_check
        %p669 = pneg %p105
      $region38: #{sagnn_forward.35} parent=35 // pred_check_branch
        %671 = sbr.rel (%p669) target = $region40
      $region39: #{sagnn_forward.35} parent=35 // pred_region
        %p672 = scmp.lt.s32.totalorder %s19, 1
        %s673 = scalar_select %p672, %s19, 1
        %p674 = scmp.lt.s32.totalorder %s20, 0
        %s675 = scalar_select %p674, %s20, 0
        %s676 = sadd.s32 %s675, %s673
        %s677 = scalar_lea.vmem %s2, %s676
      $region40: #{sagnn_forward.35} parent=35 // pred_fallthru
        _
    $region36: #{sagnn_forward.35} parent=5 // pred_fallthru
      _
  $region6: #{sagnn_forward.35} parent=0 // loop_footer
    %s12 = sadd.s32 1, %s8
  $region7: #{sagnn_forward.35} parent=0 // loop_footer_branch
    %7 = sbr.rel target = $region3
  $region8: #{sagnn_forward.35} parent=0 // loop_exit
    _

// kernel: sagnn_forward.34
$region0: #{sagnn_forward.34}
  #allocation0 [shape = 'u32[]', space=smem, size = 0x4, offset = 0x4, fixed_abs, tag = 'smem constant byte address 0x4 - core index']
  #allocation1 [shape = 'u32[144,128]{1,0:T(1,128)}', space=vmem, size = 0x12000, scoped, tag = 'internal scratch']
  %s0 = inlined_call_operand.vmem [shape: f32[2,25,32], index: 0, kind: input, shape index: {}]
  %s1 = inlined_call_operand.vmem [shape: f32[2,25,1], index: 1, kind: input, shape index: {}]
  %s2 = inlined_call_operand.vmem [shape: f32[2,1,32], index: 2, kind: output, shape index: {}]
  %s3 = sld [smem:[#allocation0]]
  $region41: #{sagnn_forward.34} parent=0
    _
  %s5 = ssub.s32 1, %s3
  %s6 = scalar_select 0, %s5, %s3
  loop: start=0, step=1, limit=4
  $region2: #{sagnn_forward.34} parent=0 // loop_pre_header
    _
  $region3: #{sagnn_forward.34} parent=0 // loop_header
    %s8 = sphi 0, %s12
    %p9 = scmp.ge.s32.totalorder %s8, 4
    %s18 = sphi 0, %s20
    %s21 = sphi 0, %s18
    %s22 = sphi 0, %s21
    %s38 = sphi 0, %s22
    %s44 = sphi 0, %s46
    %s47 = sphi 0, %s44
    %s48 = sphi 0, %s47
    %s64 = sphi 0, %s48
    %s70 = sphi 0, %s72
    %s73 = sphi 0, %s70
    %s74 = sphi 0, %s73
    %s90 = sphi 0, %s74
  $region4: #{sagnn_forward.34} parent=0 // loop_header_branch
    %11 = sbr.rel (%p9) target = $region8
  $region5: #{sagnn_forward.34} parent=0 // loop_body
    %s13 = ssub.s32 %s8, 1
    %s14 = ssub.s32 %s8, 2
    %s15 = sadd.s32 %s8, 1
    %s16 = ssub.s32 %s8, %s15
    %p17 = scmp.eq.s32.totalorder %s16, 0
    %s19 = sadd.s32 %s18, 1
    %s20 = scalar_select %p17, %s18, %s19
    %p23 = pneg %p17
    %p24 = scmp.eq.s32.totalorder %s8, 1
    %p25 = por %p23, %p24
    %p26 = scmp.ne.s32.totalorder %s18, %s21
    %p27 = scmp.eq.s32.totalorder %s8, 0
    %p28 = por %p26, %p27
    %p29 = scmp.ne.s32.totalorder %s18, %s21
    %p30 = scmp.eq.s32.totalorder %s13, 1
    %p31 = por %p29, %p30
    %p32 = scmp.ne.s32.totalorder %s21, %s22
    %p33 = scmp.eq.s32.totalorder %s13, 0
    %p34 = por %p32, %p33
    %p35 = scmp.ne.s32.totalorder %s21, %s22
    %p36 = scmp.eq.s32.totalorder %s14, 1
    %p37 = por %p35, %p36
    %p39 = scmp.ne.s32.totalorder %s22, %s38
    %p40 = scmp.eq.s32.totalorder %s14, 0
    %p41 = por %p39, %p40
    %s42 = ssub.s32 %s8, %s15
    %p43 = scmp.eq.s32.totalorder %s42, 0
    %s45 = sadd.s32 %s44, 1
    %s46 = scalar_select %p43, %s44, %s45
    %p49 = pneg %p43
    %p50 = scmp.eq.s32.totalorder %s8, 1
    %p51 = por %p49, %p50
    %p52 = scmp.ne.s32.totalorder %s44, %s47
    %p53 = scmp.eq.s32.totalorder %s8, 0
    %p54 = por %p52, %p53
    %p55 = scmp.ne.s32.totalorder %s44, %s47
    %p56 = scmp.eq.s32.totalorder %s13, 1
    %p57 = por %p55, %p56
    %p58 = scmp.ne.s32.totalorder %s47, %s48
    %p59 = scmp.eq.s32.totalorder %s13, 0
    %p60 = por %p58, %p59
    %p61 = scmp.ne.s32.totalorder %s47, %s48
    %p62 = scmp.eq.s32.totalorder %s14, 1
    %p63 = por %p61, %p62
    %p65 = scmp.ne.s32.totalorder %s48, %s64
    %p66 = scmp.eq.s32.totalorder %s14, 0
    %p67 = por %p65, %p66
    %s68 = ssub.s32 %s8, %s15
    %p69 = scmp.eq.s32.totalorder %s68, 0
    %s71 = sadd.s32 %s70, 1
    %s72 = scalar_select %p69, %s70, %s71
    %p75 = pneg %p69
    %p76 = scmp.eq.s32.totalorder %s8, 1
    %p77 = por %p75, %p76
    %p78 = scmp.ne.s32.totalorder %s70, %s73
    %p79 = scmp.eq.s32.totalorder %s8, 0
    %p80 = por %p78, %p79
    %p81 = scmp.ne.s32.totalorder %s70, %s73
    %p82 = scmp.eq.s32.totalorder %s13, 1
    %p83 = por %p81, %p82
    %p84 = scmp.ne.s32.totalorder %s73, %s74
    %p85 = scmp.eq.s32.totalorder %s13, 0
    %p86 = por %p84, %p85
    %p87 = scmp.ne.s32.totalorder %s73, %s74
    %p88 = scmp.eq.s32.totalorder %s14, 1
    %p89 = por %p87, %p88
    %p91 = scmp.ne.s32.totalorder %s74, %s90
    %p92 = scmp.eq.s32.totalorder %s14, 0
    %p93 = por %p91, %p92
    %p94 = scmp.le.s32.totalorder 1, %s8
    %p95 = scmp.lt.s32.totalorder %s8, 3
    %p96 = pnand %p94, %p95
    %p97 = pneg %p96
    // Predicated region
    $region9: #{sagnn_forward.34} parent=5 // pred_check
      _
    $region10: #{sagnn_forward.34} parent=5 // pred_check_branch
      %99 = sbr.rel (%p96) target = $region12
    $region11: #{sagnn_forward.34} parent=5 // pred_region
      %s100 = ssub.s32 %s8, 1
    $region12: #{sagnn_forward.34} parent=5 // pred_fallthru
      _
    %p101 = scmp.lt.s32.totalorder %s8, 2
    // Predicated region
    $region13: #{sagnn_forward.34} parent=5 // pred_check
      %p102 = pneg %p101
    $region14: #{sagnn_forward.34} parent=5 // pred_check_branch
      %104 = sbr.rel (%p102) target = $region16
    $region15: #{sagnn_forward.34} parent=5 // pred_region
      // Predicated region
      $region17: #{sagnn_forward.34} parent=15 // pred_check
        %p105 = pneg %p28
      $region18: #{sagnn_forward.34} parent=15 // pred_check_branch
        %107 = sbr.rel (%p105) target = $region20
      $region19: #{sagnn_forward.34} parent=15 // pred_region
        %p108 = scmp.lt.s32.totalorder %s8, 1
        %s109 = scalar_select %p108, %s8, 1
        %s110 = smul.addr %s109, 4
        %s111 = smul.addr %s110, 8
        %s112 = scalar_lea.vmem %s0, %s111
      $region20: #{sagnn_forward.34} parent=15 // pred_fallthru
        _
      // Predicated region
      $region21: #{sagnn_forward.34} parent=15 // pred_check
        %p113 = pneg %p54
      $region22: #{sagnn_forward.34} parent=15 // pred_check_branch
        %115 = sbr.rel (%p113) target = $region24
      $region23: #{sagnn_forward.34} parent=15 // pred_region
        %p116 = scmp.lt.s32.totalorder %s8, 1
        %s117 = scalar_select %p116, %s8, 1
        %s118 = smul.addr %s117, 4
        %s119 = smul.addr %s118, 8
        %s120 = scalar_lea.vmem %s1, %s119
      $region24: #{sagnn_forward.34} parent=15 // pred_fallthru
        _
    $region16: #{sagnn_forward.34} parent=5 // pred_fallthru
      _
    %p121 = scmp.le.s32.totalorder 1, %s8
    %p122 = scmp.lt.s32.totalorder %s8, 3
    %p123 = pnand %p121, %p122
    %p124 = pneg %p123
    // Predicated region
    $region25: #{sagnn_forward.34} parent=5 // pred_check
      _
    $region26: #{sagnn_forward.34} parent=5 // pred_check_branch
      %126 = sbr.rel (%p123) target = $region28
    $region27: #{sagnn_forward.34} parent=5 // pred_region
      %s127 = ssub.s32 %s8, 1
      %p128 = scmp.lt.s32.totalorder %s13, 1
      %s129 = scalar_select %p128, %s13, 1
      %s130 = smul.addr %s129, 4
      %s131 = smul.addr %s130, 8
      %s132 = scalar_lea.vmem %s0, %s131
      %p133 = pneg %p34
      %p134 = pneg %p31
      %p135 = scmp.lt.s32.totalorder %s13, 1
      %s136 = scalar_select %p135, %s13, 1
      %s137 = smul.addr %s136, 4
      %s138 = smul.addr %s137, 8
      %s139 = scalar_lea.vmem %s1, %s138
      %p140 = pneg %p60
      %p141 = pneg %p57
      %p142 = pneg %p86
      %p143 = pneg %p83
      %p144 = scmp.lt.s32.totalorder %s13, 1
      %s145 = scalar_select %p144, %s13, 1
      %s146 = scalar_lea.vmem %s2, %s145
      %p147 = scmp.lt.s32.totalorder %s13, 1
      %s148 = scalar_select %p147, %s13, 1
      %s149 = smul.addr %s148, 4
      %s150 = smul.addr %s149, 8
      %s151 = scalar_lea.vmem %s0, %s150
      %p152 = scmp.lt.s32.totalorder %s13, 1
      %s153 = scalar_select %p152, %s13, 1
      %s154 = smul.addr %s153, 4
      %s155 = smul.addr %s154, 8
      %s156 = scalar_lea.vmem %s1, %s155
      %p157 = scmp.lt.s32.totalorder %s13, 1
      %s158 = scalar_select %p157, %s13, 1
      %s159 = scalar_lea.vmem %s2, %s158
      %v160 = vld [vmem:[%s151] sm:$0xff]
      %v161 = vld [vmem:[%s151 + $0x8] sm:$0xff]
      %v162 = vld [vmem:[%s151 + $0x10] sm:$0xff]
      %v163 = vld [vmem:[%s151 + $0x18] sm:$0x1]
      %v164 = vld [vmem:[%s156] sm:$0xff]
      %v165 = vld [vmem:[%s156 + $0x8] sm:$0xff]
      %v166 = vld [vmem:[%s156 + $0x10] sm:$0xff]
      %v167 = vld [vmem:[%s156 + $0x18] sm:$0x1]
      %169 = vset.pattern.permute.xlu0 0
      %170 = vperm.xlu0 %169, %v164
      %v171 = vpop.permute.xlu0 %170
      %174 = vset.pattern.permute.xlu0 0
      %175 = vperm.xlu0 %174, %v165
      %v176 = vpop.permute.xlu0 %175
      %179 = vset.pattern.permute.xlu0 0
      %180 = vperm.xlu0 %179, %v166
      %v181 = vpop.permute.xlu0 %180
      %184 = vset.pattern.permute.xlu0 0
      %185 = vperm.xlu0 %184, %v167
      %v186 = vpop.permute.xlu0 %185
      %v188 = vmul.f32 %v160, %v171
      %v189 = vmul.f32 %v161, %v176
      %v190 = vmul.f32 %v162, %v181
      %v191 = vmul.f32 %v163, %v186
      %vm192 = vcmask 261120
      %v193 = vsel %vm192, %v188, 0.0
      %v194 = vsel %vm192, %v189, 0.0
      %v195 = vadd.f32 %v193, %v194
      %v196 = vsel %vm192, %v190, 0.0
      %v197 = vadd.f32 %v195, %v196
      %vm198 = vcmask 253952
      %v199 = vsel %vm198, %v191, 0.0
      %v200 = vadd.f32 %v197, %v199
      %v201 = vrot.slane %v200, 4
      %v202 = vadd.f32 %v200, %v201
      %v203 = vrot.slane %v202, 2
      %v204 = vadd.f32 %v202, %v203
      %v205 = vrot.slane %v204, 1
      %v206 = vadd.f32 %v204, %v205
      %vm207 = vcmask 7168
      %v208 = vsel %vm207, %v164, 0.0
      %v209 = vsel %vm207, %v165, 0.0
      %v210 = vadd.f32 %v208, %v209
      %v211 = vsel %vm207, %v166, 0.0
      %v212 = vadd.f32 %v210, %v211
      %vm213 = vcmask 0
      %v214 = vsel %vm213, %v167, 0.0
      %v215 = vadd.f32 %v212, %v214
      %v216 = vrot.slane %v215, 4
      %v217 = vadd.f32 %v215, %v216
      %v218 = vrot.slane %v217, 2
      %v219 = vadd.f32 %v217, %v218
      %v220 = vrot.slane %v219, 1
      %v221 = vadd.f32 %v219, %v220
      %v222 = vadd.f32 %v221, 0.0005
      %224 = vset.pattern.permute.xlu0 0
      %225 = vperm.xlu0 %224, %v222
      %v226 = vpop.permute.xlu0 %225
      %v228 = vrcp.pop %v226
      %v229 = vmul.f32 %v206, %v228
      %230 = vst.msk [vmem:[%s159] sm:$0x1] %vm198, %v229
      %p231 = scmp.lt.s32.totalorder %s13, 1
      %s232 = scalar_select %p231, %s13, 1
      %s233 = scalar_lea.vmem %s2, %s232
      // Predicated region
      $region29: #{sagnn_forward.34} parent=27 // pred_check
        %p234 = pneg %p83
      $region30: #{sagnn_forward.34} parent=27 // pred_check_branch
        %236 = sbr.rel (%p234) target = $region32
      $region31: #{sagnn_forward.34} parent=27 // pred_region
        _
      $region32: #{sagnn_forward.34} parent=27 // pred_fallthru
        _
    $region28: #{sagnn_forward.34} parent=5 // pred_fallthru
      _
    %p237 = scmp.le.s32.totalorder 2, %s8
    // Predicated region
    $region33: #{sagnn_forward.34} parent=5 // pred_check
      %p238 = pneg %p237
    $region34: #{sagnn_forward.34} parent=5 // pred_check_branch
      %240 = sbr.rel (%p238) target = $region36
    $region35: #{sagnn_forward.34} parent=5 // pred_region
      %s241 = ssub.s32 %s8, 2
      // Predicated region
      $region37: #{sagnn_forward.34} parent=35 // pred_check
        %p242 = pneg %p89
      $region38: #{sagnn_forward.34} parent=35 // pred_check_branch
        %244 = sbr.rel (%p242) target = $region40
      $region39: #{sagnn_forward.34} parent=35 // pred_region
        %p245 = scmp.lt.s32.totalorder %s14, 1
        %s246 = scalar_select %p245, %s14, 1
        %s247 = scalar_lea.vmem %s2, %s246
      $region40: #{sagnn_forward.34} parent=35 // pred_fallthru
        _
    $region36: #{sagnn_forward.34} parent=5 // pred_fallthru
      _
  $region6: #{sagnn_forward.34} parent=0 // loop_footer
    %s12 = sadd.s32 1, %s8
  $region7: #{sagnn_forward.34} parent=0 // loop_footer_branch
    %7 = sbr.rel target = $region3
  $region8: #{sagnn_forward.34} parent=0 // loop_exit
    _

// kernel: sagnn_forward.36
$region0: #{sagnn_forward.36}
  #allocation0 [shape = 'u32[]', space=smem, size = 0x4, offset = 0x4, fixed_abs, tag = 'smem constant byte address 0x4 - core index']
  #allocation1 [shape = 'u32[144,128]{1,0:T(1,128)}', space=vmem, size = 0x12000, scoped, tag = 'internal scratch']
  %s0 = inlined_call_operand.vmem [shape: bf16[56,128], index: 0, kind: input, shape index: {}]
  %s1 = inlined_call_operand.vmem [shape: bf16[128,128], index: 1, kind: input, shape index: {}]
  %s2 = inlined_call_operand.vmem [shape: f32[1,128], index: 2, kind: input, shape index: {}]
  %s3 = inlined_call_operand.vmem [shape: f32[56,128], index: 3, kind: output, shape index: {}]
  %s4 = sld [smem:[#allocation0]]
  $region22: #{sagnn_forward.36} parent=0
    _
  %s6 = ssub.s32 1, %s4
  %s7 = scalar_select 0, %s6, %s4
  // Predicated region
  $region2: #{sagnn_forward.36} parent=0 // pred_check
    _
  $region3: #{sagnn_forward.36} parent=0 // pred_check_branch
    %9 = sbr.rel (0) target = $region5
  $region4: #{sagnn_forward.36} parent=0 // pred_region
    _
  $region5: #{sagnn_forward.36} parent=0 // pred_fallthru
    _
  // Predicated region
  $region6: #{sagnn_forward.36} parent=0 // pred_check
    _
  $region7: #{sagnn_forward.36} parent=0 // pred_check_branch
    %11 = sbr.rel (0) target = $region9
  $region8: #{sagnn_forward.36} parent=0 // pred_region
    _
  $region9: #{sagnn_forward.36} parent=0 // pred_fallthru
    _
  // Predicated region
  $region10: #{sagnn_forward.36} parent=0 // pred_check
    _
  $region11: #{sagnn_forward.36} parent=0 // pred_check_branch
    %13 = sbr.rel (0) target = $region13
  $region12: #{sagnn_forward.36} parent=0 // pred_region
    _
  $region13: #{sagnn_forward.36} parent=0 // pred_fallthru
    _
  %v15 = vld [vmem:[%s0] sm:$0xf]
  %v16 = vld [vmem:[%s0 + $0x4] sm:$0xf]
  %v17 = vld [vmem:[%s0 + $0x8] sm:$0xf]
  %v18 = vld [vmem:[%s0 + $0xc] sm:$0xf]
  %v19 = vld [vmem:[%s0 + $0x10] sm:$0xf]
  %v20 = vld [vmem:[%s0 + $0x14] sm:$0xf]
  %v21 = vld [vmem:[%s0 + $0x18] sm:$0xf]
  %v22 = vld [vmem:[%s1] sm:$0xf]
  %v23 = vld [vmem:[%s1 + $0x4] sm:$0xf]
  %v24 = vld [vmem:[%s1 + $0x8] sm:$0xf]
  %v25 = vld [vmem:[%s1 + $0xc] sm:$0xf]
  %v26 = vld [vmem:[%s1 + $0x10] sm:$0xf]
  %v27 = vld [vmem:[%s1 + $0x14] sm:$0xf]
  %v28 = vld [vmem:[%s1 + $0x18] sm:$0xf]
  %v29 = vld [vmem:[%s1 + $0x1c] sm:$0xf]
  %v30 = vld [vmem:[%s1 + $0x20] sm:$0xf]
  %v31 = vld [vmem:[%s1 + $0x24] sm:$0xf]
  %v32 = vld [vmem:[%s1 + $0x28] sm:$0xf]
  %v33 = vld [vmem:[%s1 + $0x2c] sm:$0xf]
  %v34 = vld [vmem:[%s1 + $0x30] sm:$0xf]
  %v35 = vld [vmem:[%s1 + $0x34] sm:$0xf]
  %v36 = vld [vmem:[%s1 + $0x38] sm:$0xf]
  %v37 = vld [vmem:[%s1 + $0x3c] sm:$0xf]
  %v38 = vld [vmem:[%s2] sm:$0x1]
  %v40 = vlaneseq
  %v41 = vshrl.u32 %v40, 7
  %v42 = vsub.s32 0, %v41
  %v43 = vrot.slane %v38, %v42
  %v52 = vunpack.c.l.b16 %v15
  %v53 = vunpack.c.l.b16 %v16
  %v54 = vunpack.c.l.b16 %v17
  %v55 = vunpack.c.l.b16 %v18
  %v56 = vunpack.c.l.b16 %v19
  %v57 = vunpack.c.l.b16 %v20
  %v58 = vunpack.c.l.b16 %v21
  %v59 = vpack.c.b16 %v53, %v52
  %v60 = vpack.c.b16 %v55, %v54
  %v61 = vpack.c.b16 %v57, %v56
  %v62 = vpack.c.b16 %v58, %v58
  %v83 = vunpack.c.l.b16 %v22
  %v84 = vunpack.c.l.b16 %v23
  %v85 = vunpack.c.l.b16 %v24
  %v86 = vunpack.c.l.b16 %v25
  %v87 = vunpack.c.l.b16 %v26
  %v88 = vunpack.c.l.b16 %v27
  %v89 = vunpack.c.l.b16 %v28
  %v90 = vunpack.c.l.b16 %v29
  %v91 = vunpack.c.l.b16 %v30
  %v92 = vunpack.c.l.b16 %v31
  %v93 = vunpack.c.l.b16 %v32
  %v94 = vunpack.c.l.b16 %v33
  %v95 = vunpack.c.l.b16 %v34
  %v96 = vunpack.c.l.b16 %v35
  %v97 = vunpack.c.l.b16 %v36
  %v98 = vunpack.c.l.b16 %v37
  %v99 = vpack.c.b16 %v84, %v83
  %v100 = vpack.c.b16 %v86, %v85
  %v101 = vpack.c.b16 %v88, %v87
  %v102 = vpack.c.b16 %v90, %v89
  %v103 = vpack.c.b16 %v92, %v91
  %v104 = vpack.c.b16 %v94, %v93
  %v105 = vpack.c.b16 %v96, %v95
  %v106 = vpack.c.b16 %v98, %v97
  %115 = vmatprep.subr.bf16.mxu0 0
  %116 = vmatpush1.bf16.msra.mxu0 %v99
  %117 = vmatprep.subr.bf16.mxu0 0
  %118 = vmatpush1.bf16.msra.mxu0 %v100
  %119 = vmatprep.subr.bf16.mxu0 0
  %120 = vmatpush1.bf16.msra.mxu0 %v101
  %121 = vmatprep.subr.bf16.mxu0 0
  %122 = vmatpush1.bf16.msra.mxu0 %v102
  %123 = vmatprep.subr.bf16.mxu0 0
  %124 = vmatpush1.bf16.msra.mxu0 %v103
  %125 = vmatprep.subr.bf16.mxu0 0
  %126 = vmatpush1.bf16.msra.mxu0 %v104
  %127 = vmatprep.subr.bf16.mxu0 0
  %128 = vmatpush1.bf16.msra.mxu0 %v105
  %129 = vmatprep.subr.bf16.mxu0 0
  %130 = vmatpush1.bf16.msra.mxu0 %v106
  %131 = vmatprep.subr.bf16.mxu0 0
  %132 = vmatpush1.bf16.msra.mxu0 0
  %133 = vmatprep.subr.bf16.mxu0 0
  %134 = vmatpush1.bf16.msra.mxu0 0
  %135 = vmatprep.subr.bf16.mxu0 0
  %136 = vmatpush1.bf16.msra.mxu0 0
  %137 = vmatprep.subr.bf16.mxu0 0
  %138 = vmatpush1.bf16.msra.mxu0 0
  %139 = vmatprep.subr.bf16.mxu0 0
  %140 = vmatpush1.bf16.msra.mxu0 0
  %141 = vmatprep.subr.bf16.mxu0 0
  %142 = vmatpush1.bf16.msra.mxu0 0
  %143 = vmatprep.subr.bf16.mxu0 0
  %144 = vmatpush1.bf16.msra.mxu0 0
  %145 = vmatprep.subr.bf16.mxu0 0
  %146 = vmatpush1.bf16.msra.mxu0 0
  %147 = vmatprep.mubr.bf16.mxu0 0
  %148 = vmatmul.mubr.bf16.gmra.mrb[0].mxu0 %v59
  %v149 = vpop.f32.mrb[0].mxu0
  %v150 = vadd.f32 %v43, %v149
  %v151 = vpop.f32.mrb[0].mxu0
  %v152 = vpop.f32.mrb[0].mxu0
  %v153 = vadd.f32 %v43, %v152
  %v154 = vpop.f32.mrb[0].mxu0
  %155 = vmatprep.mubr.bf16.mxu0 0
  %156 = vmatmul.mubr.bf16.gmra.mrb[0].mxu0 %v60
  %v157 = vpop.f32.mrb[0].mxu0
  %v158 = vadd.f32 %v43, %v157
  %v159 = vpop.f32.mrb[0].mxu0
  %v160 = vpop.f32.mrb[0].mxu0
  %v161 = vadd.f32 %v43, %v160
  %v162 = vpop.f32.mrb[0].mxu0
  %163 = vmatprep.mubr.bf16.mxu0 0
  %164 = vmatmul.mubr.bf16.gmra.mrb[0].mxu0 %v61
  %v165 = vpop.f32.mrb[0].mxu0
  %v166 = vadd.f32 %v43, %v165
  %v167 = vpop.f32.mrb[0].mxu0
  %v168 = vpop.f32.mrb[0].mxu0
  %v169 = vadd.f32 %v43, %v168
  %v170 = vpop.f32.mrb[0].mxu0
  %171 = vmatprep.mubr.bf16.mxu0 0
  %172 = vmatmul.mubr.bf16.gmra.mrb[0].mxu0 %v62
  %v173 = vpop.f32.mrb[0].mxu0
  %v174 = vadd.f32 %v43, %v173
  %v175 = vpop.f32.mrb[0].mxu0
  %v176 = vpop.f32.mrb[0].mxu0
  %v177 = vpop.f32.mrb[0].mxu0
  %178 = vdwg.mxu0
  %v179 = vmax.f32 %v150, 0.0
  %v180 = vmax.f32 %v153, 0.0
  %v181 = vmax.f32 %v158, 0.0
  %v182 = vmax.f32 %v161, 0.0
  %v183 = vmax.f32 %v166, 0.0
  %v184 = vmax.f32 %v169, 0.0
  %v185 = vmax.f32 %v174, 0.0
  %186 = vst [vmem:[%s3] sm:$0xff] %v179
  %187 = vst [vmem:[%s3 + $0x8] sm:$0xff] %v180
  %188 = vst [vmem:[%s3 + $0x10] sm:$0xff] %v181
  %189 = vst [vmem:[%s3 + $0x18] sm:$0xff] %v182
  %190 = vst [vmem:[%s3 + $0x20] sm:$0xff] %v183
  %191 = vst [vmem:[%s3 + $0x28] sm:$0xff] %v184
  %192 = vst [vmem:[%s3 + $0x30] sm:$0xff] %v185
  // Predicated region
  $region14: #{sagnn_forward.36} parent=0 // pred_check
    _
  $region15: #{sagnn_forward.36} parent=0 // pred_check_branch
    %194 = sbr.rel (0) target = $region17
  $region16: #{sagnn_forward.36} parent=0 // pred_region
    _
  $region17: #{sagnn_forward.36} parent=0 // pred_fallthru
    _
  // Predicated region
  $region18: #{sagnn_forward.36} parent=0 // pred_check
    _
  $region19: #{sagnn_forward.36} parent=0 // pred_check_branch
    %196 = sbr.rel (0) target = $region21
  $region20: #{sagnn_forward.36} parent=0 // pred_region
    _
  $region21: #{sagnn_forward.36} parent=0 // pred_fallthru
    _

// kernel: sagnn_forward.37
$region0: #{sagnn_forward.37}
  #allocation0 [shape = 'u32[]', space=smem, size = 0x4, offset = 0x4, fixed_abs, tag = 'smem constant byte address 0x4 - core index']
  #allocation1 [shape = 'u32[144,128]{1,0:T(1,128)}', space=vmem, size = 0x12000, scoped, tag = 'internal scratch']
  %s0 = inlined_call_operand.vmem [shape: bf16[56,384], index: 0, kind: input, shape index: {}]
  %s1 = inlined_call_operand.vmem [shape: bf16[384,128], index: 1, kind: input, shape index: {}]
  %s2 = inlined_call_operand.vmem [shape: f32[1,128], index: 2, kind: input, shape index: {}]
  %s3 = inlined_call_operand.vmem [shape: f32[56,128], index: 3, kind: output, shape index: {}]
  %s4 = sld [smem:[#allocation0]]
  $region22: #{sagnn_forward.37} parent=0
    _
  %s6 = ssub.s32 1, %s4
  %s7 = scalar_select 0, %s6, %s4
  // Predicated region
  $region2: #{sagnn_forward.37} parent=0 // pred_check
    _
  $region3: #{sagnn_forward.37} parent=0 // pred_check_branch
    %9 = sbr.rel (0) target = $region5
  $region4: #{sagnn_forward.37} parent=0 // pred_region
    _
  $region5: #{sagnn_forward.37} parent=0 // pred_fallthru
    _
  // Predicated region
  $region6: #{sagnn_forward.37} parent=0 // pred_check
    _
  $region7: #{sagnn_forward.37} parent=0 // pred_check_branch
    %11 = sbr.rel (0) target = $region9
  $region8: #{sagnn_forward.37} parent=0 // pred_region
    _
  $region9: #{sagnn_forward.37} parent=0 // pred_fallthru
    _
  // Predicated region
  $region10: #{sagnn_forward.37} parent=0 // pred_check
    _
  $region11: #{sagnn_forward.37} parent=0 // pred_check_branch
    %13 = sbr.rel (0) target = $region13
  $region12: #{sagnn_forward.37} parent=0 // pred_region
    _
  $region13: #{sagnn_forward.37} parent=0 // pred_fallthru
    _
  %v15 = vld [vmem:[%s0] sm:$0xff]
  %v16 = vld [vmem:[%s0 + $0x8] sm:$0xf]
  %v17 = vld [vmem:[%s0 + $0xc] sm:$0xff]
  %v18 = vld [vmem:[%s0 + $0x14] sm:$0xf]
  %v19 = vld [vmem:[%s0 + $0x18] sm:$0xff]
  %v20 = vld [vmem:[%s0 + $0x20] sm:$0xf]
  %v21 = vld [vmem:[%s0 + $0x24] sm:$0xff]
  %v22 = vld [vmem:[%s0 + $0x2c] sm:$0xf]
  %v23 = vld [vmem:[%s0 + $0x30] sm:$0xff]
  %v24 = vld [vmem:[%s0 + $0x38] sm:$0xf]
  %v25 = vld [vmem:[%s0 + $0x3c] sm:$0xff]
  %v26 = vld [vmem:[%s0 + $0x44] sm:$0xf]
  %v27 = vld [vmem:[%s0 + $0x48] sm:$0xff]
  %v28 = vld [vmem:[%s0 + $0x50] sm:$0xf]
  %v29 = vld [vmem:[%s1] sm:$0xf]
  %v30 = vld [vmem:[%s1 + $0x4] sm:$0xf]
  %v31 = vld [vmem:[%s1 + $0x8] sm:$0xf]
  %v32 = vld [vmem:[%s1 + $0xc] sm:$0xf]
  %v33 = vld [vmem:[%s1 + $0x10] sm:$0xf]
  %v34 = vld [vmem:[%s1 + $0x14] sm:$0xf]
  %v35 = vld [vmem:[%s1 + $0x18] sm:$0xf]
  %v36 = vld [vmem:[%s1 + $0x1c] sm:$0xf]
  %v37 = vld [vmem:[%s1 + $0x20] sm:$0xf]
  %v38 = vld [vmem:[%s1 + $0x24] sm:$0xf]
  %v39 = vld [vmem:[%s1 + $0x28] sm:$0xf]
  %v40 = vld [vmem:[%s1 + $0x2c] sm:$0xf]
  %v41 = vld [vmem:[%s1 + $0x30] sm:$0xf]
  %v42 = vld [vmem:[%s1 + $0x34] sm:$0xf]
  %v43 = vld [vmem:[%s1 + $0x38] sm:$0xf]
  %v44 = vld [vmem:[%s1 + $0x3c] sm:$0xf]
  %v45 = vld [vmem:[%s1 + $0x40] sm:$0xf]
  %v46 = vld [vmem:[%s1 + $0x44] sm:$0xf]
  %v47 = vld [vmem:[%s1 + $0x48] sm:$0xf]
  %v48 = vld [vmem:[%s1 + $0x4c] sm:$0xf]
  %v49 = vld [vmem:[%s1 + $0x50] sm:$0xf]
  %v50 = vld [vmem:[%s1 + $0x54] sm:$0xf]
  %v51 = vld [vmem:[%s1 + $0x58] sm:$0xf]
  %v52 = vld [vmem:[%s1 + $0x5c] sm:$0xf]
  %v53 = vld [vmem:[%s1 + $0x60] sm:$0xf]
  %v54 = vld [vmem:[%s1 + $0x64] sm:$0xf]
  %v55 = vld [vmem:[%s1 + $0x68] sm:$0xf]
  %v56 = vld [vmem:[%s1 + $0x6c] sm:$0xf]
  %v57 = vld [vmem:[%s1 + $0x70] sm:$0xf]
  %v58 = vld [vmem:[%s1 + $0x74] sm:$0xf]
  %v59 = vld [vmem:[%s1 + $0x78] sm:$0xf]
  %v60 = vld [vmem:[%s1 + $0x7c] sm:$0xf]
  %v61 = vld [vmem:[%s1 + $0x80] sm:$0xf]
  %v62 = vld [vmem:[%s1 + $0x84] sm:$0xf]
  %v63 = vld [vmem:[%s1 + $0x88] sm:$0xf]
  %v64 = vld [vmem:[%s1 + $0x8c] sm:$0xf]
  %v65 = vld [vmem:[%s1 + $0x90] sm:$0xf]
  %v66 = vld [vmem:[%s1 + $0x94] sm:$0xf]
  %v67 = vld [vmem:[%s1 + $0x98] sm:$0xf]
  %v68 = vld [vmem:[%s1 + $0x9c] sm:$0xf]
  %v69 = vld [vmem:[%s1 + $0xa0] sm:$0xf]
  %v70 = vld [vmem:[%s1 + $0xa4] sm:$0xf]
  %v71 = vld [vmem:[%s1 + $0xa8] sm:$0xf]
  %v72 = vld [vmem:[%s1 + $0xac] sm:$0xf]
  %v73 = vld [vmem:[%s1 + $0xb0] sm:$0xf]
  %v74 = vld [vmem:[%s1 + $0xb4] sm:$0xf]
  %v75 = vld [vmem:[%s1 + $0xb8] sm:$0xf]
  %v76 = vld [vmem:[%s1 + $0xbc] sm:$0xf]
  %v77 = vld [vmem:[%s2] sm:$0x1]
  %v79 = vlaneseq
  %v80 = vshrl.u32 %v79, 7
  %v81 = vsub.s32 0, %v80
  %v82 = vrot.slane %v77, %v81
  %v98 = vunpack.c.l.b16 %v15
  %v99 = vunpack.c.h.b16 %v15
  %v100 = vunpack.c.l.b16 %v16
  %v101 = vunpack.c.l.b16 %v17
  %v102 = vunpack.c.h.b16 %v17
  %v103 = vunpack.c.l.b16 %v18
  %v104 = vunpack.c.l.b16 %v19
  %v105 = vunpack.c.h.b16 %v19
  %v106 = vunpack.c.l.b16 %v20
  %v107 = vunpack.c.l.b16 %v21
  %v108 = vunpack.c.h.b16 %v21
  %v109 = vunpack.c.l.b16 %v22
  %v110 = vunpack.c.l.b16 %v23
  %v111 = vunpack.c.h.b16 %v23
  %v112 = vunpack.c.l.b16 %v24
  %v113 = vunpack.c.l.b16 %v25
  %v114 = vunpack.c.h.b16 %v25
  %v115 = vunpack.c.l.b16 %v26
  %v116 = vunpack.c.l.b16 %v27
  %v117 = vunpack.c.h.b16 %v27
  %v118 = vunpack.c.l.b16 %v28
  %v119 = vpack.c.b16 %v101, %v98
  %v120 = vpack.c.b16 %v102, %v99
  %v121 = vpack.c.b16 %v103, %v100
  %v122 = vpack.c.b16 %v107, %v104
  %v123 = vpack.c.b16 %v108, %v105
  %v124 = vpack.c.b16 %v109, %v106
  %v125 = vpack.c.b16 %v113, %v110
  %v126 = vpack.c.b16 %v114, %v111
  %v127 = vpack.c.b16 %v115, %v112
  %v128 = vpack.c.b16 %v116, %v116
  %v129 = vpack.c.b16 %v117, %v117
  %v130 = vpack.c.b16 %v118, %v118
  %v191 = vunpack.c.l.b16 %v29
  %v192 = vunpack.c.l.b16 %v30
  %v193 = vunpack.c.l.b16 %v31
  %v194 = vunpack.c.l.b16 %v32
  %v195 = vunpack.c.l.b16 %v33
  %v196 = vunpack.c.l.b16 %v34
  %v197 = vunpack.c.l.b16 %v35
  %v198 = vunpack.c.l.b16 %v36
  %v199 = vunpack.c.l.b16 %v37
  %v200 = vunpack.c.l.b16 %v38
  %v201 = vunpack.c.l.b16 %v39
  %v202 = vunpack.c.l.b16 %v40
  %v203 = vunpack.c.l.b16 %v41
  %v204 = vunpack.c.l.b16 %v42
  %v205 = vunpack.c.l.b16 %v43
  %v206 = vunpack.c.l.b16 %v44
  %v207 = vunpack.c.l.b16 %v45
  %v208 = vunpack.c.l.b16 %v46
  %v209 = vunpack.c.l.b16 %v47
  %v210 = vunpack.c.l.b16 %v48
  %v211 = vunpack.c.l.b16 %v49
  %v212 = vunpack.c.l.b16 %v50
  %v213 = vunpack.c.l.b16 %v51
  %v214 = vunpack.c.l.b16 %v52
  %v215 = vunpack.c.l.b16 %v53
  %v216 = vunpack.c.l.b16 %v54
  %v217 = vunpack.c.l.b16 %v55
  %v218 = vunpack.c.l.b16 %v56
  %v219 = vunpack.c.l.b16 %v57
  %v220 = vunpack.c.l.b16 %v58
  %v221 = vunpack.c.l.b16 %v59
  %v222 = vunpack.c.l.b16 %v60
  %v223 = vunpack.c.l.b16 %v61
  %v224 = vunpack.c.l.b16 %v62
  %v225 = vunpack.c.l.b16 %v63
  %v226 = vunpack.c.l.b16 %v64
  %v227 = vunpack.c.l.b16 %v65
  %v228 = vunpack.c.l.b16 %v66
  %v229 = vunpack.c.l.b16 %v67
  %v230 = vunpack.c.l.b16 %v68
  %v231 = vunpack.c.l.b16 %v69
  %v232 = vunpack.c.l.b16 %v70
  %v233 = vunpack.c.l.b16 %v71
  %v234 = vunpack.c.l.b16 %v72
  %v235 = vunpack.c.l.b16 %v73
  %v236 = vunpack.c.l.b16 %v74
  %v237 = vunpack.c.l.b16 %v75
  %v238 = vunpack.c.l.b16 %v76
  %v239 = vpack.c.b16 %v192, %v191
  %v240 = vpack.c.b16 %v194, %v193
  %v241 = vpack.c.b16 %v196, %v195
  %v242 = vpack.c.b16 %v198, %v197
  %v243 = vpack.c.b16 %v200, %v199
  %v244 = vpack.c.b16 %v202, %v201
  %v245 = vpack.c.b16 %v204, %v203
  %v246 = vpack.c.b16 %v206, %v205
  %v247 = vpack.c.b16 %v208, %v207
  %v248 = vpack.c.b16 %v210, %v209
  %v249 = vpack.c.b16 %v212, %v211
  %v250 = vpack.c.b16 %v214, %v213
  %v251 = vpack.c.b16 %v216, %v215
  %v252 = vpack.c.b16 %v218, %v217
  %v253 = vpack.c.b16 %v220, %v219
  %v254 = vpack.c.b16 %v222, %v221
  %v255 = vpack.c.b16 %v224, %v223
  %v256 = vpack.c.b16 %v226, %v225
  %v257 = vpack.c.b16 %v228, %v227
  %v258 = vpack.c.b16 %v230, %v229
  %v259 = vpack.c.b16 %v232, %v231
  %v260 = vpack.c.b16 %v234, %v233
  %v261 = vpack.c.b16 %v236, %v235
  %v262 = vpack.c.b16 %v238, %v237
  %287 = vmatprep.subr.bf16.mxu0 0
  %288 = vmatpush1.bf16.msra.mxu0 %v239
  %289 = vmatprep.subr.bf16.mxu0 0
  %290 = vmatpush1.bf16.msra.mxu0 %v240
  %291 = vmatprep.subr.bf16.mxu0 0
  %292 = vmatpush1.bf16.msra.mxu0 %v241
  %293 = vmatprep.subr.bf16.mxu0 0
  %294 = vmatpush1.bf16.msra.mxu0 %v242
  %295 = vmatprep.subr.bf16.mxu0 0
  %296 = vmatpush1.bf16.msra.mxu0 %v243
  %297 = vmatprep.subr.bf16.mxu0 0
  %298 = vmatpush1.bf16.msra.mxu0 %v244
  %299 = vmatprep.subr.bf16.mxu0 0
  %300 = vmatpush1.bf16.msra.mxu0 %v245
  %301 = vmatprep.subr.bf16.mxu0 0
  %302 = vmatpush1.bf16.msra.mxu0 %v246
  %303 = vmatprep.subr.bf16.mxu0 0
  %304 = vmatpush1.bf16.msra.mxu0 %v247
  %305 = vmatprep.subr.bf16.mxu0 0
  %306 = vmatpush1.bf16.msra.mxu0 %v248
  %307 = vmatprep.subr.bf16.mxu0 0
  %308 = vmatpush1.bf16.msra.mxu0 %v249
  %309 = vmatprep.subr.bf16.mxu0 0
  %310 = vmatpush1.bf16.msra.mxu0 %v250
  %311 = vmatprep.subr.bf16.mxu0 0
  %312 = vmatpush1.bf16.msra.mxu0 %v251
  %313 = vmatprep.subr.bf16.mxu0 0
  %314 = vmatpush1.bf16.msra.mxu0 %v252
  %315 = vmatprep.subr.bf16.mxu0 0
  %316 = vmatpush1.bf16.msra.mxu0 %v253
  %317 = vmatprep.subr.bf16.mxu0 0
  %318 = vmatpush1.bf16.msra.mxu0 %v254
  %319 = vmatprep.mubr.bf16.mxu0 %v120
  %320 = vmatmul.mubr.bf16.gmra.mrb[0].mxu0 %v119
  %v321 = vpop.f32.mrb[0].mxu0
  %v322 = vadd.f32 %v82, %v321
  %v323 = vpop.f32.mrb[0].mxu0
  %v324 = vpop.f32.mrb[0].mxu0
  %v325 = vadd.f32 %v82, %v324
  %v326 = vpop.f32.mrb[0].mxu0
  %327 = vmatprep.mubr.bf16.mxu0 %v123
  %328 = vmatmul.mubr.bf16.gmra.mrb[0].mxu0 %v122
  %v329 = vpop.f32.mrb[0].mxu0
  %v330 = vadd.f32 %v82, %v329
  %v331 = vpop.f32.mrb[0].mxu0
  %v332 = vpop.f32.mrb[0].mxu0
  %v333 = vadd.f32 %v82, %v332
  %v334 = vpop.f32.mrb[0].mxu0
  %335 = vmatprep.mubr.bf16.mxu0 %v126
  %336 = vmatmul.mubr.bf16.gmra.mrb[0].mxu0 %v125
  %v337 = vpop.f32.mrb[0].mxu0
  %v338 = vadd.f32 %v82, %v337
  %v339 = vpop.f32.mrb[0].mxu0
  %v340 = vpop.f32.mrb[0].mxu0
  %v341 = vadd.f32 %v82, %v340
  %v342 = vpop.f32.mrb[0].mxu0
  %343 = vmatprep.mubr.bf16.mxu0 %v129
  %344 = vmatmul.mubr.bf16.gmra.mrb[0].mxu0 %v128
  %v345 = vpop.f32.mrb[0].mxu0
  %v346 = vadd.f32 %v82, %v345
  %v347 = vpop.f32.mrb[0].mxu0
  %v348 = vpop.f32.mrb[0].mxu0
  %v349 = vpop.f32.mrb[0].mxu0
  %350 = vdwg.mxu0
  %351 = vmatprep.subr.bf16.mxu0 0
  %352 = vmatpush1.bf16.msra.mxu0 %v255
  %353 = vmatprep.subr.bf16.mxu0 0
  %354 = vmatpush1.bf16.msra.mxu0 %v256
  %355 = vmatprep.subr.bf16.mxu0 0
  %356 = vmatpush1.bf16.msra.mxu0 %v257
  %357 = vmatprep.subr.bf16.mxu0 0
  %358 = vmatpush1.bf16.msra.mxu0 %v258
  %359 = vmatprep.subr.bf16.mxu0 0
  %360 = vmatpush1.bf16.msra.mxu0 %v259
  %361 = vmatprep.subr.bf16.mxu0 0
  %362 = vmatpush1.bf16.msra.mxu0 %v260
  %363 = vmatprep.subr.bf16.mxu0 0
  %364 = vmatpush1.bf16.msra.mxu0 %v261
  %365 = vmatprep.subr.bf16.mxu0 0
  %366 = vmatpush1.bf16.msra.mxu0 %v262
  %367 = vmatprep.subr.bf16.mxu0 0
  %368 = vmatpush1.bf16.msra.mxu0 0
  %369 = vmatprep.subr.bf16.mxu0 0
  %370 = vmatpush1.bf16.msra.mxu0 0
  %371 = vmatprep.subr.bf16.mxu0 0
  %372 = vmatpush1.bf16.msra.mxu0 0
  %373 = vmatprep.subr.bf16.mxu0 0
  %374 = vmatpush1.bf16.msra.mxu0 0
  %375 = vmatprep.subr.bf16.mxu0 0
  %376 = vmatpush1.bf16.msra.mxu0 0
  %377 = vmatprep.subr.bf16.mxu0 0
  %378 = vmatpush1.bf16.msra.mxu0 0
  %379 = vmatprep.subr.bf16.mxu0 0
  %380 = vmatpush1.bf16.msra.mxu0 0
  %381 = vmatprep.subr.bf16.mxu0 0
  %382 = vmatpush1.bf16.msra.mxu0 0
  %383 = vmatprep.mubr.bf16.mxu0 0
  %384 = vmatmul.mubr.bf16.gmra.mrb[0].mxu0 %v121
  %v385 = vpop.f32.mrb[0].mxu0
  %v386 = vadd.f32 %v322, %v385
  %v387 = vpop.f32.mrb[0].mxu0
  %v388 = vpop.f32.mrb[0].mxu0
  %v389 = vadd.f32 %v325, %v388
  %v390 = vpop.f32.mrb[0].mxu0
  %391 = vmatprep.mubr.bf16.mxu0 0
  %392 = vmatmul.mubr.bf16.gmra.mrb[0].mxu0 %v124
  %v393 = vpop.f32.mrb[0].mxu0
  %v394 = vadd.f32 %v330, %v393
  %v395 = vpop.f32.mrb[0].mxu0
  %v396 = vpop.f32.mrb[0].mxu0
  %v397 = vadd.f32 %v333, %v396
  %v398 = vpop.f32.mrb[0].mxu0
  %399 = vmatprep.mubr.bf16.mxu0 0
  %400 = vmatmul.mubr.bf16.gmra.mrb[0].mxu0 %v127
  %v401 = vpop.f32.mrb[0].mxu0
  %v402 = vadd.f32 %v338, %v401
  %v403 = vpop.f32.mrb[0].mxu0
  %v404 = vpop.f32.mrb[0].mxu0
  %v405 = vadd.f32 %v341, %v404
  %v406 = vpop.f32.mrb[0].mxu0
  %407 = vmatprep.mubr.bf16.mxu0 0
  %408 = vmatmul.mubr.bf16.gmra.mrb[0].mxu0 %v130
  %v409 = vpop.f32.mrb[0].mxu0
  %v410 = vadd.f32 %v346, %v409
  %v411 = vpop.f32.mrb[0].mxu0
  %v412 = vpop.f32.mrb[0].mxu0
  %v413 = vpop.f32.mrb[0].mxu0
  %414 = vdwg.mxu0
  %v415 = vmax.f32 %v386, 0.0
  %v416 = vmax.f32 %v389, 0.0
  %v417 = vmax.f32 %v394, 0.0
  %v418 = vmax.f32 %v397, 0.0
  %v419 = vmax.f32 %v402, 0.0
  %v420 = vmax.f32 %v405, 0.0
  %v421 = vmax.f32 %v410, 0.0
  %422 = vst [vmem:[%s3] sm:$0xff] %v415
  %423 = vst [vmem:[%s3 + $0x8] sm:$0xff] %v416
  %424 = vst [vmem:[%s3 + $0x10] sm:$0xff] %v417
  %425 = vst [vmem:[%s3 + $0x18] sm:$0xff] %v418
  %426 = vst [vmem:[%s3 + $0x20] sm:$0xff] %v419
  %427 = vst [vmem:[%s3 + $0x28] sm:$0xff] %v420
  %428 = vst [vmem:[%s3 + $0x30] sm:$0xff] %v421
  // Predicated region
  $region14: #{sagnn_forward.37} parent=0 // pred_check
    _
  $region15: #{sagnn_forward.37} parent=0 // pred_check_branch
    %430 = sbr.rel (0) target = $region17
  $region16: #{sagnn_forward.37} parent=0 // pred_region
    _
  $region17: #{sagnn_forward.37} parent=0 // pred_fallthru
    _
  // Predicated region
  $region18: #{sagnn_forward.37} parent=0 // pred_check
    _
  $region19: #{sagnn_forward.37} parent=0 // pred_check_branch
    %432 = sbr.rel (0) target = $region21
  $region20: #{sagnn_forward.37} parent=0 // pred_region
    _
  $region21: #{sagnn_forward.37} parent=0 // pred_fallthru
    _

// kernel: sagnn_forward.39
$region0: #{sagnn_forward.39}
  #allocation0 [shape = 'u32[]', space=smem, size = 0x4, offset = 0x4, fixed_abs, tag = 'smem constant byte address 0x4 - core index']
  #allocation1 [shape = 'u32[144,128]{1,0:T(1,128)}', space=vmem, size = 0x12000, scoped, tag = 'internal scratch']
  %s0 = inlined_call_operand.vmem [shape: bf16[24,128], index: 0, kind: input, shape index: {}]
  %s1 = inlined_call_operand.vmem [shape: bf16[128,128], index: 1, kind: input, shape index: {}]
  %s2 = inlined_call_operand.vmem [shape: f32[1,128], index: 2, kind: input, shape index: {}]
  %s3 = inlined_call_operand.vmem [shape: f32[24,128], index: 3, kind: output, shape index: {}]
  %s4 = sld [smem:[#allocation0]]
  $region22: #{sagnn_forward.39} parent=0
    _
  %s6 = ssub.s32 1, %s4
  %s7 = scalar_select 0, %s6, %s4
  // Predicated region
  $region2: #{sagnn_forward.39} parent=0 // pred_check
    _
  $region3: #{sagnn_forward.39} parent=0 // pred_check_branch
    %9 = sbr.rel (0) target = $region5
  $region4: #{sagnn_forward.39} parent=0 // pred_region
    _
  $region5: #{sagnn_forward.39} parent=0 // pred_fallthru
    _
  // Predicated region
  $region6: #{sagnn_forward.39} parent=0 // pred_check
    _
  $region7: #{sagnn_forward.39} parent=0 // pred_check_branch
    %11 = sbr.rel (0) target = $region9
  $region8: #{sagnn_forward.39} parent=0 // pred_region
    _
  $region9: #{sagnn_forward.39} parent=0 // pred_fallthru
    _
  // Predicated region
  $region10: #{sagnn_forward.39} parent=0 // pred_check
    _
  $region11: #{sagnn_forward.39} parent=0 // pred_check_branch
    %13 = sbr.rel (0) target = $region13
  $region12: #{sagnn_forward.39} parent=0 // pred_region
    _
  $region13: #{sagnn_forward.39} parent=0 // pred_fallthru
    _
  %v15 = vld [vmem:[%s0] sm:$0xf]
  %v16 = vld [vmem:[%s0 + $0x4] sm:$0xf]
  %v17 = vld [vmem:[%s0 + $0x8] sm:$0xf]
  %v18 = vld [vmem:[%s1] sm:$0xf]
  %v19 = vld [vmem:[%s1 + $0x4] sm:$0xf]
  %v20 = vld [vmem:[%s1 + $0x8] sm:$0xf]
  %v21 = vld [vmem:[%s1 + $0xc] sm:$0xf]
  %v22 = vld [vmem:[%s1 + $0x10] sm:$0xf]
  %v23 = vld [vmem:[%s1 + $0x14] sm:$0xf]
  %v24 = vld [vmem:[%s1 + $0x18] sm:$0xf]
  %v25 = vld [vmem:[%s1 + $0x1c] sm:$0xf]
  %v26 = vld [vmem:[%s1 + $0x20] sm:$0xf]
  %v27 = vld [vmem:[%s1 + $0x24] sm:$0xf]
  %v28 = vld [vmem:[%s1 + $0x28] sm:$0xf]
  %v29 = vld [vmem:[%s1 + $0x2c] sm:$0xf]
  %v30 = vld [vmem:[%s1 + $0x30] sm:$0xf]
  %v31 = vld [vmem:[%s1 + $0x34] sm:$0xf]
  %v32 = vld [vmem:[%s1 + $0x38] sm:$0xf]
  %v33 = vld [vmem:[%s1 + $0x3c] sm:$0xf]
  %v34 = vld [vmem:[%s2] sm:$0x1]
  %v36 = vlaneseq
  %v37 = vshrl.u32 %v36, 7
  %v38 = vsub.s32 0, %v37
  %v39 = vrot.slane %v34, %v38
  %v44 = vunpack.c.l.b16 %v15
  %v45 = vunpack.c.l.b16 %v16
  %v46 = vunpack.c.l.b16 %v17
  %v47 = vpack.c.b16 %v45, %v44
  %v48 = vpack.c.b16 %v46, %v46
  %v67 = vunpack.c.l.b16 %v18
  %v68 = vunpack.c.l.b16 %v19
  %v69 = vunpack.c.l.b16 %v20
  %v70 = vunpack.c.l.b16 %v21
  %v71 = vunpack.c.l.b16 %v22
  %v72 = vunpack.c.l.b16 %v23
  %v73 = vunpack.c.l.b16 %v24
  %v74 = vunpack.c.l.b16 %v25
  %v75 = vunpack.c.l.b16 %v26
  %v76 = vunpack.c.l.b16 %v27
  %v77 = vunpack.c.l.b16 %v28
  %v78 = vunpack.c.l.b16 %v29
  %v79 = vunpack.c.l.b16 %v30
  %v80 = vunpack.c.l.b16 %v31
  %v81 = vunpack.c.l.b16 %v32
  %v82 = vunpack.c.l.b16 %v33
  %v83 = vpack.c.b16 %v68, %v67
  %v84 = vpack.c.b16 %v70, %v69
  %v85 = vpack.c.b16 %v72, %v71
  %v86 = vpack.c.b16 %v74, %v73
  %v87 = vpack.c.b16 %v76, %v75
  %v88 = vpack.c.b16 %v78, %v77
  %v89 = vpack.c.b16 %v80, %v79
  %v90 = vpack.c.b16 %v82, %v81
  %99 = vmatprep.subr.bf16.mxu0 0
  %100 = vmatpush1.bf16.msra.mxu0 %v83
  %101 = vmatprep.subr.bf16.mxu0 0
  %102 = vmatpush1.bf16.msra.mxu0 %v84
  %103 = vmatprep.subr.bf16.mxu0 0
  %104 = vmatpush1.bf16.msra.mxu0 %v85
  %105 = vmatprep.subr.bf16.mxu0 0
  %106 = vmatpush1.bf16.msra.mxu0 %v86
  %107 = vmatprep.subr.bf16.mxu0 0
  %108 = vmatpush1.bf16.msra.mxu0 %v87
  %109 = vmatprep.subr.bf16.mxu0 0
  %110 = vmatpush1.bf16.msra.mxu0 %v88
  %111 = vmatprep.subr.bf16.mxu0 0
  %112 = vmatpush1.bf16.msra.mxu0 %v89
  %113 = vmatprep.subr.bf16.mxu0 0
  %114 = vmatpush1.bf16.msra.mxu0 %v90
  %115 = vmatprep.subr.bf16.mxu0 0
  %116 = vmatpush1.bf16.msra.mxu0 0
  %117 = vmatprep.subr.bf16.mxu0 0
  %118 = vmatpush1.bf16.msra.mxu0 0
  %119 = vmatprep.subr.bf16.mxu0 0
  %120 = vmatpush1.bf16.msra.mxu0 0
  %121 = vmatprep.subr.bf16.mxu0 0
  %122 = vmatpush1.bf16.msra.mxu0 0
  %123 = vmatprep.subr.bf16.mxu0 0
  %124 = vmatpush1.bf16.msra.mxu0 0
  %125 = vmatprep.subr.bf16.mxu0 0
  %126 = vmatpush1.bf16.msra.mxu0 0
  %127 = vmatprep.subr.bf16.mxu0 0
  %128 = vmatpush1.bf16.msra.mxu0 0
  %129 = vmatprep.subr.bf16.mxu0 0
  %130 = vmatpush1.bf16.msra.mxu0 0
  %131 = vmatprep.mubr.bf16.mxu0 0
  %132 = vmatmul.mubr.bf16.gmra.mrb[0].mxu0 %v47
  %v133 = vpop.f32.mrb[0].mxu0
  %v134 = vadd.f32 %v39, %v133
  %v135 = vpop.f32.mrb[0].mxu0
  %v136 = vpop.f32.mrb[0].mxu0
  %v137 = vadd.f32 %v39, %v136
  %v138 = vpop.f32.mrb[0].mxu0
  %139 = vmatprep.mubr.bf16.mxu0 0
  %140 = vmatmul.mubr.bf16.gmra.mrb[0].mxu0 %v48
  %v141 = vpop.f32.mrb[0].mxu0
  %v142 = vadd.f32 %v39, %v141
  %v143 = vpop.f32.mrb[0].mxu0
  %v144 = vpop.f32.mrb[0].mxu0
  %v145 = vpop.f32.mrb[0].mxu0
  %146 = vdwg.mxu0
  %v147 = vmax.f32 %v134, 0.0
  %v148 = vmax.f32 %v137, 0.0
  %v149 = vmax.f32 %v142, 0.0
  %150 = vst [vmem:[%s3] sm:$0xff] %v147
  %151 = vst [vmem:[%s3 + $0x8] sm:$0xff] %v148
  %152 = vst [vmem:[%s3 + $0x10] sm:$0xff] %v149
  // Predicated region
  $region14: #{sagnn_forward.39} parent=0 // pred_check
    _
  $region15: #{sagnn_forward.39} parent=0 // pred_check_branch
    %154 = sbr.rel (0) target = $region17
  $region16: #{sagnn_forward.39} parent=0 // pred_region
    _
  $region17: #{sagnn_forward.39} parent=0 // pred_fallthru
    _
  // Predicated region
  $region18: #{sagnn_forward.39} parent=0 // pred_check
    _
  $region19: #{sagnn_forward.39} parent=0 // pred_check_branch
    %156 = sbr.rel (0) target = $region21
  $region20: #{sagnn_forward.39} parent=0 // pred_region
    _
  $region21: #{sagnn_forward.39} parent=0 // pred_fallthru
    _

// kernel: sagnn_forward.40
$region0: #{sagnn_forward.40}
  #allocation0 [shape = 'u32[]', space=smem, size = 0x4, offset = 0x4, fixed_abs, tag = 'smem constant byte address 0x4 - core index']
  #allocation1 [shape = 'u32[144,128]{1,0:T(1,128)}', space=vmem, size = 0x12000, scoped, tag = 'internal scratch']
  %s0 = inlined_call_operand.vmem [shape: bf16[24,384], index: 0, kind: input, shape index: {}]
  %s1 = inlined_call_operand.vmem [shape: bf16[384,128], index: 1, kind: input, shape index: {}]
  %s2 = inlined_call_operand.vmem [shape: f32[1,128], index: 2, kind: input, shape index: {}]
  %s3 = inlined_call_operand.vmem [shape: f32[24,128], index: 3, kind: output, shape index: {}]
  %s4 = sld [smem:[#allocation0]]
  $region22: #{sagnn_forward.40} parent=0
    _
  %s6 = ssub.s32 1, %s4
  %s7 = scalar_select 0, %s6, %s4
  // Predicated region
  $region2: #{sagnn_forward.40} parent=0 // pred_check
    _
  $region3: #{sagnn_forward.40} parent=0 // pred_check_branch
    %9 = sbr.rel (0) target = $region5
  $region4: #{sagnn_forward.40} parent=0 // pred_region
    _
  $region5: #{sagnn_forward.40} parent=0 // pred_fallthru
    _
  // Predicated region
  $region6: #{sagnn_forward.40} parent=0 // pred_check
    _
  $region7: #{sagnn_forward.40} parent=0 // pred_check_branch
    %11 = sbr.rel (0) target = $region9
  $region8: #{sagnn_forward.40} parent=0 // pred_region
    _
  $region9: #{sagnn_forward.40} parent=0 // pred_fallthru
    _
  // Predicated region
  $region10: #{sagnn_forward.40} parent=0 // pred_check
    _
  $region11: #{sagnn_forward.40} parent=0 // pred_check_branch
    %13 = sbr.rel (0) target = $region13
  $region12: #{sagnn_forward.40} parent=0 // pred_region
    _
  $region13: #{sagnn_forward.40} parent=0 // pred_fallthru
    _
  %v15 = vld [vmem:[%s0] sm:$0xff]
  %v16 = vld [vmem:[%s0 + $0x8] sm:$0xf]
  %v17 = vld [vmem:[%s0 + $0xc] sm:$0xff]
  %v18 = vld [vmem:[%s0 + $0x14] sm:$0xf]
  %v19 = vld [vmem:[%s0 + $0x18] sm:$0xff]
  %v20 = vld [vmem:[%s0 + $0x20] sm:$0xf]
  %v21 = vld [vmem:[%s1] sm:$0xf]
  %v22 = vld [vmem:[%s1 + $0x4] sm:$0xf]
  %v23 = vld [vmem:[%s1 + $0x8] sm:$0xf]
  %v24 = vld [vmem:[%s1 + $0xc] sm:$0xf]
  %v25 = vld [vmem:[%s1 + $0x10] sm:$0xf]
  %v26 = vld [vmem:[%s1 + $0x14] sm:$0xf]
  %v27 = vld [vmem:[%s1 + $0x18] sm:$0xf]
  %v28 = vld [vmem:[%s1 + $0x1c] sm:$0xf]
  %v29 = vld [vmem:[%s1 + $0x20] sm:$0xf]
  %v30 = vld [vmem:[%s1 + $0x24] sm:$0xf]
  %v31 = vld [vmem:[%s1 + $0x28] sm:$0xf]
  %v32 = vld [vmem:[%s1 + $0x2c] sm:$0xf]
  %v33 = vld [vmem:[%s1 + $0x30] sm:$0xf]
  %v34 = vld [vmem:[%s1 + $0x34] sm:$0xf]
  %v35 = vld [vmem:[%s1 + $0x38] sm:$0xf]
  %v36 = vld [vmem:[%s1 + $0x3c] sm:$0xf]
  %v37 = vld [vmem:[%s1 + $0x40] sm:$0xf]
  %v38 = vld [vmem:[%s1 + $0x44] sm:$0xf]
  %v39 = vld [vmem:[%s1 + $0x48] sm:$0xf]
  %v40 = vld [vmem:[%s1 + $0x4c] sm:$0xf]
  %v41 = vld [vmem:[%s1 + $0x50] sm:$0xf]
  %v42 = vld [vmem:[%s1 + $0x54] sm:$0xf]
  %v43 = vld [vmem:[%s1 + $0x58] sm:$0xf]
  %v44 = vld [vmem:[%s1 + $0x5c] sm:$0xf]
  %v45 = vld [vmem:[%s1 + $0x60] sm:$0xf]
  %v46 = vld [vmem:[%s1 + $0x64] sm:$0xf]
  %v47 = vld [vmem:[%s1 + $0x68] sm:$0xf]
  %v48 = vld [vmem:[%s1 + $0x6c] sm:$0xf]
  %v49 = vld [vmem:[%s1 + $0x70] sm:$0xf]
  %v50 = vld [vmem:[%s1 + $0x74] sm:$0xf]
  %v51 = vld [vmem:[%s1 + $0x78] sm:$0xf]
  %v52 = vld [vmem:[%s1 + $0x7c] sm:$0xf]
  %v53 = vld [vmem:[%s1 + $0x80] sm:$0xf]
  %v54 = vld [vmem:[%s1 + $0x84] sm:$0xf]
  %v55 = vld [vmem:[%s1 + $0x88] sm:$0xf]
  %v56 = vld [vmem:[%s1 + $0x8c] sm:$0xf]
  %v57 = vld [vmem:[%s1 + $0x90] sm:$0xf]
  %v58 = vld [vmem:[%s1 + $0x94] sm:$0xf]
  %v59 = vld [vmem:[%s1 + $0x98] sm:$0xf]
  %v60 = vld [vmem:[%s1 + $0x9c] sm:$0xf]
  %v61 = vld [vmem:[%s1 + $0xa0] sm:$0xf]
  %v62 = vld [vmem:[%s1 + $0xa4] sm:$0xf]
  %v63 = vld [vmem:[%s1 + $0xa8] sm:$0xf]
  %v64 = vld [vmem:[%s1 + $0xac] sm:$0xf]
  %v65 = vld [vmem:[%s1 + $0xb0] sm:$0xf]
  %v66 = vld [vmem:[%s1 + $0xb4] sm:$0xf]
  %v67 = vld [vmem:[%s1 + $0xb8] sm:$0xf]
  %v68 = vld [vmem:[%s1 + $0xbc] sm:$0xf]
  %v69 = vld [vmem:[%s2] sm:$0x1]
  %v71 = vlaneseq
  %v72 = vshrl.u32 %v71, 7
  %v73 = vsub.s32 0, %v72
  %v74 = vrot.slane %v69, %v73
  %v82 = vunpack.c.l.b16 %v15
  %v83 = vunpack.c.h.b16 %v15
  %v84 = vunpack.c.l.b16 %v16
  %v85 = vunpack.c.l.b16 %v17
  %v86 = vunpack.c.h.b16 %v17
  %v87 = vunpack.c.l.b16 %v18
  %v88 = vunpack.c.l.b16 %v19
  %v89 = vunpack.c.h.b16 %v19
  %v90 = vunpack.c.l.b16 %v20
  %v91 = vpack.c.b16 %v85, %v82
  %v92 = vpack.c.b16 %v86, %v83
  %v93 = vpack.c.b16 %v87, %v84
  %v94 = vpack.c.b16 %v88, %v88
  %v95 = vpack.c.b16 %v89, %v89
  %v96 = vpack.c.b16 %v90, %v90
  %v151 = vunpack.c.l.b16 %v21
  %v152 = vunpack.c.l.b16 %v22
  %v153 = vunpack.c.l.b16 %v23
  %v154 = vunpack.c.l.b16 %v24
  %v155 = vunpack.c.l.b16 %v25
  %v156 = vunpack.c.l.b16 %v26
  %v157 = vunpack.c.l.b16 %v27
  %v158 = vunpack.c.l.b16 %v28
  %v159 = vunpack.c.l.b16 %v29
  %v160 = vunpack.c.l.b16 %v30
  %v161 = vunpack.c.l.b16 %v31
  %v162 = vunpack.c.l.b16 %v32
  %v163 = vunpack.c.l.b16 %v33
  %v164 = vunpack.c.l.b16 %v34
  %v165 = vunpack.c.l.b16 %v35
  %v166 = vunpack.c.l.b16 %v36
  %v167 = vunpack.c.l.b16 %v37
  %v168 = vunpack.c.l.b16 %v38
  %v169 = vunpack.c.l.b16 %v39
  %v170 = vunpack.c.l.b16 %v40
  %v171 = vunpack.c.l.b16 %v41
  %v172 = vunpack.c.l.b16 %v42
  %v173 = vunpack.c.l.b16 %v43
  %v174 = vunpack.c.l.b16 %v44
  %v175 = vunpack.c.l.b16 %v45
  %v176 = vunpack.c.l.b16 %v46
  %v177 = vunpack.c.l.b16 %v47
  %v178 = vunpack.c.l.b16 %v48
  %v179 = vunpack.c.l.b16 %v49
  %v180 = vunpack.c.l.b16 %v50
  %v181 = vunpack.c.l.b16 %v51
  %v182 = vunpack.c.l.b16 %v52
  %v183 = vunpack.c.l.b16 %v53
  %v184 = vunpack.c.l.b16 %v54
  %v185 = vunpack.c.l.b16 %v55
  %v186 = vunpack.c.l.b16 %v56
  %v187 = vunpack.c.l.b16 %v57
  %v188 = vunpack.c.l.b16 %v58
  %v189 = vunpack.c.l.b16 %v59
  %v190 = vunpack.c.l.b16 %v60
  %v191 = vunpack.c.l.b16 %v61
  %v192 = vunpack.c.l.b16 %v62
  %v193 = vunpack.c.l.b16 %v63
  %v194 = vunpack.c.l.b16 %v64
  %v195 = vunpack.c.l.b16 %v65
  %v196 = vunpack.c.l.b16 %v66
  %v197 = vunpack.c.l.b16 %v67
  %v198 = vunpack.c.l.b16 %v68
  %v199 = vpack.c.b16 %v152, %v151
  %v200 = vpack.c.b16 %v154, %v153
  %v201 = vpack.c.b16 %v156, %v155
  %v202 = vpack.c.b16 %v158, %v157
  %v203 = vpack.c.b16 %v160, %v159
  %v204 = vpack.c.b16 %v162, %v161
  %v205 = vpack.c.b16 %v164, %v163
  %v206 = vpack.c.b16 %v166, %v165
  %v207 = vpack.c.b16 %v168, %v167
  %v208 = vpack.c.b16 %v170, %v169
  %v209 = vpack.c.b16 %v172, %v171
  %v210 = vpack.c.b16 %v174, %v173
  %v211 = vpack.c.b16 %v176, %v175
  %v212 = vpack.c.b16 %v178, %v177
  %v213 = vpack.c.b16 %v180, %v179
  %v214 = vpack.c.b16 %v182, %v181
  %v215 = vpack.c.b16 %v184, %v183
  %v216 = vpack.c.b16 %v186, %v185
  %v217 = vpack.c.b16 %v188, %v187
  %v218 = vpack.c.b16 %v190, %v189
  %v219 = vpack.c.b16 %v192, %v191
  %v220 = vpack.c.b16 %v194, %v193
  %v221 = vpack.c.b16 %v196, %v195
  %v222 = vpack.c.b16 %v198, %v197
  %247 = vmatprep.subr.bf16.mxu0 0
  %248 = vmatpush1.bf16.msra.mxu0 %v199
  %249 = vmatprep.subr.bf16.mxu0 0
  %250 = vmatpush1.bf16.msra.mxu0 %v200
  %251 = vmatprep.subr.bf16.mxu0 0
  %252 = vmatpush1.bf16.msra.mxu0 %v201
  %253 = vmatprep.subr.bf16.mxu0 0
  %254 = vmatpush1.bf16.msra.mxu0 %v202
  %255 = vmatprep.subr.bf16.mxu0 0
  %256 = vmatpush1.bf16.msra.mxu0 %v203
  %257 = vmatprep.subr.bf16.mxu0 0
  %258 = vmatpush1.bf16.msra.mxu0 %v204
  %259 = vmatprep.subr.bf16.mxu0 0
  %260 = vmatpush1.bf16.msra.mxu0 %v205
  %261 = vmatprep.subr.bf16.mxu0 0
  %262 = vmatpush1.bf16.msra.mxu0 %v206
  %263 = vmatprep.subr.bf16.mxu0 0
  %264 = vmatpush1.bf16.msra.mxu0 %v207
  %265 = vmatprep.subr.bf16.mxu0 0
  %266 = vmatpush1.bf16.msra.mxu0 %v208
  %267 = vmatprep.subr.bf16.mxu0 0
  %268 = vmatpush1.bf16.msra.mxu0 %v209
  %269 = vmatprep.subr.bf16.mxu0 0
  %270 = vmatpush1.bf16.msra.mxu0 %v210
  %271 = vmatprep.subr.bf16.mxu0 0
  %272 = vmatpush1.bf16.msra.mxu0 %v211
  %273 = vmatprep.subr.bf16.mxu0 0
  %274 = vmatpush1.bf16.msra.mxu0 %v212
  %275 = vmatprep.subr.bf16.mxu0 0
  %276 = vmatpush1.bf16.msra.mxu0 %v213
  %277 = vmatprep.subr.bf16.mxu0 0
  %278 = vmatpush1.bf16.msra.mxu0 %v214
  %279 = vmatprep.mubr.bf16.mxu0 %v92
  %280 = vmatmul.mubr.bf16.gmra.mrb[0].mxu0 %v91
  %v281 = vpop.f32.mrb[0].mxu0
  %v282 = vadd.f32 %v74, %v281
  %v283 = vpop.f32.mrb[0].mxu0
  %v284 = vpop.f32.mrb[0].mxu0
  %v285 = vadd.f32 %v74, %v284
  %v286 = vpop.f32.mrb[0].mxu0
  %287 = vmatprep.mubr.bf16.mxu0 %v95
  %288 = vmatmul.mubr.bf16.gmra.mrb[0].mxu0 %v94
  %v289 = vpop.f32.mrb[0].mxu0
  %v290 = vadd.f32 %v74, %v289
  %v291 = vpop.f32.mrb[0].mxu0
  %v292 = vpop.f32.mrb[0].mxu0
  %v293 = vpop.f32.mrb[0].mxu0
  %294 = vdwg.mxu0
  %295 = vmatprep.subr.bf16.mxu0 0
  %296 = vmatpush1.bf16.msra.mxu0 %v215
  %297 = vmatprep.subr.bf16.mxu0 0
  %298 = vmatpush1.bf16.msra.mxu0 %v216
  %299 = vmatprep.subr.bf16.mxu0 0
  %300 = vmatpush1.bf16.msra.mxu0 %v217
  %301 = vmatprep.subr.bf16.mxu0 0
  %302 = vmatpush1.bf16.msra.mxu0 %v218
  %303 = vmatprep.subr.bf16.mxu0 0
  %304 = vmatpush1.bf16.msra.mxu0 %v219
  %305 = vmatprep.subr.bf16.mxu0 0
  %306 = vmatpush1.bf16.msra.mxu0 %v220
  %307 = vmatprep.subr.bf16.mxu0 0
  %308 = vmatpush1.bf16.msra.mxu0 %v221
  %309 = vmatprep.subr.bf16.mxu0 0
  %310 = vmatpush1.bf16.msra.mxu0 %v222
  %311 = vmatprep.subr.bf16.mxu0 0
  %312 = vmatpush1.bf16.msra.mxu0 0
  %313 = vmatprep.subr.bf16.mxu0 0
  %314 = vmatpush1.bf16.msra.mxu0 0
  %315 = vmatprep.subr.bf16.mxu0 0
  %316 = vmatpush1.bf16.msra.mxu0 0
  %317 = vmatprep.subr.bf16.mxu0 0
  %318 = vmatpush1.bf16.msra.mxu0 0
  %319 = vmatprep.subr.bf16.mxu0 0
  %320 = vmatpush1.bf16.msra.mxu0 0
  %321 = vmatprep.subr.bf16.mxu0 0
  %322 = vmatpush1.bf16.msra.mxu0 0
  %323 = vmatprep.subr.bf16.mxu0 0
  %324 = vmatpush1.bf16.msra.mxu0 0
  %325 = vmatprep.subr.bf16.mxu0 0
  %326 = vmatpush1.bf16.msra.mxu0 0
  %327 = vmatprep.mubr.bf16.mxu0 0
  %328 = vmatmul.mubr.bf16.gmra.mrb[0].mxu0 %v93
  %v329 = vpop.f32.mrb[0].mxu0
  %v330 = vadd.f32 %v282, %v329
  %v331 = vpop.f32.mrb[0].mxu0
  %v332 = vpop.f32.mrb[0].mxu0
  %v333 = vadd.f32 %v285, %v332
  %v334 = vpop.f32.mrb[0].mxu0
  %335 = vmatprep.mubr.bf16.mxu0 0
  %336 = vmatmul.mubr.bf16.gmra.mrb[0].mxu0 %v96
  %v337 = vpop.f32.mrb[0].mxu0
  %v338 = vadd.f32 %v290, %v337
  %v339 = vpop.f32.mrb[0].mxu0
  %v340 = vpop.f32.mrb[0].mxu0
  %v341 = vpop.f32.mrb[0].mxu0
  %342 = vdwg.mxu0
  %v343 = vmax.f32 %v330, 0.0
  %v344 = vmax.f32 %v333, 0.0
  %v345 = vmax.f32 %v338, 0.0
  %346 = vst [vmem:[%s3] sm:$0xff] %v343
  %347 = vst [vmem:[%s3 + $0x8] sm:$0xff] %v344
  %348 = vst [vmem:[%s3 + $0x10] sm:$0xff] %v345
  // Predicated region
  $region14: #{sagnn_forward.40} parent=0 // pred_check
    _
  $region15: #{sagnn_forward.40} parent=0 // pred_check_branch
    %350 = sbr.rel (0) target = $region17
  $region16: #{sagnn_forward.40} parent=0 // pred_region
    _
  $region17: #{sagnn_forward.40} parent=0 // pred_fallthru
    _
  // Predicated region
  $region18: #{sagnn_forward.40} parent=0 // pred_check
    _
  $region19: #{sagnn_forward.40} parent=0 // pred_check_branch
    %352 = sbr.rel (0) target = $region21
  $region20: #{sagnn_forward.40} parent=0 // pred_region
    _
  $region21: #{sagnn_forward.40} parent=0 // pred_fallthru
    _

// kernel: sagnn_forward.42
$region0: #{sagnn_forward.42}
  #allocation0 [shape = 'u32[]', space=smem, size = 0x4, offset = 0x4, fixed_abs, tag = 'smem constant byte address 0x4 - core index']
  #allocation1 [shape = 'u32[144,128]{1,0:T(1,128)}', space=vmem, size = 0x12000, scoped, tag = 'internal scratch']
  %s0 = inlined_call_operand.vmem [shape: bf16[8,128], index: 0, kind: input, shape index: {}]
  %s1 = inlined_call_operand.vmem [shape: bf16[128,128], index: 1, kind: input, shape index: {}]
  %s2 = inlined_call_operand.vmem [shape: f32[1,128], index: 2, kind: input, shape index: {}]
  %s3 = inlined_call_operand.vmem [shape: f32[8,128], index: 3, kind: output, shape index: {}]
  %s4 = sld [smem:[#allocation0]]
  $region22: #{sagnn_forward.42} parent=0
    _
  %s6 = ssub.s32 1, %s4
  %s7 = scalar_select 0, %s6, %s4
  // Predicated region
  $region2: #{sagnn_forward.42} parent=0 // pred_check
    _
  $region3: #{sagnn_forward.42} parent=0 // pred_check_branch
    %9 = sbr.rel (0) target = $region5
  $region4: #{sagnn_forward.42} parent=0 // pred_region
    _
  $region5: #{sagnn_forward.42} parent=0 // pred_fallthru
    _
  // Predicated region
  $region6: #{sagnn_forward.42} parent=0 // pred_check
    _
  $region7: #{sagnn_forward.42} parent=0 // pred_check_branch
    %11 = sbr.rel (0) target = $region9
  $region8: #{sagnn_forward.42} parent=0 // pred_region
    _
  $region9: #{sagnn_forward.42} parent=0 // pred_fallthru
    _
  // Predicated region
  $region10: #{sagnn_forward.42} parent=0 // pred_check
    _
  $region11: #{sagnn_forward.42} parent=0 // pred_check_branch
    %13 = sbr.rel (0) target = $region13
  $region12: #{sagnn_forward.42} parent=0 // pred_region
    _
  $region13: #{sagnn_forward.42} parent=0 // pred_fallthru
    _
  %v15 = vld [vmem:[%s0] sm:$0xf]
  %v16 = vld [vmem:[%s1] sm:$0xf]
  %v17 = vld [vmem:[%s1 + $0x4] sm:$0xf]
  %v18 = vld [vmem:[%s1 + $0x8] sm:$0xf]
  %v19 = vld [vmem:[%s1 + $0xc] sm:$0xf]
  %v20 = vld [vmem:[%s1 + $0x10] sm:$0xf]
  %v21 = vld [vmem:[%s1 + $0x14] sm:$0xf]
  %v22 = vld [vmem:[%s1 + $0x18] sm:$0xf]
  %v23 = vld [vmem:[%s1 + $0x1c] sm:$0xf]
  %v24 = vld [vmem:[%s1 + $0x20] sm:$0xf]
  %v25 = vld [vmem:[%s1 + $0x24] sm:$0xf]
  %v26 = vld [vmem:[%s1 + $0x28] sm:$0xf]
  %v27 = vld [vmem:[%s1 + $0x2c] sm:$0xf]
  %v28 = vld [vmem:[%s1 + $0x30] sm:$0xf]
  %v29 = vld [vmem:[%s1 + $0x34] sm:$0xf]
  %v30 = vld [vmem:[%s1 + $0x38] sm:$0xf]
  %v31 = vld [vmem:[%s1 + $0x3c] sm:$0xf]
  %v32 = vld [vmem:[%s2] sm:$0x1]
  %v34 = vlaneseq
  %v35 = vshrl.u32 %v34, 7
  %v36 = vsub.s32 0, %v35
  %v37 = vrot.slane %v32, %v36
  %v55 = vunpack.c.l.b16 %v16
  %v56 = vunpack.c.l.b16 %v17
  %v57 = vunpack.c.l.b16 %v18
  %v58 = vunpack.c.l.b16 %v19
  %v59 = vunpack.c.l.b16 %v20
  %v60 = vunpack.c.l.b16 %v21
  %v61 = vunpack.c.l.b16 %v22
  %v62 = vunpack.c.l.b16 %v23
  %v63 = vunpack.c.l.b16 %v24
  %v64 = vunpack.c.l.b16 %v25
  %v65 = vunpack.c.l.b16 %v26
  %v66 = vunpack.c.l.b16 %v27
  %v67 = vunpack.c.l.b16 %v28
  %v68 = vunpack.c.l.b16 %v29
  %v69 = vunpack.c.l.b16 %v30
  %v70 = vunpack.c.l.b16 %v31
  %v71 = vpack.c.b16 %v56, %v55
  %v72 = vpack.c.b16 %v58, %v57
  %v73 = vpack.c.b16 %v60, %v59
  %v74 = vpack.c.b16 %v62, %v61
  %v75 = vpack.c.b16 %v64, %v63
  %v76 = vpack.c.b16 %v66, %v65
  %v77 = vpack.c.b16 %v68, %v67
  %v78 = vpack.c.b16 %v70, %v69
  %87 = vmatprep.subr.bf16.mxu0 0
  %88 = vmatpush1.bf16.msra.mxu0 %v71
  %89 = vmatprep.subr.bf16.mxu0 0
  %90 = vmatpush1.bf16.msra.mxu0 %v72
  %91 = vmatprep.subr.bf16.mxu0 0
  %92 = vmatpush1.bf16.msra.mxu0 %v73
  %93 = vmatprep.subr.bf16.mxu0 0
  %94 = vmatpush1.bf16.msra.mxu0 %v74
  %95 = vmatprep.subr.bf16.mxu0 0
  %96 = vmatpush1.bf16.msra.mxu0 %v75
  %97 = vmatprep.subr.bf16.mxu0 0
  %98 = vmatpush1.bf16.msra.mxu0 %v76
  %99 = vmatprep.subr.bf16.mxu0 0
  %100 = vmatpush1.bf16.msra.mxu0 %v77
  %101 = vmatprep.subr.bf16.mxu0 0
  %102 = vmatpush1.bf16.msra.mxu0 %v78
  %103 = vmatprep.subr.bf16.mxu0 0
  %104 = vmatpush1.bf16.msra.mxu0 0
  %105 = vmatprep.subr.bf16.mxu0 0
  %106 = vmatpush1.bf16.msra.mxu0 0
  %107 = vmatprep.subr.bf16.mxu0 0
  %108 = vmatpush1.bf16.msra.mxu0 0
  %109 = vmatprep.subr.bf16.mxu0 0
  %110 = vmatpush1.bf16.msra.mxu0 0
  %111 = vmatprep.subr.bf16.mxu0 0
  %112 = vmatpush1.bf16.msra.mxu0 0
  %113 = vmatprep.subr.bf16.mxu0 0
  %114 = vmatpush1.bf16.msra.mxu0 0
  %115 = vmatprep.subr.bf16.mxu0 0
  %116 = vmatpush1.bf16.msra.mxu0 0
  %117 = vmatprep.subr.bf16.mxu0 0
  %118 = vmatpush1.bf16.msra.mxu0 0
  %119 = vmatprep.mubr.bf16.mxu0 0
  %120 = vmatmul.mubr.bf16.gmra.mrb[0].mxu0 %v15
  %v121 = vpop.f32.mrb[0].mxu0
  %v122 = vadd.f32 %v37, %v121
  %v123 = vpop.f32.mrb[0].mxu0
  %v124 = vpop.f32.mrb[0].mxu0
  %v125 = vpop.f32.mrb[0].mxu0
  %126 = vdwg.mxu0
  %v127 = vmax.f32 %v122, 0.0
  %128 = vst [vmem:[%s3] sm:$0xff] %v127
  // Predicated region
  $region14: #{sagnn_forward.42} parent=0 // pred_check
    _
  $region15: #{sagnn_forward.42} parent=0 // pred_check_branch
    %130 = sbr.rel (0) target = $region17
  $region16: #{sagnn_forward.42} parent=0 // pred_region
    _
  $region17: #{sagnn_forward.42} parent=0 // pred_fallthru
    _
  // Predicated region
  $region18: #{sagnn_forward.42} parent=0 // pred_check
    _
  $region19: #{sagnn_forward.42} parent=0 // pred_check_branch
    %132 = sbr.rel (0) target = $region21
  $region20: #{sagnn_forward.42} parent=0 // pred_region
    _
  $region21: #{sagnn_forward.42} parent=0 // pred_fallthru
    _

// kernel: sagnn_forward.43
$region0: #{sagnn_forward.43}
  #allocation0 [shape = 'u32[]', space=smem, size = 0x4, offset = 0x4, fixed_abs, tag = 'smem constant byte address 0x4 - core index']
  #allocation1 [shape = 'u32[144,128]{1,0:T(1,128)}', space=vmem, size = 0x12000, scoped, tag = 'internal scratch']
  %s0 = inlined_call_operand.vmem [shape: bf16[8,384], index: 0, kind: input, shape index: {}]
  %s1 = inlined_call_operand.vmem [shape: bf16[384,128], index: 1, kind: input, shape index: {}]
  %s2 = inlined_call_operand.vmem [shape: f32[1,128], index: 2, kind: input, shape index: {}]
  %s3 = inlined_call_operand.vmem [shape: f32[8,128], index: 3, kind: output, shape index: {}]
  %s4 = sld [smem:[#allocation0]]
  $region22: #{sagnn_forward.43} parent=0
    _
  %s6 = ssub.s32 1, %s4
  %s7 = scalar_select 0, %s6, %s4
  // Predicated region
  $region2: #{sagnn_forward.43} parent=0 // pred_check
    _
  $region3: #{sagnn_forward.43} parent=0 // pred_check_branch
    %9 = sbr.rel (0) target = $region5
  $region4: #{sagnn_forward.43} parent=0 // pred_region
    _
  $region5: #{sagnn_forward.43} parent=0 // pred_fallthru
    _
  // Predicated region
  $region6: #{sagnn_forward.43} parent=0 // pred_check
    _
  $region7: #{sagnn_forward.43} parent=0 // pred_check_branch
    %11 = sbr.rel (0) target = $region9
  $region8: #{sagnn_forward.43} parent=0 // pred_region
    _
  $region9: #{sagnn_forward.43} parent=0 // pred_fallthru
    _
  // Predicated region
  $region10: #{sagnn_forward.43} parent=0 // pred_check
    _
  $region11: #{sagnn_forward.43} parent=0 // pred_check_branch
    %13 = sbr.rel (0) target = $region13
  $region12: #{sagnn_forward.43} parent=0 // pred_region
    _
  $region13: #{sagnn_forward.43} parent=0 // pred_fallthru
    _
  %v15 = vld [vmem:[%s0] sm:$0xff]
  %v16 = vld [vmem:[%s0 + $0x8] sm:$0xf]
  %v17 = vld [vmem:[%s1] sm:$0xf]
  %v18 = vld [vmem:[%s1 + $0x4] sm:$0xf]
  %v19 = vld [vmem:[%s1 + $0x8] sm:$0xf]
  %v20 = vld [vmem:[%s1 + $0xc] sm:$0xf]
  %v21 = vld [vmem:[%s1 + $0x10] sm:$0xf]
  %v22 = vld [vmem:[%s1 + $0x14] sm:$0xf]
  %v23 = vld [vmem:[%s1 + $0x18] sm:$0xf]
  %v24 = vld [vmem:[%s1 + $0x1c] sm:$0xf]
  %v25 = vld [vmem:[%s1 + $0x20] sm:$0xf]
  %v26 = vld [vmem:[%s1 + $0x24] sm:$0xf]
  %v27 = vld [vmem:[%s1 + $0x28] sm:$0xf]
  %v28 = vld [vmem:[%s1 + $0x2c] sm:$0xf]
  %v29 = vld [vmem:[%s1 + $0x30] sm:$0xf]
  %v30 = vld [vmem:[%s1 + $0x34] sm:$0xf]
  %v31 = vld [vmem:[%s1 + $0x38] sm:$0xf]
  %v32 = vld [vmem:[%s1 + $0x3c] sm:$0xf]
  %v33 = vld [vmem:[%s1 + $0x40] sm:$0xf]
  %v34 = vld [vmem:[%s1 + $0x44] sm:$0xf]
  %v35 = vld [vmem:[%s1 + $0x48] sm:$0xf]
  %v36 = vld [vmem:[%s1 + $0x4c] sm:$0xf]
  %v37 = vld [vmem:[%s1 + $0x50] sm:$0xf]
  %v38 = vld [vmem:[%s1 + $0x54] sm:$0xf]
  %v39 = vld [vmem:[%s1 + $0x58] sm:$0xf]
  %v40 = vld [vmem:[%s1 + $0x5c] sm:$0xf]
  %v41 = vld [vmem:[%s1 + $0x60] sm:$0xf]
  %v42 = vld [vmem:[%s1 + $0x64] sm:$0xf]
  %v43 = vld [vmem:[%s1 + $0x68] sm:$0xf]
  %v44 = vld [vmem:[%s1 + $0x6c] sm:$0xf]
  %v45 = vld [vmem:[%s1 + $0x70] sm:$0xf]
  %v46 = vld [vmem:[%s1 + $0x74] sm:$0xf]
  %v47 = vld [vmem:[%s1 + $0x78] sm:$0xf]
  %v48 = vld [vmem:[%s1 + $0x7c] sm:$0xf]
  %v49 = vld [vmem:[%s1 + $0x80] sm:$0xf]
  %v50 = vld [vmem:[%s1 + $0x84] sm:$0xf]
  %v51 = vld [vmem:[%s1 + $0x88] sm:$0xf]
  %v52 = vld [vmem:[%s1 + $0x8c] sm:$0xf]
  %v53 = vld [vmem:[%s1 + $0x90] sm:$0xf]
  %v54 = vld [vmem:[%s1 + $0x94] sm:$0xf]
  %v55 = vld [vmem:[%s1 + $0x98] sm:$0xf]
  %v56 = vld [vmem:[%s1 + $0x9c] sm:$0xf]
  %v57 = vld [vmem:[%s1 + $0xa0] sm:$0xf]
  %v58 = vld [vmem:[%s1 + $0xa4] sm:$0xf]
  %v59 = vld [vmem:[%s1 + $0xa8] sm:$0xf]
  %v60 = vld [vmem:[%s1 + $0xac] sm:$0xf]
  %v61 = vld [vmem:[%s1 + $0xb0] sm:$0xf]
  %v62 = vld [vmem:[%s1 + $0xb4] sm:$0xf]
  %v63 = vld [vmem:[%s1 + $0xb8] sm:$0xf]
  %v64 = vld [vmem:[%s1 + $0xbc] sm:$0xf]
  %v65 = vld [vmem:[%s2] sm:$0x1]
  %v67 = vlaneseq
  %v68 = vshrl.u32 %v67, 7
  %v69 = vsub.s32 0, %v68
  %v70 = vrot.slane %v65, %v69
  %v74 = vunpack.c.l.b16 %v15
  %v75 = vunpack.c.h.b16 %v15
  %v76 = vunpack.c.l.b16 %v16
  %v77 = vpack.c.b16 %v74, %v74
  %v78 = vpack.c.b16 %v75, %v75
  %v79 = vpack.c.b16 %v76, %v76
  %v131 = vunpack.c.l.b16 %v17
  %v132 = vunpack.c.l.b16 %v18
  %v133 = vunpack.c.l.b16 %v19
  %v134 = vunpack.c.l.b16 %v20
  %v135 = vunpack.c.l.b16 %v21
  %v136 = vunpack.c.l.b16 %v22
  %v137 = vunpack.c.l.b16 %v23
  %v138 = vunpack.c.l.b16 %v24
  %v139 = vunpack.c.l.b16 %v25
  %v140 = vunpack.c.l.b16 %v26
  %v141 = vunpack.c.l.b16 %v27
  %v142 = vunpack.c.l.b16 %v28
  %v143 = vunpack.c.l.b16 %v29
  %v144 = vunpack.c.l.b16 %v30
  %v145 = vunpack.c.l.b16 %v31
  %v146 = vunpack.c.l.b16 %v32
  %v147 = vunpack.c.l.b16 %v33
  %v148 = vunpack.c.l.b16 %v34
  %v149 = vunpack.c.l.b16 %v35
  %v150 = vunpack.c.l.b16 %v36
  %v151 = vunpack.c.l.b16 %v37
  %v152 = vunpack.c.l.b16 %v38
  %v153 = vunpack.c.l.b16 %v39
  %v154 = vunpack.c.l.b16 %v40
  %v155 = vunpack.c.l.b16 %v41
  %v156 = vunpack.c.l.b16 %v42
  %v157 = vunpack.c.l.b16 %v43
  %v158 = vunpack.c.l.b16 %v44
  %v159 = vunpack.c.l.b16 %v45
  %v160 = vunpack.c.l.b16 %v46
  %v161 = vunpack.c.l.b16 %v47
  %v162 = vunpack.c.l.b16 %v48
  %v163 = vunpack.c.l.b16 %v49
  %v164 = vunpack.c.l.b16 %v50
  %v165 = vunpack.c.l.b16 %v51
  %v166 = vunpack.c.l.b16 %v52
  %v167 = vunpack.c.l.b16 %v53
  %v168 = vunpack.c.l.b16 %v54
  %v169 = vunpack.c.l.b16 %v55
  %v170 = vunpack.c.l.b16 %v56
  %v171 = vunpack.c.l.b16 %v57
  %v172 = vunpack.c.l.b16 %v58
  %v173 = vunpack.c.l.b16 %v59
  %v174 = vunpack.c.l.b16 %v60
  %v175 = vunpack.c.l.b16 %v61
  %v176 = vunpack.c.l.b16 %v62
  %v177 = vunpack.c.l.b16 %v63
  %v178 = vunpack.c.l.b16 %v64
  %v179 = vpack.c.b16 %v132, %v131
  %v180 = vpack.c.b16 %v134, %v133
  %v181 = vpack.c.b16 %v136, %v135
  %v182 = vpack.c.b16 %v138, %v137
  %v183 = vpack.c.b16 %v140, %v139
  %v184 = vpack.c.b16 %v142, %v141
  %v185 = vpack.c.b16 %v144, %v143
  %v186 = vpack.c.b16 %v146, %v145
  %v187 = vpack.c.b16 %v148, %v147
  %v188 = vpack.c.b16 %v150, %v149
  %v189 = vpack.c.b16 %v152, %v151
  %v190 = vpack.c.b16 %v154, %v153
  %v191 = vpack.c.b16 %v156, %v155
  %v192 = vpack.c.b16 %v158, %v157
  %v193 = vpack.c.b16 %v160, %v159
  %v194 = vpack.c.b16 %v162, %v161
  %v195 = vpack.c.b16 %v164, %v163
  %v196 = vpack.c.b16 %v166, %v165
  %v197 = vpack.c.b16 %v168, %v167
  %v198 = vpack.c.b16 %v170, %v169
  %v199 = vpack.c.b16 %v172, %v171
  %v200 = vpack.c.b16 %v174, %v173
  %v201 = vpack.c.b16 %v176, %v175
  %v202 = vpack.c.b16 %v178, %v177
  %227 = vmatprep.subr.bf16.mxu0 0
  %228 = vmatpush1.bf16.msra.mxu0 %v179
  %229 = vmatprep.subr.bf16.mxu0 0
  %230 = vmatpush1.bf16.msra.mxu0 %v180
  %231 = vmatprep.subr.bf16.mxu0 0
  %232 = vmatpush1.bf16.msra.mxu0 %v181
  %233 = vmatprep.subr.bf16.mxu0 0
  %234 = vmatpush1.bf16.msra.mxu0 %v182
  %235 = vmatprep.subr.bf16.mxu0 0
  %236 = vmatpush1.bf16.msra.mxu0 %v183
  %237 = vmatprep.subr.bf16.mxu0 0
  %238 = vmatpush1.bf16.msra.mxu0 %v184
  %239 = vmatprep.subr.bf16.mxu0 0
  %240 = vmatpush1.bf16.msra.mxu0 %v185
  %241 = vmatprep.subr.bf16.mxu0 0
  %242 = vmatpush1.bf16.msra.mxu0 %v186
  %243 = vmatprep.subr.bf16.mxu0 0
  %244 = vmatpush1.bf16.msra.mxu0 %v187
  %245 = vmatprep.subr.bf16.mxu0 0
  %246 = vmatpush1.bf16.msra.mxu0 %v188
  %247 = vmatprep.subr.bf16.mxu0 0
  %248 = vmatpush1.bf16.msra.mxu0 %v189
  %249 = vmatprep.subr.bf16.mxu0 0
  %250 = vmatpush1.bf16.msra.mxu0 %v190
  %251 = vmatprep.subr.bf16.mxu0 0
  %252 = vmatpush1.bf16.msra.mxu0 %v191
  %253 = vmatprep.subr.bf16.mxu0 0
  %254 = vmatpush1.bf16.msra.mxu0 %v192
  %255 = vmatprep.subr.bf16.mxu0 0
  %256 = vmatpush1.bf16.msra.mxu0 %v193
  %257 = vmatprep.subr.bf16.mxu0 0
  %258 = vmatpush1.bf16.msra.mxu0 %v194
  %259 = vmatprep.mubr.bf16.mxu0 %v78
  %260 = vmatmul.mubr.bf16.gmra.mrb[0].mxu0 %v77
  %v261 = vpop.f32.mrb[0].mxu0
  %v262 = vadd.f32 %v70, %v261
  %v263 = vpop.f32.mrb[0].mxu0
  %v264 = vpop.f32.mrb[0].mxu0
  %v265 = vpop.f32.mrb[0].mxu0
  %266 = vdwg.mxu0
  %267 = vmatprep.subr.bf16.mxu0 0
  %268 = vmatpush1.bf16.msra.mxu0 %v195
  %269 = vmatprep.subr.bf16.mxu0 0
  %270 = vmatpush1.bf16.msra.mxu0 %v196
  %271 = vmatprep.subr.bf16.mxu0 0
  %272 = vmatpush1.bf16.msra.mxu0 %v197
  %273 = vmatprep.subr.bf16.mxu0 0
  %274 = vmatpush1.bf16.msra.mxu0 %v198
  %275 = vmatprep.subr.bf16.mxu0 0
  %276 = vmatpush1.bf16.msra.mxu0 %v199
  %277 = vmatprep.subr.bf16.mxu0 0
  %278 = vmatpush1.bf16.msra.mxu0 %v200
  %279 = vmatprep.subr.bf16.mxu0 0
  %280 = vmatpush1.bf16.msra.mxu0 %v201
  %281 = vmatprep.subr.bf16.mxu0 0
  %282 = vmatpush1.bf16.msra.mxu0 %v202
  %283 = vmatprep.subr.bf16.mxu0 0
  %284 = vmatpush1.bf16.msra.mxu0 0
  %285 = vmatprep.subr.bf16.mxu0 0
  %286 = vmatpush1.bf16.msra.mxu0 0
  %287 = vmatprep.subr.bf16.mxu0 0
  %288 = vmatpush1.bf16.msra.mxu0 0
  %289 = vmatprep.subr.bf16.mxu0 0
  %290 = vmatpush1.bf16.msra.mxu0 0
  %291 = vmatprep.subr.bf16.mxu0 0
  %292 = vmatpush1.bf16.msra.mxu0 0
  %293 = vmatprep.subr.bf16.mxu0 0
  %294 = vmatpush1.bf16.msra.mxu0 0
  %295 = vmatprep.subr.bf16.mxu0 0
  %296 = vmatpush1.bf16.msra.mxu0 0
  %297 = vmatprep.subr.bf16.mxu0 0
  %298 = vmatpush1.bf16.msra.mxu0 0
  %299 = vmatprep.mubr.bf16.mxu0 0
  %300 = vmatmul.mubr.bf16.gmra.mrb[0].mxu0 %v79
  %v301 = vpop.f32.mrb[0].mxu0
  %v302 = vadd.f32 %v262, %v301
  %v303 = vpop.f32.mrb[0].mxu0
  %v304 = vpop.f32.mrb[0].mxu0
  %v305 = vpop.f32.mrb[0].mxu0
  %306 = vdwg.mxu0
  %v307 = vmax.f32 %v302, 0.0
  %308 = vst [vmem:[%s3] sm:$0xff] %v307
  // Predicated region
  $region14: #{sagnn_forward.43} parent=0 // pred_check
    _
  $region15: #{sagnn_forward.43} parent=0 // pred_check_branch
    %310 = sbr.rel (0) target = $region17
  $region16: #{sagnn_forward.43} parent=0 // pred_region
    _
  $region17: #{sagnn_forward.43} parent=0 // pred_fallthru
    _
  // Predicated region
  $region18: #{sagnn_forward.43} parent=0 // pred_check
    _
  $region19: #{sagnn_forward.43} parent=0 // pred_check_branch
    %312 = sbr.rel (0) target = $region21
  $region20: #{sagnn_forward.43} parent=0 // pred_region
    _
  $region21: #{sagnn_forward.43} parent=0 // pred_fallthru
    _

// kernel: squeeze.5
$region0: #{squeeze.5}
  %s0 = inlined_call_operand.vmem [shape: bf16[1,50,32], index: 0, kind: input, shape index: {}]
  %s1 = inlined_call_operand.vmem [shape: bf16[2,5,5,32], index: 1, kind: output, shape index: {}]
  $region1: #{squeeze.5} parent=0
    #allocation0 [shape = 'u8[40960]{0}', space=vmem, size = 0xa000, scoped, tag = 'scoped mem for output reshape']
    #allocation1 [shape = 'u8[28672]{0}', space=vmem, size = 0x7000, scoped, tag = 'scoped mem for input reshape']
    %s3 = smul.u32 4, 2
    %s4 = sshllo.u32 0, %s3
    %s5 = smul.addr 4, 6
    %s6 = scalar_lea.vmem %s0, %s5
    %s7 = sshrl.u32 %s4, 1
    %s8 = sor.u32 %s4, %s7
    %s9 = sand.u32 %s8, 85
    %s10 = sshrl.u32 %s9, 1
    %s11 = sor.u32 %s9, %s10
    %s12 = sand.u32 51, %s11
    %s13 = sshrl.u32 %s12, 2
    %s14 = sor.u32 %s12, %s13
    %s15 = sand.u32 15, %s14
    %v16 = vld [vmem:[%s6] sm:%s15]
    %v17 = vunpack.c.l.bf16 %v16
    %v18 = vunpack.c.h.bf16 %v16
    %s19 = scalar_lea.vmem [#allocation1], 48
    %20 = vst [vmem:[%s19] sm:%s4] %v17
    %s21 = smul.addr 4, 5
    %s22 = scalar_lea.vmem %s0, %s21
    %s23 = sshrl.u32 %s4, 1
    %s24 = sor.u32 %s4, %s23
    %s25 = sand.u32 %s24, 85
    %s26 = sshrl.u32 %s25, 1
    %s27 = sor.u32 %s25, %s26
    %s28 = sand.u32 51, %s27
    %s29 = sshrl.u32 %s28, 2
    %s30 = sor.u32 %s28, %s29
    %s31 = sand.u32 15, %s30
    %v32 = vld [vmem:[%s22] sm:%s31]
    %v33 = vunpack.c.l.bf16 %v32
    %v34 = vunpack.c.h.bf16 %v32
    %s35 = scalar_lea.vmem [#allocation1], 40
    %36 = vst [vmem:[%s35] sm:%s4] %v33
    %s37 = smul.addr 4, 4
    %s38 = scalar_lea.vmem %s0, %s37
    %s39 = sshrl.u32 %s4, 1
    %s40 = sor.u32 %s4, %s39
    %s41 = sand.u32 %s40, 85
    %s42 = sshrl.u32 %s41, 1
    %s43 = sor.u32 %s41, %s42
    %s44 = sand.u32 51, %s43
    %s45 = sshrl.u32 %s44, 2
    %s46 = sor.u32 %s44, %s45
    %s47 = sand.u32 15, %s46
    %v48 = vld [vmem:[%s38] sm:%s47]
    %v49 = vunpack.c.l.bf16 %v48
    %v50 = vunpack.c.h.bf16 %v48
    %s51 = scalar_lea.vmem [#allocation1], 32
    %52 = vst [vmem:[%s51] sm:%s4] %v49
    %s53 = smul.addr 4, 3
    %s54 = scalar_lea.vmem %s0, %s53
    %s55 = sshrl.u32 %s4, 1
    %s56 = sor.u32 %s4, %s55
    %s57 = sand.u32 %s56, 85
    %s58 = sshrl.u32 %s57, 1
    %s59 = sor.u32 %s57, %s58
    %s60 = sand.u32 51, %s59
    %s61 = sshrl.u32 %s60, 2
    %s62 = sor.u32 %s60, %s61
    %s63 = sand.u32 15, %s62
    %v64 = vld [vmem:[%s54] sm:%s63]
    %v65 = vunpack.c.l.bf16 %v64
    %v66 = vunpack.c.h.bf16 %v64
    %s67 = scalar_lea.vmem [#allocation1], 24
    %68 = vst [vmem:[%s67] sm:%s4] %v65
    %s69 = smul.addr 4, 2
    %s70 = scalar_lea.vmem %s0, %s69
    %s71 = sshrl.u32 %s4, 1
    %s72 = sor.u32 %s4, %s71
    %s73 = sand.u32 %s72, 85
    %s74 = sshrl.u32 %s73, 1
    %s75 = sor.u32 %s73, %s74
    %s76 = sand.u32 51, %s75
    %s77 = sshrl.u32 %s76, 2
    %s78 = sor.u32 %s76, %s77
    %s79 = sand.u32 15, %s78
    %v80 = vld [vmem:[%s70] sm:%s79]
    %v81 = vunpack.c.l.bf16 %v80
    %v82 = vunpack.c.h.bf16 %v80
    %s83 = scalar_lea.vmem [#allocation1], 16
    %84 = vst [vmem:[%s83] sm:%s4] %v81
    %s85 = scalar_lea.vmem %s0, 4
    %s86 = sshrl.u32 %s4, 1
    %s87 = sor.u32 %s4, %s86
    %s88 = sand.u32 %s87, 85
    %s89 = sshrl.u32 %s88, 1
    %s90 = sor.u32 %s88, %s89
    %s91 = sand.u32 51, %s90
    %s92 = sshrl.u32 %s91, 2
    %s93 = sor.u32 %s91, %s92
    %s94 = sand.u32 15, %s93
    %v95 = vld [vmem:[%s85] sm:%s94]
    %v96 = vunpack.c.l.bf16 %v95
    %v97 = vunpack.c.h.bf16 %v95
    %s98 = scalar_lea.vmem [#allocation1], 8
    %99 = vst [vmem:[%s98] sm:%s4] %v96
    %s100 = sshrl.u32 %s4, 1
    %s101 = sor.u32 %s4, %s100
    %s102 = sand.u32 %s101, 85
    %s103 = sshrl.u32 %s102, 1
    %s104 = sor.u32 %s102, %s103
    %s105 = sand.u32 51, %s104
    %s106 = sshrl.u32 %s105, 2
    %s107 = sor.u32 %s105, %s106
    %s108 = sand.u32 15, %s107
    %v109 = vld [vmem:[%s0] sm:%s108]
    %v110 = vunpack.c.l.bf16 %v109
    %v111 = vunpack.c.h.bf16 %v109
    %112 = vst [vmem:[#allocation1] sm:%s4] %v110
    %v113 = vld [vmem:[#allocation1] sm:$0xff]
    %vm114 = vcmask 261120
    %115 = vst.msk [vmem:[#allocation0] sm:$0x1f] %vm114, %v113
    %s116 = scalar_lea.vmem [#allocation0], 3
    %117 = vst.msk [vmem:[%s116] sm:$0xe0] %vm114, %v113
    %s118 = scalar_lea.vmem [#allocation1], 8
    %v119 = vld [vmem:[%s118] sm:$0xff]
    %vm120 = vcmask 261120
    %s121 = scalar_lea.vmem [#allocation0], 11
    %122 = vst.msk [vmem:[%s121] sm:$0x3] %vm120, %v119
    %s123 = scalar_lea.vmem [#allocation0], 14
    %124 = vst.msk [vmem:[%s123] sm:$0x7c] %vm120, %v119
    %s125 = scalar_lea.vmem [#allocation0], 17
    %126 = vst.msk [vmem:[%s125] sm:$0x80] %vm120, %v119
    %s127 = scalar_lea.vmem [#allocation1], 16
    %v128 = vld [vmem:[%s127] sm:$0xff]
    %vm129 = vcmask 261120
    %s130 = scalar_lea.vmem [#allocation0], 25
    %131 = vst.msk [vmem:[%s130] sm:$0xf] %vm129, %v128
    %s132 = scalar_lea.vmem [#allocation0], 28
    %133 = vst.msk [vmem:[%s132] sm:$0xf0] %vm129, %v128
    %s134 = scalar_lea.vmem [#allocation1], 24
    %v135 = vld [vmem:[%s134] sm:$0xff]
    %vm136 = vcmask 261120
    %s137 = scalar_lea.vmem [#allocation0], 36
    %138 = vst.msk [vmem:[%s137] ss:$4 sm:$0x3] %vm136, %v135
    %s139 = scalar_lea.vmem [#allocation0], 39
    %140 = vst.msk [vmem:[%s139] sm:$0x3c] %vm136, %v135
    %s141 = scalar_lea.vmem [#allocation0], 42
    %142 = vst.msk [vmem:[%s141] sm:$0xc0] %vm136, %v135
    %s143 = scalar_lea.vmem [#allocation1], 32
    %v144 = vld [vmem:[%s143] sm:$0xff]
    %vm145 = vcmask 261120
    %s146 = scalar_lea.vmem [#allocation0], 50
    %147 = vst.msk [vmem:[%s146] sm:$0x7] %vm145, %v144
    %s148 = scalar_lea.vmem [#allocation0], 53
    %149 = vst.msk [vmem:[%s148] sm:$0xf8] %vm145, %v144
    %s150 = scalar_lea.vmem [#allocation1], 40
    %v151 = vld [vmem:[%s150] sm:$0xff]
    %vm152 = vcmask 261120
    %s153 = scalar_lea.vmem [#allocation0], 64
    %154 = vst.msk [vmem:[%s153] sm:$0x1f] %vm152, %v151
    %s155 = scalar_lea.vmem [#allocation0], 67
    %156 = vst.msk [vmem:[%s155] sm:$0xe0] %vm152, %v151
    %s157 = scalar_lea.vmem [#allocation1], 48
    %v158 = vld [vmem:[%s157] sm:$0x3]
    %vm159 = vcmask 261120
    %s160 = scalar_lea.vmem [#allocation0], 75
    %161 = vst.msk [vmem:[%s160] sm:$0x3] %vm159, %v158
    %s163 = smul.u32 4, 2
    %s164 = sshllo.u32 0, %s163
    %s165 = sshrl.u32 %s163, 1
    %v166 = vld [vmem:[#allocation0] sm:%s164]
    %v167 = vpack.c.bf16 0.0, %v166
    %s168 = sshllo.u32 0, %s165
    %169 = vst [vmem:[%s1] sm:%s168] %v167
    %s170 = scalar_lea.vmem [#allocation0], 8
    %v171 = vld [vmem:[%s170] sm:%s164]
    %v172 = vpack.c.bf16 0.0, %v171
    %s173 = sshllo.u32 0, %s165
    %s174 = scalar_lea.vmem %s1, 4
    %175 = vst [vmem:[%s174] sm:%s173] %v172
    %s176 = scalar_lea.vmem [#allocation0], 16
    %v177 = vld [vmem:[%s176] sm:%s164]
    %v178 = vpack.c.bf16 0.0, %v177
    %s179 = sshllo.u32 0, %s165
    %s180 = smul.addr 4, 2
    %s181 = scalar_lea.vmem %s1, %s180
    %182 = vst [vmem:[%s181] sm:%s179] %v178
    %s183 = scalar_lea.vmem [#allocation0], 24
    %v184 = vld [vmem:[%s183] sm:%s164]
    %v185 = vpack.c.bf16 0.0, %v184
    %s186 = sshllo.u32 0, %s165
    %s187 = smul.addr 4, 3
    %s188 = scalar_lea.vmem %s1, %s187
    %189 = vst [vmem:[%s188] sm:%s186] %v185
    %s190 = scalar_lea.vmem [#allocation0], 32
    %v191 = vld [vmem:[%s190] sm:%s164]
    %v192 = vpack.c.bf16 0.0, %v191
    %s193 = sshllo.u32 0, %s165
    %s194 = smul.addr 4, 4
    %s195 = scalar_lea.vmem %s1, %s194
    %196 = vst [vmem:[%s195] sm:%s193] %v192
    %s197 = scalar_lea.vmem [#allocation0], 40
    %v198 = vld [vmem:[%s197] sm:%s164]
    %v199 = vpack.c.bf16 0.0, %v198
    %s200 = sshllo.u32 0, %s165
    %s201 = smul.addr 4, 5
    %s202 = scalar_lea.vmem %s1, %s201
    %203 = vst [vmem:[%s202] sm:%s200] %v199
    %s204 = scalar_lea.vmem [#allocation0], 48
    %v205 = vld [vmem:[%s204] sm:%s164]
    %v206 = vpack.c.bf16 0.0, %v205
    %s207 = sshllo.u32 0, %s165
    %s208 = smul.addr 4, 6
    %s209 = scalar_lea.vmem %s1, %s208
    %210 = vst [vmem:[%s209] sm:%s207] %v206
    %s211 = scalar_lea.vmem [#allocation0], 56
    %v212 = vld [vmem:[%s211] sm:%s164]
    %v213 = vpack.c.bf16 0.0, %v212
    %s214 = sshllo.u32 0, %s165
    %s215 = smul.addr 4, 7
    %s216 = scalar_lea.vmem %s1, %s215
    %217 = vst [vmem:[%s216] sm:%s214] %v213
    %s218 = scalar_lea.vmem [#allocation0], 64
    %v219 = vld [vmem:[%s218] sm:%s164]
    %v220 = vpack.c.bf16 0.0, %v219
    %s221 = sshllo.u32 0, %s165
    %s222 = smul.addr 4, 8
    %s223 = scalar_lea.vmem %s1, %s222
    %224 = vst [vmem:[%s223] sm:%s221] %v220
    %s225 = scalar_lea.vmem [#allocation0], 72
    %v226 = vld [vmem:[%s225] sm:%s164]
    %v227 = vpack.c.bf16 0.0, %v226
    %s228 = sshllo.u32 0, %s165
    %s229 = smul.addr 4, 9
    %s230 = scalar_lea.vmem %s1, %s229
    %231 = vst [vmem:[%s230] sm:%s228] %v227

// kernel: sagnn_forward.52
$region0: #{sagnn_forward.52}
  #allocation0 [shape = 'u32[]', space=smem, size = 0x4, offset = 0x4, fixed_abs, tag = 'smem constant byte address 0x4 - core index']
  #allocation1 [shape = 'u32[144,128]{1,0:T(1,128)}', space=vmem, size = 0x12000, scoped, tag = 'internal scratch']
  %s0 = inlined_call_operand.vmem [shape: bf16[3,56,384], index: 0, kind: input, shape index: {}]
  %s1 = inlined_call_operand.vmem [shape: bf16[3,384,128], index: 1, kind: input, shape index: {}]
  %s2 = inlined_call_operand.vmem [shape: f32[3,1,128], index: 2, kind: input, shape index: {}]
  %s3 = inlined_call_operand.vmem [shape: f32[3,56,128], index: 3, kind: output, shape index: {}]
  %s4 = sld [smem:[#allocation0]]
  $region45: #{sagnn_forward.52} parent=0
    _
  %s6 = ssub.s32 1, %s4
  %s7 = scalar_select 0, %s6, %s4
  loop: start=0, step=1, limit=5
  $region2: #{sagnn_forward.52} parent=0 // loop_pre_header
    _
  $region3: #{sagnn_forward.52} parent=0 // loop_header
    %s9 = sphi 0, %s13
    %p10 = scmp.ge.s32.totalorder %s9, 5
    %s16 = sphi 0, %s35
    %s17 = sphi 0, %s31
    %s18 = sphi 0, %s27
    %s19 = sphi 0, %s16
    %s20 = sphi 0, %s17
    %s21 = sphi 0, %s18
    %s22 = sphi 0, %s19
    %s23 = sphi 0, %s20
    %s24 = sphi 0, %s21
    %s40 = sphi 0, %s42
    %s43 = sphi 0, %s40
    %s44 = sphi 0, %s43
    %s60 = sphi 0, %s44
    %s68 = sphi 0, %s70
    %s71 = sphi 0, %s68
    %s72 = sphi 0, %s71
    %s88 = sphi 0, %s72
    %s96 = sphi 0, %s98
    %s99 = sphi 0, %s96
    %s100 = sphi 0, %s99
    %s116 = sphi 0, %s100
    %s126 = sphi 0, %s128
    %s129 = sphi 0, %s126
    %s130 = sphi 0, %s129
    %s146 = sphi 0, %s130
  $region4: #{sagnn_forward.52} parent=0 // loop_header_branch
    %12 = sbr.rel (%p10) target = $region8
  $region5: #{sagnn_forward.52} parent=0 // loop_body
    %s14 = ssub.s32 %s9, 1
    %s15 = ssub.s32 %s9, 2
    %s25 = sadd.s32 1, %s18
    %p26 = scmp.ge.s32.totalorder %s25, 1
    %s27 = scalar_select %p26, 0, %s25
    %s28 = sadd.s32 1, %s17
    %s29 = scalar_select %p26, %s28, %s17
    %p30 = scmp.ge.s32.totalorder %s29, 1
    %s31 = scalar_select %p30, 0, %s29
    %s32 = sadd.s32 1, %s16
    %s33 = scalar_select %p30, %s32, %s16
    %p34 = scmp.ge.s32.totalorder %s33, 3
    %s35 = scalar_select %p34, 0, %s33
    %s36 = ssub.s32 %s16, %s35
    %s37 = ssub.s32 %s17, %s31
    %s38 = sor.u32 %s36, %s37
    %p39 = scmp.eq.s32.totalorder %s38, 0
    %s41 = sadd.s32 %s40, 1
    %s42 = scalar_select %p39, %s40, %s41
    %p45 = pneg %p39
    %p46 = scmp.eq.s32.totalorder %s9, 2
    %p47 = por %p45, %p46
    %p48 = scmp.ne.s32.totalorder %s40, %s43
    %p49 = scmp.eq.s32.totalorder %s9, 0
    %p50 = por %p48, %p49
    %p51 = scmp.ne.s32.totalorder %s40, %s43
    %p52 = scmp.eq.s32.totalorder %s14, 2
    %p53 = por %p51, %p52
    %p54 = scmp.ne.s32.totalorder %s43, %s44
    %p55 = scmp.eq.s32.totalorder %s14, 0
    %p56 = por %p54, %p55
    %p57 = scmp.ne.s32.totalorder %s43, %s44
    %p58 = scmp.eq.s32.totalorder %s15, 2
    %p59 = por %p57, %p58
    %p61 = scmp.ne.s32.totalorder %s44, %s60
    %p62 = scmp.eq.s32.totalorder %s15, 0
    %p63 = por %p61, %p62
    %s64 = ssub.s32 %s16, %s35
    %s65 = ssub.s32 %s18, %s27
    %s66 = sor.u32 %s64, %s65
    %p67 = scmp.eq.s32.totalorder %s66, 0
    %s69 = sadd.s32 %s68, 1
    %s70 = scalar_select %p67, %s68, %s69
    %p73 = pneg %p67
    %p74 = scmp.eq.s32.totalorder %s9, 2
    %p75 = por %p73, %p74
    %p76 = scmp.ne.s32.totalorder %s68, %s71
    %p77 = scmp.eq.s32.totalorder %s9, 0
    %p78 = por %p76, %p77
    %p79 = scmp.ne.s32.totalorder %s68, %s71
    %p80 = scmp.eq.s32.totalorder %s14, 2
    %p81 = por %p79, %p80
    %p82 = scmp.ne.s32.totalorder %s71, %s72
    %p83 = scmp.eq.s32.totalorder %s14, 0
    %p84 = por %p82, %p83
    %p85 = scmp.ne.s32.totalorder %s71, %s72
    %p86 = scmp.eq.s32.totalorder %s15, 2
    %p87 = por %p85, %p86
    %p89 = scmp.ne.s32.totalorder %s72, %s88
    %p90 = scmp.eq.s32.totalorder %s15, 0
    %p91 = por %p89, %p90
    %s92 = ssub.s32 %s16, %s35
    %s93 = ssub.s32 %s18, %s27
    %s94 = sor.u32 %s92, %s93
    %p95 = scmp.eq.s32.totalorder %s94, 0
    %s97 = sadd.s32 %s96, 1
    %s98 = scalar_select %p95, %s96, %s97
    %p101 = pneg %p95
    %p102 = scmp.eq.s32.totalorder %s9, 2
    %p103 = por %p101, %p102
    %p104 = scmp.ne.s32.totalorder %s96, %s99
    %p105 = scmp.eq.s32.totalorder %s9, 0
    %p106 = por %p104, %p105
    %p107 = scmp.ne.s32.totalorder %s96, %s99
    %p108 = scmp.eq.s32.totalorder %s14, 2
    %p109 = por %p107, %p108
    %p110 = scmp.ne.s32.totalorder %s99, %s100
    %p111 = scmp.eq.s32.totalorder %s14, 0
    %p112 = por %p110, %p111
    %p113 = scmp.ne.s32.totalorder %s99, %s100
    %p114 = scmp.eq.s32.totalorder %s15, 2
    %p115 = por %p113, %p114
    %p117 = scmp.ne.s32.totalorder %s100, %s116
    %p118 = scmp.eq.s32.totalorder %s15, 0
    %p119 = por %p117, %p118
    %s120 = ssub.s32 %s16, %s35
    %s121 = ssub.s32 %s17, %s31
    %s122 = sor.u32 %s120, %s121
    %s123 = ssub.s32 %s18, %s27
    %s124 = sor.u32 %s122, %s123
    %p125 = scmp.eq.s32.totalorder %s124, 0
    %s127 = sadd.s32 %s126, 1
    %s128 = scalar_select %p125, %s126, %s127
    %p131 = pneg %p125
    %p132 = scmp.eq.s32.totalorder %s9, 2
    %p133 = por %p131, %p132
    %p134 = scmp.ne.s32.totalorder %s126, %s129
    %p135 = scmp.eq.s32.totalorder %s9, 0
    %p136 = por %p134, %p135
    %p137 = scmp.ne.s32.totalorder %s126, %s129
    %p138 = scmp.eq.s32.totalorder %s14, 2
    %p139 = por %p137, %p138
    %p140 = scmp.ne.s32.totalorder %s129, %s130
    %p141 = scmp.eq.s32.totalorder %s14, 0
    %p142 = por %p140, %p141
    %p143 = scmp.ne.s32.totalorder %s129, %s130
    %p144 = scmp.eq.s32.totalorder %s15, 2
    %p145 = por %p143, %p144
    %p147 = scmp.ne.s32.totalorder %s130, %s146
    %p148 = scmp.eq.s32.totalorder %s15, 0
    %p149 = por %p147, %p148
    %p150 = scmp.le.s32.totalorder 1, %s9
    %p151 = scmp.lt.s32.totalorder %s9, 4
    %p152 = pnand %p150, %p151
    %p153 = pneg %p152
    // Predicated region
    $region9: #{sagnn_forward.52} parent=5 // pred_check
      _
    $region10: #{sagnn_forward.52} parent=5 // pred_check_branch
      %155 = sbr.rel (%p152) target = $region12
    $region11: #{sagnn_forward.52} parent=5 // pred_region
      %s156 = ssub.s32 %s9, 1
    $region12: #{sagnn_forward.52} parent=5 // pred_fallthru
      _
    %p157 = scmp.lt.s32.totalorder %s9, 3
    // Predicated region
    $region13: #{sagnn_forward.52} parent=5 // pred_check
      %p158 = pneg %p157
    $region14: #{sagnn_forward.52} parent=5 // pred_check_branch
      %160 = sbr.rel (%p158) target = $region16
    $region15: #{sagnn_forward.52} parent=5 // pred_region
      // Predicated region
      $region17: #{sagnn_forward.52} parent=15 // pred_check
        %p161 = pneg %p50
      $region18: #{sagnn_forward.52} parent=15 // pred_check_branch
        %163 = sbr.rel (%p161) target = $region20
      $region19: #{sagnn_forward.52} parent=15 // pred_region
        %s164 = smul.u32 7, %s17
        %p165 = scmp.lt.s32.totalorder %s16, 2
        %s166 = scalar_select %p165, %s16, 2
        %p167 = scmp.lt.s32.totalorder %s164, 6
        %s168 = scalar_select %p167, %s164, 6
        %s169 = smul.addr %s168, 3
        %s170 = smul.addr %s166, 21
        %s171 = sadd.s32 %s169, %s170
        %s172 = smul.addr %s171, 4
        %s173 = scalar_lea.vmem %s0, %s172
        %s174 = smul.u32 7, %s17
      $region20: #{sagnn_forward.52} parent=15 // pred_fallthru
        _
      // Predicated region
      $region21: #{sagnn_forward.52} parent=15 // pred_check
        %p175 = pneg %p78
      $region22: #{sagnn_forward.52} parent=15 // pred_check_branch
        %177 = sbr.rel (%p175) target = $region24
      $region23: #{sagnn_forward.52} parent=15 // pred_region
        %p178 = scmp.lt.s32.totalorder %s16, 2
        %s179 = scalar_select %p178, %s16, 2
        %p180 = scmp.lt.s32.totalorder %s18, 0
        %s181 = scalar_select %p180, %s18, 0
        %s182 = smul.addr %s179, 48
        %s183 = sadd.s32 %s181, %s182
        %s184 = smul.addr %s183, 4
        %s185 = scalar_lea.vmem %s1, %s184
      $region24: #{sagnn_forward.52} parent=15 // pred_fallthru
        _
      // Predicated region
      $region25: #{sagnn_forward.52} parent=15 // pred_check
        %p186 = pneg %p106
      $region26: #{sagnn_forward.52} parent=15 // pred_check_branch
        %188 = sbr.rel (%p186) target = $region28
      $region27: #{sagnn_forward.52} parent=15 // pred_region
        %p189 = scmp.lt.s32.totalorder %s16, 2
        %s190 = scalar_select %p189, %s16, 2
        %p191 = scmp.lt.s32.totalorder %s18, 0
        %s192 = scalar_select %p191, %s18, 0
        %s193 = sadd.s32 %s192, %s190
        %s194 = scalar_lea.vmem %s2, %s193
      $region28: #{sagnn_forward.52} parent=15 // pred_fallthru
        _
    $region16: #{sagnn_forward.52} parent=5 // pred_fallthru
      _
    %p195 = scmp.le.s32.totalorder 1, %s9
    %p196 = scmp.lt.s32.totalorder %s9, 4
    %p197 = pnand %p195, %p196
    %p198 = pneg %p197
    // Predicated region
    $region29: #{sagnn_forward.52} parent=5 // pred_check
      _
    $region30: #{sagnn_forward.52} parent=5 // pred_check_branch
      %200 = sbr.rel (%p197) target = $region32
    $region31: #{sagnn_forward.52} parent=5 // pred_region
      %s201 = ssub.s32 %s9, 1
      %s202 = smul.u32 7, %s20
      %p203 = scmp.lt.s32.totalorder %s19, 2
      %s204 = scalar_select %p203, %s19, 2
      %p205 = scmp.lt.s32.totalorder %s202, 6
      %s206 = scalar_select %p205, %s202, 6
      %s207 = smul.addr %s206, 3
      %s208 = smul.addr %s204, 21
      %s209 = sadd.s32 %s207, %s208
      %s210 = smul.addr %s209, 4
      %s211 = scalar_lea.vmem %s0, %s210
      %p212 = pneg %p56
      %p213 = pneg %p53
      %p214 = scmp.lt.s32.totalorder %s19, 2
      %s215 = scalar_select %p214, %s19, 2
      %p216 = scmp.lt.s32.totalorder %s21, 0
      %s217 = scalar_select %p216, %s21, 0
      %s218 = smul.addr %s215, 48
      %s219 = sadd.s32 %s217, %s218
      %s220 = smul.addr %s219, 4
      %s221 = scalar_lea.vmem %s1, %s220
      %p222 = pneg %p84
      %p223 = pneg %p81
      %p224 = scmp.lt.s32.totalorder %s19, 2
      %s225 = scalar_select %p224, %s19, 2
      %p226 = scmp.lt.s32.totalorder %s21, 0
      %s227 = scalar_select %p226, %s21, 0
      %s228 = sadd.s32 %s227, %s225
      %s229 = scalar_lea.vmem %s2, %s228
      %p230 = pneg %p112
      %p231 = pneg %p109
      %p232 = pneg %p142
      %p233 = pneg %p139
      %s234 = smul.u32 7, %s20
      %p235 = scmp.lt.s32.totalorder %s19, 2
      %s236 = scalar_select %p235, %s19, 2
      %p237 = scmp.lt.s32.totalorder %s234, 6
      %s238 = scalar_select %p237, %s234, 6
      %p239 = scmp.lt.s32.totalorder %s21, 0
      %s240 = scalar_select %p239, %s21, 0
      %s241 = sadd.s32 %s240, %s238
      %s242 = smul.addr %s236, 7
      %s243 = sadd.s32 %s241, %s242
      %s244 = smul.addr %s243, 8
      %s245 = scalar_lea.vmem %s3, %s244
      %s246 = smul.u32 7, %s20
      %p247 = scmp.lt.s32.totalorder %s19, 2
      %s248 = scalar_select %p247, %s19, 2
      %p249 = scmp.lt.s32.totalorder %s246, 6
      %s250 = scalar_select %p249, %s246, 6
      %s251 = smul.addr %s250, 3
      %s252 = smul.addr %s248, 21
      %s253 = sadd.s32 %s251, %s252
      %s254 = smul.addr %s253, 4
      %s255 = scalar_lea.vmem %s0, %s254
      %s256 = smul.u32 7, %s20
      %p257 = scmp.lt.s32.totalorder %s19, 2
      %s258 = scalar_select %p257, %s19, 2
      %p259 = scmp.lt.s32.totalorder %s21, 0
      %s260 = scalar_select %p259, %s21, 0
      %s261 = smul.addr %s258, 48
      %s262 = sadd.s32 %s260, %s261
      %s263 = smul.addr %s262, 4
      %s264 = scalar_lea.vmem %s1, %s263
      %p265 = scmp.lt.s32.totalorder %s19, 2
      %s266 = scalar_select %p265, %s19, 2
      %p267 = scmp.lt.s32.totalorder %s21, 0
      %s268 = scalar_select %p267, %s21, 0
      %s269 = sadd.s32 %s268, %s266
      %s270 = scalar_lea.vmem %s2, %s269
      %s271 = smul.u32 7, %s20
      %p272 = scmp.lt.s32.totalorder %s19, 2
      %s273 = scalar_select %p272, %s19, 2
      %p274 = scmp.lt.s32.totalorder %s271, 6
      %s275 = scalar_select %p274, %s271, 6
      %p276 = scmp.lt.s32.totalorder %s21, 0
      %s277 = scalar_select %p276, %s21, 0
      %s278 = sadd.s32 %s277, %s275
      %s279 = smul.addr %s273, 7
      %s280 = sadd.s32 %s278, %s279
      %s281 = smul.addr %s280, 8
      %s282 = scalar_lea.vmem %s3, %s281
      %s283 = smul.u32 7, %s20
      %v285 = vld [vmem:[%s255] sm:$0xff]
      %v286 = vld [vmem:[%s255 + $0x8] sm:$0xf]
      %v287 = vld [vmem:[%s255 + $0xc] sm:$0xff]
      %v288 = vld [vmem:[%s255 + $0x14] sm:$0xf]
      %v289 = vld [vmem:[%s255 + $0x18] sm:$0xff]
      %v290 = vld [vmem:[%s255 + $0x20] sm:$0xf]
      %v291 = vld [vmem:[%s255 + $0x24] sm:$0xff]
      %v292 = vld [vmem:[%s255 + $0x2c] sm:$0xf]
      %v293 = vld [vmem:[%s255 + $0x30] sm:$0xff]
      %v294 = vld [vmem:[%s255 + $0x38] sm:$0xf]
      %v295 = vld [vmem:[%s255 + $0x3c] sm:$0xff]
      %v296 = vld [vmem:[%s255 + $0x44] sm:$0xf]
      %v297 = vld [vmem:[%s255 + $0x48] sm:$0xff]
      %v298 = vld [vmem:[%s255 + $0x50] sm:$0xf]
      %v299 = vld [vmem:[%s264] sm:$0xf]
      %v300 = vld [vmem:[%s264 + $0x4] sm:$0xf]
      %v301 = vld [vmem:[%s264 + $0x8] sm:$0xf]
      %v302 = vld [vmem:[%s264 + $0xc] sm:$0xf]
      %v303 = vld [vmem:[%s264 + $0x10] sm:$0xf]
      %v304 = vld [vmem:[%s264 + $0x14] sm:$0xf]
      %v305 = vld [vmem:[%s264 + $0x18] sm:$0xf]
      %v306 = vld [vmem:[%s264 + $0x1c] sm:$0xf]
      %v307 = vld [vmem:[%s264 + $0x20] sm:$0xf]
      %v308 = vld [vmem:[%s264 + $0x24] sm:$0xf]
      %v309 = vld [vmem:[%s264 + $0x28] sm:$0xf]
      %v310 = vld [vmem:[%s264 + $0x2c] sm:$0xf]
      %v311 = vld [vmem:[%s264 + $0x30] sm:$0xf]
      %v312 = vld [vmem:[%s264 + $0x34] sm:$0xf]
      %v313 = vld [vmem:[%s264 + $0x38] sm:$0xf]
      %v314 = vld [vmem:[%s264 + $0x3c] sm:$0xf]
      %v315 = vld [vmem:[%s264 + $0x40] sm:$0xf]
      %v316 = vld [vmem:[%s264 + $0x44] sm:$0xf]
      %v317 = vld [vmem:[%s264 + $0x48] sm:$0xf]
      %v318 = vld [vmem:[%s264 + $0x4c] sm:$0xf]
      %v319 = vld [vmem:[%s264 + $0x50] sm:$0xf]
      %v320 = vld [vmem:[%s264 + $0x54] sm:$0xf]
      %v321 = vld [vmem:[%s264 + $0x58] sm:$0xf]
      %v322 = vld [vmem:[%s264 + $0x5c] sm:$0xf]
      %v323 = vld [vmem:[%s264 + $0x60] sm:$0xf]
      %v324 = vld [vmem:[%s264 + $0x64] sm:$0xf]
      %v325 = vld [vmem:[%s264 + $0x68] sm:$0xf]
      %v326 = vld [vmem:[%s264 + $0x6c] sm:$0xf]
      %v327 = vld [vmem:[%s264 + $0x70] sm:$0xf]
      %v328 = vld [vmem:[%s264 + $0x74] sm:$0xf]
      %v329 = vld [vmem:[%s264 + $0x78] sm:$0xf]
      %v330 = vld [vmem:[%s264 + $0x7c] sm:$0xf]
      %v331 = vld [vmem:[%s264 + $0x80] sm:$0xf]
      %v332 = vld [vmem:[%s264 + $0x84] sm:$0xf]
      %v333 = vld [vmem:[%s264 + $0x88] sm:$0xf]
      %v334 = vld [vmem:[%s264 + $0x8c] sm:$0xf]
      %v335 = vld [vmem:[%s264 + $0x90] sm:$0xf]
      %v336 = vld [vmem:[%s264 + $0x94] sm:$0xf]
      %v337 = vld [vmem:[%s264 + $0x98] sm:$0xf]
      %v338 = vld [vmem:[%s264 + $0x9c] sm:$0xf]
      %v339 = vld [vmem:[%s264 + $0xa0] sm:$0xf]
      %v340 = vld [vmem:[%s264 + $0xa4] sm:$0xf]
      %v341 = vld [vmem:[%s264 + $0xa8] sm:$0xf]
      %v342 = vld [vmem:[%s264 + $0xac] sm:$0xf]
      %v343 = vld [vmem:[%s264 + $0xb0] sm:$0xf]
      %v344 = vld [vmem:[%s264 + $0xb4] sm:$0xf]
      %v345 = vld [vmem:[%s264 + $0xb8] sm:$0xf]
      %v346 = vld [vmem:[%s264 + $0xbc] sm:$0xf]
      %v347 = vld [vmem:[%s270] sm:$0x1]
      %v349 = vlaneseq
      %v350 = vshrl.u32 %v349, 7
      %v351 = vsub.s32 0, %v350
      %v352 = vrot.slane %v347, %v351
      %v368 = vunpack.c.l.b16 %v285
      %v369 = vunpack.c.h.b16 %v285
      %v370 = vunpack.c.l.b16 %v286
      %v371 = vunpack.c.l.b16 %v287
      %v372 = vunpack.c.h.b16 %v287
      %v373 = vunpack.c.l.b16 %v288
      %v374 = vunpack.c.l.b16 %v289
      %v375 = vunpack.c.h.b16 %v289
      %v376 = vunpack.c.l.b16 %v290
      %v377 = vunpack.c.l.b16 %v291
      %v378 = vunpack.c.h.b16 %v291
      %v379 = vunpack.c.l.b16 %v292
      %v380 = vunpack.c.l.b16 %v293
      %v381 = vunpack.c.h.b16 %v293
      %v382 = vunpack.c.l.b16 %v294
      %v383 = vunpack.c.l.b16 %v295
      %v384 = vunpack.c.h.b16 %v295
      %v385 = vunpack.c.l.b16 %v296
      %v386 = vunpack.c.l.b16 %v297
      %v387 = vunpack.c.h.b16 %v297
      %v388 = vunpack.c.l.b16 %v298
      %v389 = vpack.c.b16 %v371, %v368
      %v390 = vpack.c.b16 %v372, %v369
      %v391 = vpack.c.b16 %v373, %v370
      %v392 = vpack.c.b16 %v377, %v374
      %v393 = vpack.c.b16 %v378, %v375
      %v394 = vpack.c.b16 %v379, %v376
      %v395 = vpack.c.b16 %v383, %v380
      %v396 = vpack.c.b16 %v384, %v381
      %v397 = vpack.c.b16 %v385, %v382
      %v398 = vpack.c.b16 %v386, %v386
      %v399 = vpack.c.b16 %v387, %v387
      %v400 = vpack.c.b16 %v388, %v388
      %v461 = vunpack.c.l.b16 %v299
      %v462 = vunpack.c.l.b16 %v300
      %v463 = vunpack.c.l.b16 %v301
      %v464 = vunpack.c.l.b16 %v302
      %v465 = vunpack.c.l.b16 %v303
      %v466 = vunpack.c.l.b16 %v304
      %v467 = vunpack.c.l.b16 %v305
      %v468 = vunpack.c.l.b16 %v306
      %v469 = vunpack.c.l.b16 %v307
      %v470 = vunpack.c.l.b16 %v308
      %v471 = vunpack.c.l.b16 %v309
      %v472 = vunpack.c.l.b16 %v310
      %v473 = vunpack.c.l.b16 %v311
      %v474 = vunpack.c.l.b16 %v312
      %v475 = vunpack.c.l.b16 %v313
      %v476 = vunpack.c.l.b16 %v314
      %v477 = vunpack.c.l.b16 %v315
      %v478 = vunpack.c.l.b16 %v316
      %v479 = vunpack.c.l.b16 %v317
      %v480 = vunpack.c.l.b16 %v318
      %v481 = vunpack.c.l.b16 %v319
      %v482 = vunpack.c.l.b16 %v320
      %v483 = vunpack.c.l.b16 %v321
      %v484 = vunpack.c.l.b16 %v322
      %v485 = vunpack.c.l.b16 %v323
      %v486 = vunpack.c.l.b16 %v324
      %v487 = vunpack.c.l.b16 %v325
      %v488 = vunpack.c.l.b16 %v326
      %v489 = vunpack.c.l.b16 %v327
      %v490 = vunpack.c.l.b16 %v328
      %v491 = vunpack.c.l.b16 %v329
      %v492 = vunpack.c.l.b16 %v330
      %v493 = vunpack.c.l.b16 %v331
      %v494 = vunpack.c.l.b16 %v332
      %v495 = vunpack.c.l.b16 %v333
      %v496 = vunpack.c.l.b16 %v334
      %v497 = vunpack.c.l.b16 %v335
      %v498 = vunpack.c.l.b16 %v336
      %v499 = vunpack.c.l.b16 %v337
      %v500 = vunpack.c.l.b16 %v338
      %v501 = vunpack.c.l.b16 %v339
      %v502 = vunpack.c.l.b16 %v340
      %v503 = vunpack.c.l.b16 %v341
      %v504 = vunpack.c.l.b16 %v342
      %v505 = vunpack.c.l.b16 %v343
      %v506 = vunpack.c.l.b16 %v344
      %v507 = vunpack.c.l.b16 %v345
      %v508 = vunpack.c.l.b16 %v346
      %v509 = vpack.c.b16 %v462, %v461
      %v510 = vpack.c.b16 %v464, %v463
      %v511 = vpack.c.b16 %v466, %v465
      %v512 = vpack.c.b16 %v468, %v467
      %v513 = vpack.c.b16 %v470, %v469
      %v514 = vpack.c.b16 %v472, %v471
      %v515 = vpack.c.b16 %v474, %v473
      %v516 = vpack.c.b16 %v476, %v475
      %v517 = vpack.c.b16 %v478, %v477
      %v518 = vpack.c.b16 %v480, %v479
      %v519 = vpack.c.b16 %v482, %v481
      %v520 = vpack.c.b16 %v484, %v483
      %v521 = vpack.c.b16 %v486, %v485
      %v522 = vpack.c.b16 %v488, %v487
      %v523 = vpack.c.b16 %v490, %v489
      %v524 = vpack.c.b16 %v492, %v491
      %v525 = vpack.c.b16 %v494, %v493
      %v526 = vpack.c.b16 %v496, %v495
      %v527 = vpack.c.b16 %v498, %v497
      %v528 = vpack.c.b16 %v500, %v499
      %v529 = vpack.c.b16 %v502, %v501
      %v530 = vpack.c.b16 %v504, %v503
      %v531 = vpack.c.b16 %v506, %v505
      %v532 = vpack.c.b16 %v508, %v507
      %557 = vmatprep.subr.bf16.mxu0 0
      %558 = vmatpush1.bf16.msra.mxu0 %v509
      %559 = vmatprep.subr.bf16.mxu0 0
      %560 = vmatpush1.bf16.msra.mxu0 %v510
      %561 = vmatprep.subr.bf16.mxu0 0
      %562 = vmatpush1.bf16.msra.mxu0 %v511
      %563 = vmatprep.subr.bf16.mxu0 0
      %564 = vmatpush1.bf16.msra.mxu0 %v512
      %565 = vmatprep.subr.bf16.mxu0 0
      %566 = vmatpush1.bf16.msra.mxu0 %v513
      %567 = vmatprep.subr.bf16.mxu0 0
      %568 = vmatpush1.bf16.msra.mxu0 %v514
      %569 = vmatprep.subr.bf16.mxu0 0
      %570 = vmatpush1.bf16.msra.mxu0 %v515
      %571 = vmatprep.subr.bf16.mxu0 0
      %572 = vmatpush1.bf16.msra.mxu0 %v516
      %573 = vmatprep.subr.bf16.mxu0 0
      %574 = vmatpush1.bf16.msra.mxu0 %v517
      %575 = vmatprep.subr.bf16.mxu0 0
      %576 = vmatpush1.bf16.msra.mxu0 %v518
      %577 = vmatprep.subr.bf16.mxu0 0
      %578 = vmatpush1.bf16.msra.mxu0 %v519
      %579 = vmatprep.subr.bf16.mxu0 0
      %580 = vmatpush1.bf16.msra.mxu0 %v520
      %581 = vmatprep.subr.bf16.mxu0 0
      %582 = vmatpush1.bf16.msra.mxu0 %v521
      %583 = vmatprep.subr.bf16.mxu0 0
      %584 = vmatpush1.bf16.msra.mxu0 %v522
      %585 = vmatprep.subr.bf16.mxu0 0
      %586 = vmatpush1.bf16.msra.mxu0 %v523
      %587 = vmatprep.subr.bf16.mxu0 0
      %588 = vmatpush1.bf16.msra.mxu0 %v524
      %589 = vmatprep.mubr.bf16.mxu0 %v390
      %590 = vmatmul.mubr.bf16.gmra.mrb[0].mxu0 %v389
      %v591 = vpop.f32.mrb[0].mxu0
      %v592 = vadd.f32 %v352, %v591
      %v593 = vpop.f32.mrb[0].mxu0
      %v594 = vpop.f32.mrb[0].mxu0
      %v595 = vadd.f32 %v352, %v594
      %v596 = vpop.f32.mrb[0].mxu0
      %597 = vmatprep.mubr.bf16.mxu0 %v393
      %598 = vmatmul.mubr.bf16.gmra.mrb[0].mxu0 %v392
      %v599 = vpop.f32.mrb[0].mxu0
      %v600 = vadd.f32 %v352, %v599
      %v601 = vpop.f32.mrb[0].mxu0
      %v602 = vpop.f32.mrb[0].mxu0
      %v603 = vadd.f32 %v352, %v602
      %v604 = vpop.f32.mrb[0].mxu0
      %605 = vmatprep.mubr.bf16.mxu0 %v396
      %606 = vmatmul.mubr.bf16.gmra.mrb[0].mxu0 %v395
      %v607 = vpop.f32.mrb[0].mxu0
      %v608 = vadd.f32 %v352, %v607
      %v609 = vpop.f32.mrb[0].mxu0
      %v610 = vpop.f32.mrb[0].mxu0
      %v611 = vadd.f32 %v352, %v610
      %v612 = vpop.f32.mrb[0].mxu0
      %613 = vmatprep.mubr.bf16.mxu0 %v399
      %614 = vmatmul.mubr.bf16.gmra.mrb[0].mxu0 %v398
      %v615 = vpop.f32.mrb[0].mxu0
      %v616 = vadd.f32 %v352, %v615
      %v617 = vpop.f32.mrb[0].mxu0
      %v618 = vpop.f32.mrb[0].mxu0
      %v619 = vpop.f32.mrb[0].mxu0
      %620 = vdwg.mxu0
      %621 = vmatprep.subr.bf16.mxu0 0
      %622 = vmatpush1.bf16.msra.mxu0 %v525
      %623 = vmatprep.subr.bf16.mxu0 0
      %624 = vmatpush1.bf16.msra.mxu0 %v526
      %625 = vmatprep.subr.bf16.mxu0 0
      %626 = vmatpush1.bf16.msra.mxu0 %v527
      %627 = vmatprep.subr.bf16.mxu0 0
      %628 = vmatpush1.bf16.msra.mxu0 %v528
      %629 = vmatprep.subr.bf16.mxu0 0
      %630 = vmatpush1.bf16.msra.mxu0 %v529
      %631 = vmatprep.subr.bf16.mxu0 0
      %632 = vmatpush1.bf16.msra.mxu0 %v530
      %633 = vmatprep.subr.bf16.mxu0 0
      %634 = vmatpush1.bf16.msra.mxu0 %v531
      %635 = vmatprep.subr.bf16.mxu0 0
      %636 = vmatpush1.bf16.msra.mxu0 %v532
      %637 = vmatprep.subr.bf16.mxu0 0
      %638 = vmatpush1.bf16.msra.mxu0 0
      %639 = vmatprep.subr.bf16.mxu0 0
      %640 = vmatpush1.bf16.msra.mxu0 0
      %641 = vmatprep.subr.bf16.mxu0 0
      %642 = vmatpush1.bf16.msra.mxu0 0
      %643 = vmatprep.subr.bf16.mxu0 0
      %644 = vmatpush1.bf16.msra.mxu0 0
      %645 = vmatprep.subr.bf16.mxu0 0
      %646 = vmatpush1.bf16.msra.mxu0 0
      %647 = vmatprep.subr.bf16.mxu0 0
      %648 = vmatpush1.bf16.msra.mxu0 0
      %649 = vmatprep.subr.bf16.mxu0 0
      %650 = vmatpush1.bf16.msra.mxu0 0
      %651 = vmatprep.subr.bf16.mxu0 0
      %652 = vmatpush1.bf16.msra.mxu0 0
      %653 = vmatprep.mubr.bf16.mxu0 0
      %654 = vmatmul.mubr.bf16.gmra.mrb[0].mxu0 %v391
      %v655 = vpop.f32.mrb[0].mxu0
      %v656 = vadd.f32 %v592, %v655
      %v657 = vpop.f32.mrb[0].mxu0
      %v658 = vpop.f32.mrb[0].mxu0
      %v659 = vadd.f32 %v595, %v658
      %v660 = vpop.f32.mrb[0].mxu0
      %661 = vmatprep.mubr.bf16.mxu0 0
      %662 = vmatmul.mubr.bf16.gmra.mrb[0].mxu0 %v394
      %v663 = vpop.f32.mrb[0].mxu0
      %v664 = vadd.f32 %v600, %v663
      %v665 = vpop.f32.mrb[0].mxu0
      %v666 = vpop.f32.mrb[0].mxu0
      %v667 = vadd.f32 %v603, %v666
      %v668 = vpop.f32.mrb[0].mxu0
      %669 = vmatprep.mubr.bf16.mxu0 0
      %670 = vmatmul.mubr.bf16.gmra.mrb[0].mxu0 %v397
      %v671 = vpop.f32.mrb[0].mxu0
      %v672 = vadd.f32 %v608, %v671
      %v673 = vpop.f32.mrb[0].mxu0
      %v674 = vpop.f32.mrb[0].mxu0
      %v675 = vadd.f32 %v611, %v674
      %v676 = vpop.f32.mrb[0].mxu0
      %677 = vmatprep.mubr.bf16.mxu0 0
      %678 = vmatmul.mubr.bf16.gmra.mrb[0].mxu0 %v400
      %v679 = vpop.f32.mrb[0].mxu0
      %v680 = vadd.f32 %v616, %v679
      %v681 = vpop.f32.mrb[0].mxu0
      %v682 = vpop.f32.mrb[0].mxu0
      %v683 = vpop.f32.mrb[0].mxu0
      %684 = vdwg.mxu0
      %v685 = vmax.f32 %v656, 0.0
      %v686 = vmax.f32 %v659, 0.0
      %v687 = vmax.f32 %v664, 0.0
      %v688 = vmax.f32 %v667, 0.0
      %v689 = vmax.f32 %v672, 0.0
      %v690 = vmax.f32 %v675, 0.0
      %v691 = vmax.f32 %v680, 0.0
      %692 = vst [vmem:[%s282] sm:$0xff] %v685
      %693 = vst [vmem:[%s282 + $0x8] sm:$0xff] %v686
      %694 = vst [vmem:[%s282 + $0x10] sm:$0xff] %v687
      %695 = vst [vmem:[%s282 + $0x18] sm:$0xff] %v688
      %696 = vst [vmem:[%s282 + $0x20] sm:$0xff] %v689
      %697 = vst [vmem:[%s282 + $0x28] sm:$0xff] %v690
      %698 = vst [vmem:[%s282 + $0x30] sm:$0xff] %v691
      %s699 = smul.u32 7, %s20
      %p700 = scmp.lt.s32.totalorder %s19, 2
      %s701 = scalar_select %p700, %s19, 2
      %p702 = scmp.lt.s32.totalorder %s699, 6
      %s703 = scalar_select %p702, %s699, 6
      %p704 = scmp.lt.s32.totalorder %s21, 0
      %s705 = scalar_select %p704, %s21, 0
      %s706 = sadd.s32 %s705, %s703
      %s707 = smul.addr %s701, 7
      %s708 = sadd.s32 %s706, %s707
      %s709 = smul.addr %s708, 8
      %s710 = scalar_lea.vmem %s3, %s709
      // Predicated region
      $region33: #{sagnn_forward.52} parent=31 // pred_check
        %p711 = pneg %p139
      $region34: #{sagnn_forward.52} parent=31 // pred_check_branch
        %713 = sbr.rel (%p711) target = $region36
      $region35: #{sagnn_forward.52} parent=31 // pred_region
        %s714 = smul.u32 7, %s20
      $region36: #{sagnn_forward.52} parent=31 // pred_fallthru
        _
    $region32: #{sagnn_forward.52} parent=5 // pred_fallthru
      _
    %p715 = scmp.le.s32.totalorder 2, %s9
    // Predicated region
    $region37: #{sagnn_forward.52} parent=5 // pred_check
      %p716 = pneg %p715
    $region38: #{sagnn_forward.52} parent=5 // pred_check_branch
      %718 = sbr.rel (%p716) target = $region40
    $region39: #{sagnn_forward.52} parent=5 // pred_region
      %s719 = ssub.s32 %s9, 2
      // Predicated region
      $region41: #{sagnn_forward.52} parent=39 // pred_check
        %p720 = pneg %p145
      $region42: #{sagnn_forward.52} parent=39 // pred_check_branch
        %722 = sbr.rel (%p720) target = $region44
      $region43: #{sagnn_forward.52} parent=39 // pred_region
        %s723 = smul.u32 7, %s23
        %p724 = scmp.lt.s32.totalorder %s22, 2
        %s725 = scalar_select %p724, %s22, 2
        %p726 = scmp.lt.s32.totalorder %s723, 6
        %s727 = scalar_select %p726, %s723, 6
        %p728 = scmp.lt.s32.totalorder %s24, 0
        %s729 = scalar_select %p728, %s24, 0
        %s730 = sadd.s32 %s729, %s727
        %s731 = smul.addr %s725, 7
        %s732 = sadd.s32 %s730, %s731
        %s733 = smul.addr %s732, 8
        %s734 = scalar_lea.vmem %s3, %s733
      $region44: #{sagnn_forward.52} parent=39 // pred_fallthru
        _
    $region40: #{sagnn_forward.52} parent=5 // pred_fallthru
      _
  $region6: #{sagnn_forward.52} parent=0 // loop_footer
    %s13 = sadd.s32 1, %s9
  $region7: #{sagnn_forward.52} parent=0 // loop_footer_branch
    %8 = sbr.rel target = $region3
  $region8: #{sagnn_forward.52} parent=0 // loop_exit
    _

// kernel: sagnn_forward.55
$region0: #{sagnn_forward.55}
  #allocation0 [shape = 'u32[]', space=smem, size = 0x4, offset = 0x4, fixed_abs, tag = 'smem constant byte address 0x4 - core index']
  #allocation1 [shape = 'u32[144,128]{1,0:T(1,128)}', space=vmem, size = 0x12000, scoped, tag = 'internal scratch']
  %s0 = inlined_call_operand.vmem [shape: bf16[56,128], index: 0, kind: input, shape index: {}]
  %s1 = inlined_call_operand.vmem [shape: bf16[128,128], index: 1, kind: input, shape index: {}]
  %s2 = inlined_call_operand.vmem [shape: f32[1,128], index: 2, kind: input, shape index: {}]
  %s3 = inlined_call_operand.vmem [shape: f32[56,128], index: 3, kind: output, shape index: {}]
  %s4 = sld [smem:[#allocation0]]
  $region22: #{sagnn_forward.55} parent=0
    _
  %s6 = ssub.s32 1, %s4
  %s7 = scalar_select 0, %s6, %s4
  // Predicated region
  $region2: #{sagnn_forward.55} parent=0 // pred_check
    _
  $region3: #{sagnn_forward.55} parent=0 // pred_check_branch
    %9 = sbr.rel (0) target = $region5
  $region4: #{sagnn_forward.55} parent=0 // pred_region
    _
  $region5: #{sagnn_forward.55} parent=0 // pred_fallthru
    _
  // Predicated region
  $region6: #{sagnn_forward.55} parent=0 // pred_check
    _
  $region7: #{sagnn_forward.55} parent=0 // pred_check_branch
    %11 = sbr.rel (0) target = $region9
  $region8: #{sagnn_forward.55} parent=0 // pred_region
    _
  $region9: #{sagnn_forward.55} parent=0 // pred_fallthru
    _
  // Predicated region
  $region10: #{sagnn_forward.55} parent=0 // pred_check
    _
  $region11: #{sagnn_forward.55} parent=0 // pred_check_branch
    %13 = sbr.rel (0) target = $region13
  $region12: #{sagnn_forward.55} parent=0 // pred_region
    _
  $region13: #{sagnn_forward.55} parent=0 // pred_fallthru
    _
  %v15 = vld [vmem:[%s0] sm:$0xf]
  %v16 = vld [vmem:[%s0 + $0x4] sm:$0xf]
  %v17 = vld [vmem:[%s0 + $0x8] sm:$0xf]
  %v18 = vld [vmem:[%s0 + $0xc] sm:$0xf]
  %v19 = vld [vmem:[%s0 + $0x10] sm:$0xf]
  %v20 = vld [vmem:[%s0 + $0x14] sm:$0xf]
  %v21 = vld [vmem:[%s0 + $0x18] sm:$0xf]
  %v22 = vld [vmem:[%s1] sm:$0xf]
  %v23 = vld [vmem:[%s1 + $0x4] sm:$0xf]
  %v24 = vld [vmem:[%s1 + $0x8] sm:$0xf]
  %v25 = vld [vmem:[%s1 + $0xc] sm:$0xf]
  %v26 = vld [vmem:[%s1 + $0x10] sm:$0xf]
  %v27 = vld [vmem:[%s1 + $0x14] sm:$0xf]
  %v28 = vld [vmem:[%s1 + $0x18] sm:$0xf]
  %v29 = vld [vmem:[%s1 + $0x1c] sm:$0xf]
  %v30 = vld [vmem:[%s1 + $0x20] sm:$0xf]
  %v31 = vld [vmem:[%s1 + $0x24] sm:$0xf]
  %v32 = vld [vmem:[%s1 + $0x28] sm:$0xf]
  %v33 = vld [vmem:[%s1 + $0x2c] sm:$0xf]
  %v34 = vld [vmem:[%s1 + $0x30] sm:$0xf]
  %v35 = vld [vmem:[%s1 + $0x34] sm:$0xf]
  %v36 = vld [vmem:[%s1 + $0x38] sm:$0xf]
  %v37 = vld [vmem:[%s1 + $0x3c] sm:$0xf]
  %v38 = vld [vmem:[%s2] sm:$0x1]
  %v40 = vlaneseq
  %v41 = vshrl.u32 %v40, 7
  %v42 = vsub.s32 0, %v41
  %v43 = vrot.slane %v38, %v42
  %v52 = vunpack.c.l.b16 %v15
  %v53 = vunpack.c.l.b16 %v16
  %v54 = vunpack.c.l.b16 %v17
  %v55 = vunpack.c.l.b16 %v18
  %v56 = vunpack.c.l.b16 %v19
  %v57 = vunpack.c.l.b16 %v20
  %v58 = vunpack.c.l.b16 %v21
  %v59 = vpack.c.b16 %v53, %v52
  %v60 = vpack.c.b16 %v55, %v54
  %v61 = vpack.c.b16 %v57, %v56
  %v62 = vpack.c.b16 %v58, %v58
  %v83 = vunpack.c.l.b16 %v22
  %v84 = vunpack.c.l.b16 %v23
  %v85 = vunpack.c.l.b16 %v24
  %v86 = vunpack.c.l.b16 %v25
  %v87 = vunpack.c.l.b16 %v26
  %v88 = vunpack.c.l.b16 %v27
  %v89 = vunpack.c.l.b16 %v28
  %v90 = vunpack.c.l.b16 %v29
  %v91 = vunpack.c.l.b16 %v30
  %v92 = vunpack.c.l.b16 %v31
  %v93 = vunpack.c.l.b16 %v32
  %v94 = vunpack.c.l.b16 %v33
  %v95 = vunpack.c.l.b16 %v34
  %v96 = vunpack.c.l.b16 %v35
  %v97 = vunpack.c.l.b16 %v36
  %v98 = vunpack.c.l.b16 %v37
  %v99 = vpack.c.b16 %v84, %v83
  %v100 = vpack.c.b16 %v86, %v85
  %v101 = vpack.c.b16 %v88, %v87
  %v102 = vpack.c.b16 %v90, %v89
  %v103 = vpack.c.b16 %v92, %v91
  %v104 = vpack.c.b16 %v94, %v93
  %v105 = vpack.c.b16 %v96, %v95
  %v106 = vpack.c.b16 %v98, %v97
  %115 = vmatprep.subr.bf16.mxu0 0
  %116 = vmatpush1.bf16.msra.mxu0 %v99
  %117 = vmatprep.subr.bf16.mxu0 0
  %118 = vmatpush1.bf16.msra.mxu0 %v100
  %119 = vmatprep.subr.bf16.mxu0 0
  %120 = vmatpush1.bf16.msra.mxu0 %v101
  %121 = vmatprep.subr.bf16.mxu0 0
  %122 = vmatpush1.bf16.msra.mxu0 %v102
  %123 = vmatprep.subr.bf16.mxu0 0
  %124 = vmatpush1.bf16.msra.mxu0 %v103
  %125 = vmatprep.subr.bf16.mxu0 0
  %126 = vmatpush1.bf16.msra.mxu0 %v104
  %127 = vmatprep.subr.bf16.mxu0 0
  %128 = vmatpush1.bf16.msra.mxu0 %v105
  %129 = vmatprep.subr.bf16.mxu0 0
  %130 = vmatpush1.bf16.msra.mxu0 %v106
  %131 = vmatprep.subr.bf16.mxu0 0
  %132 = vmatpush1.bf16.msra.mxu0 0
  %133 = vmatprep.subr.bf16.mxu0 0
  %134 = vmatpush1.bf16.msra.mxu0 0
  %135 = vmatprep.subr.bf16.mxu0 0
  %136 = vmatpush1.bf16.msra.mxu0 0
  %137 = vmatprep.subr.bf16.mxu0 0
  %138 = vmatpush1.bf16.msra.mxu0 0
  %139 = vmatprep.subr.bf16.mxu0 0
  %140 = vmatpush1.bf16.msra.mxu0 0
  %141 = vmatprep.subr.bf16.mxu0 0
  %142 = vmatpush1.bf16.msra.mxu0 0
  %143 = vmatprep.subr.bf16.mxu0 0
  %144 = vmatpush1.bf16.msra.mxu0 0
  %145 = vmatprep.subr.bf16.mxu0 0
  %146 = vmatpush1.bf16.msra.mxu0 0
  %147 = vmatprep.mubr.bf16.mxu0 0
  %148 = vmatmul.mubr.bf16.gmra.mrb[0].mxu0 %v59
  %v149 = vpop.f32.mrb[0].mxu0
  %v150 = vadd.f32 %v43, %v149
  %v151 = vpop.f32.mrb[0].mxu0
  %v152 = vpop.f32.mrb[0].mxu0
  %v153 = vadd.f32 %v43, %v152
  %v154 = vpop.f32.mrb[0].mxu0
  %155 = vmatprep.mubr.bf16.mxu0 0
  %156 = vmatmul.mubr.bf16.gmra.mrb[0].mxu0 %v60
  %v157 = vpop.f32.mrb[0].mxu0
  %v158 = vadd.f32 %v43, %v157
  %v159 = vpop.f32.mrb[0].mxu0
  %v160 = vpop.f32.mrb[0].mxu0
  %v161 = vadd.f32 %v43, %v160
  %v162 = vpop.f32.mrb[0].mxu0
  %163 = vmatprep.mubr.bf16.mxu0 0
  %164 = vmatmul.mubr.bf16.gmra.mrb[0].mxu0 %v61
  %v165 = vpop.f32.mrb[0].mxu0
  %v166 = vadd.f32 %v43, %v165
  %v167 = vpop.f32.mrb[0].mxu0
  %v168 = vpop.f32.mrb[0].mxu0
  %v169 = vadd.f32 %v43, %v168
  %v170 = vpop.f32.mrb[0].mxu0
  %171 = vmatprep.mubr.bf16.mxu0 0
  %172 = vmatmul.mubr.bf16.gmra.mrb[0].mxu0 %v62
  %v173 = vpop.f32.mrb[0].mxu0
  %v174 = vadd.f32 %v43, %v173
  %v175 = vpop.f32.mrb[0].mxu0
  %v176 = vpop.f32.mrb[0].mxu0
  %v177 = vpop.f32.mrb[0].mxu0
  %178 = vdwg.mxu0
  %179 = vst [vmem:[%s3] sm:$0xff] %v150
  %180 = vst [vmem:[%s3 + $0x8] sm:$0xff] %v153
  %181 = vst [vmem:[%s3 + $0x10] sm:$0xff] %v158
  %182 = vst [vmem:[%s3 + $0x18] sm:$0xff] %v161
  %183 = vst [vmem:[%s3 + $0x20] sm:$0xff] %v166
  %184 = vst [vmem:[%s3 + $0x28] sm:$0xff] %v169
  %185 = vst [vmem:[%s3 + $0x30] sm:$0xff] %v174
  // Predicated region
  $region14: #{sagnn_forward.55} parent=0 // pred_check
    _
  $region15: #{sagnn_forward.55} parent=0 // pred_check_branch
    %187 = sbr.rel (0) target = $region17
  $region16: #{sagnn_forward.55} parent=0 // pred_region
    _
  $region17: #{sagnn_forward.55} parent=0 // pred_fallthru
    _
  // Predicated region
  $region18: #{sagnn_forward.55} parent=0 // pred_check
    _
  $region19: #{sagnn_forward.55} parent=0 // pred_check_branch
    %189 = sbr.rel (0) target = $region21
  $region20: #{sagnn_forward.55} parent=0 // pred_region
    _
  $region21: #{sagnn_forward.55} parent=0 // pred_fallthru
    _

// kernel: sagnn_forward.54
$region0: #{sagnn_forward.54}
  #allocation0 [shape = 'u32[]', space=smem, size = 0x4, offset = 0x4, fixed_abs, tag = 'smem constant byte address 0x4 - core index']
  #allocation1 [shape = 'u32[144,128]{1,0:T(1,128)}', space=vmem, size = 0x12000, scoped, tag = 'internal scratch']
  #allocation2 [shape = 'f32[56,128]{1,0:T(8,128)}', space=vmem, size = 0x7000, scoped, tag = 'scratch operand']
  %s0 = inlined_call_operand.vmem [shape: bf16[56,1536], index: 0, kind: input, shape index: {}]
  %s1 = inlined_call_operand.vmem [shape: bf16[1536,128], index: 1, kind: input, shape index: {}]
  %s2 = inlined_call_operand.vmem [shape: f32[1,128], index: 2, kind: input, shape index: {}]
  %s3 = inlined_call_operand.vmem [shape: f32[56,128], index: 3, kind: output, shape index: {}]
  %s4 = sld [smem:[#allocation0]]
  $region76: #{sagnn_forward.54} parent=0
    _
  %s6 = ssub.s32 1, %s4
  %s7 = scalar_select 0, %s6, %s4
  $region1: #{sagnn_forward.54} parent=0
    #allocation3 [shape = 'u8[114688]{0}', space=vmem, size = 0x1c000, scoped, tag = 'input window, operand 0']
    loop: start=0, step=1, limit=5
    $region2: #{sagnn_forward.54} parent=1 // loop_pre_header
      _
    $region3: #{sagnn_forward.54} parent=1 // loop_header
      %s9 = sphi 0, %s13
      %p10 = scmp.ge.s32.totalorder %s9, 5
      %s16 = sphi 0, %s35
      %s17 = sphi 0, %s31
      %s18 = sphi 0, %s27
      %s19 = sphi 0, %s16
      %s20 = sphi 0, %s17
      %s21 = sphi 0, %s18
      %s22 = sphi 0, %s19
      %s23 = sphi 0, %s20
      %s24 = sphi 0, %s21
      %s40 = sphi 0, %s42
      %s43 = sphi 0, %s40
      %s44 = sphi 0, %s43
      %s60 = sphi 0, %s44
      %s68 = sphi 0, %s70
      %s71 = sphi 0, %s68
      %s72 = sphi 0, %s71
      %s88 = sphi 0, %s72
      %s94 = sphi 0, %s96
      %s97 = sphi 0, %s94
      %s98 = sphi 0, %s97
      %s114 = sphi 0, %s98
      %s122 = sphi 0, %s124
      %s125 = sphi 0, %s122
      %s126 = sphi 0, %s125
      %s142 = sphi 0, %s126
    $region4: #{sagnn_forward.54} parent=1 // loop_header_branch
      %12 = sbr.rel (%p10) target = $region8
    $region5: #{sagnn_forward.54} parent=1 // loop_body
      %s14 = ssub.s32 %s9, 1
      %s15 = ssub.s32 %s9, 2
      %s25 = sadd.s32 1, %s18
      %p26 = scmp.ge.s32.totalorder %s25, 3
      %s27 = scalar_select %p26, 0, %s25
      %s28 = sadd.s32 1, %s17
      %s29 = scalar_select %p26, %s28, %s17
      %p30 = scmp.ge.s32.totalorder %s29, 1
      %s31 = scalar_select %p30, 0, %s29
      %s32 = sadd.s32 1, %s16
      %s33 = scalar_select %p30, %s32, %s16
      %p34 = scmp.ge.s32.totalorder %s33, 1
      %s35 = scalar_select %p34, 0, %s33
      %s36 = ssub.s32 %s16, %s35
      %s37 = ssub.s32 %s18, %s27
      %s38 = sor.u32 %s36, %s37
      %p39 = scmp.eq.s32.totalorder %s38, 0
      %s41 = sadd.s32 %s40, 1
      %s42 = scalar_select %p39, %s40, %s41
      %p45 = pneg %p39
      %p46 = scmp.eq.s32.totalorder %s9, 2
      %p47 = por %p45, %p46
      %p48 = scmp.ne.s32.totalorder %s40, %s43
      %p49 = scmp.eq.s32.totalorder %s9, 0
      %p50 = por %p48, %p49
      %p51 = scmp.ne.s32.totalorder %s40, %s43
      %p52 = scmp.eq.s32.totalorder %s14, 2
      %p53 = por %p51, %p52
      %p54 = scmp.ne.s32.totalorder %s43, %s44
      %p55 = scmp.eq.s32.totalorder %s14, 0
      %p56 = por %p54, %p55
      %p57 = scmp.ne.s32.totalorder %s43, %s44
      %p58 = scmp.eq.s32.totalorder %s15, 2
      %p59 = por %p57, %p58
      %p61 = scmp.ne.s32.totalorder %s44, %s60
      %p62 = scmp.eq.s32.totalorder %s15, 0
      %p63 = por %p61, %p62
      %s64 = ssub.s32 %s18, %s27
      %s65 = ssub.s32 %s17, %s31
      %s66 = sor.u32 %s64, %s65
      %p67 = scmp.eq.s32.totalorder %s66, 0
      %s69 = sadd.s32 %s68, 1
      %s70 = scalar_select %p67, %s68, %s69
      %p73 = pneg %p67
      %p74 = scmp.eq.s32.totalorder %s9, 2
      %p75 = por %p73, %p74
      %p76 = scmp.ne.s32.totalorder %s68, %s71
      %p77 = scmp.eq.s32.totalorder %s9, 0
      %p78 = por %p76, %p77
      %p79 = scmp.ne.s32.totalorder %s68, %s71
      %p80 = scmp.eq.s32.totalorder %s14, 2
      %p81 = por %p79, %p80
      %p82 = scmp.ne.s32.totalorder %s71, %s72
      %p83 = scmp.eq.s32.totalorder %s14, 0
      %p84 = por %p82, %p83
      %p85 = scmp.ne.s32.totalorder %s71, %s72
      %p86 = scmp.eq.s32.totalorder %s15, 2
      %p87 = por %p85, %p86
      %p89 = scmp.ne.s32.totalorder %s72, %s88
      %p90 = scmp.eq.s32.totalorder %s15, 0
      %p91 = por %p89, %p90
      %s92 = ssub.s32 %s17, %s31
      %p93 = scmp.eq.s32.totalorder %s92, 0
      %s95 = sadd.s32 %s94, 1
      %s96 = scalar_select %p93, %s94, %s95
      %p99 = pneg %p93
      %p100 = scmp.eq.s32.totalorder %s9, 2
      %p101 = por %p99, %p100
      %p102 = scmp.ne.s32.totalorder %s94, %s97
      %p103 = scmp.eq.s32.totalorder %s9, 0
      %p104 = por %p102, %p103
      %p105 = scmp.ne.s32.totalorder %s94, %s97
      %p106 = scmp.eq.s32.totalorder %s14, 2
      %p107 = por %p105, %p106
      %p108 = scmp.ne.s32.totalorder %s97, %s98
      %p109 = scmp.eq.s32.totalorder %s14, 0
      %p110 = por %p108, %p109
      %p111 = scmp.ne.s32.totalorder %s97, %s98
      %p112 = scmp.eq.s32.totalorder %s15, 2
      %p113 = por %p111, %p112
      %p115 = scmp.ne.s32.totalorder %s98, %s114
      %p116 = scmp.eq.s32.totalorder %s15, 0
      %p117 = por %p115, %p116
      %s118 = ssub.s32 %s16, %s35
      %s119 = ssub.s32 %s17, %s31
      %s120 = sor.u32 %s118, %s119
      %p121 = scmp.eq.s32.totalorder %s120, 0
      %s123 = sadd.s32 %s122, 1
      %s124 = scalar_select %p121, %s122, %s123
      %p127 = pneg %p121
      %p128 = scmp.eq.s32.totalorder %s9, 2
      %p129 = por %p127, %p128
      %p130 = scmp.ne.s32.totalorder %s122, %s125
      %p131 = scmp.eq.s32.totalorder %s9, 0
      %p132 = por %p130, %p131
      %p133 = scmp.ne.s32.totalorder %s122, %s125
      %p134 = scmp.eq.s32.totalorder %s14, 2
      %p135 = por %p133, %p134
      %p136 = scmp.ne.s32.totalorder %s125, %s126
      %p137 = scmp.eq.s32.totalorder %s14, 0
      %p138 = por %p136, %p137
      %p139 = scmp.ne.s32.totalorder %s125, %s126
      %p140 = scmp.eq.s32.totalorder %s15, 2
      %p141 = por %p139, %p140
      %p143 = scmp.ne.s32.totalorder %s126, %s142
      %p144 = scmp.eq.s32.totalorder %s15, 0
      %p145 = por %p143, %p144
      %p146 = scmp.le.s32.totalorder 1, %s9
      %p147 = scmp.lt.s32.totalorder %s9, 4
      %p148 = pnand %p146, %p147
      %p149 = pneg %p148
      // Predicated region
      $region9: #{sagnn_forward.54} parent=5 // pred_check
        _
      $region10: #{sagnn_forward.54} parent=5 // pred_check_branch
        %151 = sbr.rel (%p148) target = $region12
      $region11: #{sagnn_forward.54} parent=5 // pred_region
        %s152 = ssub.s32 %s9, 1
        // Predicated region
        $region13: #{sagnn_forward.54} parent=11 // pred_check
          %p153 = pneg %p110
        $region14: #{sagnn_forward.54} parent=11 // pred_check_branch
          %155 = sbr.rel (%p153) target = $region16
        $region15: #{sagnn_forward.54} parent=11 // pred_region
          %p156 = scmp.lt.s32.totalorder %s20, 0
          %s157 = scalar_select %p156, %s20, 0
          %s158 = scalar_lea.vmem %s2, %s157
        $region16: #{sagnn_forward.54} parent=11 // pred_fallthru
          _
      $region12: #{sagnn_forward.54} parent=5 // pred_fallthru
        _
      %p159 = scmp.lt.s32.totalorder %s9, 3
      // Predicated region
      $region17: #{sagnn_forward.54} parent=5 // pred_check
        %p160 = pneg %p159
      $region18: #{sagnn_forward.54} parent=5 // pred_check_branch
        %162 = sbr.rel (%p160) target = $region20
      $region19: #{sagnn_forward.54} parent=5 // pred_region
        // Predicated region
        $region21: #{sagnn_forward.54} parent=19 // pred_check
          %p163 = pneg %p50
        $region22: #{sagnn_forward.54} parent=19 // pred_check_branch
          %165 = sbr.rel (%p163) target = $region24
        $region23: #{sagnn_forward.54} parent=19 // pred_region
          %s166 = sand.u32 %s40, 1
          %s167 = sand.u32 %s40, 1
          %s168 = smul.addr %s167, 112
          %s169 = scalar_lea.vmem [#allocation3], %s168
          %s170 = smul.u32 7, %s16
          %s171 = smul.u32 4, %s18
          %s172 = smul.addr %s170, 12
          %s173 = sadd.s32 %s171, %s172
          %s174 = smul.addr %s173, 4
          %s175 = scalar_lea.vmem %s0, %s174
          // Predicated region
          $region25: #{sagnn_forward.54} parent=23 // pred_check
            _
          $region26: #{sagnn_forward.54} parent=23 // pred_check_branch
            %177 = sbr.rel (0) target = $region28
          $region27: #{sagnn_forward.54} parent=23 // pred_region
            // Predicated region
            $region29: #{sagnn_forward.54} parent=27 // pred_check
              _
            $region30: #{sagnn_forward.54} parent=27 // pred_check_branch
              %179 = sbr.rel (0) target = $region32
            $region31: #{sagnn_forward.54} parent=27 // pred_region
              loop: start=0, step=1, limit=1
              $region33: #{sagnn_forward.54} parent=31 // loop_pre_header
                _
              $region34: #{sagnn_forward.54} parent=31 // loop_header
                %s181 = sphi 0, %s185
                %p182 = scmp.ge.s32.totalorder %s181, 1
                %s186 = sphi %s175, %s175
                %s187 = sphi %s169, %s169
              $region35: #{sagnn_forward.54} parent=31 // loop_header_branch
                %184 = sbr.rel (%p182) target = $region39
              $region36: #{sagnn_forward.54} parent=31 // loop_body
                %v188 = vld [vmem:[%s186] sm:$0xff]
                %189 = vst [vmem:[%s187] sm:$0xff] %v188
                %v190 = vld [vmem:[%s186 + $0x8] sm:$0xff]
                %191 = vst [vmem:[%s187 + $0x8] sm:$0xff] %v190
                %v192 = vld [vmem:[%s186 + $0x30] sm:$0xff]
                %193 = vst [vmem:[%s187 + $0x10] sm:$0xff] %v192
                %v194 = vld [vmem:[%s186 + $0x38] sm:$0xff]
                %195 = vst [vmem:[%s187 + $0x18] sm:$0xff] %v194
                %v196 = vld [vmem:[%s186 + $0x60] sm:$0xff]
                %197 = vst [vmem:[%s187 + $0x20] sm:$0xff] %v196
                %v198 = vld [vmem:[%s186 + $0x68] sm:$0xff]
                %199 = vst [vmem:[%s187 + $0x28] sm:$0xff] %v198
                %v200 = vld [vmem:[%s186 + $0x90] sm:$0xff]
                %201 = vst [vmem:[%s187 + $0x30] sm:$0xff] %v200
                %v202 = vld [vmem:[%s186 + $0x98] sm:$0xff]
                %203 = vst [vmem:[%s187 + $0x38] sm:$0xff] %v202
                %v204 = vld [vmem:[%s186 + $0xc0] sm:$0xff]
                %205 = vst [vmem:[%s187 + $0x40] sm:$0xff] %v204
                %v206 = vld [vmem:[%s186 + $0xc8] sm:$0xff]
                %207 = vst [vmem:[%s187 + $0x48] sm:$0xff] %v206
                %v208 = vld [vmem:[%s186 + $0xf0] sm:$0xff]
                %209 = vst [vmem:[%s187 + $0x50] sm:$0xff] %v208
                %v210 = vld [vmem:[%s186 + $0xf8] sm:$0xff]
                %211 = vst [vmem:[%s187 + $0x58] sm:$0xff] %v210
                %v212 = vld [vmem:[%s186 + $0x120] sm:$0xff]
                %213 = vst [vmem:[%s187 + $0x60] sm:$0xff] %v212
                %v214 = vld [vmem:[%s186 + $0x128] sm:$0xff]
                %215 = vst [vmem:[%s187 + $0x68] sm:$0xff] %v214
              $region37: #{sagnn_forward.54} parent=31 // loop_footer
                %s185 = sadd.s32 1, %s181
              $region38: #{sagnn_forward.54} parent=31 // loop_footer_branch
                %180 = sbr.rel target = $region34
              $region39: #{sagnn_forward.54} parent=31 // loop_exit
                _
            $region32: #{sagnn_forward.54} parent=27 // pred_fallthru
              _
            // Predicated region
            $region40: #{sagnn_forward.54} parent=27 // pred_check
              _
            $region41: #{sagnn_forward.54} parent=27 // pred_check_branch
              %217 = sbr.rel target = $region43
            $region42: #{sagnn_forward.54} parent=27 // pred_region
              _
            $region43: #{sagnn_forward.54} parent=27 // pred_fallthru
              _
          $region28: #{sagnn_forward.54} parent=23 // pred_fallthru
            _
          %218 = vnop
        $region24: #{sagnn_forward.54} parent=19 // pred_fallthru
          _
        // Predicated region
        $region44: #{sagnn_forward.54} parent=19 // pred_check
          %p219 = pneg %p78
        $region45: #{sagnn_forward.54} parent=19 // pred_check_branch
          %221 = sbr.rel (%p219) target = $region47
        $region46: #{sagnn_forward.54} parent=19 // pred_region
          %s222 = smul.u32 64, %s18
          %p223 = scmp.lt.s32.totalorder %s222, 191
          %s224 = scalar_select %p223, %s222, 191
          %p225 = scmp.lt.s32.totalorder %s17, 0
          %s226 = scalar_select %p225, %s17, 0
          %s227 = sadd.s32 %s226, %s224
          %s228 = smul.addr %s227, 4
          %s229 = scalar_lea.vmem %s1, %s228
          %s230 = smul.u32 64, %s18
        $region47: #{sagnn_forward.54} parent=19 // pred_fallthru
          _
      $region20: #{sagnn_forward.54} parent=5 // pred_fallthru
        _
      %p231 = scmp.le.s32.totalorder 1, %s9
      %p232 = scmp.lt.s32.totalorder %s9, 4
      %p233 = pnand %p231, %p232
      %p234 = pneg %p233
      // Predicated region
      $region48: #{sagnn_forward.54} parent=5 // pred_check
        _
      $region49: #{sagnn_forward.54} parent=5 // pred_check_branch
        %236 = sbr.rel (%p233) target = $region51
      $region50: #{sagnn_forward.54} parent=5 // pred_region
        %s237 = ssub.s32 %s9, 1
        %s238 = sand.u32 %s43, 1
        %s239 = sand.u32 %s43, 1
        %s240 = smul.addr %s239, 112
        %s241 = scalar_lea.vmem [#allocation3], %s240
        // Predicated region
        $region52: #{sagnn_forward.54} parent=50 // pred_check
          %p242 = pneg %p56
        $region53: #{sagnn_forward.54} parent=50 // pred_check_branch
          %244 = sbr.rel (%p242) target = $region55
        $region54: #{sagnn_forward.54} parent=50 // pred_region
          _
        $region55: #{sagnn_forward.54} parent=50 // pred_fallthru
          _
        %s245 = sand.u32 %s43, 1
        %s246 = sand.u32 %s43, 1
        %s247 = smul.addr %s246, 112
        %s248 = scalar_lea.vmem [#allocation3], %s247
        %p249 = pneg %p56
        %p250 = pneg %p53
        %s251 = smul.u32 64, %s21
        %p252 = scmp.lt.s32.totalorder %s251, 191
        %s253 = scalar_select %p252, %s251, 191
        %p254 = scmp.lt.s32.totalorder %s20, 0
        %s255 = scalar_select %p254, %s20, 0
        %s256 = sadd.s32 %s255, %s253
        %s257 = smul.addr %s256, 4
        %s258 = scalar_lea.vmem %s1, %s257
        %p259 = pneg %p84
        %p260 = pneg %p81
        %p261 = scmp.lt.s32.totalorder %s20, 0
        %s262 = scalar_select %p261, %s20, 0
        %s263 = scalar_lea.vmem %s2, %s262
        %p264 = pneg %p110
        %p265 = pneg %p107
        %p266 = pneg %p138
        %p267 = pneg %p135
        %s268 = smul.u32 7, %s19
        %p269 = scmp.lt.s32.totalorder %s268, 6
        %s270 = scalar_select %p269, %s268, 6
        %p271 = scmp.lt.s32.totalorder %s20, 0
        %s272 = scalar_select %p271, %s20, 0
        %s273 = sadd.s32 %s272, %s270
        %s274 = smul.addr %s273, 8
        %s275 = scalar_lea.vmem %s3, %s274
        %s276 = smul.u32 7, %s19
        %s277 = smul.u32 4, %s21
        %s278 = smul.u32 64, %s21
        %p279 = scmp.lt.s32.totalorder %s278, 191
        %s280 = scalar_select %p279, %s278, 191
        %p281 = scmp.lt.s32.totalorder %s20, 0
        %s282 = scalar_select %p281, %s20, 0
        %s283 = sadd.s32 %s282, %s280
        %s284 = smul.addr %s283, 4
        %s285 = scalar_lea.vmem %s1, %s284
        %s286 = smul.u32 64, %s21
        %p287 = scmp.lt.s32.totalorder %s20, 0
        %s288 = scalar_select %p287, %s20, 0
        %s289 = scalar_lea.vmem %s2, %s288
        %s290 = smul.u32 7, %s19
        %p291 = scmp.lt.s32.totalorder %s290, 6
        %s292 = scalar_select %p291, %s290, 6
        %p293 = scmp.lt.s32.totalorder %s20, 0
        %s294 = scalar_select %p293, %s20, 0
        %s295 = sadd.s32 %s294, %s292
        %s296 = smul.addr %s295, 8
        %s297 = scalar_lea.vmem %s3, %s296
        %s298 = smul.u32 7, %s19
        %p300 = scmp.eq.s32.totalorder %s21, 0
        // Predicated region
        $region56: #{sagnn_forward.54} parent=50 // pred_check
          %p301 = pneg %p300
        $region57: #{sagnn_forward.54} parent=50 // pred_check_branch
          %303 = sbr.rel (%p301) target = $region59
        $region58: #{sagnn_forward.54} parent=50 // pred_region
          %304 = vst [vmem:[#allocation2] sm:$0xff] 0.0
          %305 = vst [vmem:[#allocation2 + $0x8] sm:$0xff] 0.0
          %306 = vst [vmem:[#allocation2 + $0x10] sm:$0xff] 0.0
          %307 = vst [vmem:[#allocation2 + $0x18] sm:$0xff] 0.0
          %308 = vst [vmem:[#allocation2 + $0x20] sm:$0xff] 0.0
          %309 = vst [vmem:[#allocation2 + $0x28] sm:$0xff] 0.0
          %310 = vst [vmem:[#allocation2 + $0x30] sm:$0xff] 0.0
        $region59: #{sagnn_forward.54} parent=50 // pred_fallthru
          _
        %v311 = vld [vmem:[#allocation2] sm:$0xff]
        %v312 = vld [vmem:[#allocation2 + $0x8] sm:$0xff]
        %v313 = vld [vmem:[#allocation2 + $0x10] sm:$0xff]
        %v314 = vld [vmem:[#allocation2 + $0x18] sm:$0xff]
        %v315 = vld [vmem:[#allocation2 + $0x20] sm:$0xff]
        %v316 = vld [vmem:[#allocation2 + $0x28] sm:$0xff]
        %v317 = vld [vmem:[#allocation2 + $0x30] sm:$0xff]
        %v318 = vld [vmem:[%s241] sm:$0xff]
        %v319 = vld [vmem:[%s241 + $0x8] sm:$0xff]
        %v320 = vld [vmem:[%s241 + $0x10] sm:$0xff]
        %v321 = vld [vmem:[%s241 + $0x18] sm:$0xff]
        %v322 = vld [vmem:[%s241 + $0x20] sm:$0xff]
        %v323 = vld [vmem:[%s241 + $0x28] sm:$0xff]
        %v324 = vld [vmem:[%s241 + $0x30] sm:$0xff]
        %v325 = vld [vmem:[%s241 + $0x38] sm:$0xff]
        %v326 = vld [vmem:[%s241 + $0x40] sm:$0xff]
        %v327 = vld [vmem:[%s241 + $0x48] sm:$0xff]
        %v328 = vld [vmem:[%s241 + $0x50] sm:$0xff]
        %v329 = vld [vmem:[%s241 + $0x58] sm:$0xff]
        %v330 = vld [vmem:[%s241 + $0x60] sm:$0xff]
        %v331 = vld [vmem:[%s241 + $0x68] sm:$0xff]
        %v332 = vld [vmem:[%s285] sm:$0xf]
        %v333 = vld [vmem:[%s285 + $0x4] sm:$0xf]
        %v334 = vld [vmem:[%s285 + $0x8] sm:$0xf]
        %v335 = vld [vmem:[%s285 + $0xc] sm:$0xf]
        %v336 = vld [vmem:[%s285 + $0x10] sm:$0xf]
        %v337 = vld [vmem:[%s285 + $0x14] sm:$0xf]
        %v338 = vld [vmem:[%s285 + $0x18] sm:$0xf]
        %v339 = vld [vmem:[%s285 + $0x1c] sm:$0xf]
        %v340 = vld [vmem:[%s285 + $0x20] sm:$0xf]
        %v341 = vld [vmem:[%s285 + $0x24] sm:$0xf]
        %v342 = vld [vmem:[%s285 + $0x28] sm:$0xf]
        %v343 = vld [vmem:[%s285 + $0x2c] sm:$0xf]
        %v344 = vld [vmem:[%s285 + $0x30] sm:$0xf]
        %v345 = vld [vmem:[%s285 + $0x34] sm:$0xf]
        %v346 = vld [vmem:[%s285 + $0x38] sm:$0xf]
        %v347 = vld [vmem:[%s285 + $0x3c] sm:$0xf]
        %v348 = vld [vmem:[%s285 + $0x40] sm:$0xf]
        %v349 = vld [vmem:[%s285 + $0x44] sm:$0xf]
        %v350 = vld [vmem:[%s285 + $0x48] sm:$0xf]
        %v351 = vld [vmem:[%s285 + $0x4c] sm:$0xf]
        %v352 = vld [vmem:[%s285 + $0x50] sm:$0xf]
        %v353 = vld [vmem:[%s285 + $0x54] sm:$0xf]
        %v354 = vld [vmem:[%s285 + $0x58] sm:$0xf]
        %v355 = vld [vmem:[%s285 + $0x5c] sm:$0xf]
        %v356 = vld [vmem:[%s285 + $0x60] sm:$0xf]
        %v357 = vld [vmem:[%s285 + $0x64] sm:$0xf]
        %v358 = vld [vmem:[%s285 + $0x68] sm:$0xf]
        %v359 = vld [vmem:[%s285 + $0x6c] sm:$0xf]
        %v360 = vld [vmem:[%s285 + $0x70] sm:$0xf]
        %v361 = vld [vmem:[%s285 + $0x74] sm:$0xf]
        %v362 = vld [vmem:[%s285 + $0x78] sm:$0xf]
        %v363 = vld [vmem:[%s285 + $0x7c] sm:$0xf]
        %v364 = vld [vmem:[%s285 + $0x80] sm:$0xf]
        %v365 = vld [vmem:[%s285 + $0x84] sm:$0xf]
        %v366 = vld [vmem:[%s285 + $0x88] sm:$0xf]
        %v367 = vld [vmem:[%s285 + $0x8c] sm:$0xf]
        %v368 = vld [vmem:[%s285 + $0x90] sm:$0xf]
        %v369 = vld [vmem:[%s285 + $0x94] sm:$0xf]
        %v370 = vld [vmem:[%s285 + $0x98] sm:$0xf]
        %v371 = vld [vmem:[%s285 + $0x9c] sm:$0xf]
        %v372 = vld [vmem:[%s285 + $0xa0] sm:$0xf]
        %v373 = vld [vmem:[%s285 + $0xa4] sm:$0xf]
        %v374 = vld [vmem:[%s285 + $0xa8] sm:$0xf]
        %v375 = vld [vmem:[%s285 + $0xac] sm:$0xf]
        %v376 = vld [vmem:[%s285 + $0xb0] sm:$0xf]
        %v377 = vld [vmem:[%s285 + $0xb4] sm:$0xf]
        %v378 = vld [vmem:[%s285 + $0xb8] sm:$0xf]
        %v379 = vld [vmem:[%s285 + $0xbc] sm:$0xf]
        %v380 = vld [vmem:[%s285 + $0xc0] sm:$0xf]
        %v381 = vld [vmem:[%s285 + $0xc4] sm:$0xf]
        %v382 = vld [vmem:[%s285 + $0xc8] sm:$0xf]
        %v383 = vld [vmem:[%s285 + $0xcc] sm:$0xf]
        %v384 = vld [vmem:[%s285 + $0xd0] sm:$0xf]
        %v385 = vld [vmem:[%s285 + $0xd4] sm:$0xf]
        %v386 = vld [vmem:[%s285 + $0xd8] sm:$0xf]
        %v387 = vld [vmem:[%s285 + $0xdc] sm:$0xf]
        %v388 = vld [vmem:[%s285 + $0xe0] sm:$0xf]
        %v389 = vld [vmem:[%s285 + $0xe4] sm:$0xf]
        %v390 = vld [vmem:[%s285 + $0xe8] sm:$0xf]
        %v391 = vld [vmem:[%s285 + $0xec] sm:$0xf]
        %v392 = vld [vmem:[%s285 + $0xf0] sm:$0xf]
        %v393 = vld [vmem:[%s285 + $0xf4] sm:$0xf]
        %v394 = vld [vmem:[%s285 + $0xf8] sm:$0xf]
        %v395 = vld [vmem:[%s285 + $0xfc] sm:$0xf]
        %v410 = vunpack.c.l.b16 %v318
        %v411 = vunpack.c.h.b16 %v318
        %v412 = vunpack.c.l.b16 %v319
        %v413 = vunpack.c.h.b16 %v319
        %v414 = vunpack.c.l.b16 %v320
        %v415 = vunpack.c.h.b16 %v320
        %v416 = vunpack.c.l.b16 %v321
        %v417 = vunpack.c.h.b16 %v321
        %v418 = vunpack.c.l.b16 %v322
        %v419 = vunpack.c.h.b16 %v322
        %v420 = vunpack.c.l.b16 %v323
        %v421 = vunpack.c.h.b16 %v323
        %v422 = vunpack.c.l.b16 %v324
        %v423 = vunpack.c.h.b16 %v324
        %v424 = vunpack.c.l.b16 %v325
        %v425 = vunpack.c.h.b16 %v325
        %v426 = vunpack.c.l.b16 %v326
        %v427 = vunpack.c.h.b16 %v326
        %v428 = vunpack.c.l.b16 %v327
        %v429 = vunpack.c.h.b16 %v327
        %v430 = vunpack.c.l.b16 %v328
        %v431 = vunpack.c.h.b16 %v328
        %v432 = vunpack.c.l.b16 %v329
        %v433 = vunpack.c.h.b16 %v329
        %v434 = vunpack.c.l.b16 %v330
        %v435 = vunpack.c.h.b16 %v330
        %v436 = vunpack.c.l.b16 %v331
        %v437 = vunpack.c.h.b16 %v331
        %v438 = vpack.c.b16 %v414, %v410
        %v439 = vpack.c.b16 %v415, %v411
        %v440 = vpack.c.b16 %v416, %v412
        %v441 = vpack.c.b16 %v417, %v413
        %v442 = vpack.c.b16 %v422, %v418
        %v443 = vpack.c.b16 %v423, %v419
        %v444 = vpack.c.b16 %v424, %v420
        %v445 = vpack.c.b16 %v425, %v421
        %v446 = vpack.c.b16 %v430, %v426
        %v447 = vpack.c.b16 %v431, %v427
        %v448 = vpack.c.b16 %v432, %v428
        %v449 = vpack.c.b16 %v433, %v429
        %v450 = vpack.c.b16 %v434, %v434
        %v451 = vpack.c.b16 %v435, %v435
        %v452 = vpack.c.b16 %v436, %v436
        %v453 = vpack.c.b16 %v437, %v437
        %v534 = vunpack.c.l.b16 %v332
        %v535 = vunpack.c.l.b16 %v333
        %v536 = vunpack.c.l.b16 %v334
        %v537 = vunpack.c.l.b16 %v335
        %v538 = vunpack.c.l.b16 %v336
        %v539 = vunpack.c.l.b16 %v337
        %v540 = vunpack.c.l.b16 %v338
        %v541 = vunpack.c.l.b16 %v339
        %v542 = vunpack.c.l.b16 %v340
        %v543 = vunpack.c.l.b16 %v341
        %v544 = vunpack.c.l.b16 %v342
        %v545 = vunpack.c.l.b16 %v343
        %v546 = vunpack.c.l.b16 %v344
        %v547 = vunpack.c.l.b16 %v345
        %v548 = vunpack.c.l.b16 %v346
        %v549 = vunpack.c.l.b16 %v347
        %v550 = vunpack.c.l.b16 %v348
        %v551 = vunpack.c.l.b16 %v349
        %v552 = vunpack.c.l.b16 %v350
        %v553 = vunpack.c.l.b16 %v351
        %v554 = vunpack.c.l.b16 %v352
        %v555 = vunpack.c.l.b16 %v353
        %v556 = vunpack.c.l.b16 %v354
        %v557 = vunpack.c.l.b16 %v355
        %v558 = vunpack.c.l.b16 %v356
        %v559 = vunpack.c.l.b16 %v357
        %v560 = vunpack.c.l.b16 %v358
        %v561 = vunpack.c.l.b16 %v359
        %v562 = vunpack.c.l.b16 %v360
        %v563 = vunpack.c.l.b16 %v361
        %v564 = vunpack.c.l.b16 %v362
        %v565 = vunpack.c.l.b16 %v363
        %v566 = vunpack.c.l.b16 %v364
        %v567 = vunpack.c.l.b16 %v365
        %v568 = vunpack.c.l.b16 %v366
        %v569 = vunpack.c.l.b16 %v367
        %v570 = vunpack.c.l.b16 %v368
        %v571 = vunpack.c.l.b16 %v369
        %v572 = vunpack.c.l.b16 %v370
        %v573 = vunpack.c.l.b16 %v371
        %v574 = vunpack.c.l.b16 %v372
        %v575 = vunpack.c.l.b16 %v373
        %v576 = vunpack.c.l.b16 %v374
        %v577 = vunpack.c.l.b16 %v375
        %v578 = vunpack.c.l.b16 %v376
        %v579 = vunpack.c.l.b16 %v377
        %v580 = vunpack.c.l.b16 %v378
        %v581 = vunpack.c.l.b16 %v379
        %v582 = vunpack.c.l.b16 %v380
        %v583 = vunpack.c.l.b16 %v381
        %v584 = vunpack.c.l.b16 %v382
        %v585 = vunpack.c.l.b16 %v383
        %v586 = vunpack.c.l.b16 %v384
        %v587 = vunpack.c.l.b16 %v385
        %v588 = vunpack.c.l.b16 %v386
        %v589 = vunpack.c.l.b16 %v387
        %v590 = vunpack.c.l.b16 %v388
        %v591 = vunpack.c.l.b16 %v389
        %v592 = vunpack.c.l.b16 %v390
        %v593 = vunpack.c.l.b16 %v391
        %v594 = vunpack.c.l.b16 %v392
        %v595 = vunpack.c.l.b16 %v393
        %v596 = vunpack.c.l.b16 %v394
        %v597 = vunpack.c.l.b16 %v395
        %v598 = vpack.c.b16 %v535, %v534
        %v599 = vpack.c.b16 %v537, %v536
        %v600 = vpack.c.b16 %v539, %v538
        %v601 = vpack.c.b16 %v541, %v540
        %v602 = vpack.c.b16 %v543, %v542
        %v603 = vpack.c.b16 %v545, %v544
        %v604 = vpack.c.b16 %v547, %v546
        %v605 = vpack.c.b16 %v549, %v548
        %v606 = vpack.c.b16 %v551, %v550
        %v607 = vpack.c.b16 %v553, %v552
        %v608 = vpack.c.b16 %v555, %v554
        %v609 = vpack.c.b16 %v557, %v556
        %v610 = vpack.c.b16 %v559, %v558
        %v611 = vpack.c.b16 %v561, %v560
        %v612 = vpack.c.b16 %v563, %v562
        %v613 = vpack.c.b16 %v565, %v564
        %v614 = vpack.c.b16 %v567, %v566
        %v615 = vpack.c.b16 %v569, %v568
        %v616 = vpack.c.b16 %v571, %v570
        %v617 = vpack.c.b16 %v573, %v572
        %v618 = vpack.c.b16 %v575, %v574
        %v619 = vpack.c.b16 %v577, %v576
        %v620 = vpack.c.b16 %v579, %v578
        %v621 = vpack.c.b16 %v581, %v580
        %v622 = vpack.c.b16 %v583, %v582
        %v623 = vpack.c.b16 %v585, %v584
        %v624 = vpack.c.b16 %v587, %v586
        %v625 = vpack.c.b16 %v589, %v588
        %v626 = vpack.c.b16 %v591, %v590
        %v627 = vpack.c.b16 %v593, %v592
        %v628 = vpack.c.b16 %v595, %v594
        %v629 = vpack.c.b16 %v597, %v596
        %662 = vmatprep.subr.bf16.mxu0 0
        %663 = vmatpush1.bf16.msra.mxu0 %v598
        %664 = vmatprep.subr.bf16.mxu0 0
        %665 = vmatpush1.bf16.msra.mxu0 %v599
        %666 = vmatprep.subr.bf16.mxu0 0
        %667 = vmatpush1.bf16.msra.mxu0 %v600
        %668 = vmatprep.subr.bf16.mxu0 0
        %669 = vmatpush1.bf16.msra.mxu0 %v601
        %670 = vmatprep.subr.bf16.mxu0 0
        %671 = vmatpush1.bf16.msra.mxu0 %v602
        %672 = vmatprep.subr.bf16.mxu0 0
        %673 = vmatpush1.bf16.msra.mxu0 %v603
        %674 = vmatprep.subr.bf16.mxu0 0
        %675 = vmatpush1.bf16.msra.mxu0 %v604
        %676 = vmatprep.subr.bf16.mxu0 0
        %677 = vmatpush1.bf16.msra.mxu0 %v605
        %678 = vmatprep.subr.bf16.mxu0 0
        %679 = vmatpush1.bf16.msra.mxu0 %v606
        %680 = vmatprep.subr.bf16.mxu0 0
        %681 = vmatpush1.bf16.msra.mxu0 %v607
        %682 = vmatprep.subr.bf16.mxu0 0
        %683 = vmatpush1.bf16.msra.mxu0 %v608
        %684 = vmatprep.subr.bf16.mxu0 0
        %685 = vmatpush1.bf16.msra.mxu0 %v609
        %686 = vmatprep.subr.bf16.mxu0 0
        %687 = vmatpush1.bf16.msra.mxu0 %v610
        %688 = vmatprep.subr.bf16.mxu0 0
        %689 = vmatpush1.bf16.msra.mxu0 %v611
        %690 = vmatprep.subr.bf16.mxu0 0
        %691 = vmatpush1.bf16.msra.mxu0 %v612
        %692 = vmatprep.subr.bf16.mxu0 0
        %693 = vmatpush1.bf16.msra.mxu0 %v613
        %694 = vmatprep.mubr.bf16.mxu0 %v439
        %695 = vmatmul.mubr.bf16.gmra.mrb[0].mxu0 %v438
        %v696 = vpop.f32.mrb[0].mxu0
        %v697 = vadd.f32 0.0, %v696
        %v698 = vpop.f32.mrb[0].mxu0
        %v699 = vpop.f32.mrb[0].mxu0
        %v700 = vadd.f32 0.0, %v699
        %v701 = vpop.f32.mrb[0].mxu0
        %702 = vmatprep.mubr.bf16.mxu0 %v443
        %703 = vmatmul.mubr.bf16.gmra.mrb[0].mxu0 %v442
        %v704 = vpop.f32.mrb[0].mxu0
        %v705 = vadd.f32 0.0, %v704
        %v706 = vpop.f32.mrb[0].mxu0
        %v707 = vpop.f32.mrb[0].mxu0
        %v708 = vadd.f32 0.0, %v707
        %v709 = vpop.f32.mrb[0].mxu0
        %710 = vmatprep.mubr.bf16.mxu0 %v447
        %711 = vmatmul.mubr.bf16.gmra.mrb[0].mxu0 %v446
        %v712 = vpop.f32.mrb[0].mxu0
        %v713 = vadd.f32 0.0, %v712
        %v714 = vpop.f32.mrb[0].mxu0
        %v715 = vpop.f32.mrb[0].mxu0
        %v716 = vadd.f32 0.0, %v715
        %v717 = vpop.f32.mrb[0].mxu0
        %718 = vmatprep.mubr.bf16.mxu0 %v451
        %719 = vmatmul.mubr.bf16.gmra.mrb[0].mxu0 %v450
        %v720 = vpop.f32.mrb[0].mxu0
        %v721 = vadd.f32 0.0, %v720
        %v722 = vpop.f32.mrb[0].mxu0
        %v723 = vpop.f32.mrb[0].mxu0
        %v724 = vpop.f32.mrb[0].mxu0
        %725 = vdwg.mxu0
        %726 = vmatprep.subr.bf16.mxu0 0
        %727 = vmatpush1.bf16.msra.mxu0 %v614
        %728 = vmatprep.subr.bf16.mxu0 0
        %729 = vmatpush1.bf16.msra.mxu0 %v615
        %730 = vmatprep.subr.bf16.mxu0 0
        %731 = vmatpush1.bf16.msra.mxu0 %v616
        %732 = vmatprep.subr.bf16.mxu0 0
        %733 = vmatpush1.bf16.msra.mxu0 %v617
        %734 = vmatprep.subr.bf16.mxu0 0
        %735 = vmatpush1.bf16.msra.mxu0 %v618
        %736 = vmatprep.subr.bf16.mxu0 0
        %737 = vmatpush1.bf16.msra.mxu0 %v619
        %738 = vmatprep.subr.bf16.mxu0 0
        %739 = vmatpush1.bf16.msra.mxu0 %v620
        %740 = vmatprep.subr.bf16.mxu0 0
        %741 = vmatpush1.bf16.msra.mxu0 %v621
        %742 = vmatprep.subr.bf16.mxu0 0
        %743 = vmatpush1.bf16.msra.mxu0 %v622
        %744 = vmatprep.subr.bf16.mxu0 0
        %745 = vmatpush1.bf16.msra.mxu0 %v623
        %746 = vmatprep.subr.bf16.mxu0 0
        %747 = vmatpush1.bf16.msra.mxu0 %v624
        %748 = vmatprep.subr.bf16.mxu0 0
        %749 = vmatpush1.bf16.msra.mxu0 %v625
        %750 = vmatprep.subr.bf16.mxu0 0
        %751 = vmatpush1.bf16.msra.mxu0 %v626
        %752 = vmatprep.subr.bf16.mxu0 0
        %753 = vmatpush1.bf16.msra.mxu0 %v627
        %754 = vmatprep.subr.bf16.mxu0 0
        %755 = vmatpush1.bf16.msra.mxu0 %v628
        %756 = vmatprep.subr.bf16.mxu0 0
        %757 = vmatpush1.bf16.msra.mxu0 %v629
        %758 = vmatprep.mubr.bf16.mxu0 %v441
        %759 = vmatmul.mubr.bf16.gmra.mrb[0].mxu0 %v440
        %v760 = vpop.f32.mrb[0].mxu0
        %v761 = vadd.f32 %v697, %v760
        %v762 = vpop.f32.mrb[0].mxu0
        %v763 = vpop.f32.mrb[0].mxu0
        %v764 = vadd.f32 %v700, %v763
        %v765 = vpop.f32.mrb[0].mxu0
        %766 = vmatprep.mubr.bf16.mxu0 %v445
        %767 = vmatmul.mubr.bf16.gmra.mrb[0].mxu0 %v444
        %v768 = vpop.f32.mrb[0].mxu0
        %v769 = vadd.f32 %v705, %v768
        %v770 = vpop.f32.mrb[0].mxu0
        %v771 = vpop.f32.mrb[0].mxu0
        %v772 = vadd.f32 %v708, %v771
        %v773 = vpop.f32.mrb[0].mxu0
        %774 = vmatprep.mubr.bf16.mxu0 %v449
        %775 = vmatmul.mubr.bf16.gmra.mrb[0].mxu0 %v448
        %v776 = vpop.f32.mrb[0].mxu0
        %v777 = vadd.f32 %v713, %v776
        %v778 = vpop.f32.mrb[0].mxu0
        %v779 = vpop.f32.mrb[0].mxu0
        %v780 = vadd.f32 %v716, %v779
        %v781 = vpop.f32.mrb[0].mxu0
        %782 = vmatprep.mubr.bf16.mxu0 %v453
        %783 = vmatmul.mubr.bf16.gmra.mrb[0].mxu0 %v452
        %v784 = vpop.f32.mrb[0].mxu0
        %v785 = vadd.f32 %v721, %v784
        %v786 = vpop.f32.mrb[0].mxu0
        %v787 = vpop.f32.mrb[0].mxu0
        %v788 = vpop.f32.mrb[0].mxu0
        %789 = vdwg.mxu0
        %v790 = vadd.f32 %v311, %v761
        %v791 = vadd.f32 %v312, %v764
        %v792 = vadd.f32 %v313, %v769
        %v793 = vadd.f32 %v314, %v772
        %v794 = vadd.f32 %v315, %v777
        %v795 = vadd.f32 %v316, %v780
        %v796 = vadd.f32 %v317, %v785
        %797 = vst [vmem:[#allocation2] sm:$0xff] %v790
        %798 = vst [vmem:[#allocation2 + $0x8] sm:$0xff] %v791
        %799 = vst [vmem:[#allocation2 + $0x10] sm:$0xff] %v792
        %800 = vst [vmem:[#allocation2 + $0x18] sm:$0xff] %v793
        %801 = vst [vmem:[#allocation2 + $0x20] sm:$0xff] %v794
        %802 = vst [vmem:[#allocation2 + $0x28] sm:$0xff] %v795
        %803 = vst [vmem:[#allocation2 + $0x30] sm:$0xff] %v796
        %p804 = scmp.eq.s32.totalorder %s21, 2
        // Predicated region
        $region60: #{sagnn_forward.54} parent=50 // pred_check
          %p805 = pneg %p804
        $region61: #{sagnn_forward.54} parent=50 // pred_check_branch
          %807 = sbr.rel (%p805) target = $region63
        $region62: #{sagnn_forward.54} parent=50 // pred_region
          %v808 = vld [vmem:[#allocation2] sm:$0xff]
          %v809 = vld [vmem:[#allocation2 + $0x8] sm:$0xff]
          %v810 = vld [vmem:[#allocation2 + $0x10] sm:$0xff]
          %v811 = vld [vmem:[#allocation2 + $0x18] sm:$0xff]
          %v812 = vld [vmem:[#allocation2 + $0x20] sm:$0xff]
          %v813 = vld [vmem:[#allocation2 + $0x28] sm:$0xff]
          %v814 = vld [vmem:[#allocation2 + $0x30] sm:$0xff]
          %v815 = vld [vmem:[%s289] sm:$0x1]
          %v817 = vlaneseq
          %v818 = vshrl.u32 %v817, 7
          %v819 = vsub.s32 0, %v818
          %v820 = vrot.slane %v815, %v819
          %v822 = vadd.f32 %v808, %v820
          %v823 = vadd.f32 %v809, %v820
          %v824 = vadd.f32 %v810, %v820
          %v825 = vadd.f32 %v811, %v820
          %v826 = vadd.f32 %v812, %v820
          %v827 = vadd.f32 %v813, %v820
          %v828 = vadd.f32 %v814, %v820
          %v829 = vmax.f32 %v822, 0.0
          %v830 = vmax.f32 %v823, 0.0
          %v831 = vmax.f32 %v824, 0.0
          %v832 = vmax.f32 %v825, 0.0
          %v833 = vmax.f32 %v826, 0.0
          %v834 = vmax.f32 %v827, 0.0
          %v835 = vmax.f32 %v828, 0.0
          %836 = vst [vmem:[%s297] sm:$0xff] %v829
          %837 = vst [vmem:[%s297 + $0x8] sm:$0xff] %v830
          %838 = vst [vmem:[%s297 + $0x10] sm:$0xff] %v831
          %839 = vst [vmem:[%s297 + $0x18] sm:$0xff] %v832
          %840 = vst [vmem:[%s297 + $0x20] sm:$0xff] %v833
          %841 = vst [vmem:[%s297 + $0x28] sm:$0xff] %v834
          %842 = vst [vmem:[%s297 + $0x30] sm:$0xff] %v835
        $region63: #{sagnn_forward.54} parent=50 // pred_fallthru
          _
        %s843 = smul.u32 7, %s19
        %p844 = scmp.lt.s32.totalorder %s843, 6
        %s845 = scalar_select %p844, %s843, 6
        %p846 = scmp.lt.s32.totalorder %s20, 0
        %s847 = scalar_select %p846, %s20, 0
        %s848 = sadd.s32 %s847, %s845
        %s849 = smul.addr %s848, 8
        %s850 = scalar_lea.vmem %s3, %s849
        // Predicated region
        $region64: #{sagnn_forward.54} parent=50 // pred_check
          %p851 = pneg %p135
        $region65: #{sagnn_forward.54} parent=50 // pred_check_branch
          %853 = sbr.rel (%p851) target = $region67
        $region66: #{sagnn_forward.54} parent=50 // pred_region
          %s854 = smul.u32 7, %s19
        $region67: #{sagnn_forward.54} parent=50 // pred_fallthru
          _
        // Predicated region
        $region68: #{sagnn_forward.54} parent=50 // pred_check
          %p855 = pneg %p135
        $region69: #{sagnn_forward.54} parent=50 // pred_check_branch
          %857 = sbr.rel (%p855) target = $region71
        $region70: #{sagnn_forward.54} parent=50 // pred_region
          %s858 = smul.u32 7, %s19
          %p859 = scmp.lt.s32.totalorder %s858, 6
          %s860 = scalar_select %p859, %s858, 6
          %p861 = scmp.lt.s32.totalorder %s20, 0
          %s862 = scalar_select %p861, %s20, 0
          %s863 = sadd.s32 %s862, %s860
          %s864 = smul.addr %s863, 8
          %s865 = scalar_lea.vmem %s3, %s864
        $region71: #{sagnn_forward.54} parent=50 // pred_fallthru
          _
      $region51: #{sagnn_forward.54} parent=5 // pred_fallthru
        _
      %p866 = scmp.le.s32.totalorder 2, %s9
      // Predicated region
      $region72: #{sagnn_forward.54} parent=5 // pred_check
        %p867 = pneg %p866
      $region73: #{sagnn_forward.54} parent=5 // pred_check_branch
        %869 = sbr.rel (%p867) target = $region75
      $region74: #{sagnn_forward.54} parent=5 // pred_region
        %s870 = ssub.s32 %s9, 2
      $region75: #{sagnn_forward.54} parent=5 // pred_fallthru
        _
    $region6: #{sagnn_forward.54} parent=1 // loop_footer
      %s13 = sadd.s32 1, %s9
    $region7: #{sagnn_forward.54} parent=1 // loop_footer_branch
      %8 = sbr.rel target = $region3
    $region8: #{sagnn_forward.54} parent=1 // loop_exit
      _

</llo_original>
